<compile_context>
chip_gen: v6e
topology: v6e:2x2x1
jax: 0.10.0
libtpu: 0.0.40
codegen_flags: <defaults>
</compile_context>

<pallas_src>
import jax
import jax.numpy as jnp
from jax.experimental import pallas as pl
from jax.experimental.pallas import tpu as pltpu


# A @ B.T (contract last dim of both operands, no batch dims).
NT_DIMS = (((1,), (1,)), ((), ()))

# Conscious choice (flagged by the perf review): softmax denominators use the EUP
# approximate reciprocal, so attention rows sum to 1 +/- ~1e-4.  Set to False for
# exact parity with the PyTorch softmax.
APPROX_SOFTMAX_RECIP = True

HEADS1 = 8          # GATConv layer-1 heads (matches the reference module)
NEG_SLOPE = 0.2     # GATConv LeakyReLU negative slope (PyG default)


def _round_up(x, m):
    return ((x + m - 1) // m) * m


# ------------------------------ the fused kernel ------------------------------

def _build_kernel(F, VH, Z, E, H, T, Nt, B, bsz, N, F1, F2P):
    """Single fused kernel: VAE + 2-layer GRU + 2x GATConv.  All sizes are static."""

    def kernel(uf_ref, eps_ref, emb_ref, h0_ref, mask_ref, vec_ref,
               vaew_ref, gruw_ref, w1_ref, att1_ref, w2_ref,
               o_ref, kl_ref, rec_ref,
               xin_scr, hab_scr, vbig_scr):
        f32 = jnp.float32

        def dot(a, b):
            return jnp.dot(a, b, preferred_element_type=f32)

        def dot_nt(a, b):
            return jax.lax.dot_general(a, b, NT_DIMS, preferred_element_type=f32)

        def attn_softmax(e, neg_mask):
            # LeakyReLU on raw scores, additive -1e9 mask on non-edges, row softmax.
            # Invariant: every row has >=1 valid entry (self-loops added by the caller).
            e = jnp.where(e > 0.0, e, NEG_SLOPE * e)
            e = e + neg_mask
            e = e - jnp.max(e, axis=-1, keepdims=True)
            p = jnp.exp(e)
            s = jnp.sum(p, axis=-1, keepdims=True)
            return p * pl.reciprocal(s, approx=APPROX_SOFTMAX_RECIP)

        # =================== VAE user embedding ===================
        # TODO(synk): the VAE submodule is not defined in the reference file; a standard
        # Gaussian VAE (enc -> relu -> [mu|logvar], reparameterize, linear decoder,
        # KL + MSE reconstruction loss) is assumed.
        xu = uf_ref[...]                                                  # [B, F]
        henc = jax.nn.relu(dot(xu, vaew_ref[0:F, 0:VH]) + vec_ref[0:1, 0:VH])
        # mu and logvar projections fused into one matmul ([VH, 2Z] weight slab).
        mulv = dot(henc, vaew_ref[F:F + VH, 0:2 * Z]) + vec_ref[1:2, 0:2 * Z]
        mu = mulv[:, 0:Z]
        logvar = mulv[:, Z:2 * Z]
        z = mu + eps_ref[...] * jnp.exp(0.5 * logvar)                     # [B, Z]
        recon = dot(z, vaew_ref[F + VH:F + VH + Z, 0:F]) + vec_ref[2:3, 0:F]
        kl_in = jnp.sum(1.0 + logvar - mu * mu - jnp.exp(logvar),
                        axis=1, keepdims=True)
        kl_ref[...] = -0.5 * jnp.mean(kl_in, axis=0, keepdims=True)
        sq = (recon - xu) ** 2
        rec_ref[...] = jnp.mean(jnp.mean(sq, axis=1, keepdims=True), axis=0,
                                keepdims=True)

        # =================== 2-layer GRU (time loop fully unrolled) ===================
        # Layer-0 input projection for ALL timesteps in one lane-dense matmul.
        # NOTE: weights are [input, 3H] with (r, z, n) column blocks; porting real
        # PyTorch weights ([3H, input]) requires a transpose with gate order preserved.
        xp0 = dot(emb_ref[...], gruw_ref[0:E, 0:3 * H]) + vec_ref[3:4, 0:3 * H]
        b_hh = vec_ref[4:5, 0:6 * H]                 # [b_hh0 | b_hh1]
        b_ih1 = vec_ref[5:6, 0:3 * H]

        def gru_gate(xg, g, hprev):
            r = jax.nn.sigmoid(xg[:, 0:H] + g[:, 0:H])
            zz = jax.nn.sigmoid(xg[:, H:2 * H] + g[:, H:2 * H])
            n = jnp.tanh(xg[:, 2 * H:3 * H] + r * g[:, 2 * H:3 * H])      # b_hn in r*()
            return (1.0 - zz) * n + zz * hprev

        # Packed state [hA | hB] lives in a 3 KiB VMEM scratch (lowering-safe splice);
        # ONE block-diagonal [Nt,2H]@[2H,6H] hidden matmul per step covers both layers.
        hab_scr[...] = h0_ref[...]
        for t in range(T):   # static unroll: full LLO visibility, no per-step grid cost
            hab = hab_scr[...]                                            # [Nt, 2H]
            g_all = dot(hab, gruw_ref[E:E + 2 * H, 0:6 * H]) + b_hh       # [Nt, 6H]
            hA = gru_gate(xp0[t * Nt:(t + 1) * Nt, :], g_all[:, 0:3 * H],
                          hab[:, 0:H])
            x1 = dot(hA, gruw_ref[E + 2 * H:E + 3 * H, 0:3 * H]) + b_ih1
            hB = gru_gate(x1, g_all[:, 3 * H:6 * H], hab[:, H:2 * H])
            hab_scr[:, 0:H] = hA
            hab_scr[:, H:2 * H] = hB

        # splice x_input = [hn[:bsz], user_embedding, hn[bsz:]] entirely on-chip
        # (no HBM round trip between "kernel 1" and "kernel 2" any more).
        hn = hab_scr[:, H:2 * H]                                          # [Nt, H]
        xin_scr[0:bsz, :] = hn[0:bsz, :]
        xin_scr[bsz:bsz + B, :] = z
        xin_scr[bsz + B:N, :] = hn[bsz:Nt, :]

        # =================== GAT layer 1: all 8 heads, ONE softmax ===================
        xh1 = dot(xin_scr[...], w1_ref[...])                              # [N, 8*F1]
        # head-major stack: vbig[h*N + j, :] = xh1[j, h*F1:(h+1)*F1]
        for h in range(HEADS1):
            vbig_scr[h * N:(h + 1) * N, :] = xh1[:, h * F1:(h + 1) * F1]
        v_big = vbig_scr[...]                                             # [8N, F1]

        a_dst_big = att1_ref[:, 0:F1]
        a_src_big = att1_ref[:, F1:2 * F1]
        ones_col = jnp.ones((F1, 1), f32)
        ones_row = jnp.ones((1, F1), f32)
        sd_col = dot(v_big * a_dst_big, ones_col)                         # [8N, 1]
        ss_row = dot_nt(ones_row, v_big * a_src_big)                      # [1, 8N]
        e1 = sd_col + ss_row                                              # [8N, 8N]
        p1 = attn_softmax(e1, mask_ref[...])       # mask = additive kron(eye(8), adj)
        out_big = dot(p1, v_big)                                          # [8N, F1]

        # =================== GAT layer 2 (1 head, concat=False), lane-padded =========
        # xh2 = (concat_heads(out_big) + b1) @ W2, computed as a sum of per-head block
        # matmuls so the head-major -> node-major relayout never materializes; the
        # b1 @ W2 row is folded in on the wrapper (vec row 6).  Dropout = eval identity.
        xh2 = dot(out_big[0:N, :], w2_ref[0:F1, :])
        for h in range(1, HEADS1):
            xh2 = xh2 + dot(out_big[h * N:(h + 1) * N, :],
                            w2_ref[h * F1:(h + 1) * F1, :])
        xh2 = xh2 + vec_ref[6:7, 0:F2P]                                   # [N, F2P]

        a_dst2 = vec_ref[8:9, 0:F2P]
        a_src2 = vec_ref[9:10, 0:F2P]
        ones2_col = jnp.ones((F2P, 1), f32)
        ones2_row = jnp.ones((1, F2P), f32)
        sd2 = dot(xh2 * a_dst2, ones2_col)                                # [N, 1]
        ss2 = dot_nt(ones2_row, xh2 * a_src2)                             # [1, N]
        e2 = sd2 + ss2                                                    # [N, N]
        p2 = attn_softmax(e2, mask_ref[0:N, 0:N])  # top-left kron block == adj mask
        o_ref[...] = dot(p2, xh2) + vec_ref[7:8, 0:F2P]                   # lane-dense

    return kernel


# ------------------------------ model forward ------------------------------

def graph_gat_forward(params, cfg, user_text, user_feats, graph_node_features,
                      graph_edge_index, rng):
    """Forward pass of graphGAT.  Returns (x [N, h2], kl_loss, rec_loss)."""
    del user_text  # unused by the reference forward pass
    f32 = jnp.float32

    F = cfg["user_feat_size"]
    VH = cfg["vae_hidden"]
    Z = cfg["z_dim"]
    E = cfg["embed_dim"]
    H = cfg["tweet_out_size"]
    bsz = cfg["batch_size"]
    F1 = cfg["h1"]
    F2 = cfg["h2"]
    F2P = _round_up(F2, 128)
    assert Z == H, "z_dim must equal tweet_out_size for the node-feature splice"

    vae, gru, g1, g2 = params["vae"], params["gru"], params["gat1"], params["gat2"]

    k_eps, k_h0 = jax.random.split(rng)
    B = user_feats.shape[0]
    eps = jax.random.normal(k_eps, (B, Z), f32)

    # tweet-token embedding lookup (cheap gather glue, stays in XLA)
    Nt, T = graph_node_features.shape
    emb = jnp.take(params["tweet_embedding"].astype(f32), graph_node_features, axis=0)
    emb_flat = jnp.transpose(emb, (1, 0, 2)).reshape(T * Nt, E)          # [T*Nt, E]
    # h0 ~ randn per forward, matching torch.randn in the reference module.
    h0 = jax.random.normal(k_h0, (2, Nt, H), f32)
    h0_cat = jnp.concatenate([h0[0], h0[1]], axis=1)                     # [Nt, 2H]

    N = Nt + B

    # Dense adjacency (adj[i, j] = 1 iff edge j -> i) plus self-loops (as PyG GATConv
    # adds; they also guarantee every softmax row has >=1 valid entry), expanded to an
    # additive kron(eye(heads), adj) mask for the single 8-head softmax; its top-left
    # NxN block is exactly the layer-2 mask.
    src, dst = graph_edge_index[0], graph_edge_index[1]
    adj = jnp.zeros((N, N), f32).at[dst, src].set(1.0)
    adj = adj.at[jnp.arange(N), jnp.arange(N)].set(1.0)
    valid_big = jnp.kron(jnp.eye(HEADS1, dtype=f32), adj)                # [8N, 8N]
    neg_mask = jnp.where(valid_big > 0.0, 0.0, -1e9).astype(f32)

    # ---------- operand slabs: ~30 tiny tensors packed into 11 kernel inputs ----------
    VW = _round_up(max(VH, 2 * Z, F, 3 * H, 6 * H, F2P), 128)

    def vrow(v):
        v = jnp.asarray(v, f32).reshape(-1)
        return jnp.zeros((1, VW), f32).at[0, :v.shape[0]].set(v)

    w2p = jnp.zeros((HEADS1 * F1, F2P), f32).at[:, :F2].set(g2["w"].astype(f32))
    b1w2 = jnp.dot(g1["bias"].astype(f32).reshape(1, -1), w2p)           # [1, F2P]
    b2p = jnp.zeros((F2P,), f32).at[:F2].set(g2["bias"].astype(f32))
    adst2 = jnp.zeros((F2P,), f32).at[:F2].set(g2["att_dst"].reshape(-1).astype(f32))
    asrc2 = jnp.zeros((F2P,), f32).at[:F2].set(g2["att_src"].reshape(-1).astype(f32))

    vec_slab = jnp.concatenate([
        vrow(vae["enc_b"]),                                              # row 0
        vrow(jnp.concatenate([vae["mu_b"], vae["lv_b"]])),               # row 1
        vrow(vae["dec_b"]),                                              # row 2
        vrow(gru["b_ih0"]),                                              # row 3
        vrow(jnp.concatenate([gru["b_hh0"], gru["b_hh1"]])),             # row 4
        vrow(gru["b_ih1"]),                                              # row 5
        vrow(b1w2),                                                      # row 6
        vrow(b2p),                                                       # row 7
        vrow(adst2),                                                     # row 8
        vrow(asrc2),                                                     # row 9
    ], axis=0)                                                           # [10, VW]

    vae_w = jnp.zeros((F + VH + Z, max(VH, 2 * Z, F)), f32)
    vae_w = vae_w.at[0:F, 0:VH].set(vae["enc_w"].astype(f32))
    vae_w = vae_w.at[F:F + VH, 0:2 * Z].set(
        jnp.concatenate([vae["mu_w"], vae["lv_w"]], axis=1).astype(f32))
    vae_w = vae_w.at[F + VH:F + VH + Z, 0:F].set(vae["dec_w"].astype(f32))

    # GRU weight slab: [w_ih0 ; blockdiag(w_hh0, w_hh1) ; w_ih1]
    gru_w = jnp.zeros((E + 3 * H, 6 * H), f32)
    gru_w = gru_w.at[0:E, 0:3 * H].set(gru["w_ih0"].astype(f32))
    gru_w = gru_w.at[E:E + H, 0:3 * H].set(gru["w_hh0"].astype(f32))
    gru_w = gru_w.at[E + H:E + 2 * H, 3 * H:6 * H].set(gru["w_hh1"].astype(f32))
    gru_w = gru_w.at[E + 2 * H:E + 3 * H, 0:3 * H].set(gru["w_ih1"].astype(f32))

    w1 = g1["w"].astype(f32)                                             # [H, 8*F1]
    att1 = jnp.concatenate([
        jnp.repeat(g1["att_dst"].astype(f32), N, axis=0),                # [8N, F1]
        jnp.repeat(g1["att_src"].astype(f32), N, axis=0),                # [8N, F1]
    ], axis=1)                                                           # [8N, 2*F1]

    kernel = _build_kernel(F, VH, Z, E, H, T, Nt, B, bsz, N, F1, F2P)

    out_pad, kl, rec = pl.pallas_call(
        kernel,
        out_shape=(jax.ShapeDtypeStruct((N, F2P), f32),
                   jax.ShapeDtypeStruct((1, 1), f32),
                   jax.ShapeDtypeStruct((1, 1), f32)),
        scratch_shapes=[pltpu.VMEM((N, H), f32),                # x_input splice
                        pltpu.VMEM((Nt, 2 * H), f32),           # packed GRU state
                        pltpu.VMEM((HEADS1 * N, F1), f32)],     # head-major stack
    )(user_feats.astype(f32), eps, emb_flat, h0_cat, neg_mask, vec_slab,
      vae_w, gru_w, w1, att1, w2p)

    return out_pad[:, :F2], kl[0, 0], rec[0, 0]


# ------------------------------ init / driver ------------------------------

def init_params(key, cfg):
    ks = iter(jax.random.split(key, 32))

    def w(shape, scale=0.1):
        return (scale * jax.random.normal(next(ks), shape)).astype(jnp.float32)

    E, H = cfg["embed_dim"], cfg["tweet_out_size"]
    vae = dict(
        enc_w=w((cfg["user_feat_size"], cfg["vae_hidden"])), enc_b=w((cfg["vae_hidden"],)),
        mu_w=w((cfg["vae_hidden"], cfg["z_dim"])), mu_b=w((cfg["z_dim"],)),
        lv_w=w((cfg["vae_hidden"], cfg["z_dim"])), lv_b=w((cfg["z_dim"],)),
        dec_w=w((cfg["z_dim"], cfg["user_feat_size"])), dec_b=w((cfg["user_feat_size"],)),
    )
    gru = dict(
        w_ih0=w((E, 3 * H)), b_ih0=w((3 * H,)), w_hh0=w((H, 3 * H)), b_hh0=w((3 * H,)),
        w_ih1=w((H, 3 * H)), b_ih1=w((3 * H,)), w_hh1=w((H, 3 * H)), b_hh1=w((3 * H,)),
    )
    gat1 = dict(
        w=w((H, 8 * cfg["h1"])),
        att_src=w((8, cfg["h1"])), att_dst=w((8, cfg["h1"])),
        bias=w((8 * cfg["h1"],)),
    )
    gat2 = dict(
        w=w((8 * cfg["h1"], cfg["h2"])),
        att_src=w((1, cfg["h2"])), att_dst=w((1, cfg["h2"])),
        bias=w((cfg["h2"],)),
    )
    return dict(
        vae=vae, gru=gru, gat1=gat1, gat2=gat2,
        tweet_embedding=w((cfg["vocab"], E), scale=0.2),
    )


if __name__ == "__main__":
    cfg = dict(
        user_feat_size=16, z_dim=32, embed_dim=32, tweet_out_size=32,
        batch_size=4, h1=64, h2=100, vocab=50, vae_hidden=32,
    )
    n_tweet_nodes, seq_len, n_edges = 12, 8, 24
    n_nodes = n_tweet_nodes + cfg["batch_size"]  # 16 graph nodes total

    key = jax.random.PRNGKey(0)
    k_param, k_uf, k_tok, k_src, k_dst, k_run = jax.random.split(key, 6)

    params = init_params(k_param, cfg)
    user_feats = jax.random.normal(k_uf, (cfg["batch_size"], cfg["user_feat_size"]),
                                   jnp.float32)
    graph_node_features = jax.random.randint(k_tok, (n_tweet_nodes, seq_len),
                                             0, cfg["vocab"], dtype=jnp.int32)
    graph_edge_index = jnp.stack([
        jax.random.randint(k_src, (n_edges,), 0, n_nodes, dtype=jnp.int32),
        jax.random.randint(k_dst, (n_edges,), 0, n_nodes, dtype=jnp.int32),
    ], axis=0)
    user_text = jnp.zeros((cfg["batch_size"], seq_len), jnp.int32)  # unused in forward

    x, kl_loss, rec_loss = graph_gat_forward(
        params, cfg, user_text, user_feats, graph_node_features, graph_edge_index, k_run)
    jax.block_until_ready((x, kl_loss, rec_loss))

    assert x.shape == (n_nodes, cfg["h2"]) and x.dtype == jnp.float32
    assert kl_loss.shape == () and rec_loss.shape == ()
    assert bool(jnp.all(jnp.isfinite(x))) and bool(jnp.isfinite(kl_loss)) \
        and bool(jnp.isfinite(rec_loss))
    print("KERNEL_OK")
</pallas_src>

<mosaic_0001>
module attributes {stable_mosaic.version = 11 : i64} {
  func.func @kernel(%arg0: memref<4x16xf32, #tpu.memory_space<vmem>>, %arg1: memref<4x32xf32, #tpu.memory_space<vmem>>, %arg2: memref<96x32xf32, #tpu.memory_space<vmem>>, %arg3: memref<12x64xf32, #tpu.memory_space<vmem>>, %arg4: memref<128x128xf32, #tpu.memory_space<vmem>>, %arg5: memref<10x256xf32, #tpu.memory_space<vmem>>, %arg6: memref<80x64xf32, #tpu.memory_space<vmem>>, %arg7: memref<128x192xf32, #tpu.memory_space<vmem>>, %arg8: memref<32x512xf32, #tpu.memory_space<vmem>>, %arg9: memref<128x128xf32, #tpu.memory_space<vmem>>, %arg10: memref<512x128xf32, #tpu.memory_space<vmem>>, %arg11: memref<16x128xf32, #tpu.memory_space<vmem>>, %arg12: memref<1x1xf32, #tpu.memory_space<vmem>>, %arg13: memref<1x1xf32, #tpu.memory_space<vmem>>, %arg14: memref<16x32xf32, #tpu.memory_space<vmem>>, %arg15: memref<12x64xf32, #tpu.memory_space<vmem>>, %arg16: memref<128x64xf32, #tpu.memory_space<vmem>>) attributes {dimension_semantics = [], scalar_prefetch = 0 : i64, scratch_operands = 3 : i64, tpu.core_type = #tpu.core_type<tc>} {
    %c0 = arith.constant 0 : index
    %c0_0 = arith.constant 0 : index
    %0 = vector.load %arg0[%c0, %c0_0] : memref<4x16xf32, #tpu.memory_space<vmem>>, vector<4x16xf32>
    %c0_1 = arith.constant 0 : index
    %c0_2 = arith.constant 0 : index
    %1 = vector.load %arg6[%c0_1, %c0_2] : memref<80x64xf32, #tpu.memory_space<vmem>>, vector<16x32xf32>
    %cst = arith.constant dense<0.000000e+00> : vector<4x32xf32>
    %2 = tpu.matmul %0, %1, %cst {dimension_numbers = #tpu.dot_dimension_numbers<[1], [0], [0], [1], [0, 0, 1, 1], [], []>} : vector<4x16xf32>, vector<16x32xf32>, vector<4x32xf32> -> vector<4x32xf32>
    %c0_3 = arith.constant 0 : index
    %c0_4 = arith.constant 0 : index
    %3 = vector.load %arg5[%c0_3, %c0_4] : memref<10x256xf32, #tpu.memory_space<vmem>>, vector<1x32xf32>
    %4 = vector.broadcast %3 : vector<1x32xf32> to vector<4x32xf32>
    %5 = arith.addf %2, %4 : vector<4x32xf32>
    %cst_5 = arith.constant 0.000000e+00 : f32
    %6 = vector.broadcast %cst_5 : f32 to vector<4x32xf32>
    %7 = arith.maximumf %5, %6 : vector<4x32xf32>
    %c16 = arith.constant 16 : index
    %c0_6 = arith.constant 0 : index
    %8 = vector.load %arg6[%c16, %c0_6] : memref<80x64xf32, #tpu.memory_space<vmem>>, vector<32x64xf32>
    %cst_7 = arith.constant dense<0.000000e+00> : vector<4x64xf32>
    %9 = tpu.matmul %7, %8, %cst_7 {dimension_numbers = #tpu.dot_dimension_numbers<[1], [0], [0], [1], [0, 0, 1, 1], [], []>} : vector<4x32xf32>, vector<32x64xf32>, vector<4x64xf32> -> vector<4x64xf32>
    %c1 = arith.constant 1 : index
    %c0_8 = arith.constant 0 : index
    %10 = vector.load %arg5[%c1, %c0_8] : memref<10x256xf32, #tpu.memory_space<vmem>>, vector<1x64xf32>
    %11 = vector.broadcast %10 : vector<1x64xf32> to vector<4x64xf32>
    %12 = arith.addf %9, %11 : vector<4x64xf32>
    %13 = vector.extract_strided_slice %12 {offsets = [0, 0], sizes = [4, 32], strides = [1, 1]} : vector<4x64xf32> to vector<4x32xf32>
    %14 = vector.extract_strided_slice %12 {offsets = [0, 32], sizes = [4, 32], strides = [1, 1]} : vector<4x64xf32> to vector<4x32xf32>
    %c0_9 = arith.constant 0 : index
    %c0_10 = arith.constant 0 : index
    %15 = vector.load %arg1[%c0_9, %c0_10] : memref<4x32xf32, #tpu.memory_space<vmem>>, vector<4x32xf32>
    %cst_11 = arith.constant 5.000000e-01 : f32
    %16 = vector.broadcast %cst_11 : f32 to vector<4x32xf32>
    %17 = arith.mulf %16, %14 : vector<4x32xf32>
    %18 = math.exp %17 : vector<4x32xf32>
    %19 = arith.mulf %15, %18 : vector<4x32xf32>
    %20 = arith.addf %13, %19 : vector<4x32xf32>
    %c48 = arith.constant 48 : index
    %c0_12 = arith.constant 0 : index
    %21 = vector.load %arg6[%c48, %c0_12] : memref<80x64xf32, #tpu.memory_space<vmem>>, vector<32x16xf32>
    %cst_13 = arith.constant dense<0.000000e+00> : vector<4x16xf32>
    %22 = tpu.matmul %20, %21, %cst_13 {dimension_numbers = #tpu.dot_dimension_numbers<[1], [0], [0], [1], [0, 0, 1, 1], [], []>} : vector<4x32xf32>, vector<32x16xf32>, vector<4x16xf32> -> vector<4x16xf32>
    %c2 = arith.constant 2 : index
    %c0_14 = arith.constant 0 : index
    %23 = vector.load %arg5[%c2, %c0_14] : memref<10x256xf32, #tpu.memory_space<vmem>>, vector<1x16xf32>
    %24 = vector.broadcast %23 : vector<1x16xf32> to vector<4x16xf32>
    %25 = arith.addf %22, %24 : vector<4x16xf32>
    %cst_15 = arith.constant 1.000000e+00 : f32
    %26 = vector.broadcast %cst_15 : f32 to vector<4x32xf32>
    %27 = arith.addf %26, %14 : vector<4x32xf32>
    %28 = arith.mulf %13, %13 : vector<4x32xf32>
    %29 = arith.subf %27, %28 : vector<4x32xf32>
    %30 = math.exp %14 : vector<4x32xf32>
    %31 = arith.subf %29, %30 : vector<4x32xf32>
    %cst_16 = arith.constant dense<0.000000e+00> : vector<4xf32>
    %32 = vector.multi_reduction <add>, %31, %cst_16 [1] : vector<4x32xf32> to vector<4xf32>
    %33 = vector.shape_cast %32 : vector<4xf32> to vector<4x1xf32>
    %cst_17 = arith.constant dense<0.000000e+00> : vector<1xf32>
    %34 = vector.multi_reduction <add>, %33, %cst_17 [0] : vector<4x1xf32> to vector<1xf32>
    %35 = vector.shape_cast %34 : vector<1xf32> to vector<1x1xf32>
    %cst_18 = arith.constant 4.000000e+00 : f32
    %36 = vector.broadcast %cst_18 : f32 to vector<1x1xf32>
    %37 = arith.divf %35, %36 : vector<1x1xf32>
    %cst_19 = arith.constant -5.000000e-01 : f32
    %38 = vector.broadcast %cst_19 : f32 to vector<1x1xf32>
    %39 = arith.mulf %38, %37 : vector<1x1xf32>
    %c0_20 = arith.constant 0 : index
    %c0_21 = arith.constant 0 : index
    %40 = vector.load %arg12[%c0_20, %c0_21] : memref<1x1xf32, #tpu.memory_space<vmem>>, vector<1x1xf32>
    tpu.vector_store %arg12[%c0_20, %c0_21], %39 {strides = array<i32>} : memref<1x1xf32, #tpu.memory_space<vmem>>, vector<1x1xf32>,
    %41 = arith.subf %25, %0 : vector<4x16xf32>
    %42 = arith.mulf %41, %41 : vector<4x16xf32>
    %cst_22 = arith.constant dense<0.000000e+00> : vector<4xf32>
    %43 = vector.multi_reduction <add>, %42, %cst_22 [1] : vector<4x16xf32> to vector<4xf32>
    %44 = vector.shape_cast %43 : vector<4xf32> to vector<4x1xf32>
    %cst_23 = arith.constant 1.600000e+01 : f32
    %45 = vector.broadcast %cst_23 : f32 to vector<4x1xf32>
    %46 = arith.divf %44, %45 : vector<4x1xf32>
    %cst_24 = arith.constant dense<0.000000e+00> : vector<1xf32>
    %47 = vector.multi_reduction <add>, %46, %cst_24 [0] : vector<4x1xf32> to vector<1xf32>
    %48 = vector.shape_cast %47 : vector<1xf32> to vector<1x1xf32>
    %cst_25 = arith.constant 4.000000e+00 : f32
    %49 = vector.broadcast %cst_25 : f32 to vector<1x1xf32>
    %50 = arith.divf %48, %49 : vector<1x1xf32>
    %c0_26 = arith.constant 0 : index
    %c0_27 = arith.constant 0 : index
    %51 = vector.load %arg13[%c0_26, %c0_27] : memref<1x1xf32, #tpu.memory_space<vmem>>, vector<1x1xf32>
    tpu.vector_store %arg13[%c0_26, %c0_27], %50 {strides = array<i32>} : memref<1x1xf32, #tpu.memory_space<vmem>>, vector<1x1xf32>,
    %c0_28 = arith.constant 0 : index
    %c0_29 = arith.constant 0 : index
    %52 = vector.load %arg2[%c0_28, %c0_29] : memref<96x32xf32, #tpu.memory_space<vmem>>, vector<96x32xf32>
    %c0_30 = arith.constant 0 : index
    %c0_31 = arith.constant 0 : index
    %53 = vector.load %arg7[%c0_30, %c0_31] : memref<128x192xf32, #tpu.memory_space<vmem>>, vector<32x96xf32>
    %cst_32 = arith.constant dense<0.000000e+00> : vector<96x96xf32>
    %54 = tpu.matmul %52, %53, %cst_32 {dimension_numbers = #tpu.dot_dimension_numbers<[1], [0], [0], [1], [0, 0, 1, 1], [], []>} : vector<96x32xf32>, vector<32x96xf32>, vector<96x96xf32> -> vector<96x96xf32>
    %c3 = arith.constant 3 : index
    %c0_33 = arith.constant 0 : index
    %55 = vector.load %arg5[%c3, %c0_33] : memref<10x256xf32, #tpu.memory_space<vmem>>, vector<1x96xf32>
    %56 = vector.broadcast %55 : vector<1x96xf32> to vector<96x96xf32>
    %57 = arith.addf %54, %56 : vector<96x96xf32>
    %c4 = arith.constant 4 : index
    %c0_34 = arith.constant 0 : index
    %58 = vector.load %arg5[%c4, %c0_34] : memref<10x256xf32, #tpu.memory_space<vmem>>, vector<1x192xf32>
    %c5 = arith.constant 5 : index
    %c0_35 = arith.constant 0 : index
    %59 = vector.load %arg5[%c5, %c0_35] : memref<10x256xf32, #tpu.memory_space<vmem>>, vector<1x96xf32>
    %c0_36 = arith.constant 0 : index
    %c0_37 = arith.constant 0 : index
    %60 = vector.load %arg3[%c0_36, %c0_37] : memref<12x64xf32, #tpu.memory_space<vmem>>, vector<12x64xf32>
    %c0_38 = arith.constant 0 : index
    %c0_39 = arith.constant 0 : index
    %61 = vector.load %arg15[%c0_38, %c0_39] : memref<12x64xf32, #tpu.memory_space<vmem>>, vector<12x64xf32>
    tpu.vector_store %arg15[%c0_38, %c0_39], %60 {strides = array<i32>} : memref<12x64xf32, #tpu.memory_space<vmem>>, vector<12x64xf32>,
    %c0_40 = arith.constant 0 : index
    %c0_41 = arith.constant 0 : index
    %62 = vector.load %arg15[%c0_40, %c0_41] : memref<12x64xf32, #tpu.memory_space<vmem>>, vector<12x64xf32>
    %c32 = arith.constant 32 : index
    %c0_42 = arith.constant 0 : index
    %63 = vector.load %arg7[%c32, %c0_42] : memref<128x192xf32, #tpu.memory_space<vmem>>, vector<64x192xf32>
    %cst_43 = arith.constant dense<0.000000e+00> : vector<12x192xf32>
    %64 = tpu.matmul %62, %63, %cst_43 {dimension_numbers = #tpu.dot_dimension_numbers<[1], [0], [0], [1], [0, 0, 1, 1], [], []>} : vector<12x64xf32>, vector<64x192xf32>, vector<12x192xf32> -> vector<12x192xf32>
    %65 = vector.broadcast %58 : vector<1x192xf32> to vector<12x192xf32>
    %66 = arith.addf %64, %65 : vector<12x192xf32>
    %67 = vector.extract_strided_slice %57 {offsets = [0, 0], sizes = [12, 96], strides = [1, 1]} : vector<96x96xf32> to vector<12x96xf32>
    %68 = vector.extract_strided_slice %66 {offsets = [0, 0], sizes = [12, 96], strides = [1, 1]} : vector<12x192xf32> to vector<12x96xf32>
    %69 = vector.extract_strided_slice %62 {offsets = [0, 0], sizes = [12, 32], strides = [1, 1]} : vector<12x64xf32> to vector<12x32xf32>
    %70 = vector.extract_strided_slice %67 {offsets = [0, 0], sizes = [12, 32], strides = [1, 1]} : vector<12x96xf32> to vector<12x32xf32>
    %71 = vector.extract_strided_slice %68 {offsets = [0, 0], sizes = [12, 32], strides = [1, 1]} : vector<12x96xf32> to vector<12x32xf32>
    %72 = arith.addf %70, %71 : vector<12x32xf32>
    %73 = arith.negf %72 : vector<12x32xf32>
    %74 = math.exp %73 : vector<12x32xf32>
    %cst_44 = arith.constant 1.000000e+00 : f32
    %75 = vector.broadcast %cst_44 : f32 to vector<12x32xf32>
    %76 = arith.addf %75, %74 : vector<12x32xf32>
    %77 = arith.divf %75, %76 : vector<12x32xf32>
    %78 = vector.extract_strided_slice %67 {offsets = [0, 32], sizes = [12, 32], strides = [1, 1]} : vector<12x96xf32> to vector<12x32xf32>
    %79 = vector.extract_strided_slice %68 {offsets = [0, 32], sizes = [12, 32], strides = [1, 1]} : vector<12x96xf32> to vector<12x32xf32>
    %80 = arith.addf %78, %79 : vector<12x32xf32>
    %81 = arith.negf %80 : vector<12x32xf32>
    %82 = math.exp %81 : vector<12x32xf32>
    %cst_45 = arith.constant 1.000000e+00 : f32
    %83 = vector.broadcast %cst_45 : f32 to vector<12x32xf32>
    %84 = arith.addf %83, %82 : vector<12x32xf32>
    %85 = arith.divf %83, %84 : vector<12x32xf32>
    %86 = vector.extract_strided_slice %67 {offsets = [0, 64], sizes = [12, 32], strides = [1, 1]} : vector<12x96xf32> to vector<12x32xf32>
    %87 = vector.extract_strided_slice %68 {offsets = [0, 64], sizes = [12, 32], strides = [1, 1]} : vector<12x96xf32> to vector<12x32xf32>
    %88 = arith.mulf %77, %87 : vector<12x32xf32>
    %89 = arith.addf %86, %88 : vector<12x32xf32>
    %90 = math.tanh %89 : vector<12x32xf32>
    %cst_46 = arith.constant 1.000000e+00 : f32
    %91 = vector.broadcast %cst_46 : f32 to vector<12x32xf32>
    %92 = arith.subf %91, %85 : vector<12x32xf32>
    %93 = arith.mulf %92, %90 : vector<12x32xf32>
    %94 = arith.mulf %85, %69 : vector<12x32xf32>
    %95 = arith.addf %93, %94 : vector<12x32xf32>
    %c96 = arith.constant 96 : index
    %c0_47 = arith.constant 0 : index
    %96 = vector.load %arg7[%c96, %c0_47] : memref<128x192xf32, #tpu.memory_space<vmem>>, vector<32x96xf32>
    %cst_48 = arith.constant dense<0.000000e+00> : vector<12x96xf32>
    %97 = tpu.matmul %95, %96, %cst_48 {dimension_numbers = #tpu.dot_dimension_numbers<[1], [0], [0], [1], [0, 0, 1, 1], [], []>} : vector<12x32xf32>, vector<32x96xf32>, vector<12x96xf32> -> vector<12x96xf32>
    %98 = vector.broadcast %59 : vector<1x96xf32> to vector<12x96xf32>
    %99 = arith.addf %97, %98 : vector<12x96xf32>
    %100 = vector.extract_strided_slice %66 {offsets = [0, 96], sizes = [12, 96], strides = [1, 1]} : vector<12x192xf32> to vector<12x96xf32>
    %101 = vector.extract_strided_slice %62 {offsets = [0, 32], sizes = [12, 32], strides = [1, 1]} : vector<12x64xf32> to vector<12x32xf32>
    %102 = vector.extract_strided_slice %99 {offsets = [0, 0], sizes = [12, 32], strides = [1, 1]} : vector<12x96xf32> to vector<12x32xf32>
    %103 = vector.extract_strided_slice %100 {offsets = [0, 0], sizes = [12, 32], strides = [1, 1]} : vector<12x96xf32> to vector<12x32xf32>
    %104 = arith.addf %102, %103 : vector<12x32xf32>
    %105 = arith.negf %104 : vector<12x32xf32>
    %106 = math.exp %105 : vector<12x32xf32>
    %cst_49 = arith.constant 1.000000e+00 : f32
    %107 = vector.broadcast %cst_49 : f32 to vector<12x32xf32>
    %108 = arith.addf %107, %106 : vector<12x32xf32>
    %109 = arith.divf %107, %108 : vector<12x32xf32>
    %110 = vector.extract_strided_slice %99 {offsets = [0, 32], sizes = [12, 32], strides = [1, 1]} : vector<12x96xf32> to vector<12x32xf32>
    %111 = vector.extract_strided_slice %100 {offsets = [0, 32], sizes = [12, 32], strides = [1, 1]} : vector<12x96xf32> to vector<12x32xf32>
    %112 = arith.addf %110, %111 : vector<12x32xf32>
    %113 = arith.negf %112 : vector<12x32xf32>
    %114 = math.exp %113 : vector<12x32xf32>
    %cst_50 = arith.constant 1.000000e+00 : f32
    %115 = vector.broadcast %cst_50 : f32 to vector<12x32xf32>
    %116 = arith.addf %115, %114 : vector<12x32xf32>
    %117 = arith.divf %115, %116 : vector<12x32xf32>
    %118 = vector.extract_strided_slice %99 {offsets = [0, 64], sizes = [12, 32], strides = [1, 1]} : vector<12x96xf32> to vector<12x32xf32>
    %119 = vector.extract_strided_slice %100 {offsets = [0, 64], sizes = [12, 32], strides = [1, 1]} : vector<12x96xf32> to vector<12x32xf32>
    %120 = arith.mulf %109, %119 : vector<12x32xf32>
    %121 = arith.addf %118, %120 : vector<12x32xf32>
    %122 = math.tanh %121 : vector<12x32xf32>
    %cst_51 = arith.constant 1.000000e+00 : f32
    %123 = vector.broadcast %cst_51 : f32 to vector<12x32xf32>
    %124 = arith.subf %123, %117 : vector<12x32xf32>
    %125 = arith.mulf %124, %122 : vector<12x32xf32>
    %126 = arith.mulf %117, %101 : vector<12x32xf32>
    %127 = arith.addf %125, %126 : vector<12x32xf32>
    %c0_52 = arith.constant 0 : index
    %c0_53 = arith.constant 0 : index
    %128 = vector.load %arg15[%c0_52, %c0_53] : memref<12x64xf32, #tpu.memory_space<vmem>>, vector<12x32xf32>
    tpu.vector_store %arg15[%c0_52, %c0_53], %95 {strides = array<i32>} : memref<12x64xf32, #tpu.memory_space<vmem>>, vector<12x32xf32>,
    %c0_54 = arith.constant 0 : index
    %c32_55 = arith.constant 32 : index
    %129 = vector.load %arg15[%c0_54, %c32_55] : memref<12x64xf32, #tpu.memory_space<vmem>>, vector<12x32xf32>
    tpu.vector_store %arg15[%c0_54, %c32_55], %127 {strides = array<i32>} : memref<12x64xf32, #tpu.memory_space<vmem>>, vector<12x32xf32>,
    %c0_56 = arith.constant 0 : index
    %c0_57 = arith.constant 0 : index
    %130 = vector.load %arg15[%c0_56, %c0_57] : memref<12x64xf32, #tpu.memory_space<vmem>>, vector<12x64xf32>
    %c32_58 = arith.constant 32 : index
    %c0_59 = arith.constant 0 : index
    %131 = vector.load %arg7[%c32_58, %c0_59] : memref<128x192xf32, #tpu.memory_space<vmem>>, vector<64x192xf32>
    %cst_60 = arith.constant dense<0.000000e+00> : vector<12x192xf32>
    %132 = tpu.matmul %130, %131, %cst_60 {dimension_numbers = #tpu.dot_dimension_numbers<[1], [0], [0], [1], [0, 0, 1, 1], [], []>} : vector<12x64xf32>, vector<64x192xf32>, vector<12x192xf32> -> vector<12x192xf32>
    %133 = vector.broadcast %58 : vector<1x192xf32> to vector<12x192xf32>
    %134 = arith.addf %132, %133 : vector<12x192xf32>
    %135 = vector.extract_strided_slice %57 {offsets = [12, 0], sizes = [12, 96], strides = [1, 1]} : vector<96x96xf32> to vector<12x96xf32>
    %136 = vector.extract_strided_slice %134 {offsets = [0, 0], sizes = [12, 96], strides = [1, 1]} : vector<12x192xf32> to vector<12x96xf32>
    %137 = vector.extract_strided_slice %130 {offsets = [0, 0], sizes = [12, 32], strides = [1, 1]} : vector<12x64xf32> to vector<12x32xf32>
    %138 = vector.extract_strided_slice %135 {offsets = [0, 0], sizes = [12, 32], strides = [1, 1]} : vector<12x96xf32> to vector<12x32xf32>
    %139 = vector.extract_strided_slice %136 {offsets = [0, 0], sizes = [12, 32], strides = [1, 1]} : vector<12x96xf32> to vector<12x32xf32>
    %140 = arith.addf %138, %139 : vector<12x32xf32>
    %141 = arith.negf %140 : vector<12x32xf32>
    %142 = math.exp %141 : vector<12x32xf32>
    %cst_61 = arith.constant 1.000000e+00 : f32
    %143 = vector.broadcast %cst_61 : f32 to vector<12x32xf32>
    %144 = arith.addf %143, %142 : vector<12x32xf32>
    %145 = arith.divf %143, %144 : vector<12x32xf32>
    %146 = vector.extract_strided_slice %135 {offsets = [0, 32], sizes = [12, 32], strides = [1, 1]} : vector<12x96xf32> to vector<12x32xf32>
    %147 = vector.extract_strided_slice %136 {offsets = [0, 32], sizes = [12, 32], strides = [1, 1]} : vector<12x96xf32> to vector<12x32xf32>
    %148 = arith.addf %146, %147 : vector<12x32xf32>
    %149 = arith.negf %148 : vector<12x32xf32>
    %150 = math.exp %149 : vector<12x32xf32>
    %cst_62 = arith.constant 1.000000e+00 : f32
    %151 = vector.broadcast %cst_62 : f32 to vector<12x32xf32>
    %152 = arith.addf %151, %150 : vector<12x32xf32>
    %153 = arith.divf %151, %152 : vector<12x32xf32>
    %154 = vector.extract_strided_slice %135 {offsets = [0, 64], sizes = [12, 32], strides = [1, 1]} : vector<12x96xf32> to vector<12x32xf32>
    %155 = vector.extract_strided_slice %136 {offsets = [0, 64], sizes = [12, 32], strides = [1, 1]} : vector<12x96xf32> to vector<12x32xf32>
    %156 = arith.mulf %145, %155 : vector<12x32xf32>
    %157 = arith.addf %154, %156 : vector<12x32xf32>
    %158 = math.tanh %157 : vector<12x32xf32>
    %cst_63 = arith.constant 1.000000e+00 : f32
    %159 = vector.broadcast %cst_63 : f32 to vector<12x32xf32>
    %160 = arith.subf %159, %153 : vector<12x32xf32>
    %161 = arith.mulf %160, %158 : vector<12x32xf32>
    %162 = arith.mulf %153, %137 : vector<12x32xf32>
    %163 = arith.addf %161, %162 : vector<12x32xf32>
    %c96_64 = arith.constant 96 : index
    %c0_65 = arith.constant 0 : index
    %164 = vector.load %arg7[%c96_64, %c0_65] : memref<128x192xf32, #tpu.memory_space<vmem>>, vector<32x96xf32>
    %cst_66 = arith.constant dense<0.000000e+00> : vector<12x96xf32>
    %165 = tpu.matmul %163, %164, %cst_66 {dimension_numbers = #tpu.dot_dimension_numbers<[1], [0], [0], [1], [0, 0, 1, 1], [], []>} : vector<12x32xf32>, vector<32x96xf32>, vector<12x96xf32> -> vector<12x96xf32>
    %166 = vector.broadcast %59 : vector<1x96xf32> to vector<12x96xf32>
    %167 = arith.addf %165, %166 : vector<12x96xf32>
    %168 = vector.extract_strided_slice %134 {offsets = [0, 96], sizes = [12, 96], strides = [1, 1]} : vector<12x192xf32> to vector<12x96xf32>
    %169 = vector.extract_strided_slice %130 {offsets = [0, 32], sizes = [12, 32], strides = [1, 1]} : vector<12x64xf32> to vector<12x32xf32>
    %170 = vector.extract_strided_slice %167 {offsets = [0, 0], sizes = [12, 32], strides = [1, 1]} : vector<12x96xf32> to vector<12x32xf32>
    %171 = vector.extract_strided_slice %168 {offsets = [0, 0], sizes = [12, 32], strides = [1, 1]} : vector<12x96xf32> to vector<12x32xf32>
    %172 = arith.addf %170, %171 : vector<12x32xf32>
    %173 = arith.negf %172 : vector<12x32xf32>
    %174 = math.exp %173 : vector<12x32xf32>
    %cst_67 = arith.constant 1.000000e+00 : f32
    %175 = vector.broadcast %cst_67 : f32 to vector<12x32xf32>
    %176 = arith.addf %175, %174 : vector<12x32xf32>
    %177 = arith.divf %175, %176 : vector<12x32xf32>
    %178 = vector.extract_strided_slice %167 {offsets = [0, 32], sizes = [12, 32], strides = [1, 1]} : vector<12x96xf32> to vector<12x32xf32>
    %179 = vector.extract_strided_slice %168 {offsets = [0, 32], sizes = [12, 32], strides = [1, 1]} : vector<12x96xf32> to vector<12x32xf32>
    %180 = arith.addf %178, %179 : vector<12x32xf32>
    %181 = arith.negf %180 : vector<12x32xf32>
    %182 = math.exp %181 : vector<12x32xf32>
    %cst_68 = arith.constant 1.000000e+00 : f32
    %183 = vector.broadcast %cst_68 : f32 to vector<12x32xf32>
    %184 = arith.addf %183, %182 : vector<12x32xf32>
    %185 = arith.divf %183, %184 : vector<12x32xf32>
    %186 = vector.extract_strided_slice %167 {offsets = [0, 64], sizes = [12, 32], strides = [1, 1]} : vector<12x96xf32> to vector<12x32xf32>
    %187 = vector.extract_strided_slice %168 {offsets = [0, 64], sizes = [12, 32], strides = [1, 1]} : vector<12x96xf32> to vector<12x32xf32>
    %188 = arith.mulf %177, %187 : vector<12x32xf32>
    %189 = arith.addf %186, %188 : vector<12x32xf32>
    %190 = math.tanh %189 : vector<12x32xf32>
    %cst_69 = arith.constant 1.000000e+00 : f32
    %191 = vector.broadcast %cst_69 : f32 to vector<12x32xf32>
    %192 = arith.subf %191, %185 : vector<12x32xf32>
    %193 = arith.mulf %192, %190 : vector<12x32xf32>
    %194 = arith.mulf %185, %169 : vector<12x32xf32>
    %195 = arith.addf %193, %194 : vector<12x32xf32>
    %c0_70 = arith.constant 0 : index
    %c0_71 = arith.constant 0 : index
    %196 = vector.load %arg15[%c0_70, %c0_71] : memref<12x64xf32, #tpu.memory_space<vmem>>, vector<12x32xf32>
    tpu.vector_store %arg15[%c0_70, %c0_71], %163 {strides = array<i32>} : memref<12x64xf32, #tpu.memory_space<vmem>>, vector<12x32xf32>,
    %c0_72 = arith.constant 0 : index
    %c32_73 = arith.constant 32 : index
    %197 = vector.load %arg15[%c0_72, %c32_73] : memref<12x64xf32, #tpu.memory_space<vmem>>, vector<12x32xf32>
    tpu.vector_store %arg15[%c0_72, %c32_73], %195 {strides = array<i32>} : memref<12x64xf32, #tpu.memory_space<vmem>>, vector<12x32xf32>,
    %c0_74 = arith.constant 0 : index
    %c0_75 = arith.constant 0 : index
    %198 = vector.load %arg15[%c0_74, %c0_75] : memref<12x64xf32, #tpu.memory_space<vmem>>, vector<12x64xf32>
    %c32_76 = arith.constant 32 : index
    %c0_77 = arith.constant 0 : index
    %199 = vector.load %arg7[%c32_76, %c0_77] : memref<128x192xf32, #tpu.memory_space<vmem>>, vector<64x192xf32>
    %cst_78 = arith.constant dense<0.000000e+00> : vector<12x192xf32>
    %200 = tpu.matmul %198, %199, %cst_78 {dimension_numbers = #tpu.dot_dimension_numbers<[1], [0], [0], [1], [0, 0, 1, 1], [], []>} : vector<12x64xf32>, vector<64x192xf32>, vector<12x192xf32> -> vector<12x192xf32>
    %201 = vector.broadcast %58 : vector<1x192xf32> to vector<12x192xf32>
    %202 = arith.addf %200, %201 : vector<12x192xf32>
    %203 = vector.extract_strided_slice %57 {offsets = [24, 0], sizes = [12, 96], strides = [1, 1]} : vector<96x96xf32> to vector<12x96xf32>
    %204 = vector.extract_strided_slice %202 {offsets = [0, 0], sizes = [12, 96], strides = [1, 1]} : vector<12x192xf32> to vector<12x96xf32>
    %205 = vector.extract_strided_slice %198 {offsets = [0, 0], sizes = [12, 32], strides = [1, 1]} : vector<12x64xf32> to vector<12x32xf32>
    %206 = vector.extract_strided_slice %203 {offsets = [0, 0], sizes = [12, 32], strides = [1, 1]} : vector<12x96xf32> to vector<12x32xf32>
    %207 = vector.extract_strided_slice %204 {offsets = [0, 0], sizes = [12, 32], strides = [1, 1]} : vector<12x96xf32> to vector<12x32xf32>
    %208 = arith.addf %206, %207 : vector<12x32xf32>
    %209 = arith.negf %208 : vector<12x32xf32>
    %210 = math.exp %209 : vector<12x32xf32>
    %cst_79 = arith.constant 1.000000e+00 : f32
    %211 = vector.broadcast %cst_79 : f32 to vector<12x32xf32>
    %212 = arith.addf %211, %210 : vector<12x32xf32>
    %213 = arith.divf %211, %212 : vector<12x32xf32>
    %214 = vector.extract_strided_slice %203 {offsets = [0, 32], sizes = [12, 32], strides = [1, 1]} : vector<12x96xf32> to vector<12x32xf32>
    %215 = vector.extract_strided_slice %204 {offsets = [0, 32], sizes = [12, 32], strides = [1, 1]} : vector<12x96xf32> to vector<12x32xf32>
    %216 = arith.addf %214, %215 : vector<12x32xf32>
    %217 = arith.negf %216 : vector<12x32xf32>
    %218 = math.exp %217 : vector<12x32xf32>
    %cst_80 = arith.constant 1.000000e+00 : f32
    %219 = vector.broadcast %cst_80 : f32 to vector<12x32xf32>
    %220 = arith.addf %219, %218 : vector<12x32xf32>
    %221 = arith.divf %219, %220 : vector<12x32xf32>
    %222 = vector.extract_strided_slice %203 {offsets = [0, 64], sizes = [12, 32], strides = [1, 1]} : vector<12x96xf32> to vector<12x32xf32>
    %223 = vector.extract_strided_slice %204 {offsets = [0, 64], sizes = [12, 32], strides = [1, 1]} : vector<12x96xf32> to vector<12x32xf32>
    %224 = arith.mulf %213, %223 : vector<12x32xf32>
    %225 = arith.addf %222, %224 : vector<12x32xf32>
    %226 = math.tanh %225 : vector<12x32xf32>
    %cst_81 = arith.constant 1.000000e+00 : f32
    %227 = vector.broadcast %cst_81 : f32 to vector<12x32xf32>
    %228 = arith.subf %227, %221 : vector<12x32xf32>
    %229 = arith.mulf %228, %226 : vector<12x32xf32>
    %230 = arith.mulf %221, %205 : vector<12x32xf32>
    %231 = arith.addf %229, %230 : vector<12x32xf32>
    %c96_82 = arith.constant 96 : index
    %c0_83 = arith.constant 0 : index
    %232 = vector.load %arg7[%c96_82, %c0_83] : memref<128x192xf32, #tpu.memory_space<vmem>>, vector<32x96xf32>
    %cst_84 = arith.constant dense<0.000000e+00> : vector<12x96xf32>
    %233 = tpu.matmul %231, %232, %cst_84 {dimension_numbers = #tpu.dot_dimension_numbers<[1], [0], [0], [1], [0, 0, 1, 1], [], []>} : vector<12x32xf32>, vector<32x96xf32>, vector<12x96xf32> -> vector<12x96xf32>
    %234 = vector.broadcast %59 : vector<1x96xf32> to vector<12x96xf32>
    %235 = arith.addf %233, %234 : vector<12x96xf32>
    %236 = vector.extract_strided_slice %202 {offsets = [0, 96], sizes = [12, 96], strides = [1, 1]} : vector<12x192xf32> to vector<12x96xf32>
    %237 = vector.extract_strided_slice %198 {offsets = [0, 32], sizes = [12, 32], strides = [1, 1]} : vector<12x64xf32> to vector<12x32xf32>
    %238 = vector.extract_strided_slice %235 {offsets = [0, 0], sizes = [12, 32], strides = [1, 1]} : vector<12x96xf32> to vector<12x32xf32>
    %239 = vector.extract_strided_slice %236 {offsets = [0, 0], sizes = [12, 32], strides = [1, 1]} : vector<12x96xf32> to vector<12x32xf32>
    %240 = arith.addf %238, %239 : vector<12x32xf32>
    %241 = arith.negf %240 : vector<12x32xf32>
    %242 = math.exp %241 : vector<12x32xf32>
    %cst_85 = arith.constant 1.000000e+00 : f32
    %243 = vector.broadcast %cst_85 : f32 to vector<12x32xf32>
    %244 = arith.addf %243, %242 : vector<12x32xf32>
    %245 = arith.divf %243, %244 : vector<12x32xf32>
    %246 = vector.extract_strided_slice %235 {offsets = [0, 32], sizes = [12, 32], strides = [1, 1]} : vector<12x96xf32> to vector<12x32xf32>
    %247 = vector.extract_strided_slice %236 {offsets = [0, 32], sizes = [12, 32], strides = [1, 1]} : vector<12x96xf32> to vector<12x32xf32>
    %248 = arith.addf %246, %247 : vector<12x32xf32>
    %249 = arith.negf %248 : vector<12x32xf32>
    %250 = math.exp %249 : vector<12x32xf32>
    %cst_86 = arith.constant 1.000000e+00 : f32
    %251 = vector.broadcast %cst_86 : f32 to vector<12x32xf32>
    %252 = arith.addf %251, %250 : vector<12x32xf32>
    %253 = arith.divf %251, %252 : vector<12x32xf32>
    %254 = vector.extract_strided_slice %235 {offsets = [0, 64], sizes = [12, 32], strides = [1, 1]} : vector<12x96xf32> to vector<12x32xf32>
    %255 = vector.extract_strided_slice %236 {offsets = [0, 64], sizes = [12, 32], strides = [1, 1]} : vector<12x96xf32> to vector<12x32xf32>
    %256 = arith.mulf %245, %255 : vector<12x32xf32>
    %257 = arith.addf %254, %256 : vector<12x32xf32>
    %258 = math.tanh %257 : vector<12x32xf32>
    %cst_87 = arith.constant 1.000000e+00 : f32
    %259 = vector.broadcast %cst_87 : f32 to vector<12x32xf32>
    %260 = arith.subf %259, %253 : vector<12x32xf32>
    %261 = arith.mulf %260, %258 : vector<12x32xf32>
    %262 = arith.mulf %253, %237 : vector<12x32xf32>
    %263 = arith.addf %261, %262 : vector<12x32xf32>
    %c0_88 = arith.constant 0 : index
    %c0_89 = arith.constant 0 : index
    %264 = vector.load %arg15[%c0_88, %c0_89] : memref<12x64xf32, #tpu.memory_space<vmem>>, vector<12x32xf32>
    tpu.vector_store %arg15[%c0_88, %c0_89], %231 {strides = array<i32>} : memref<12x64xf32, #tpu.memory_space<vmem>>, vector<12x32xf32>,
    %c0_90 = arith.constant 0 : index
    %c32_91 = arith.constant 32 : index
    %265 = vector.load %arg15[%c0_90, %c32_91] : memref<12x64xf32, #tpu.memory_space<vmem>>, vector<12x32xf32>
    tpu.vector_store %arg15[%c0_90, %c32_91], %263 {strides = array<i32>} : memref<12x64xf32, #tpu.memory_space<vmem>>, vector<12x32xf32>,
    %c0_92 = arith.constant 0 : index
    %c0_93 = arith.constant 0 : index
    %266 = vector.load %arg15[%c0_92, %c0_93] : memref<12x64xf32, #tpu.memory_space<vmem>>, vector<12x64xf32>
    %c32_94 = arith.constant 32 : index
    %c0_95 = arith.constant 0 : index
    %267 = vector.load %arg7[%c32_94, %c0_95] : memref<128x192xf32, #tpu.memory_space<vmem>>, vector<64x192xf32>
    %cst_96 = arith.constant dense<0.000000e+00> : vector<12x192xf32>
    %268 = tpu.matmul %266, %267, %cst_96 {dimension_numbers = #tpu.dot_dimension_numbers<[1], [0], [0], [1], [0, 0, 1, 1], [], []>} : vector<12x64xf32>, vector<64x192xf32>, vector<12x192xf32> -> vector<12x192xf32>
    %269 = vector.broadcast %58 : vector<1x192xf32> to vector<12x192xf32>
    %270 = arith.addf %268, %269 : vector<12x192xf32>
    %271 = vector.extract_strided_slice %57 {offsets = [36, 0], sizes = [12, 96], strides = [1, 1]} : vector<96x96xf32> to vector<12x96xf32>
    %272 = vector.extract_strided_slice %270 {offsets = [0, 0], sizes = [12, 96], strides = [1, 1]} : vector<12x192xf32> to vector<12x96xf32>
    %273 = vector.extract_strided_slice %266 {offsets = [0, 0], sizes = [12, 32], strides = [1, 1]} : vector<12x64xf32> to vector<12x32xf32>
    %274 = vector.extract_strided_slice %271 {offsets = [0, 0], sizes = [12, 32], strides = [1, 1]} : vector<12x96xf32> to vector<12x32xf32>
    %275 = vector.extract_strided_slice %272 {offsets = [0, 0], sizes = [12, 32], strides = [1, 1]} : vector<12x96xf32> to vector<12x32xf32>
    %276 = arith.addf %274, %275 : vector<12x32xf32>
    %277 = arith.negf %276 : vector<12x32xf32>
    %278 = math.exp %277 : vector<12x32xf32>
    %cst_97 = arith.constant 1.000000e+00 : f32
    %279 = vector.broadcast %cst_97 : f32 to vector<12x32xf32>
    %280 = arith.addf %279, %278 : vector<12x32xf32>
    %281 = arith.divf %279, %280 : vector<12x32xf32>
    %282 = vector.extract_strided_slice %271 {offsets = [0, 32], sizes = [12, 32], strides = [1, 1]} : vector<12x96xf32> to vector<12x32xf32>
    %283 = vector.extract_strided_slice %272 {offsets = [0, 32], sizes = [12, 32], strides = [1, 1]} : vector<12x96xf32> to vector<12x32xf32>
    %284 = arith.addf %282, %283 : vector<12x32xf32>
    %285 = arith.negf %284 : vector<12x32xf32>
    %286 = math.exp %285 : vector<12x32xf32>
    %cst_98 = arith.constant 1.000000e+00 : f32
    %287 = vector.broadcast %cst_98 : f32 to vector<12x32xf32>
    %288 = arith.addf %287, %286 : vector<12x32xf32>
    %289 = arith.divf %287, %288 : vector<12x32xf32>
    %290 = vector.extract_strided_slice %271 {offsets = [0, 64], sizes = [12, 32], strides = [1, 1]} : vector<12x96xf32> to vector<12x32xf32>
    %291 = vector.extract_strided_slice %272 {offsets = [0, 64], sizes = [12, 32], strides = [1, 1]} : vector<12x96xf32> to vector<12x32xf32>
    %292 = arith.mulf %281, %291 : vector<12x32xf32>
    %293 = arith.addf %290, %292 : vector<12x32xf32>
    %294 = math.tanh %293 : vector<12x32xf32>
    %cst_99 = arith.constant 1.000000e+00 : f32
    %295 = vector.broadcast %cst_99 : f32 to vector<12x32xf32>
    %296 = arith.subf %295, %289 : vector<12x32xf32>
    %297 = arith.mulf %296, %294 : vector<12x32xf32>
    %298 = arith.mulf %289, %273 : vector<12x32xf32>
    %299 = arith.addf %297, %298 : vector<12x32xf32>
    %c96_100 = arith.constant 96 : index
    %c0_101 = arith.constant 0 : index
    %300 = vector.load %arg7[%c96_100, %c0_101] : memref<128x192xf32, #tpu.memory_space<vmem>>, vector<32x96xf32>
    %cst_102 = arith.constant dense<0.000000e+00> : vector<12x96xf32>
    %301 = tpu.matmul %299, %300, %cst_102 {dimension_numbers = #tpu.dot_dimension_numbers<[1], [0], [0], [1], [0, 0, 1, 1], [], []>} : vector<12x32xf32>, vector<32x96xf32>, vector<12x96xf32> -> vector<12x96xf32>
    %302 = vector.broadcast %59 : vector<1x96xf32> to vector<12x96xf32>
    %303 = arith.addf %301, %302 : vector<12x96xf32>
    %304 = vector.extract_strided_slice %270 {offsets = [0, 96], sizes = [12, 96], strides = [1, 1]} : vector<12x192xf32> to vector<12x96xf32>
    %305 = vector.extract_strided_slice %266 {offsets = [0, 32], sizes = [12, 32], strides = [1, 1]} : vector<12x64xf32> to vector<12x32xf32>
    %306 = vector.extract_strided_slice %303 {offsets = [0, 0], sizes = [12, 32], strides = [1, 1]} : vector<12x96xf32> to vector<12x32xf32>
    %307 = vector.extract_strided_slice %304 {offsets = [0, 0], sizes = [12, 32], strides = [1, 1]} : vector<12x96xf32> to vector<12x32xf32>
    %308 = arith.addf %306, %307 : vector<12x32xf32>
    %309 = arith.negf %308 : vector<12x32xf32>
    %310 = math.exp %309 : vector<12x32xf32>
    %cst_103 = arith.constant 1.000000e+00 : f32
    %311 = vector.broadcast %cst_103 : f32 to vector<12x32xf32>
    %312 = arith.addf %311, %310 : vector<12x32xf32>
    %313 = arith.divf %311, %312 : vector<12x32xf32>
    %314 = vector.extract_strided_slice %303 {offsets = [0, 32], sizes = [12, 32], strides = [1, 1]} : vector<12x96xf32> to vector<12x32xf32>
    %315 = vector.extract_strided_slice %304 {offsets = [0, 32], sizes = [12, 32], strides = [1, 1]} : vector<12x96xf32> to vector<12x32xf32>
    %316 = arith.addf %314, %315 : vector<12x32xf32>
    %317 = arith.negf %316 : vector<12x32xf32>
    %318 = math.exp %317 : vector<12x32xf32>
    %cst_104 = arith.constant 1.000000e+00 : f32
    %319 = vector.broadcast %cst_104 : f32 to vector<12x32xf32>
    %320 = arith.addf %319, %318 : vector<12x32xf32>
    %321 = arith.divf %319, %320 : vector<12x32xf32>
    %322 = vector.extract_strided_slice %303 {offsets = [0, 64], sizes = [12, 32], strides = [1, 1]} : vector<12x96xf32> to vector<12x32xf32>
    %323 = vector.extract_strided_slice %304 {offsets = [0, 64], sizes = [12, 32], strides = [1, 1]} : vector<12x96xf32> to vector<12x32xf32>
    %324 = arith.mulf %313, %323 : vector<12x32xf32>
    %325 = arith.addf %322, %324 : vector<12x32xf32>
    %326 = math.tanh %325 : vector<12x32xf32>
    %cst_105 = arith.constant 1.000000e+00 : f32
    %327 = vector.broadcast %cst_105 : f32 to vector<12x32xf32>
    %328 = arith.subf %327, %321 : vector<12x32xf32>
    %329 = arith.mulf %328, %326 : vector<12x32xf32>
    %330 = arith.mulf %321, %305 : vector<12x32xf32>
    %331 = arith.addf %329, %330 : vector<12x32xf32>
    %c0_106 = arith.constant 0 : index
    %c0_107 = arith.constant 0 : index
    %332 = vector.load %arg15[%c0_106, %c0_107] : memref<12x64xf32, #tpu.memory_space<vmem>>, vector<12x32xf32>
    tpu.vector_store %arg15[%c0_106, %c0_107], %299 {strides = array<i32>} : memref<12x64xf32, #tpu.memory_space<vmem>>, vector<12x32xf32>,
    %c0_108 = arith.constant 0 : index
    %c32_109 = arith.constant 32 : index
    %333 = vector.load %arg15[%c0_108, %c32_109] : memref<12x64xf32, #tpu.memory_space<vmem>>, vector<12x32xf32>
    tpu.vector_store %arg15[%c0_108, %c32_109], %331 {strides = array<i32>} : memref<12x64xf32, #tpu.memory_space<vmem>>, vector<12x32xf32>,
    %c0_110 = arith.constant 0 : index
    %c0_111 = arith.constant 0 : index
    %334 = vector.load %arg15[%c0_110, %c0_111] : memref<12x64xf32, #tpu.memory_space<vmem>>, vector<12x64xf32>
    %c32_112 = arith.constant 32 : index
    %c0_113 = arith.constant 0 : index
    %335 = vector.load %arg7[%c32_112, %c0_113] : memref<128x192xf32, #tpu.memory_space<vmem>>, vector<64x192xf32>
    %cst_114 = arith.constant dense<0.000000e+00> : vector<12x192xf32>
    %336 = tpu.matmul %334, %335, %cst_114 {dimension_numbers = #tpu.dot_dimension_numbers<[1], [0], [0], [1], [0, 0, 1, 1], [], []>} : vector<12x64xf32>, vector<64x192xf32>, vector<12x192xf32> -> vector<12x192xf32>
    %337 = vector.broadcast %58 : vector<1x192xf32> to vector<12x192xf32>
    %338 = arith.addf %336, %337 : vector<12x192xf32>
    %339 = vector.extract_strided_slice %57 {offsets = [48, 0], sizes = [12, 96], strides = [1, 1]} : vector<96x96xf32> to vector<12x96xf32>
    %340 = vector.extract_strided_slice %338 {offsets = [0, 0], sizes = [12, 96], strides = [1, 1]} : vector<12x192xf32> to vector<12x96xf32>
    %341 = vector.extract_strided_slice %334 {offsets = [0, 0], sizes = [12, 32], strides = [1, 1]} : vector<12x64xf32> to vector<12x32xf32>
    %342 = vector.extract_strided_slice %339 {offsets = [0, 0], sizes = [12, 32], strides = [1, 1]} : vector<12x96xf32> to vector<12x32xf32>
    %343 = vector.extract_strided_slice %340 {offsets = [0, 0], sizes = [12, 32], strides = [1, 1]} : vector<12x96xf32> to vector<12x32xf32>
    %344 = arith.addf %342, %343 : vector<12x32xf32>
    %345 = arith.negf %344 : vector<12x32xf32>
    %346 = math.exp %345 : vector<12x32xf32>
    %cst_115 = arith.constant 1.000000e+00 : f32
    %347 = vector.broadcast %cst_115 : f32 to vector<12x32xf32>
    %348 = arith.addf %347, %346 : vector<12x32xf32>
    %349 = arith.divf %347, %348 : vector<12x32xf32>
    %350 = vector.extract_strided_slice %339 {offsets = [0, 32], sizes = [12, 32], strides = [1, 1]} : vector<12x96xf32> to vector<12x32xf32>
    %351 = vector.extract_strided_slice %340 {offsets = [0, 32], sizes = [12, 32], strides = [1, 1]} : vector<12x96xf32> to vector<12x32xf32>
    %352 = arith.addf %350, %351 : vector<12x32xf32>
    %353 = arith.negf %352 : vector<12x32xf32>
    %354 = math.exp %353 : vector<12x32xf32>
    %cst_116 = arith.constant 1.000000e+00 : f32
    %355 = vector.broadcast %cst_116 : f32 to vector<12x32xf32>
    %356 = arith.addf %355, %354 : vector<12x32xf32>
    %357 = arith.divf %355, %356 : vector<12x32xf32>
    %358 = vector.extract_strided_slice %339 {offsets = [0, 64], sizes = [12, 32], strides = [1, 1]} : vector<12x96xf32> to vector<12x32xf32>
    %359 = vector.extract_strided_slice %340 {offsets = [0, 64], sizes = [12, 32], strides = [1, 1]} : vector<12x96xf32> to vector<12x32xf32>
    %360 = arith.mulf %349, %359 : vector<12x32xf32>
    %361 = arith.addf %358, %360 : vector<12x32xf32>
    %362 = math.tanh %361 : vector<12x32xf32>
    %cst_117 = arith.constant 1.000000e+00 : f32
    %363 = vector.broadcast %cst_117 : f32 to vector<12x32xf32>
    %364 = arith.subf %363, %357 : vector<12x32xf32>
    %365 = arith.mulf %364, %362 : vector<12x32xf32>
    %366 = arith.mulf %357, %341 : vector<12x32xf32>
    %367 = arith.addf %365, %366 : vector<12x32xf32>
    %c96_118 = arith.constant 96 : index
    %c0_119 = arith.constant 0 : index
    %368 = vector.load %arg7[%c96_118, %c0_119] : memref<128x192xf32, #tpu.memory_space<vmem>>, vector<32x96xf32>
    %cst_120 = arith.constant dense<0.000000e+00> : vector<12x96xf32>
    %369 = tpu.matmul %367, %368, %cst_120 {dimension_numbers = #tpu.dot_dimension_numbers<[1], [0], [0], [1], [0, 0, 1, 1], [], []>} : vector<12x32xf32>, vector<32x96xf32>, vector<12x96xf32> -> vector<12x96xf32>
    %370 = vector.broadcast %59 : vector<1x96xf32> to vector<12x96xf32>
    %371 = arith.addf %369, %370 : vector<12x96xf32>
    %372 = vector.extract_strided_slice %338 {offsets = [0, 96], sizes = [12, 96], strides = [1, 1]} : vector<12x192xf32> to vector<12x96xf32>
    %373 = vector.extract_strided_slice %334 {offsets = [0, 32], sizes = [12, 32], strides = [1, 1]} : vector<12x64xf32> to vector<12x32xf32>
    %374 = vector.extract_strided_slice %371 {offsets = [0, 0], sizes = [12, 32], strides = [1, 1]} : vector<12x96xf32> to vector<12x32xf32>
    %375 = vector.extract_strided_slice %372 {offsets = [0, 0], sizes = [12, 32], strides = [1, 1]} : vector<12x96xf32> to vector<12x32xf32>
    %376 = arith.addf %374, %375 : vector<12x32xf32>
    %377 = arith.negf %376 : vector<12x32xf32>
    %378 = math.exp %377 : vector<12x32xf32>
    %cst_121 = arith.constant 1.000000e+00 : f32
    %379 = vector.broadcast %cst_121 : f32 to vector<12x32xf32>
    %380 = arith.addf %379, %378 : vector<12x32xf32>
    %381 = arith.divf %379, %380 : vector<12x32xf32>
    %382 = vector.extract_strided_slice %371 {offsets = [0, 32], sizes = [12, 32], strides = [1, 1]} : vector<12x96xf32> to vector<12x32xf32>
    %383 = vector.extract_strided_slice %372 {offsets = [0, 32], sizes = [12, 32], strides = [1, 1]} : vector<12x96xf32> to vector<12x32xf32>
    %384 = arith.addf %382, %383 : vector<12x32xf32>
    %385 = arith.negf %384 : vector<12x32xf32>
    %386 = math.exp %385 : vector<12x32xf32>
    %cst_122 = arith.constant 1.000000e+00 : f32
    %387 = vector.broadcast %cst_122 : f32 to vector<12x32xf32>
    %388 = arith.addf %387, %386 : vector<12x32xf32>
    %389 = arith.divf %387, %388 : vector<12x32xf32>
    %390 = vector.extract_strided_slice %371 {offsets = [0, 64], sizes = [12, 32], strides = [1, 1]} : vector<12x96xf32> to vector<12x32xf32>
    %391 = vector.extract_strided_slice %372 {offsets = [0, 64], sizes = [12, 32], strides = [1, 1]} : vector<12x96xf32> to vector<12x32xf32>
    %392 = arith.mulf %381, %391 : vector<12x32xf32>
    %393 = arith.addf %390, %392 : vector<12x32xf32>
    %394 = math.tanh %393 : vector<12x32xf32>
    %cst_123 = arith.constant 1.000000e+00 : f32
    %395 = vector.broadcast %cst_123 : f32 to vector<12x32xf32>
    %396 = arith.subf %395, %389 : vector<12x32xf32>
    %397 = arith.mulf %396, %394 : vector<12x32xf32>
    %398 = arith.mulf %389, %373 : vector<12x32xf32>
    %399 = arith.addf %397, %398 : vector<12x32xf32>
    %c0_124 = arith.constant 0 : index
    %c0_125 = arith.constant 0 : index
    %400 = vector.load %arg15[%c0_124, %c0_125] : memref<12x64xf32, #tpu.memory_space<vmem>>, vector<12x32xf32>
    tpu.vector_store %arg15[%c0_124, %c0_125], %367 {strides = array<i32>} : memref<12x64xf32, #tpu.memory_space<vmem>>, vector<12x32xf32>,
    %c0_126 = arith.constant 0 : index
    %c32_127 = arith.constant 32 : index
    %401 = vector.load %arg15[%c0_126, %c32_127] : memref<12x64xf32, #tpu.memory_space<vmem>>, vector<12x32xf32>
    tpu.vector_store %arg15[%c0_126, %c32_127], %399 {strides = array<i32>} : memref<12x64xf32, #tpu.memory_space<vmem>>, vector<12x32xf32>,
    %c0_128 = arith.constant 0 : index
    %c0_129 = arith.constant 0 : index
    %402 = vector.load %arg15[%c0_128, %c0_129] : memref<12x64xf32, #tpu.memory_space<vmem>>, vector<12x64xf32>
    %c32_130 = arith.constant 32 : index
    %c0_131 = arith.constant 0 : index
    %403 = vector.load %arg7[%c32_130, %c0_131] : memref<128x192xf32, #tpu.memory_space<vmem>>, vector<64x192xf32>
    %cst_132 = arith.constant dense<0.000000e+00> : vector<12x192xf32>
    %404 = tpu.matmul %402, %403, %cst_132 {dimension_numbers = #tpu.dot_dimension_numbers<[1], [0], [0], [1], [0, 0, 1, 1], [], []>} : vector<12x64xf32>, vector<64x192xf32>, vector<12x192xf32> -> vector<12x192xf32>
    %405 = vector.broadcast %58 : vector<1x192xf32> to vector<12x192xf32>
    %406 = arith.addf %404, %405 : vector<12x192xf32>
    %407 = vector.extract_strided_slice %57 {offsets = [60, 0], sizes = [12, 96], strides = [1, 1]} : vector<96x96xf32> to vector<12x96xf32>
    %408 = vector.extract_strided_slice %406 {offsets = [0, 0], sizes = [12, 96], strides = [1, 1]} : vector<12x192xf32> to vector<12x96xf32>
    %409 = vector.extract_strided_slice %402 {offsets = [0, 0], sizes = [12, 32], strides = [1, 1]} : vector<12x64xf32> to vector<12x32xf32>
    %410 = vector.extract_strided_slice %407 {offsets = [0, 0], sizes = [12, 32], strides = [1, 1]} : vector<12x96xf32> to vector<12x32xf32>
    %411 = vector.extract_strided_slice %408 {offsets = [0, 0], sizes = [12, 32], strides = [1, 1]} : vector<12x96xf32> to vector<12x32xf32>
    %412 = arith.addf %410, %411 : vector<12x32xf32>
    %413 = arith.negf %412 : vector<12x32xf32>
    %414 = math.exp %413 : vector<12x32xf32>
    %cst_133 = arith.constant 1.000000e+00 : f32
    %415 = vector.broadcast %cst_133 : f32 to vector<12x32xf32>
    %416 = arith.addf %415, %414 : vector<12x32xf32>
    %417 = arith.divf %415, %416 : vector<12x32xf32>
    %418 = vector.extract_strided_slice %407 {offsets = [0, 32], sizes = [12, 32], strides = [1, 1]} : vector<12x96xf32> to vector<12x32xf32>
    %419 = vector.extract_strided_slice %408 {offsets = [0, 32], sizes = [12, 32], strides = [1, 1]} : vector<12x96xf32> to vector<12x32xf32>
    %420 = arith.addf %418, %419 : vector<12x32xf32>
    %421 = arith.negf %420 : vector<12x32xf32>
    %422 = math.exp %421 : vector<12x32xf32>
    %cst_134 = arith.constant 1.000000e+00 : f32
    %423 = vector.broadcast %cst_134 : f32 to vector<12x32xf32>
    %424 = arith.addf %423, %422 : vector<12x32xf32>
    %425 = arith.divf %423, %424 : vector<12x32xf32>
    %426 = vector.extract_strided_slice %407 {offsets = [0, 64], sizes = [12, 32], strides = [1, 1]} : vector<12x96xf32> to vector<12x32xf32>
    %427 = vector.extract_strided_slice %408 {offsets = [0, 64], sizes = [12, 32], strides = [1, 1]} : vector<12x96xf32> to vector<12x32xf32>
    %428 = arith.mulf %417, %427 : vector<12x32xf32>
    %429 = arith.addf %426, %428 : vector<12x32xf32>
    %430 = math.tanh %429 : vector<12x32xf32>
    %cst_135 = arith.constant 1.000000e+00 : f32
    %431 = vector.broadcast %cst_135 : f32 to vector<12x32xf32>
    %432 = arith.subf %431, %425 : vector<12x32xf32>
    %433 = arith.mulf %432, %430 : vector<12x32xf32>
    %434 = arith.mulf %425, %409 : vector<12x32xf32>
    %435 = arith.addf %433, %434 : vector<12x32xf32>
    %c96_136 = arith.constant 96 : index
    %c0_137 = arith.constant 0 : index
    %436 = vector.load %arg7[%c96_136, %c0_137] : memref<128x192xf32, #tpu.memory_space<vmem>>, vector<32x96xf32>
    %cst_138 = arith.constant dense<0.000000e+00> : vector<12x96xf32>
    %437 = tpu.matmul %435, %436, %cst_138 {dimension_numbers = #tpu.dot_dimension_numbers<[1], [0], [0], [1], [0, 0, 1, 1], [], []>} : vector<12x32xf32>, vector<32x96xf32>, vector<12x96xf32> -> vector<12x96xf32>
    %438 = vector.broadcast %59 : vector<1x96xf32> to vector<12x96xf32>
    %439 = arith.addf %437, %438 : vector<12x96xf32>
    %440 = vector.extract_strided_slice %406 {offsets = [0, 96], sizes = [12, 96], strides = [1, 1]} : vector<12x192xf32> to vector<12x96xf32>
    %441 = vector.extract_strided_slice %402 {offsets = [0, 32], sizes = [12, 32], strides = [1, 1]} : vector<12x64xf32> to vector<12x32xf32>
    %442 = vector.extract_strided_slice %439 {offsets = [0, 0], sizes = [12, 32], strides = [1, 1]} : vector<12x96xf32> to vector<12x32xf32>
    %443 = vector.extract_strided_slice %440 {offsets = [0, 0], sizes = [12, 32], strides = [1, 1]} : vector<12x96xf32> to vector<12x32xf32>
    %444 = arith.addf %442, %443 : vector<12x32xf32>
    %445 = arith.negf %444 : vector<12x32xf32>
    %446 = math.exp %445 : vector<12x32xf32>
    %cst_139 = arith.constant 1.000000e+00 : f32
    %447 = vector.broadcast %cst_139 : f32 to vector<12x32xf32>
    %448 = arith.addf %447, %446 : vector<12x32xf32>
    %449 = arith.divf %447, %448 : vector<12x32xf32>
    %450 = vector.extract_strided_slice %439 {offsets = [0, 32], sizes = [12, 32], strides = [1, 1]} : vector<12x96xf32> to vector<12x32xf32>
    %451 = vector.extract_strided_slice %440 {offsets = [0, 32], sizes = [12, 32], strides = [1, 1]} : vector<12x96xf32> to vector<12x32xf32>
    %452 = arith.addf %450, %451 : vector<12x32xf32>
    %453 = arith.negf %452 : vector<12x32xf32>
    %454 = math.exp %453 : vector<12x32xf32>
    %cst_140 = arith.constant 1.000000e+00 : f32
    %455 = vector.broadcast %cst_140 : f32 to vector<12x32xf32>
    %456 = arith.addf %455, %454 : vector<12x32xf32>
    %457 = arith.divf %455, %456 : vector<12x32xf32>
    %458 = vector.extract_strided_slice %439 {offsets = [0, 64], sizes = [12, 32], strides = [1, 1]} : vector<12x96xf32> to vector<12x32xf32>
    %459 = vector.extract_strided_slice %440 {offsets = [0, 64], sizes = [12, 32], strides = [1, 1]} : vector<12x96xf32> to vector<12x32xf32>
    %460 = arith.mulf %449, %459 : vector<12x32xf32>
    %461 = arith.addf %458, %460 : vector<12x32xf32>
    %462 = math.tanh %461 : vector<12x32xf32>
    %cst_141 = arith.constant 1.000000e+00 : f32
    %463 = vector.broadcast %cst_141 : f32 to vector<12x32xf32>
    %464 = arith.subf %463, %457 : vector<12x32xf32>
    %465 = arith.mulf %464, %462 : vector<12x32xf32>
    %466 = arith.mulf %457, %441 : vector<12x32xf32>
    %467 = arith.addf %465, %466 : vector<12x32xf32>
    %c0_142 = arith.constant 0 : index
    %c0_143 = arith.constant 0 : index
    %468 = vector.load %arg15[%c0_142, %c0_143] : memref<12x64xf32, #tpu.memory_space<vmem>>, vector<12x32xf32>
    tpu.vector_store %arg15[%c0_142, %c0_143], %435 {strides = array<i32>} : memref<12x64xf32, #tpu.memory_space<vmem>>, vector<12x32xf32>,
    %c0_144 = arith.constant 0 : index
    %c32_145 = arith.constant 32 : index
    %469 = vector.load %arg15[%c0_144, %c32_145] : memref<12x64xf32, #tpu.memory_space<vmem>>, vector<12x32xf32>
    tpu.vector_store %arg15[%c0_144, %c32_145], %467 {strides = array<i32>} : memref<12x64xf32, #tpu.memory_space<vmem>>, vector<12x32xf32>,
    %c0_146 = arith.constant 0 : index
    %c0_147 = arith.constant 0 : index
    %470 = vector.load %arg15[%c0_146, %c0_147] : memref<12x64xf32, #tpu.memory_space<vmem>>, vector<12x64xf32>
    %c32_148 = arith.constant 32 : index
    %c0_149 = arith.constant 0 : index
    %471 = vector.load %arg7[%c32_148, %c0_149] : memref<128x192xf32, #tpu.memory_space<vmem>>, vector<64x192xf32>
    %cst_150 = arith.constant dense<0.000000e+00> : vector<12x192xf32>
    %472 = tpu.matmul %470, %471, %cst_150 {dimension_numbers = #tpu.dot_dimension_numbers<[1], [0], [0], [1], [0, 0, 1, 1], [], []>} : vector<12x64xf32>, vector<64x192xf32>, vector<12x192xf32> -> vector<12x192xf32>
    %473 = vector.broadcast %58 : vector<1x192xf32> to vector<12x192xf32>
    %474 = arith.addf %472, %473 : vector<12x192xf32>
    %475 = vector.extract_strided_slice %57 {offsets = [72, 0], sizes = [12, 96], strides = [1, 1]} : vector<96x96xf32> to vector<12x96xf32>
    %476 = vector.extract_strided_slice %474 {offsets = [0, 0], sizes = [12, 96], strides = [1, 1]} : vector<12x192xf32> to vector<12x96xf32>
    %477 = vector.extract_strided_slice %470 {offsets = [0, 0], sizes = [12, 32], strides = [1, 1]} : vector<12x64xf32> to vector<12x32xf32>
    %478 = vector.extract_strided_slice %475 {offsets = [0, 0], sizes = [12, 32], strides = [1, 1]} : vector<12x96xf32> to vector<12x32xf32>
    %479 = vector.extract_strided_slice %476 {offsets = [0, 0], sizes = [12, 32], strides = [1, 1]} : vector<12x96xf32> to vector<12x32xf32>
    %480 = arith.addf %478, %479 : vector<12x32xf32>
    %481 = arith.negf %480 : vector<12x32xf32>
    %482 = math.exp %481 : vector<12x32xf32>
    %cst_151 = arith.constant 1.000000e+00 : f32
    %483 = vector.broadcast %cst_151 : f32 to vector<12x32xf32>
    %484 = arith.addf %483, %482 : vector<12x32xf32>
    %485 = arith.divf %483, %484 : vector<12x32xf32>
    %486 = vector.extract_strided_slice %475 {offsets = [0, 32], sizes = [12, 32], strides = [1, 1]} : vector<12x96xf32> to vector<12x32xf32>
    %487 = vector.extract_strided_slice %476 {offsets = [0, 32], sizes = [12, 32], strides = [1, 1]} : vector<12x96xf32> to vector<12x32xf32>
    %488 = arith.addf %486, %487 : vector<12x32xf32>
    %489 = arith.negf %488 : vector<12x32xf32>
    %490 = math.exp %489 : vector<12x32xf32>
    %cst_152 = arith.constant 1.000000e+00 : f32
    %491 = vector.broadcast %cst_152 : f32 to vector<12x32xf32>
    %492 = arith.addf %491, %490 : vector<12x32xf32>
    %493 = arith.divf %491, %492 : vector<12x32xf32>
    %494 = vector.extract_strided_slice %475 {offsets = [0, 64], sizes = [12, 32], strides = [1, 1]} : vector<12x96xf32> to vector<12x32xf32>
    %495 = vector.extract_strided_slice %476 {offsets = [0, 64], sizes = [12, 32], strides = [1, 1]} : vector<12x96xf32> to vector<12x32xf32>
    %496 = arith.mulf %485, %495 : vector<12x32xf32>
    %497 = arith.addf %494, %496 : vector<12x32xf32>
    %498 = math.tanh %497 : vector<12x32xf32>
    %cst_153 = arith.constant 1.000000e+00 : f32
    %499 = vector.broadcast %cst_153 : f32 to vector<12x32xf32>
    %500 = arith.subf %499, %493 : vector<12x32xf32>
    %501 = arith.mulf %500, %498 : vector<12x32xf32>
    %502 = arith.mulf %493, %477 : vector<12x32xf32>
    %503 = arith.addf %501, %502 : vector<12x32xf32>
    %c96_154 = arith.constant 96 : index
    %c0_155 = arith.constant 0 : index
    %504 = vector.load %arg7[%c96_154, %c0_155] : memref<128x192xf32, #tpu.memory_space<vmem>>, vector<32x96xf32>
    %cst_156 = arith.constant dense<0.000000e+00> : vector<12x96xf32>
    %505 = tpu.matmul %503, %504, %cst_156 {dimension_numbers = #tpu.dot_dimension_numbers<[1], [0], [0], [1], [0, 0, 1, 1], [], []>} : vector<12x32xf32>, vector<32x96xf32>, vector<12x96xf32> -> vector<12x96xf32>
    %506 = vector.broadcast %59 : vector<1x96xf32> to vector<12x96xf32>
    %507 = arith.addf %505, %506 : vector<12x96xf32>
    %508 = vector.extract_strided_slice %474 {offsets = [0, 96], sizes = [12, 96], strides = [1, 1]} : vector<12x192xf32> to vector<12x96xf32>
    %509 = vector.extract_strided_slice %470 {offsets = [0, 32], sizes = [12, 32], strides = [1, 1]} : vector<12x64xf32> to vector<12x32xf32>
    %510 = vector.extract_strided_slice %507 {offsets = [0, 0], sizes = [12, 32], strides = [1, 1]} : vector<12x96xf32> to vector<12x32xf32>
    %511 = vector.extract_strided_slice %508 {offsets = [0, 0], sizes = [12, 32], strides = [1, 1]} : vector<12x96xf32> to vector<12x32xf32>
    %512 = arith.addf %510, %511 : vector<12x32xf32>
    %513 = arith.negf %512 : vector<12x32xf32>
    %514 = math.exp %513 : vector<12x32xf32>
    %cst_157 = arith.constant 1.000000e+00 : f32
    %515 = vector.broadcast %cst_157 : f32 to vector<12x32xf32>
    %516 = arith.addf %515, %514 : vector<12x32xf32>
    %517 = arith.divf %515, %516 : vector<12x32xf32>
    %518 = vector.extract_strided_slice %507 {offsets = [0, 32], sizes = [12, 32], strides = [1, 1]} : vector<12x96xf32> to vector<12x32xf32>
    %519 = vector.extract_strided_slice %508 {offsets = [0, 32], sizes = [12, 32], strides = [1, 1]} : vector<12x96xf32> to vector<12x32xf32>
    %520 = arith.addf %518, %519 : vector<12x32xf32>
    %521 = arith.negf %520 : vector<12x32xf32>
    %522 = math.exp %521 : vector<12x32xf32>
    %cst_158 = arith.constant 1.000000e+00 : f32
    %523 = vector.broadcast %cst_158 : f32 to vector<12x32xf32>
    %524 = arith.addf %523, %522 : vector<12x32xf32>
    %525 = arith.divf %523, %524 : vector<12x32xf32>
    %526 = vector.extract_strided_slice %507 {offsets = [0, 64], sizes = [12, 32], strides = [1, 1]} : vector<12x96xf32> to vector<12x32xf32>
    %527 = vector.extract_strided_slice %508 {offsets = [0, 64], sizes = [12, 32], strides = [1, 1]} : vector<12x96xf32> to vector<12x32xf32>
    %528 = arith.mulf %517, %527 : vector<12x32xf32>
    %529 = arith.addf %526, %528 : vector<12x32xf32>
    %530 = math.tanh %529 : vector<12x32xf32>
    %cst_159 = arith.constant 1.000000e+00 : f32
    %531 = vector.broadcast %cst_159 : f32 to vector<12x32xf32>
    %532 = arith.subf %531, %525 : vector<12x32xf32>
    %533 = arith.mulf %532, %530 : vector<12x32xf32>
    %534 = arith.mulf %525, %509 : vector<12x32xf32>
    %535 = arith.addf %533, %534 : vector<12x32xf32>
    %c0_160 = arith.constant 0 : index
    %c0_161 = arith.constant 0 : index
    %536 = vector.load %arg15[%c0_160, %c0_161] : memref<12x64xf32, #tpu.memory_space<vmem>>, vector<12x32xf32>
    tpu.vector_store %arg15[%c0_160, %c0_161], %503 {strides = array<i32>} : memref<12x64xf32, #tpu.memory_space<vmem>>, vector<12x32xf32>,
    %c0_162 = arith.constant 0 : index
    %c32_163 = arith.constant 32 : index
    %537 = vector.load %arg15[%c0_162, %c32_163] : memref<12x64xf32, #tpu.memory_space<vmem>>, vector<12x32xf32>
    tpu.vector_store %arg15[%c0_162, %c32_163], %535 {strides = array<i32>} : memref<12x64xf32, #tpu.memory_space<vmem>>, vector<12x32xf32>,
    %c0_164 = arith.constant 0 : index
    %c0_165 = arith.constant 0 : index
    %538 = vector.load %arg15[%c0_164, %c0_165] : memref<12x64xf32, #tpu.memory_space<vmem>>, vector<12x64xf32>
    %c32_166 = arith.constant 32 : index
    %c0_167 = arith.constant 0 : index
    %539 = vector.load %arg7[%c32_166, %c0_167] : memref<128x192xf32, #tpu.memory_space<vmem>>, vector<64x192xf32>
    %cst_168 = arith.constant dense<0.000000e+00> : vector<12x192xf32>
    %540 = tpu.matmul %538, %539, %cst_168 {dimension_numbers = #tpu.dot_dimension_numbers<[1], [0], [0], [1], [0, 0, 1, 1], [], []>} : vector<12x64xf32>, vector<64x192xf32>, vector<12x192xf32> -> vector<12x192xf32>
    %541 = vector.broadcast %58 : vector<1x192xf32> to vector<12x192xf32>
    %542 = arith.addf %540, %541 : vector<12x192xf32>
    %543 = vector.extract_strided_slice %57 {offsets = [84, 0], sizes = [12, 96], strides = [1, 1]} : vector<96x96xf32> to vector<12x96xf32>
    %544 = vector.extract_strided_slice %542 {offsets = [0, 0], sizes = [12, 96], strides = [1, 1]} : vector<12x192xf32> to vector<12x96xf32>
    %545 = vector.extract_strided_slice %538 {offsets = [0, 0], sizes = [12, 32], strides = [1, 1]} : vector<12x64xf32> to vector<12x32xf32>
    %546 = vector.extract_strided_slice %543 {offsets = [0, 0], sizes = [12, 32], strides = [1, 1]} : vector<12x96xf32> to vector<12x32xf32>
    %547 = vector.extract_strided_slice %544 {offsets = [0, 0], sizes = [12, 32], strides = [1, 1]} : vector<12x96xf32> to vector<12x32xf32>
    %548 = arith.addf %546, %547 : vector<12x32xf32>
    %549 = arith.negf %548 : vector<12x32xf32>
    %550 = math.exp %549 : vector<12x32xf32>
    %cst_169 = arith.constant 1.000000e+00 : f32
    %551 = vector.broadcast %cst_169 : f32 to vector<12x32xf32>
    %552 = arith.addf %551, %550 : vector<12x32xf32>
    %553 = arith.divf %551, %552 : vector<12x32xf32>
    %554 = vector.extract_strided_slice %543 {offsets = [0, 32], sizes = [12, 32], strides = [1, 1]} : vector<12x96xf32> to vector<12x32xf32>
    %555 = vector.extract_strided_slice %544 {offsets = [0, 32], sizes = [12, 32], strides = [1, 1]} : vector<12x96xf32> to vector<12x32xf32>
    %556 = arith.addf %554, %555 : vector<12x32xf32>
    %557 = arith.negf %556 : vector<12x32xf32>
    %558 = math.exp %557 : vector<12x32xf32>
    %cst_170 = arith.constant 1.000000e+00 : f32
    %559 = vector.broadcast %cst_170 : f32 to vector<12x32xf32>
    %560 = arith.addf %559, %558 : vector<12x32xf32>
    %561 = arith.divf %559, %560 : vector<12x32xf32>
    %562 = vector.extract_strided_slice %543 {offsets = [0, 64], sizes = [12, 32], strides = [1, 1]} : vector<12x96xf32> to vector<12x32xf32>
    %563 = vector.extract_strided_slice %544 {offsets = [0, 64], sizes = [12, 32], strides = [1, 1]} : vector<12x96xf32> to vector<12x32xf32>
    %564 = arith.mulf %553, %563 : vector<12x32xf32>
    %565 = arith.addf %562, %564 : vector<12x32xf32>
    %566 = math.tanh %565 : vector<12x32xf32>
    %cst_171 = arith.constant 1.000000e+00 : f32
    %567 = vector.broadcast %cst_171 : f32 to vector<12x32xf32>
    %568 = arith.subf %567, %561 : vector<12x32xf32>
    %569 = arith.mulf %568, %566 : vector<12x32xf32>
    %570 = arith.mulf %561, %545 : vector<12x32xf32>
    %571 = arith.addf %569, %570 : vector<12x32xf32>
    %c96_172 = arith.constant 96 : index
    %c0_173 = arith.constant 0 : index
    %572 = vector.load %arg7[%c96_172, %c0_173] : memref<128x192xf32, #tpu.memory_space<vmem>>, vector<32x96xf32>
    %cst_174 = arith.constant dense<0.000000e+00> : vector<12x96xf32>
    %573 = tpu.matmul %571, %572, %cst_174 {dimension_numbers = #tpu.dot_dimension_numbers<[1], [0], [0], [1], [0, 0, 1, 1], [], []>} : vector<12x32xf32>, vector<32x96xf32>, vector<12x96xf32> -> vector<12x96xf32>
    %574 = vector.broadcast %59 : vector<1x96xf32> to vector<12x96xf32>
    %575 = arith.addf %573, %574 : vector<12x96xf32>
    %576 = vector.extract_strided_slice %542 {offsets = [0, 96], sizes = [12, 96], strides = [1, 1]} : vector<12x192xf32> to vector<12x96xf32>
    %577 = vector.extract_strided_slice %538 {offsets = [0, 32], sizes = [12, 32], strides = [1, 1]} : vector<12x64xf32> to vector<12x32xf32>
    %578 = vector.extract_strided_slice %575 {offsets = [0, 0], sizes = [12, 32], strides = [1, 1]} : vector<12x96xf32> to vector<12x32xf32>
    %579 = vector.extract_strided_slice %576 {offsets = [0, 0], sizes = [12, 32], strides = [1, 1]} : vector<12x96xf32> to vector<12x32xf32>
    %580 = arith.addf %578, %579 : vector<12x32xf32>
    %581 = arith.negf %580 : vector<12x32xf32>
    %582 = math.exp %581 : vector<12x32xf32>
    %cst_175 = arith.constant 1.000000e+00 : f32
    %583 = vector.broadcast %cst_175 : f32 to vector<12x32xf32>
    %584 = arith.addf %583, %582 : vector<12x32xf32>
    %585 = arith.divf %583, %584 : vector<12x32xf32>
    %586 = vector.extract_strided_slice %575 {offsets = [0, 32], sizes = [12, 32], strides = [1, 1]} : vector<12x96xf32> to vector<12x32xf32>
    %587 = vector.extract_strided_slice %576 {offsets = [0, 32], sizes = [12, 32], strides = [1, 1]} : vector<12x96xf32> to vector<12x32xf32>
    %588 = arith.addf %586, %587 : vector<12x32xf32>
    %589 = arith.negf %588 : vector<12x32xf32>
    %590 = math.exp %589 : vector<12x32xf32>
    %cst_176 = arith.constant 1.000000e+00 : f32
    %591 = vector.broadcast %cst_176 : f32 to vector<12x32xf32>
    %592 = arith.addf %591, %590 : vector<12x32xf32>
    %593 = arith.divf %591, %592 : vector<12x32xf32>
    %594 = vector.extract_strided_slice %575 {offsets = [0, 64], sizes = [12, 32], strides = [1, 1]} : vector<12x96xf32> to vector<12x32xf32>
    %595 = vector.extract_strided_slice %576 {offsets = [0, 64], sizes = [12, 32], strides = [1, 1]} : vector<12x96xf32> to vector<12x32xf32>
    %596 = arith.mulf %585, %595 : vector<12x32xf32>
    %597 = arith.addf %594, %596 : vector<12x32xf32>
    %598 = math.tanh %597 : vector<12x32xf32>
    %cst_177 = arith.constant 1.000000e+00 : f32
    %599 = vector.broadcast %cst_177 : f32 to vector<12x32xf32>
    %600 = arith.subf %599, %593 : vector<12x32xf32>
    %601 = arith.mulf %600, %598 : vector<12x32xf32>
    %602 = arith.mulf %593, %577 : vector<12x32xf32>
    %603 = arith.addf %601, %602 : vector<12x32xf32>
    %c0_178 = arith.constant 0 : index
    %c0_179 = arith.constant 0 : index
    %604 = vector.load %arg15[%c0_178, %c0_179] : memref<12x64xf32, #tpu.memory_space<vmem>>, vector<12x32xf32>
    tpu.vector_store %arg15[%c0_178, %c0_179], %571 {strides = array<i32>} : memref<12x64xf32, #tpu.memory_space<vmem>>, vector<12x32xf32>,
    %c0_180 = arith.constant 0 : index
    %c32_181 = arith.constant 32 : index
    %605 = vector.load %arg15[%c0_180, %c32_181] : memref<12x64xf32, #tpu.memory_space<vmem>>, vector<12x32xf32>
    tpu.vector_store %arg15[%c0_180, %c32_181], %603 {strides = array<i32>} : memref<12x64xf32, #tpu.memory_space<vmem>>, vector<12x32xf32>,
    %c0_182 = arith.constant 0 : index
    %c32_183 = arith.constant 32 : index
    %606 = vector.load %arg15[%c0_182, %c32_183] : memref<12x64xf32, #tpu.memory_space<vmem>>, vector<12x32xf32>
    %607 = vector.extract_strided_slice %606 {offsets = [0, 0], sizes = [4, 32], strides = [1, 1]} : vector<12x32xf32> to vector<4x32xf32>
    %c0_184 = arith.constant 0 : index
    %c0_185 = arith.constant 0 : index
    %608 = vector.load %arg14[%c0_184, %c0_185] : memref<16x32xf32, #tpu.memory_space<vmem>>, vector<4x32xf32>
    tpu.vector_store %arg14[%c0_184, %c0_185], %607 {strides = array<i32>} : memref<16x32xf32, #tpu.memory_space<vmem>>, vector<4x32xf32>,
    %c4_186 = arith.constant 4 : index
    %c0_187 = arith.constant 0 : index
    %609 = vector.load %arg14[%c4_186, %c0_187] : memref<16x32xf32, #tpu.memory_space<vmem>>, vector<4x32xf32>
    tpu.vector_store %arg14[%c4_186, %c0_187], %20 {strides = array<i32>} : memref<16x32xf32, #tpu.memory_space<vmem>>, vector<4x32xf32>,
    %610 = vector.extract_strided_slice %606 {offsets = [4, 0], sizes = [8, 32], strides = [1, 1]} : vector<12x32xf32> to vector<8x32xf32>
    %c8 = arith.constant 8 : index
    %c0_188 = arith.constant 0 : index
    %611 = vector.load %arg14[%c8, %c0_188] : memref<16x32xf32, #tpu.memory_space<vmem>>, vector<8x32xf32>
    tpu.vector_store %arg14[%c8, %c0_188], %610 {strides = array<i32>} : memref<16x32xf32, #tpu.memory_space<vmem>>, vector<8x32xf32>,
    %c0_189 = arith.constant 0 : index
    %c0_190 = arith.constant 0 : index
    %612 = vector.load %arg14[%c0_189, %c0_190] : memref<16x32xf32, #tpu.memory_space<vmem>>, vector<16x32xf32>
    %c0_191 = arith.constant 0 : index
    %c0_192 = arith.constant 0 : index
    %613 = vector.load %arg8[%c0_191, %c0_192] : memref<32x512xf32, #tpu.memory_space<vmem>>, vector<32x512xf32>
    %cst_193 = arith.constant dense<0.000000e+00> : vector<16x512xf32>
    %614 = tpu.matmul %612, %613, %cst_193 {dimension_numbers = #tpu.dot_dimension_numbers<[1], [0], [0], [1], [0, 0, 1, 1], [], []>} : vector<16x32xf32>, vector<32x512xf32>, vector<16x512xf32> -> vector<16x512xf32>
    %615 = vector.extract_strided_slice %614 {offsets = [0, 0], sizes = [16, 64], strides = [1, 1]} : vector<16x512xf32> to vector<16x64xf32>
    %c0_194 = arith.constant 0 : index
    %c0_195 = arith.constant 0 : index
    %616 = vector.load %arg16[%c0_194, %c0_195] : memref<128x64xf32, #tpu.memory_space<vmem>>, vector<16x64xf32>
    tpu.vector_store %arg16[%c0_194, %c0_195], %615 {strides = array<i32>} : memref<128x64xf32, #tpu.memory_space<vmem>>, vector<16x64xf32>,
    %617 = vector.extract_strided_slice %614 {offsets = [0, 64], sizes = [16, 64], strides = [1, 1]} : vector<16x512xf32> to vector<16x64xf32>
    %c16_196 = arith.constant 16 : index
    %c0_197 = arith.constant 0 : index
    %618 = vector.load %arg16[%c16_196, %c0_197] : memref<128x64xf32, #tpu.memory_space<vmem>>, vector<16x64xf32>
    tpu.vector_store %arg16[%c16_196, %c0_197], %617 {strides = array<i32>} : memref<128x64xf32, #tpu.memory_space<vmem>>, vector<16x64xf32>,
    %619 = vector.extract_strided_slice %614 {offsets = [0, 128], sizes = [16, 64], strides = [1, 1]} : vector<16x512xf32> to vector<16x64xf32>
    %c32_198 = arith.constant 32 : index
    %c0_199 = arith.constant 0 : index
    %620 = vector.load %arg16[%c32_198, %c0_199] : memref<128x64xf32, #tpu.memory_space<vmem>>, vector<16x64xf32>
    tpu.vector_store %arg16[%c32_198, %c0_199], %619 {strides = array<i32>} : memref<128x64xf32, #tpu.memory_space<vmem>>, vector<16x64xf32>,
    %621 = vector.extract_strided_slice %614 {offsets = [0, 192], sizes = [16, 64], strides = [1, 1]} : vector<16x512xf32> to vector<16x64xf32>
    %c48_200 = arith.constant 48 : index
    %c0_201 = arith.constant 0 : index
    %622 = vector.load %arg16[%c48_200, %c0_201] : memref<128x64xf32, #tpu.memory_space<vmem>>, vector<16x64xf32>
    tpu.vector_store %arg16[%c48_200, %c0_201], %621 {strides = array<i32>} : memref<128x64xf32, #tpu.memory_space<vmem>>, vector<16x64xf32>,
    %623 = vector.extract_strided_slice %614 {offsets = [0, 256], sizes = [16, 64], strides = [1, 1]} : vector<16x512xf32> to vector<16x64xf32>
    %c64 = arith.constant 64 : index
    %c0_202 = arith.constant 0 : index
    %624 = vector.load %arg16[%c64, %c0_202] : memref<128x64xf32, #tpu.memory_space<vmem>>, vector<16x64xf32>
    tpu.vector_store %arg16[%c64, %c0_202], %623 {strides = array<i32>} : memref<128x64xf32, #tpu.memory_space<vmem>>, vector<16x64xf32>,
    %625 = vector.extract_strided_slice %614 {offsets = [0, 320], sizes = [16, 64], strides = [1, 1]} : vector<16x512xf32> to vector<16x64xf32>
    %c80 = arith.constant 80 : index
    %c0_203 = arith.constant 0 : index
    %626 = vector.load %arg16[%c80, %c0_203] : memref<128x64xf32, #tpu.memory_space<vmem>>, vector<16x64xf32>
    tpu.vector_store %arg16[%c80, %c0_203], %625 {strides = array<i32>} : memref<128x64xf32, #tpu.memory_space<vmem>>, vector<16x64xf32>,
    %627 = vector.extract_strided_slice %614 {offsets = [0, 384], sizes = [16, 64], strides = [1, 1]} : vector<16x512xf32> to vector<16x64xf32>
    %c96_204 = arith.constant 96 : index
    %c0_205 = arith.constant 0 : index
    %628 = vector.load %arg16[%c96_204, %c0_205] : memref<128x64xf32, #tpu.memory_space<vmem>>, vector<16x64xf32>
    tpu.vector_store %arg16[%c96_204, %c0_205], %627 {strides = array<i32>} : memref<128x64xf32, #tpu.memory_space<vmem>>, vector<16x64xf32>,
    %629 = vector.extract_strided_slice %614 {offsets = [0, 448], sizes = [16, 64], strides = [1, 1]} : vector<16x512xf32> to vector<16x64xf32>
    %c112 = arith.constant 112 : index
    %c0_206 = arith.constant 0 : index
    %630 = vector.load %arg16[%c112, %c0_206] : memref<128x64xf32, #tpu.memory_space<vmem>>, vector<16x64xf32>
    tpu.vector_store %arg16[%c112, %c0_206], %629 {strides = array<i32>} : memref<128x64xf32, #tpu.memory_space<vmem>>, vector<16x64xf32>,
    %c0_207 = arith.constant 0 : index
    %c0_208 = arith.constant 0 : index
    %631 = vector.load %arg16[%c0_207, %c0_208] : memref<128x64xf32, #tpu.memory_space<vmem>>, vector<128x64xf32>
    %c0_209 = arith.constant 0 : index
    %c0_210 = arith.constant 0 : index
    %632 = vector.load %arg9[%c0_209, %c0_210] : memref<128x128xf32, #tpu.memory_space<vmem>>, vector<128x64xf32>
    %c0_211 = arith.constant 0 : index
    %c64_212 = arith.constant 64 : index
    %633 = vector.load %arg9[%c0_211, %c64_212] : memref<128x128xf32, #tpu.memory_space<vmem>>, vector<128x64xf32>
    %cst_213 = arith.constant 1.000000e+00 : f32
    %634 = vector.broadcast %cst_213 : f32 to vector<64x1xf32>
    %cst_214 = arith.constant 1.000000e+00 : f32
    %635 = vector.broadcast %cst_214 : f32 to vector<1x64xf32>
    %636 = arith.mulf %631, %632 : vector<128x64xf32>
    %cst_215 = arith.constant dense<0.000000e+00> : vector<128x1xf32>
    %637 = tpu.matmul %636, %634, %cst_215 {dimension_numbers = #tpu.dot_dimension_numbers<[1], [0], [0], [1], [0, 0, 1, 1], [], []>} : vector<128x64xf32>, vector<64x1xf32>, vector<128x1xf32> -> vector<128x1xf32>
    %638 = arith.mulf %631, %633 : vector<128x64xf32>
    %cst_216 = arith.constant dense<0.000000e+00> : vector<1x128xf32>
    %639 = tpu.matmul %635, %638, %cst_216 {dimension_numbers = #tpu.dot_dimension_numbers<[1], [1], [0], [0], [0, 0, 1, 0], [], []>} : vector<1x64xf32>, vector<128x64xf32>, vector<1x128xf32> -> vector<1x128xf32>
    %640 = vector.broadcast %637 : vector<128x1xf32> to vector<128x128xf32>
    %641 = vector.broadcast %639 : vector<1x128xf32> to vector<128x128xf32>
    %642 = arith.addf %640, %641 : vector<128x128xf32>
    %c0_217 = arith.constant 0 : index
    %c0_218 = arith.constant 0 : index
    %643 = vector.load %arg4[%c0_217, %c0_218] : memref<128x128xf32, #tpu.memory_space<vmem>>, vector<128x128xf32>
    %cst_219 = arith.constant 0.000000e+00 : f32
    %644 = vector.broadcast %cst_219 : f32 to vector<128x128xf32>
    %645 = arith.cmpf ogt, %642, %644 : vector<128x128xf32>
    %cst_220 = arith.constant 2.000000e-01 : f32
    %646 = vector.broadcast %cst_220 : f32 to vector<128x128xf32>
    %647 = arith.mulf %646, %642 : vector<128x128xf32>
    %648 = arith.select %645, %642, %647 : vector<128x128xi1>, vector<128x128xf32>
    %649 = arith.addf %648, %643 : vector<128x128xf32>
    %cst_221 = arith.constant dense<0xFF800000> : vector<128xf32>
    %650 = vector.multi_reduction <maximumf>, %649, %cst_221 [1] : vector<128x128xf32> to vector<128xf32>
    %651 = vector.shape_cast %650 : vector<128xf32> to vector<128x1xf32>
    %652 = vector.broadcast %651 : vector<128x1xf32> to vector<128x128xf32>
    %653 = arith.subf %649, %652 : vector<128x128xf32>
    %654 = math.exp %653 : vector<128x128xf32>
    %cst_222 = arith.constant dense<0.000000e+00> : vector<128xf32>
    %655 = vector.multi_reduction <add>, %654, %cst_222 [1] : vector<128x128xf32> to vector<128xf32>
    %656 = vector.shape_cast %655 : vector<128xf32> to vector<128x1xf32>
    %657 = tpu.reciprocal %656 {approx = true} : vector<128x1xf32> -> vector<128x1xf32>
    %658 = vector.broadcast %657 : vector<128x1xf32> to vector<128x128xf32>
    %659 = arith.mulf %654, %658 : vector<128x128xf32>
    %cst_223 = arith.constant dense<0.000000e+00> : vector<128x64xf32>
    %660 = tpu.matmul %659, %631, %cst_223 {dimension_numbers = #tpu.dot_dimension_numbers<[1], [0], [0], [1], [0, 0, 1, 1], [], []>} : vector<128x128xf32>, vector<128x64xf32>, vector<128x64xf32> -> vector<128x64xf32>
    %661 = vector.extract_strided_slice %660 {offsets = [0, 0], sizes = [16, 64], strides = [1, 1]} : vector<128x64xf32> to vector<16x64xf32>
    %c0_224 = arith.constant 0 : index
    %c0_225 = arith.constant 0 : index
    %662 = vector.load %arg10[%c0_224, %c0_225] : memref<512x128xf32, #tpu.memory_space<vmem>>, vector<64x128xf32>
    %cst_226 = arith.constant dense<0.000000e+00> : vector<16x128xf32>
    %663 = tpu.matmul %661, %662, %cst_226 {dimension_numbers = #tpu.dot_dimension_numbers<[1], [0], [0], [1], [0, 0, 1, 1], [], []>} : vector<16x64xf32>, vector<64x128xf32>, vector<16x128xf32> -> vector<16x128xf32>
    %664 = vector.extract_strided_slice %660 {offsets = [16, 0], sizes = [16, 64], strides = [1, 1]} : vector<128x64xf32> to vector<16x64xf32>
    %c64_227 = arith.constant 64 : index
    %c0_228 = arith.constant 0 : index
    %665 = vector.load %arg10[%c64_227, %c0_228] : memref<512x128xf32, #tpu.memory_space<vmem>>, vector<64x128xf32>
    %cst_229 = arith.constant dense<0.000000e+00> : vector<16x128xf32>
    %666 = tpu.matmul %664, %665, %cst_229 {dimension_numbers = #tpu.dot_dimension_numbers<[1], [0], [0], [1], [0, 0, 1, 1], [], []>} : vector<16x64xf32>, vector<64x128xf32>, vector<16x128xf32> -> vector<16x128xf32>
    %667 = arith.addf %663, %666 : vector<16x128xf32>
    %668 = vector.extract_strided_slice %660 {offsets = [32, 0], sizes = [16, 64], strides = [1, 1]} : vector<128x64xf32> to vector<16x64xf32>
    %c128 = arith.constant 128 : index
    %c0_230 = arith.constant 0 : index
    %669 = vector.load %arg10[%c128, %c0_230] : memref<512x128xf32, #tpu.memory_space<vmem>>, vector<64x128xf32>
    %cst_231 = arith.constant dense<0.000000e+00> : vector<16x128xf32>
    %670 = tpu.matmul %668, %669, %cst_231 {dimension_numbers = #tpu.dot_dimension_numbers<[1], [0], [0], [1], [0, 0, 1, 1], [], []>} : vector<16x64xf32>, vector<64x128xf32>, vector<16x128xf32> -> vector<16x128xf32>
    %671 = arith.addf %667, %670 : vector<16x128xf32>
    %672 = vector.extract_strided_slice %660 {offsets = [48, 0], sizes = [16, 64], strides = [1, 1]} : vector<128x64xf32> to vector<16x64xf32>
    %c192 = arith.constant 192 : index
    %c0_232 = arith.constant 0 : index
    %673 = vector.load %arg10[%c192, %c0_232] : memref<512x128xf32, #tpu.memory_space<vmem>>, vector<64x128xf32>
    %cst_233 = arith.constant dense<0.000000e+00> : vector<16x128xf32>
    %674 = tpu.matmul %672, %673, %cst_233 {dimension_numbers = #tpu.dot_dimension_numbers<[1], [0], [0], [1], [0, 0, 1, 1], [], []>} : vector<16x64xf32>, vector<64x128xf32>, vector<16x128xf32> -> vector<16x128xf32>
    %675 = arith.addf %671, %674 : vector<16x128xf32>
    %676 = vector.extract_strided_slice %660 {offsets = [64, 0], sizes = [16, 64], strides = [1, 1]} : vector<128x64xf32> to vector<16x64xf32>
    %c256 = arith.constant 256 : index
    %c0_234 = arith.constant 0 : index
    %677 = vector.load %arg10[%c256, %c0_234] : memref<512x128xf32, #tpu.memory_space<vmem>>, vector<64x128xf32>
    %cst_235 = arith.constant dense<0.000000e+00> : vector<16x128xf32>
    %678 = tpu.matmul %676, %677, %cst_235 {dimension_numbers = #tpu.dot_dimension_numbers<[1], [0], [0], [1], [0, 0, 1, 1], [], []>} : vector<16x64xf32>, vector<64x128xf32>, vector<16x128xf32> -> vector<16x128xf32>
    %679 = arith.addf %675, %678 : vector<16x128xf32>
    %680 = vector.extract_strided_slice %660 {offsets = [80, 0], sizes = [16, 64], strides = [1, 1]} : vector<128x64xf32> to vector<16x64xf32>
    %c320 = arith.constant 320 : index
    %c0_236 = arith.constant 0 : index
    %681 = vector.load %arg10[%c320, %c0_236] : memref<512x128xf32, #tpu.memory_space<vmem>>, vector<64x128xf32>
    %cst_237 = arith.constant dense<0.000000e+00> : vector<16x128xf32>
    %682 = tpu.matmul %680, %681, %cst_237 {dimension_numbers = #tpu.dot_dimension_numbers<[1], [0], [0], [1], [0, 0, 1, 1], [], []>} : vector<16x64xf32>, vector<64x128xf32>, vector<16x128xf32> -> vector<16x128xf32>
    %683 = arith.addf %679, %682 : vector<16x128xf32>
    %684 = vector.extract_strided_slice %660 {offsets = [96, 0], sizes = [16, 64], strides = [1, 1]} : vector<128x64xf32> to vector<16x64xf32>
    %c384 = arith.constant 384 : index
    %c0_238 = arith.constant 0 : index
    %685 = vector.load %arg10[%c384, %c0_238] : memref<512x128xf32, #tpu.memory_space<vmem>>, vector<64x128xf32>
    %cst_239 = arith.constant dense<0.000000e+00> : vector<16x128xf32>
    %686 = tpu.matmul %684, %685, %cst_239 {dimension_numbers = #tpu.dot_dimension_numbers<[1], [0], [0], [1], [0, 0, 1, 1], [], []>} : vector<16x64xf32>, vector<64x128xf32>, vector<16x128xf32> -> vector<16x128xf32>
    %687 = arith.addf %683, %686 : vector<16x128xf32>
    %688 = vector.extract_strided_slice %660 {offsets = [112, 0], sizes = [16, 64], strides = [1, 1]} : vector<128x64xf32> to vector<16x64xf32>
    %c448 = arith.constant 448 : index
    %c0_240 = arith.constant 0 : index
    %689 = vector.load %arg10[%c448, %c0_240] : memref<512x128xf32, #tpu.memory_space<vmem>>, vector<64x128xf32>
    %cst_241 = arith.constant dense<0.000000e+00> : vector<16x128xf32>
    %690 = tpu.matmul %688, %689, %cst_241 {dimension_numbers = #tpu.dot_dimension_numbers<[1], [0], [0], [1], [0, 0, 1, 1], [], []>} : vector<16x64xf32>, vector<64x128xf32>, vector<16x128xf32> -> vector<16x128xf32>
    %691 = arith.addf %687, %690 : vector<16x128xf32>
    %c6 = arith.constant 6 : index
    %c0_242 = arith.constant 0 : index
    %692 = vector.load %arg5[%c6, %c0_242] : memref<10x256xf32, #tpu.memory_space<vmem>>, vector<1x128xf32>
    %693 = vector.broadcast %692 : vector<1x128xf32> to vector<16x128xf32>
    %694 = arith.addf %691, %693 : vector<16x128xf32>
    %c8_243 = arith.constant 8 : index
    %c0_244 = arith.constant 0 : index
    %695 = vector.load %arg5[%c8_243, %c0_244] : memref<10x256xf32, #tpu.memory_space<vmem>>, vector<1x128xf32>
    %c9 = arith.constant 9 : index
    %c0_245 = arith.constant 0 : index
    %696 = vector.load %arg5[%c9, %c0_245] : memref<10x256xf32, #tpu.memory_space<vmem>>, vector<1x128xf32>
    %cst_246 = arith.constant 1.000000e+00 : f32
    %697 = vector.broadcast %cst_246 : f32 to vector<128x1xf32>
    %cst_247 = arith.constant 1.000000e+00 : f32
    %698 = vector.broadcast %cst_247 : f32 to vector<1x128xf32>
    %699 = vector.broadcast %695 : vector<1x128xf32> to vector<16x128xf32>
    %700 = arith.mulf %694, %699 : vector<16x128xf32>
    %cst_248 = arith.constant dense<0.000000e+00> : vector<16x1xf32>
    %701 = tpu.matmul %700, %697, %cst_248 {dimension_numbers = #tpu.dot_dimension_numbers<[1], [0], [0], [1], [0, 0, 1, 1], [], []>} : vector<16x128xf32>, vector<128x1xf32>, vector<16x1xf32> -> vector<16x1xf32>
    %702 = vector.broadcast %696 : vector<1x128xf32> to vector<16x128xf32>
    %703 = arith.mulf %694, %702 : vector<16x128xf32>
    %cst_249 = arith.constant dense<0.000000e+00> : vector<1x16xf32>
    %704 = tpu.matmul %698, %703, %cst_249 {dimension_numbers = #tpu.dot_dimension_numbers<[1], [1], [0], [0], [0, 0, 1, 0], [], []>} : vector<1x128xf32>, vector<16x128xf32>, vector<1x16xf32> -> vector<1x16xf32>
    %705 = vector.broadcast %701 : vector<16x1xf32> to vector<16x16xf32>
    %706 = vector.broadcast %704 : vector<1x16xf32> to vector<16x16xf32>
    %707 = arith.addf %705, %706 : vector<16x16xf32>
    %c0_250 = arith.constant 0 : index
    %c0_251 = arith.constant 0 : index
    %708 = vector.load %arg4[%c0_250, %c0_251] : memref<128x128xf32, #tpu.memory_space<vmem>>, vector<16x16xf32>
    %cst_252 = arith.constant 0.000000e+00 : f32
    %709 = vector.broadcast %cst_252 : f32 to vector<16x16xf32>
    %710 = arith.cmpf ogt, %707, %709 : vector<16x16xf32>
    %cst_253 = arith.constant 2.000000e-01 : f32
    %711 = vector.broadcast %cst_253 : f32 to vector<16x16xf32>
    %712 = arith.mulf %711, %707 : vector<16x16xf32>
    %713 = arith.select %710, %707, %712 : vector<16x16xi1>, vector<16x16xf32>
    %714 = arith.addf %713, %708 : vector<16x16xf32>
    %cst_254 = arith.constant dense<0xFF800000> : vector<16xf32>
    %715 = vector.multi_reduction <maximumf>, %714, %cst_254 [1] : vector<16x16xf32> to vector<16xf32>
    %716 = vector.shape_cast %715 : vector<16xf32> to vector<16x1xf32>
    %717 = vector.broadcast %716 : vector<16x1xf32> to vector<16x16xf32>
    %718 = arith.subf %714, %717 : vector<16x16xf32>
    %719 = math.exp %718 : vector<16x16xf32>
    %cst_255 = arith.constant dense<0.000000e+00> : vector<16xf32>
    %720 = vector.multi_reduction <add>, %719, %cst_255 [1] : vector<16x16xf32> to vector<16xf32>
    %721 = vector.shape_cast %720 : vector<16xf32> to vector<16x1xf32>
    %722 = tpu.reciprocal %721 {approx = true} : vector<16x1xf32> -> vector<16x1xf32>
    %723 = vector.broadcast %722 : vector<16x1xf32> to vector<16x16xf32>
    %724 = arith.mulf %719, %723 : vector<16x16xf32>
    %cst_256 = arith.constant dense<0.000000e+00> : vector<16x128xf32>
    %725 = tpu.matmul %724, %694, %cst_256 {dimension_numbers = #tpu.dot_dimension_numbers<[1], [0], [0], [1], [0, 0, 1, 1], [], []>} : vector<16x16xf32>, vector<16x128xf32>, vector<16x128xf32> -> vector<16x128xf32>
    %c7 = arith.constant 7 : index
    %c0_257 = arith.constant 0 : index
    %726 = vector.load %arg5[%c7, %c0_257] : memref<10x256xf32, #tpu.memory_space<vmem>>, vector<1x128xf32>
    %727 = vector.broadcast %726 : vector<1x128xf32> to vector<16x128xf32>
    %728 = arith.addf %725, %727 : vector<16x128xf32>
    %c0_258 = arith.constant 0 : index
    %c0_259 = arith.constant 0 : index
    %729 = vector.load %arg11[%c0_258, %c0_259] : memref<16x128xf32, #tpu.memory_space<vmem>>, vector<16x128xf32>
    tpu.vector_store %arg11[%c0_258, %c0_259], %728 {strides = array<i32>} : memref<16x128xf32, #tpu.memory_space<vmem>>, vector<16x128xf32>,
    return
  }
}

</mosaic_0001>

<llo_original>
// kernel: tpu_custom_call.1
$region0: #{tpu_custom_call.1}
  #allocation0 [shape = 'u32[]', space=smem, size = 0x4, offset = 0x4, fixed_abs, tag = 'smem constant byte address 0x4 - core index']
  #allocation1 [shape = 'u32[144,128]{1,0:T(1,128)}', space=vmem, size = 0x12000, scoped, tag = 'internal scratch']
  #allocation2 [shape = 'f32[16,32]{1,0:T(8,128)}', space=vmem, size = 0x2000, scoped, tag = 'scratch operand']
  #allocation3 [shape = 'f32[12,64]{1,0:T(8,128)}', space=vmem, size = 0x2000, scoped, tag = 'scratch operand']
  #allocation4 [shape = 'f32[128,64]{1,0:T(8,128)}', space=vmem, size = 0x10000, scoped, tag = 'scratch operand']
  %s0 = inlined_call_operand.vmem [shape: f32[4,16], index: 0, kind: input, shape index: {}]
  %s1 = inlined_call_operand.vmem [shape: f32[4,32], index: 1, kind: input, shape index: {}]
  %s2 = inlined_call_operand.vmem [shape: f32[96,32], index: 2, kind: input, shape index: {}]
  %s3 = inlined_call_operand.vmem [shape: f32[12,64], index: 3, kind: input, shape index: {}]
  %s4 = inlined_call_operand.vmem [shape: f32[128,128], index: 4, kind: input, shape index: {}]
  %s5 = inlined_call_operand.vmem [shape: f32[10,256], index: 5, kind: input, shape index: {}]
  %s6 = inlined_call_operand.vmem [shape: f32[80,64], index: 6, kind: input, shape index: {}]
  %s7 = inlined_call_operand.vmem [shape: f32[128,192], index: 7, kind: input, shape index: {}]
  %s8 = inlined_call_operand.hbm [shape: f32[32,512], index: 8, kind: input, shape index: {}]
  %s9 = inlined_call_operand.hbm [shape: f32[128,128], index: 9, kind: input, shape index: {}]
  %s10 = inlined_call_operand.vmem [shape: f32[512,128], index: 10, kind: input, shape index: {}]
  %s11 = inlined_call_operand.hbm [shape: f32[16,128], index: 11, kind: output, shape index: {0}]
  %s12 = inlined_call_operand.hbm [shape: f32[1,1], index: 12, kind: output, shape index: {1}]
  %s13 = inlined_call_operand.hbm [shape: f32[1,1], index: 13, kind: output, shape index: {2}]
  %14 = xla_tuple %s11, %s12, %s13
  %s15 = sld [smem:[#allocation0]]
  $region78: #{tpu_custom_call.1} parent=0
    _
  %s17 = ssub.s32 1, %s15
  %s18 = scalar_select 0, %s17, %s15
  $region1: #{tpu_custom_call.1} parent=0
    #allocation5 [shape = 'u8[65536]{0}', space=vmem, size = 0x10000, scoped, tag = 'input window, operand 8, single buffered']
    #allocation6 [shape = 's32[1]{0}', space=sflag, size = 0x4, scoped, tag = 'scoped memory for tpu_custom_call.1']
    #allocation7 [shape = 's32[1]{0}', space=sflag, size = 0x4, scoped, tag = 'scoped memory for tpu_custom_call.1']
    #allocation8 [shape = 'u8[65536]{0}', space=vmem, size = 0x10000, scoped, tag = 'input window, operand 9, single buffered']
    #allocation9 [shape = 's32[1]{0}', space=sflag, size = 0x4, scoped, tag = 'scoped memory for tpu_custom_call.1']
    #allocation10 [shape = 'u8[8192]{0}', space=vmem, size = 0x2000, scoped, tag = 'output window, operand 0, single buffered']
    #allocation11 [shape = 'u8[512]{0}', space=vmem, size = 0x400, scoped, tag = 'output window, operand 1, single buffered']
    #allocation12 [shape = 's32[1]{0}', space=sflag, size = 0x4, scoped, tag = 'scoped memory for tpu_custom_call.1']
    #allocation13 [shape = 'u8[512]{0}', space=vmem, size = 0x400, scoped, tag = 'output window, operand 2, single buffered']
    %19 = vsyncpa [#allocation6], 0
    %20 = vsyncpa [#allocation9], 0
    %21 = vsyncpa [#allocation7], 0
    %22 = vsyncpa [#allocation12], 0
    // Predicated region
    $region2: #{tpu_custom_call.1} parent=1 // pred_check
      _
    $region3: #{tpu_custom_call.1} parent=1 // pred_check_branch
      %24 = sbr.rel (0) target = $region5
    $region4: #{tpu_custom_call.1} parent=1 // pred_region
      _
    $region5: #{tpu_custom_call.1} parent=1 // pred_fallthru
      _
    // Predicated region
    $region6: #{tpu_custom_call.1} parent=1 // pred_check
      _
    $region7: #{tpu_custom_call.1} parent=1 // pred_check_branch
      %26 = sbr.rel (0) target = $region9
    $region8: #{tpu_custom_call.1} parent=1 // pred_region
      _
    $region9: #{tpu_custom_call.1} parent=1 // pred_fallthru
      _
    // Predicated region
    $region10: #{tpu_custom_call.1} parent=1 // pred_check
      _
    $region11: #{tpu_custom_call.1} parent=1 // pred_check_branch
      %28 = sbr.rel (0) target = $region13
    $region12: #{tpu_custom_call.1} parent=1 // pred_region
      _
    $region13: #{tpu_custom_call.1} parent=1 // pred_fallthru
      _
    // Predicated region
    $region14: #{tpu_custom_call.1} parent=1 // pred_check
      _
    $region15: #{tpu_custom_call.1} parent=1 // pred_check_branch
      %30 = sbr.rel (0) target = $region17
    $region16: #{tpu_custom_call.1} parent=1 // pred_region
      _
    $region17: #{tpu_custom_call.1} parent=1 // pred_fallthru
      _
    // Predicated region
    $region18: #{tpu_custom_call.1} parent=1 // pred_check
      _
    $region19: #{tpu_custom_call.1} parent=1 // pred_check_branch
      %32 = sbr.rel (0) target = $region21
    $region20: #{tpu_custom_call.1} parent=1 // pred_region
      _
    $region21: #{tpu_custom_call.1} parent=1 // pred_fallthru
      _
    // Predicated region
    $region22: #{tpu_custom_call.1} parent=1 // pred_check
      _
    $region23: #{tpu_custom_call.1} parent=1 // pred_check_branch
      %34 = sbr.rel (0) target = $region25
    $region24: #{tpu_custom_call.1} parent=1 // pred_region
      _
    $region25: #{tpu_custom_call.1} parent=1 // pred_fallthru
      _
    // Predicated region
    $region26: #{tpu_custom_call.1} parent=1 // pred_check
      _
    $region27: #{tpu_custom_call.1} parent=1 // pred_check_branch
      %36 = sbr.rel (0) target = $region29
    $region28: #{tpu_custom_call.1} parent=1 // pred_region
      _
    $region29: #{tpu_custom_call.1} parent=1 // pred_fallthru
      _
    // Predicated region
    $region30: #{tpu_custom_call.1} parent=1 // pred_check
      _
    $region31: #{tpu_custom_call.1} parent=1 // pred_check_branch
      %38 = sbr.rel (0) target = $region33
    $region32: #{tpu_custom_call.1} parent=1 // pred_region
      _
    $region33: #{tpu_custom_call.1} parent=1 // pred_fallthru
      _
    // Predicated region
    $region34: #{tpu_custom_call.1} parent=1 // pred_check
      _
    $region35: #{tpu_custom_call.1} parent=1 // pred_check_branch
      %40 = sbr.rel (0) target = $region37
    $region36: #{tpu_custom_call.1} parent=1 // pred_region
      %s42 = ssub.s32 2048, 2048
      %43 = vsyncadd [#allocation6], %s42
      %s44 = sshll.u32 [#allocation5], 4
      %s45 = int_to_ptr.vmem [resolvable:$true] %s44
      %50 = dma.hbm_to_vmem [thread:$0]  %s8, 2048, %s45, [#allocation6], 512, 512, 32
    $region37: #{tpu_custom_call.1} parent=1 // pred_fallthru
      _
    // Predicated region
    $region38: #{tpu_custom_call.1} parent=1 // pred_check
      _
    $region39: #{tpu_custom_call.1} parent=1 // pred_check_branch
      %52 = sbr.rel (0) target = $region41
    $region40: #{tpu_custom_call.1} parent=1 // pred_region
      %s54 = ssub.s32 2048, 2048
      %55 = vsyncadd [#allocation9], %s54
      %s56 = sshll.u32 [#allocation8], 4
      %s57 = int_to_ptr.vmem [resolvable:$true] %s56
      %62 = dma.hbm_to_vmem [thread:$0]  %s9, 2048, %s57, [#allocation9], 128, 128, 8
    $region41: #{tpu_custom_call.1} parent=1 // pred_fallthru
      _
    // Predicated region
    $region42: #{tpu_custom_call.1} parent=1 // pred_check
      _
    $region43: #{tpu_custom_call.1} parent=1 // pred_check_branch
      %64 = sbr.rel (0) target = $region45
    $region44: #{tpu_custom_call.1} parent=1 // pred_region
      _
    $region45: #{tpu_custom_call.1} parent=1 // pred_fallthru
      _
    // Predicated region
    $region46: #{tpu_custom_call.1} parent=1 // pred_check
      _
    $region47: #{tpu_custom_call.1} parent=1 // pred_check_branch
      %66 = sbr.rel (0) target = $region49
    $region48: #{tpu_custom_call.1} parent=1 // pred_region
      %67 = dma.done [#allocation6], 2048
    $region49: #{tpu_custom_call.1} parent=1 // pred_fallthru
      _
    // Predicated region
    $region50: #{tpu_custom_call.1} parent=1 // pred_check
      _
    $region51: #{tpu_custom_call.1} parent=1 // pred_check_branch
      %69 = sbr.rel (0) target = $region53
    $region52: #{tpu_custom_call.1} parent=1 // pred_region
      %70 = dma.done [#allocation9], 2048
    $region53: #{tpu_custom_call.1} parent=1 // pred_fallthru
      _
    %v71 = vld [vmem:[%s0] sm:$0xf]
    %v72 = vld [vmem:[%s6] sm:$0xff]
    %v73 = vld [vmem:[%s6 + $0x8] sm:$0xff]
    %v74 = vld [vmem:[%s5] ss:$0 sm:$0xff]
    %vm75 = vcmask 130048
    %v77 = vsel %vm75, %v71, 0
    %79 = vmatprep.subr.mxu0 0.0
    %80 = vmatpush1.msra.mxu0 0.0
    %81 = vmatprep.subr.mxu0 0.0
    %82 = vmatpush1.msra.mxu0 0.0
    %83 = vmatprep.subr.mxu0 0.0
    %84 = vmatpush1.msra.mxu0 0.0
    %85 = vmatprep.subr.mxu0 0.0
    %86 = vmatpush1.msra.mxu0 0.0
    %87 = vmatprep.subr.mxu0 0.0
    %88 = vmatpush1.msra.mxu0 0.0
    %89 = vmatprep.subr.mxu0 0.0
    %90 = vmatpush1.msra.mxu0 0.0
    %91 = vmatprep.subr.mxu0 0.0
    %92 = vmatpush1.msra.mxu0 0.0
    %93 = vmatprep.subr.mxu0 0.0
    %94 = vmatpush1.msra.mxu0 0.0
    %95 = vmatprep.subr.mxu0 0.0
    %96 = vmatpush1.msra.mxu0 0.0
    %97 = vmatprep.subr.mxu0 0.0
    %98 = vmatpush1.msra.mxu0 0.0
    %99 = vmatprep.subr.mxu0 0.0
    %100 = vmatpush1.msra.mxu0 0.0
    %101 = vmatprep.subr.mxu0 0.0
    %102 = vmatpush1.msra.mxu0 0.0
    %103 = vmatprep.subr.mxu0 0.0
    %104 = vmatpush1.msra.mxu0 0.0
    %105 = vmatprep.subr.mxu0 0.0
    %106 = vmatpush1.msra.mxu0 0.0
    %107 = vmatprep.subr.mxu0 0.0
    %108 = vmatpush1.msra.mxu0 %v73
    %109 = vmatprep.subr.mxu0 0.0
    %110 = vmatpush1.msra.mxu0 %v72
    %111 = vmatprep.subr.mxu0 0.0
    %112 = vmatpush2.msra.mxu0 0.0
    %113 = vmatprep.subr.mxu0 0.0
    %114 = vmatpush2.msra.mxu0 0.0
    %115 = vmatprep.subr.mxu0 0.0
    %116 = vmatpush2.msra.mxu0 0.0
    %117 = vmatprep.subr.mxu0 0.0
    %118 = vmatpush2.msra.mxu0 0.0
    %119 = vmatprep.subr.mxu0 0.0
    %120 = vmatpush2.msra.mxu0 0.0
    %121 = vmatprep.subr.mxu0 0.0
    %122 = vmatpush2.msra.mxu0 0.0
    %123 = vmatprep.subr.mxu0 0.0
    %124 = vmatpush2.msra.mxu0 0.0
    %125 = vmatprep.subr.mxu0 0.0
    %126 = vmatpush2.msra.mxu0 0.0
    %127 = vmatprep.subr.mxu0 0.0
    %128 = vmatpush2.msra.mxu0 0.0
    %129 = vmatprep.subr.mxu0 0.0
    %130 = vmatpush2.msra.mxu0 0.0
    %131 = vmatprep.subr.mxu0 0.0
    %132 = vmatpush2.msra.mxu0 0.0
    %133 = vmatprep.subr.mxu0 0.0
    %134 = vmatpush2.msra.mxu0 0.0
    %135 = vmatprep.subr.mxu0 0.0
    %136 = vmatpush2.msra.mxu0 0.0
    %137 = vmatprep.subr.mxu0 0.0
    %138 = vmatpush2.msra.mxu0 0.0
    %139 = vmatprep.subr.mxu0 0.0
    %140 = vmatpush2.msra.mxu0 0.0
    %141 = vmatprep.subr.mxu0 0.0
    %142 = vmatpush2.msra.mxu0 0.0
    %143 = vmatprep.mubr.f32.mxu0 0.0
    %144 = vmatmul.mubr.f32.gmra.mxu0 %v77
    %v145 = vpop.f32.mrf.mxu0
    %v146 = vadd.f32 %v74, %v145
    %v147 = vpop.f32.mrf.mxu0
    %148 = vdwg.mxu0
    %v149 = vmax.f32 %v146, 0.0
    %v150 = vld [vmem:[%s6 + $0x10] sm:$0xff]
    %v151 = vld [vmem:[%s6 + $0x18] sm:$0xff]
    %v152 = vld [vmem:[%s6 + $0x20] sm:$0xff]
    %v153 = vld [vmem:[%s6 + $0x28] sm:$0xff]
    %v154 = vld [vmem:[%s5 + $0x1] ss:$0 sm:$0xff]
    %vm155 = vcmask 261120
    %v157 = vsel %vm155, %v149, 0
    %159 = vmatprep.subr.mxu0 0.0
    %160 = vmatpush1.msra.mxu0 0.0
    %161 = vmatprep.subr.mxu0 0.0
    %162 = vmatpush1.msra.mxu0 0.0
    %163 = vmatprep.subr.mxu0 0.0
    %164 = vmatpush1.msra.mxu0 0.0
    %165 = vmatprep.subr.mxu0 0.0
    %166 = vmatpush1.msra.mxu0 0.0
    %167 = vmatprep.subr.mxu0 0.0
    %168 = vmatpush1.msra.mxu0 0.0
    %169 = vmatprep.subr.mxu0 0.0
    %170 = vmatpush1.msra.mxu0 0.0
    %171 = vmatprep.subr.mxu0 0.0
    %172 = vmatpush1.msra.mxu0 0.0
    %173 = vmatprep.subr.mxu0 0.0
    %174 = vmatpush1.msra.mxu0 0.0
    %175 = vmatprep.subr.mxu0 0.0
    %176 = vmatpush1.msra.mxu0 0.0
    %177 = vmatprep.subr.mxu0 0.0
    %178 = vmatpush1.msra.mxu0 0.0
    %179 = vmatprep.subr.mxu0 0.0
    %180 = vmatpush1.msra.mxu0 0.0
    %181 = vmatprep.subr.mxu0 0.0
    %182 = vmatpush1.msra.mxu0 0.0
    %183 = vmatprep.subr.mxu0 0.0
    %184 = vmatpush1.msra.mxu0 %v153
    %185 = vmatprep.subr.mxu0 0.0
    %186 = vmatpush1.msra.mxu0 %v152
    %187 = vmatprep.subr.mxu0 0.0
    %188 = vmatpush1.msra.mxu0 %v151
    %189 = vmatprep.subr.mxu0 0.0
    %190 = vmatpush1.msra.mxu0 %v150
    %191 = vmatprep.subr.mxu0 0.0
    %192 = vmatpush2.msra.mxu0 0.0
    %193 = vmatprep.subr.mxu0 0.0
    %194 = vmatpush2.msra.mxu0 0.0
    %195 = vmatprep.subr.mxu0 0.0
    %196 = vmatpush2.msra.mxu0 0.0
    %197 = vmatprep.subr.mxu0 0.0
    %198 = vmatpush2.msra.mxu0 0.0
    %199 = vmatprep.subr.mxu0 0.0
    %200 = vmatpush2.msra.mxu0 0.0
    %201 = vmatprep.subr.mxu0 0.0
    %202 = vmatpush2.msra.mxu0 0.0
    %203 = vmatprep.subr.mxu0 0.0
    %204 = vmatpush2.msra.mxu0 0.0
    %205 = vmatprep.subr.mxu0 0.0
    %206 = vmatpush2.msra.mxu0 0.0
    %207 = vmatprep.subr.mxu0 0.0
    %208 = vmatpush2.msra.mxu0 0.0
    %209 = vmatprep.subr.mxu0 0.0
    %210 = vmatpush2.msra.mxu0 0.0
    %211 = vmatprep.subr.mxu0 0.0
    %212 = vmatpush2.msra.mxu0 0.0
    %213 = vmatprep.subr.mxu0 0.0
    %214 = vmatpush2.msra.mxu0 0.0
    %215 = vmatprep.subr.mxu0 0.0
    %216 = vmatpush2.msra.mxu0 0.0
    %217 = vmatprep.subr.mxu0 0.0
    %218 = vmatpush2.msra.mxu0 0.0
    %219 = vmatprep.subr.mxu0 0.0
    %220 = vmatpush2.msra.mxu0 0.0
    %221 = vmatprep.subr.mxu0 0.0
    %222 = vmatpush2.msra.mxu0 0.0
    %223 = vmatprep.mubr.f32.mxu0 0.0
    %224 = vmatmul.mubr.f32.gmra.mxu0 %v157
    %v225 = vpop.f32.mrf.mxu0
    %v226 = vadd.f32 %v154, %v225
    %v227 = vpop.f32.mrf.mxu0
    %228 = vdwg.mxu0
    %v229 = vld [vmem:[%s1] sm:$0xf]
    %v230 = vmul.f32 %v226, 0.5
    %v231 = vmul.f32 %v230, 1.442695
    %v232 = vpow.pop %v231
    %234 = vrot.lane.b32.xlu0 %v232, 96
    %v235 = vpop.permute.xlu0 %234
    %v237 = vmul.f32 %v229, %v235
    %v238 = vadd.f32 %v226, %v237
    %v239 = vld [vmem:[%s6 + $0x30] sm:$0xff]
    %v240 = vld [vmem:[%s6 + $0x38] sm:$0xff]
    %v241 = vld [vmem:[%s6 + $0x40] sm:$0xff]
    %v242 = vld [vmem:[%s6 + $0x48] sm:$0xff]
    %v243 = vld [vmem:[%s5 + $0x2] ss:$0 sm:$0xff]
    %v245 = vsel %vm155, %v238, 0
    %247 = vmatprep.subr.mxu0 0.0
    %248 = vmatpush1.msra.mxu0 0.0
    %249 = vmatprep.subr.mxu0 0.0
    %250 = vmatpush1.msra.mxu0 0.0
    %251 = vmatprep.subr.mxu0 0.0
    %252 = vmatpush1.msra.mxu0 0.0
    %253 = vmatprep.subr.mxu0 0.0
    %254 = vmatpush1.msra.mxu0 0.0
    %255 = vmatprep.subr.mxu0 0.0
    %256 = vmatpush1.msra.mxu0 0.0
    %257 = vmatprep.subr.mxu0 0.0
    %258 = vmatpush1.msra.mxu0 0.0
    %259 = vmatprep.subr.mxu0 0.0
    %260 = vmatpush1.msra.mxu0 0.0
    %261 = vmatprep.subr.mxu0 0.0
    %262 = vmatpush1.msra.mxu0 0.0
    %263 = vmatprep.subr.mxu0 0.0
    %264 = vmatpush1.msra.mxu0 0.0
    %265 = vmatprep.subr.mxu0 0.0
    %266 = vmatpush1.msra.mxu0 0.0
    %267 = vmatprep.subr.mxu0 0.0
    %268 = vmatpush1.msra.mxu0 0.0
    %269 = vmatprep.subr.mxu0 0.0
    %270 = vmatpush1.msra.mxu0 0.0
    %271 = vmatprep.subr.mxu0 0.0
    %272 = vmatpush1.msra.mxu0 %v242
    %273 = vmatprep.subr.mxu0 0.0
    %274 = vmatpush1.msra.mxu0 %v241
    %275 = vmatprep.subr.mxu0 0.0
    %276 = vmatpush1.msra.mxu0 %v240
    %277 = vmatprep.subr.mxu0 0.0
    %278 = vmatpush1.msra.mxu0 %v239
    %279 = vmatprep.subr.mxu0 0.0
    %280 = vmatpush2.msra.mxu0 0.0
    %281 = vmatprep.subr.mxu0 0.0
    %282 = vmatpush2.msra.mxu0 0.0
    %283 = vmatprep.subr.mxu0 0.0
    %284 = vmatpush2.msra.mxu0 0.0
    %285 = vmatprep.subr.mxu0 0.0
    %286 = vmatpush2.msra.mxu0 0.0
    %287 = vmatprep.subr.mxu0 0.0
    %288 = vmatpush2.msra.mxu0 0.0
    %289 = vmatprep.subr.mxu0 0.0
    %290 = vmatpush2.msra.mxu0 0.0
    %291 = vmatprep.subr.mxu0 0.0
    %292 = vmatpush2.msra.mxu0 0.0
    %293 = vmatprep.subr.mxu0 0.0
    %294 = vmatpush2.msra.mxu0 0.0
    %295 = vmatprep.subr.mxu0 0.0
    %296 = vmatpush2.msra.mxu0 0.0
    %297 = vmatprep.subr.mxu0 0.0
    %298 = vmatpush2.msra.mxu0 0.0
    %299 = vmatprep.subr.mxu0 0.0
    %300 = vmatpush2.msra.mxu0 0.0
    %301 = vmatprep.subr.mxu0 0.0
    %302 = vmatpush2.msra.mxu0 0.0
    %303 = vmatprep.subr.mxu0 0.0
    %304 = vmatpush2.msra.mxu0 0.0
    %305 = vmatprep.subr.mxu0 0.0
    %306 = vmatpush2.msra.mxu0 0.0
    %307 = vmatprep.subr.mxu0 0.0
    %308 = vmatpush2.msra.mxu0 0.0
    %309 = vmatprep.subr.mxu0 0.0
    %310 = vmatpush2.msra.mxu0 0.0
    %311 = vmatprep.mubr.f32.mxu0 0.0
    %312 = vmatmul.mubr.f32.gmra.mxu0 %v245
    %v313 = vpop.f32.mrf.mxu0
    %v314 = vadd.f32 %v243, %v313
    %v315 = vpop.f32.mrf.mxu0
    %316 = vdwg.mxu0
    %v317 = vadd.f32 %v226, 1.0
    %v318 = vmul.f32 %v226, %v226
    %320 = vrot.lane.b32.xlu0 %v318, 32
    %v321 = vpop.permute.xlu0 %320
    %v323 = vsub.f32 %v317, %v321
    %v324 = vmul.f32 %v226, 1.442695
    %v325 = vpow.pop %v324
    %v326 = vsub.f32 %v323, %v325
    %328 = vrot.lane.b32.xlu0 %v326, 96
    %v329 = vpop.permute.xlu0 %328
    %vm331 = vcmask 257024
    %v332 = vsel %vm331, %v329, 0.0
    %333 = vadd.xlane.f32.xlu0 %v332
    %v334 = vpop.xlane.xlu0 %333
    %vm335 = vcmask 1043456
    %v336 = vsel %vm335, %v334, 0.0
    %v337 = vrot.slane %v336, 4
    %v338 = vadd.f32 %v336, %v337
    %v339 = vrot.slane %v338, 2
    %v340 = vadd.f32 %v338, %v339
    %v341 = vrot.slane %v340, 1
    %v342 = vadd.f32 %v340, %v341
    %v343 = vrcp.pop 4.0
    %v344 = vmul.f32 %v342, %v343
    %v345 = vmul.f32 %v344, -0.5
    %vm346 = vcmask 0
    %347 = vst.msk [vmem:[#allocation11] sm:$0x1] %vm346, %v345
    %v348 = vsub.f32 %v314, %v71
    %v349 = vmul.f32 %v348, %v348
    %vm350 = vcmask 125952
    %v351 = vsel %vm350, %v349, 0.0
    %352 = vadd.xlane.f32.xlu0 %v351
    %v353 = vpop.xlane.xlu0 %352
    %v354 = vrcp.pop 16.0
    %v355 = vmul.f32 %v353, %v354
    %v356 = vsel %vm335, %v355, 0.0
    %v357 = vrot.slane %v356, 4
    %v358 = vadd.f32 %v356, %v357
    %v359 = vrot.slane %v358, 2
    %v360 = vadd.f32 %v358, %v359
    %v361 = vrot.slane %v360, 1
    %v362 = vadd.f32 %v360, %v361
    %v363 = vmul.f32 %v362, %v343
    %364 = vst.msk [vmem:[#allocation13] sm:$0x1] %vm346, %v363
    %v365 = vld [vmem:[%s2] sm:$0xff]
    %v366 = vld [vmem:[%s2 + $0x8] sm:$0xff]
    %v367 = vld [vmem:[%s2 + $0x10] sm:$0xff]
    %v368 = vld [vmem:[%s2 + $0x18] sm:$0xff]
    %v369 = vld [vmem:[%s2 + $0x20] sm:$0xff]
    %v370 = vld [vmem:[%s2 + $0x28] sm:$0xff]
    %v371 = vld [vmem:[%s2 + $0x30] sm:$0xff]
    %v372 = vld [vmem:[%s2 + $0x38] sm:$0xff]
    %v373 = vld [vmem:[%s2 + $0x40] sm:$0xff]
    %v374 = vld [vmem:[%s2 + $0x48] sm:$0xff]
    %v375 = vld [vmem:[%s2 + $0x50] sm:$0xff]
    %v376 = vld [vmem:[%s2 + $0x58] sm:$0xff]
    %v377 = vld [vmem:[%s7] sm:$0xff]
    %v378 = vld [vmem:[%s7 + $0x10] sm:$0xff]
    %v379 = vld [vmem:[%s7 + $0x20] sm:$0xff]
    %v380 = vld [vmem:[%s7 + $0x30] sm:$0xff]
    %v381 = vld [vmem:[%s5 + $0x3] ss:$0 sm:$0xff]
    %v383 = vsel %vm155, %v365, 0
    %v386 = vsel %vm155, %v366, 0
    %v389 = vsel %vm155, %v367, 0
    %v392 = vsel %vm155, %v368, 0
    %v395 = vsel %vm155, %v369, 0
    %v398 = vsel %vm155, %v370, 0
    %v401 = vsel %vm155, %v371, 0
    %v404 = vsel %vm155, %v372, 0
    %v407 = vsel %vm155, %v373, 0
    %v410 = vsel %vm155, %v374, 0
    %v413 = vsel %vm155, %v375, 0
    %v416 = vsel %vm155, %v376, 0
    %418 = vmatprep.subr.mxu0 0.0
    %419 = vmatpush1.msra.mxu0 0.0
    %420 = vmatprep.subr.mxu0 0.0
    %421 = vmatpush1.msra.mxu0 0.0
    %422 = vmatprep.subr.mxu0 0.0
    %423 = vmatpush1.msra.mxu0 0.0
    %424 = vmatprep.subr.mxu0 0.0
    %425 = vmatpush1.msra.mxu0 0.0
    %426 = vmatprep.subr.mxu0 0.0
    %427 = vmatpush1.msra.mxu0 0.0
    %428 = vmatprep.subr.mxu0 0.0
    %429 = vmatpush1.msra.mxu0 0.0
    %430 = vmatprep.subr.mxu0 0.0
    %431 = vmatpush1.msra.mxu0 0.0
    %432 = vmatprep.subr.mxu0 0.0
    %433 = vmatpush1.msra.mxu0 0.0
    %434 = vmatprep.subr.mxu0 0.0
    %435 = vmatpush1.msra.mxu0 0.0
    %436 = vmatprep.subr.mxu0 0.0
    %437 = vmatpush1.msra.mxu0 0.0
    %438 = vmatprep.subr.mxu0 0.0
    %439 = vmatpush1.msra.mxu0 0.0
    %440 = vmatprep.subr.mxu0 0.0
    %441 = vmatpush1.msra.mxu0 0.0
    %442 = vmatprep.subr.mxu0 0.0
    %443 = vmatpush1.msra.mxu0 %v380
    %444 = vmatprep.subr.mxu0 0.0
    %445 = vmatpush1.msra.mxu0 %v379
    %446 = vmatprep.subr.mxu0 0.0
    %447 = vmatpush1.msra.mxu0 %v378
    %448 = vmatprep.subr.mxu0 0.0
    %449 = vmatpush1.msra.mxu0 %v377
    %450 = vmatprep.subr.mxu0 0.0
    %451 = vmatpush2.msra.mxu0 0.0
    %452 = vmatprep.subr.mxu0 0.0
    %453 = vmatpush2.msra.mxu0 0.0
    %454 = vmatprep.subr.mxu0 0.0
    %455 = vmatpush2.msra.mxu0 0.0
    %456 = vmatprep.subr.mxu0 0.0
    %457 = vmatpush2.msra.mxu0 0.0
    %458 = vmatprep.subr.mxu0 0.0
    %459 = vmatpush2.msra.mxu0 0.0
    %460 = vmatprep.subr.mxu0 0.0
    %461 = vmatpush2.msra.mxu0 0.0
    %462 = vmatprep.subr.mxu0 0.0
    %463 = vmatpush2.msra.mxu0 0.0
    %464 = vmatprep.subr.mxu0 0.0
    %465 = vmatpush2.msra.mxu0 0.0
    %466 = vmatprep.subr.mxu0 0.0
    %467 = vmatpush2.msra.mxu0 0.0
    %468 = vmatprep.subr.mxu0 0.0
    %469 = vmatpush2.msra.mxu0 0.0
    %470 = vmatprep.subr.mxu0 0.0
    %471 = vmatpush2.msra.mxu0 0.0
    %472 = vmatprep.subr.mxu0 0.0
    %473 = vmatpush2.msra.mxu0 0.0
    %474 = vmatprep.subr.mxu0 0.0
    %475 = vmatpush2.msra.mxu0 0.0
    %476 = vmatprep.subr.mxu0 0.0
    %477 = vmatpush2.msra.mxu0 0.0
    %478 = vmatprep.subr.mxu0 0.0
    %479 = vmatpush2.msra.mxu0 0.0
    %480 = vmatprep.subr.mxu0 0.0
    %481 = vmatpush2.msra.mxu0 0.0
    %482 = vmatprep.mubr.f32.mxu0 0.0
    %483 = vmatmul.mubr.f32.gmra.mxu0 %v383
    %v484 = vpop.f32.mrf.mxu0
    %v485 = vadd.f32 %v381, %v484
    %v486 = vpop.f32.mrf.mxu0
    %487 = vmatprep.mubr.f32.mxu0 0.0
    %488 = vmatmul.mubr.f32.gmra.mxu0 %v386
    %v489 = vpop.f32.mrf.mxu0
    %v490 = vadd.f32 %v381, %v489
    %v491 = vpop.f32.mrf.mxu0
    %492 = vmatprep.mubr.f32.mxu0 0.0
    %493 = vmatmul.mubr.f32.gmra.mxu0 %v389
    %v494 = vpop.f32.mrf.mxu0
    %v495 = vadd.f32 %v381, %v494
    %v496 = vpop.f32.mrf.mxu0
    %497 = vmatprep.mubr.f32.mxu0 0.0
    %498 = vmatmul.mubr.f32.gmra.mxu0 %v392
    %v499 = vpop.f32.mrf.mxu0
    %v500 = vadd.f32 %v381, %v499
    %v501 = vpop.f32.mrf.mxu0
    %502 = vmatprep.mubr.f32.mxu0 0.0
    %503 = vmatmul.mubr.f32.gmra.mxu0 %v395
    %v504 = vpop.f32.mrf.mxu0
    %v505 = vadd.f32 %v381, %v504
    %v506 = vpop.f32.mrf.mxu0
    %507 = vmatprep.mubr.f32.mxu0 0.0
    %508 = vmatmul.mubr.f32.gmra.mxu0 %v398
    %v509 = vpop.f32.mrf.mxu0
    %v510 = vadd.f32 %v381, %v509
    %v511 = vpop.f32.mrf.mxu0
    %512 = vmatprep.mubr.f32.mxu0 0.0
    %513 = vmatmul.mubr.f32.gmra.mxu0 %v401
    %v514 = vpop.f32.mrf.mxu0
    %v515 = vadd.f32 %v381, %v514
    %v516 = vpop.f32.mrf.mxu0
    %517 = vmatprep.mubr.f32.mxu0 0.0
    %518 = vmatmul.mubr.f32.gmra.mxu0 %v404
    %v519 = vpop.f32.mrf.mxu0
    %v520 = vadd.f32 %v381, %v519
    %v521 = vpop.f32.mrf.mxu0
    %522 = vmatprep.mubr.f32.mxu0 0.0
    %523 = vmatmul.mubr.f32.gmra.mxu0 %v407
    %v524 = vpop.f32.mrf.mxu0
    %v525 = vadd.f32 %v381, %v524
    %v526 = vpop.f32.mrf.mxu0
    %527 = vmatprep.mubr.f32.mxu0 0.0
    %528 = vmatmul.mubr.f32.gmra.mxu0 %v410
    %v529 = vpop.f32.mrf.mxu0
    %v530 = vadd.f32 %v381, %v529
    %v531 = vpop.f32.mrf.mxu0
    %532 = vmatprep.mubr.f32.mxu0 0.0
    %533 = vmatmul.mubr.f32.gmra.mxu0 %v413
    %v534 = vpop.f32.mrf.mxu0
    %v535 = vadd.f32 %v381, %v534
    %v536 = vpop.f32.mrf.mxu0
    %537 = vmatprep.mubr.f32.mxu0 0.0
    %538 = vmatmul.mubr.f32.gmra.mxu0 %v416
    %v539 = vpop.f32.mrf.mxu0
    %v540 = vadd.f32 %v381, %v539
    %v541 = vpop.f32.mrf.mxu0
    %542 = vdwg.mxu0
    %s543 = scalar_lea.vmem %s5, 4
    %v544 = vld [vmem:[%s543] ss:$8 sm:$0x3]
    %v545 = vld [vmem:[%s5 + $0x5] ss:$0 sm:$0xff]
    %v546 = vld [vmem:[%s3] sm:$0xff]
    %v547 = vld [vmem:[%s3 + $0x8] sm:$0xf]
    %vm548 = vcmask 523264
    %549 = vst.msk [vmem:[#allocation3] sm:$0xff] %vm548, %v546
    %vm550 = vcmask 519168
    %551 = vst.msk [vmem:[#allocation3 + $0x8] sm:$0xf] %vm550, %v547
    %v552 = vld [vmem:[#allocation3] sm:$0xff]
    %v553 = vld [vmem:[#allocation3 + $0x8] sm:$0xf]
    %v554 = vld [vmem:[%s7 + $0x40] sm:$0xff]
    %v555 = vld [vmem:[%s7 + $0x48] sm:$0xff]
    %v556 = vld [vmem:[%s7 + $0x50] sm:$0xff]
    %v557 = vld [vmem:[%s7 + $0x58] sm:$0xff]
    %v558 = vld [vmem:[%s7 + $0x60] sm:$0xff]
    %v559 = vld [vmem:[%s7 + $0x68] sm:$0xff]
    %v560 = vld [vmem:[%s7 + $0x70] sm:$0xff]
    %v561 = vld [vmem:[%s7 + $0x78] sm:$0xff]
    %v562 = vld [vmem:[%s7 + $0x80] sm:$0xff]
    %v563 = vld [vmem:[%s7 + $0x88] sm:$0xff]
    %v564 = vld [vmem:[%s7 + $0x90] sm:$0xff]
    %v565 = vld [vmem:[%s7 + $0x98] sm:$0xff]
    %v566 = vld [vmem:[%s7 + $0xa0] sm:$0xff]
    %v567 = vld [vmem:[%s7 + $0xa8] sm:$0xff]
    %v568 = vld [vmem:[%s7 + $0xb0] sm:$0xff]
    %v569 = vld [vmem:[%s7 + $0xb8] sm:$0xff]
    %v571 = vlaneseq
    %v572 = vshrl.u32 %v571, 7
    %v573 = vsub.s32 0, %v572
    %v574 = vrot.slane %v544, %v573
    %v575 = vlaneseq
    %v576 = vshrl.u32 %v575, 7
    %v577 = vsub.s32 1, %v576
    %v578 = vrot.slane %v544, %v577
    %v582 = vsel %vm548, %v552, 0
    %v585 = vsel %vm548, %v553, 0
    %587 = vmatprep.subr.mxu0 0.0
    %588 = vmatpush1.msra.mxu0 0.0
    %589 = vmatprep.subr.mxu0 0.0
    %590 = vmatpush1.msra.mxu0 0.0
    %591 = vmatprep.subr.mxu0 0.0
    %592 = vmatpush1.msra.mxu0 0.0
    %593 = vmatprep.subr.mxu0 0.0
    %594 = vmatpush1.msra.mxu0 0.0
    %595 = vmatprep.subr.mxu0 0.0
    %596 = vmatpush1.msra.mxu0 0.0
    %597 = vmatprep.subr.mxu0 0.0
    %598 = vmatpush1.msra.mxu0 0.0
    %599 = vmatprep.subr.mxu0 0.0
    %600 = vmatpush1.msra.mxu0 0.0
    %601 = vmatprep.subr.mxu0 0.0
    %602 = vmatpush1.msra.mxu0 0.0
    %603 = vmatprep.subr.mxu0 %v569
    %604 = vmatpush1.msra.mxu0 %v568
    %605 = vmatprep.subr.mxu0 %v567
    %606 = vmatpush1.msra.mxu0 %v566
    %607 = vmatprep.subr.mxu0 %v565
    %608 = vmatpush1.msra.mxu0 %v564
    %609 = vmatprep.subr.mxu0 %v563
    %610 = vmatpush1.msra.mxu0 %v562
    %611 = vmatprep.subr.mxu0 %v561
    %612 = vmatpush1.msra.mxu0 %v560
    %613 = vmatprep.subr.mxu0 %v559
    %614 = vmatpush1.msra.mxu0 %v558
    %615 = vmatprep.subr.mxu0 %v557
    %616 = vmatpush1.msra.mxu0 %v556
    %617 = vmatprep.subr.mxu0 %v555
    %618 = vmatpush1.msra.mxu0 %v554
    %619 = vmatprep.subr.mxu0 0.0
    %620 = vmatpush2.msra.mxu0 0.0
    %621 = vmatprep.subr.mxu0 0.0
    %622 = vmatpush2.msra.mxu0 0.0
    %623 = vmatprep.subr.mxu0 0.0
    %624 = vmatpush2.msra.mxu0 0.0
    %625 = vmatprep.subr.mxu0 0.0
    %626 = vmatpush2.msra.mxu0 0.0
    %627 = vmatprep.subr.mxu0 0.0
    %628 = vmatpush2.msra.mxu0 0.0
    %629 = vmatprep.subr.mxu0 0.0
    %630 = vmatpush2.msra.mxu0 0.0
    %631 = vmatprep.subr.mxu0 0.0
    %632 = vmatpush2.msra.mxu0 0.0
    %633 = vmatprep.subr.mxu0 0.0
    %634 = vmatpush2.msra.mxu0 0.0
    %635 = vmatprep.subr.mxu0 0.0
    %636 = vmatpush2.msra.mxu0 0.0
    %637 = vmatprep.subr.mxu0 0.0
    %638 = vmatpush2.msra.mxu0 0.0
    %639 = vmatprep.subr.mxu0 0.0
    %640 = vmatpush2.msra.mxu0 0.0
    %641 = vmatprep.subr.mxu0 0.0
    %642 = vmatpush2.msra.mxu0 0.0
    %643 = vmatprep.subr.mxu0 0.0
    %644 = vmatpush2.msra.mxu0 0.0
    %645 = vmatprep.subr.mxu0 0.0
    %646 = vmatpush2.msra.mxu0 0.0
    %647 = vmatprep.subr.mxu0 0.0
    %648 = vmatpush2.msra.mxu0 0.0
    %649 = vmatprep.subr.mxu0 0.0
    %650 = vmatpush2.msra.mxu0 0.0
    %651 = vmatprep.mubr.f32.mxu0 0.0
    %652 = vmatmul.mubr.f32.gmra.mxu0 %v582
    %v653 = vpop.f32.mrf.mxu0
    %v654 = vadd.f32 %v574, %v653
    %v655 = vpop.f32.mrf.mxu0
    %v656 = vadd.f32 %v578, %v655
    %657 = vmatprep.mubr.f32.mxu0 0.0
    %658 = vmatmul.mubr.f32.gmra.mxu0 %v585
    %v659 = vpop.f32.mrf.mxu0
    %v660 = vadd.f32 %v574, %v659
    %v661 = vpop.f32.mrf.mxu0
    %v662 = vadd.f32 %v578, %v661
    %663 = vdwg.mxu0
    %v664 = vadd.f32 %v485, %v654
    %v665 = vadd.f32 %v490, %v660
    %v666 = vxor.u32 %v664, 2147483648
    %v667 = vxor.u32 %v665, 2147483648
    %v668 = vmul.f32 %v666, 1.442695
    %v669 = vpow.pop %v668
    %v670 = vmul.f32 %v667, 1.442695
    %v671 = vpow.pop %v670
    %v672 = vadd.f32 %v669, 1.0
    %v673 = vadd.f32 %v671, 1.0
    %v674 = vrcp.pop %v672
    %v675 = vmul.f32 1.0, %v674
    %v676 = vrcp.pop %v673
    %v677 = vmul.f32 1.0, %v676
    %680 = vrot.lane.b32.xlu0 %v654, 64
    %v681 = vpop.permute.xlu0 %680
    %682 = vrot.lane.b32.xlu0 %v660, 64
    %v683 = vpop.permute.xlu0 %682
    %v686 = vmul.f32 %v675, %v681
    %v687 = vmul.f32 %v677, %v683
    %690 = vrot.lane.b32.xlu0 %v686, 64
    %v691 = vpop.permute.xlu0 %690
    %692 = vrot.lane.b32.xlu0 %v687, 64
    %v693 = vpop.permute.xlu0 %692
    %v696 = vadd.f32 %v485, %v691
    %v697 = vadd.f32 %v490, %v693
    %v698 = vtanh.pop %v696
    %v699 = vtanh.pop %v697
    %v700 = vsub.f32 1.0, %v675
    %v701 = vsub.f32 1.0, %v677
    %704 = vrot.lane.b32.xlu0 %v698, 96
    %v705 = vpop.permute.xlu0 %704
    %706 = vrot.lane.b32.xlu0 %v699, 96
    %v707 = vpop.permute.xlu0 %706
    %v710 = vmul.f32 %v700, %v705
    %v711 = vmul.f32 %v701, %v707
    %712 = vrot.lane.b32.xlu0 %v552, 32
    %v713 = vpop.permute.xlu0 %712
    %714 = vrot.lane.b32.xlu0 %v553, 32
    %v715 = vpop.permute.xlu0 %714
    %v718 = vmul.f32 %v675, %v713
    %v719 = vmul.f32 %v677, %v715
    %v720 = vadd.f32 %v710, %v718
    %v721 = vadd.f32 %v711, %v719
    %v722 = vld [vmem:[%s7 + $0xc0] sm:$0xff]
    %v723 = vld [vmem:[%s7 + $0xd0] sm:$0xff]
    %v724 = vld [vmem:[%s7 + $0xe0] sm:$0xff]
    %v725 = vld [vmem:[%s7 + $0xf0] sm:$0xff]
    %728 = vrot.lane.b32.xlu0 %v720, 96
    %v729 = vpop.permute.xlu0 %728
    %730 = vrot.lane.b32.xlu0 %v721, 96
    %v731 = vpop.permute.xlu0 %730
    %v732 = vsel %vm155, %v729, 0
    %v734 = vsel %vm155, %v731, 0
    %736 = vmatprep.subr.mxu0 0.0
    %737 = vmatpush1.msra.mxu0 0.0
    %738 = vmatprep.subr.mxu0 0.0
    %739 = vmatpush1.msra.mxu0 0.0
    %740 = vmatprep.subr.mxu0 0.0
    %741 = vmatpush1.msra.mxu0 0.0
    %742 = vmatprep.subr.mxu0 0.0
    %743 = vmatpush1.msra.mxu0 0.0
    %744 = vmatprep.subr.mxu0 0.0
    %745 = vmatpush1.msra.mxu0 0.0
    %746 = vmatprep.subr.mxu0 0.0
    %747 = vmatpush1.msra.mxu0 0.0
    %748 = vmatprep.subr.mxu0 0.0
    %749 = vmatpush1.msra.mxu0 0.0
    %750 = vmatprep.subr.mxu0 0.0
    %751 = vmatpush1.msra.mxu0 0.0
    %752 = vmatprep.subr.mxu0 0.0
    %753 = vmatpush1.msra.mxu0 0.0
    %754 = vmatprep.subr.mxu0 0.0
    %755 = vmatpush1.msra.mxu0 0.0
    %756 = vmatprep.subr.mxu0 0.0
    %757 = vmatpush1.msra.mxu0 0.0
    %758 = vmatprep.subr.mxu0 0.0
    %759 = vmatpush1.msra.mxu0 0.0
    %760 = vmatprep.subr.mxu0 0.0
    %761 = vmatpush1.msra.mxu0 %v725
    %762 = vmatprep.subr.mxu0 0.0
    %763 = vmatpush1.msra.mxu0 %v724
    %764 = vmatprep.subr.mxu0 0.0
    %765 = vmatpush1.msra.mxu0 %v723
    %766 = vmatprep.subr.mxu0 0.0
    %767 = vmatpush1.msra.mxu0 %v722
    %768 = vmatprep.subr.mxu0 0.0
    %769 = vmatpush2.msra.mxu0 0.0
    %770 = vmatprep.subr.mxu0 0.0
    %771 = vmatpush2.msra.mxu0 0.0
    %772 = vmatprep.subr.mxu0 0.0
    %773 = vmatpush2.msra.mxu0 0.0
    %774 = vmatprep.subr.mxu0 0.0
    %775 = vmatpush2.msra.mxu0 0.0
    %776 = vmatprep.subr.mxu0 0.0
    %777 = vmatpush2.msra.mxu0 0.0
    %778 = vmatprep.subr.mxu0 0.0
    %779 = vmatpush2.msra.mxu0 0.0
    %780 = vmatprep.subr.mxu0 0.0
    %781 = vmatpush2.msra.mxu0 0.0
    %782 = vmatprep.subr.mxu0 0.0
    %783 = vmatpush2.msra.mxu0 0.0
    %784 = vmatprep.subr.mxu0 0.0
    %785 = vmatpush2.msra.mxu0 0.0
    %786 = vmatprep.subr.mxu0 0.0
    %787 = vmatpush2.msra.mxu0 0.0
    %788 = vmatprep.subr.mxu0 0.0
    %789 = vmatpush2.msra.mxu0 0.0
    %790 = vmatprep.subr.mxu0 0.0
    %791 = vmatpush2.msra.mxu0 0.0
    %792 = vmatprep.subr.mxu0 0.0
    %793 = vmatpush2.msra.mxu0 0.0
    %794 = vmatprep.subr.mxu0 0.0
    %795 = vmatpush2.msra.mxu0 0.0
    %796 = vmatprep.subr.mxu0 0.0
    %797 = vmatpush2.msra.mxu0 0.0
    %798 = vmatprep.subr.mxu0 0.0
    %799 = vmatpush2.msra.mxu0 0.0
    %800 = vmatprep.mubr.f32.mxu0 0.0
    %801 = vmatmul.mubr.f32.gmra.mxu0 %v732
    %v802 = vpop.f32.mrf.mxu0
    %v803 = vadd.f32 %v545, %v802
    %v804 = vpop.f32.mrf.mxu0
    %805 = vmatprep.mubr.f32.mxu0 0.0
    %806 = vmatmul.mubr.f32.gmra.mxu0 %v734
    %v807 = vpop.f32.mrf.mxu0
    %v808 = vadd.f32 %v545, %v807
    %v809 = vpop.f32.mrf.mxu0
    %810 = vdwg.mxu0
    %811 = vrot.lane.b32.xlu0 %v654, 32
    %v812 = vpop.permute.xlu0 %811
    %813 = vrot.lane.b32.xlu0 %v660, 32
    %v814 = vpop.permute.xlu0 %813
    %v817 = vadd.f32 %v803, %v812
    %v818 = vadd.f32 %v808, %v814
    %v819 = vxor.u32 %v817, 2147483648
    %v820 = vxor.u32 %v818, 2147483648
    %v821 = vmul.f32 %v819, 1.442695
    %v822 = vpow.pop %v821
    %v823 = vmul.f32 %v820, 1.442695
    %v824 = vpow.pop %v823
    %v825 = vadd.f32 %v822, 1.0
    %v826 = vadd.f32 %v824, 1.0
    %v827 = vrcp.pop %v825
    %v828 = vmul.f32 1.0, %v827
    %v829 = vrcp.pop %v826
    %v830 = vmul.f32 1.0, %v829
    %833 = vrot.lane.b32.xlu0 %v656, 32
    %v834 = vpop.permute.xlu0 %833
    %835 = vrot.lane.b32.xlu0 %v662, 32
    %v836 = vpop.permute.xlu0 %835
    %v839 = vadd.f32 %v803, %v834
    %v840 = vadd.f32 %v808, %v836
    %v841 = vxor.u32 %v839, 2147483648
    %v842 = vxor.u32 %v840, 2147483648
    %v843 = vmul.f32 %v841, 1.442695
    %v844 = vpow.pop %v843
    %v845 = vmul.f32 %v842, 1.442695
    %v846 = vpow.pop %v845
    %v847 = vadd.f32 %v844, 1.0
    %v848 = vadd.f32 %v846, 1.0
    %v849 = vrcp.pop %v847
    %v850 = vmul.f32 1.0, %v849
    %v851 = vrcp.pop %v848
    %v852 = vmul.f32 1.0, %v851
    %853 = vrot.lane.b32.xlu0 %v656, 96
    %v854 = vpop.permute.xlu0 %853
    %855 = vrot.lane.b32.xlu0 %v662, 96
    %v856 = vpop.permute.xlu0 %855
    %v859 = vmul.f32 %v828, %v854
    %v860 = vmul.f32 %v830, %v856
    %863 = vrot.lane.b32.xlu0 %v859, 64
    %v864 = vpop.permute.xlu0 %863
    %865 = vrot.lane.b32.xlu0 %v860, 64
    %v866 = vpop.permute.xlu0 %865
    %v869 = vadd.f32 %v803, %v864
    %v870 = vadd.f32 %v808, %v866
    %v871 = vtanh.pop %v869
    %v872 = vtanh.pop %v870
    %v873 = vsub.f32 1.0, %v850
    %v874 = vsub.f32 1.0, %v852
    %877 = vrot.lane.b32.xlu0 %v871, 96
    %v878 = vpop.permute.xlu0 %877
    %879 = vrot.lane.b32.xlu0 %v872, 96
    %v880 = vpop.permute.xlu0 %879
    %v883 = vmul.f32 %v873, %v878
    %v884 = vmul.f32 %v874, %v880
    %v885 = vmul.f32 %v850, %v552
    %v886 = vmul.f32 %v852, %v553
    %v887 = vadd.f32 %v883, %v885
    %v888 = vadd.f32 %v884, %v886
    %891 = vst.msk [vmem:[#allocation3] sm:$0xff] %vm155, %v729
    %892 = vst.msk [vmem:[#allocation3 + $0x8] sm:$0xf] %vm331, %v731
    %vm893 = vcmask 523520
    %894 = vst.msk [vmem:[#allocation3] sm:$0xff] %vm893, %v887
    %vm895 = vcmask 519424
    %896 = vst.msk [vmem:[#allocation3 + $0x8] sm:$0xf] %vm895, %v888
    %v897 = vld [vmem:[#allocation3] sm:$0xff]
    %v898 = vld [vmem:[#allocation3 + $0x8] sm:$0xf]
    %v899 = vld [vmem:[%s7 + $0x40] sm:$0xff]
    %v900 = vld [vmem:[%s7 + $0x48] sm:$0xff]
    %v901 = vld [vmem:[%s7 + $0x50] sm:$0xff]
    %v902 = vld [vmem:[%s7 + $0x58] sm:$0xff]
    %v903 = vld [vmem:[%s7 + $0x60] sm:$0xff]
    %v904 = vld [vmem:[%s7 + $0x68] sm:$0xff]
    %v905 = vld [vmem:[%s7 + $0x70] sm:$0xff]
    %v906 = vld [vmem:[%s7 + $0x78] sm:$0xff]
    %v907 = vld [vmem:[%s7 + $0x80] sm:$0xff]
    %v908 = vld [vmem:[%s7 + $0x88] sm:$0xff]
    %v909 = vld [vmem:[%s7 + $0x90] sm:$0xff]
    %v910 = vld [vmem:[%s7 + $0x98] sm:$0xff]
    %v911 = vld [vmem:[%s7 + $0xa0] sm:$0xff]
    %v912 = vld [vmem:[%s7 + $0xa8] sm:$0xff]
    %v913 = vld [vmem:[%s7 + $0xb0] sm:$0xff]
    %v914 = vld [vmem:[%s7 + $0xb8] sm:$0xff]
    %v916 = vsel %vm548, %v897, 0
    %v919 = vsel %vm548, %v898, 0
    %921 = vmatprep.subr.mxu0 0.0
    %922 = vmatpush1.msra.mxu0 0.0
    %923 = vmatprep.subr.mxu0 0.0
    %924 = vmatpush1.msra.mxu0 0.0
    %925 = vmatprep.subr.mxu0 0.0
    %926 = vmatpush1.msra.mxu0 0.0
    %927 = vmatprep.subr.mxu0 0.0
    %928 = vmatpush1.msra.mxu0 0.0
    %929 = vmatprep.subr.mxu0 0.0
    %930 = vmatpush1.msra.mxu0 0.0
    %931 = vmatprep.subr.mxu0 0.0
    %932 = vmatpush1.msra.mxu0 0.0
    %933 = vmatprep.subr.mxu0 0.0
    %934 = vmatpush1.msra.mxu0 0.0
    %935 = vmatprep.subr.mxu0 0.0
    %936 = vmatpush1.msra.mxu0 0.0
    %937 = vmatprep.subr.mxu0 %v914
    %938 = vmatpush1.msra.mxu0 %v913
    %939 = vmatprep.subr.mxu0 %v912
    %940 = vmatpush1.msra.mxu0 %v911
    %941 = vmatprep.subr.mxu0 %v910
    %942 = vmatpush1.msra.mxu0 %v909
    %943 = vmatprep.subr.mxu0 %v908
    %944 = vmatpush1.msra.mxu0 %v907
    %945 = vmatprep.subr.mxu0 %v906
    %946 = vmatpush1.msra.mxu0 %v905
    %947 = vmatprep.subr.mxu0 %v904
    %948 = vmatpush1.msra.mxu0 %v903
    %949 = vmatprep.subr.mxu0 %v902
    %950 = vmatpush1.msra.mxu0 %v901
    %951 = vmatprep.subr.mxu0 %v900
    %952 = vmatpush1.msra.mxu0 %v899
    %953 = vmatprep.subr.mxu0 0.0
    %954 = vmatpush2.msra.mxu0 0.0
    %955 = vmatprep.subr.mxu0 0.0
    %956 = vmatpush2.msra.mxu0 0.0
    %957 = vmatprep.subr.mxu0 0.0
    %958 = vmatpush2.msra.mxu0 0.0
    %959 = vmatprep.subr.mxu0 0.0
    %960 = vmatpush2.msra.mxu0 0.0
    %961 = vmatprep.subr.mxu0 0.0
    %962 = vmatpush2.msra.mxu0 0.0
    %963 = vmatprep.subr.mxu0 0.0
    %964 = vmatpush2.msra.mxu0 0.0
    %965 = vmatprep.subr.mxu0 0.0
    %966 = vmatpush2.msra.mxu0 0.0
    %967 = vmatprep.subr.mxu0 0.0
    %968 = vmatpush2.msra.mxu0 0.0
    %969 = vmatprep.subr.mxu0 0.0
    %970 = vmatpush2.msra.mxu0 0.0
    %971 = vmatprep.subr.mxu0 0.0
    %972 = vmatpush2.msra.mxu0 0.0
    %973 = vmatprep.subr.mxu0 0.0
    %974 = vmatpush2.msra.mxu0 0.0
    %975 = vmatprep.subr.mxu0 0.0
    %976 = vmatpush2.msra.mxu0 0.0
    %977 = vmatprep.subr.mxu0 0.0
    %978 = vmatpush2.msra.mxu0 0.0
    %979 = vmatprep.subr.mxu0 0.0
    %980 = vmatpush2.msra.mxu0 0.0
    %981 = vmatprep.subr.mxu0 0.0
    %982 = vmatpush2.msra.mxu0 0.0
    %983 = vmatprep.subr.mxu0 0.0
    %984 = vmatpush2.msra.mxu0 0.0
    %985 = vmatprep.mubr.f32.mxu0 0.0
    %986 = vmatmul.mubr.f32.gmra.mxu0 %v916
    %v987 = vpop.f32.mrf.mxu0
    %v988 = vadd.f32 %v574, %v987
    %v989 = vpop.f32.mrf.mxu0
    %v990 = vadd.f32 %v578, %v989
    %991 = vmatprep.mubr.f32.mxu0 0.0
    %992 = vmatmul.mubr.f32.gmra.mxu0 %v919
    %v993 = vpop.f32.mrf.mxu0
    %v994 = vadd.f32 %v574, %v993
    %v995 = vpop.f32.mrf.mxu0
    %v996 = vadd.f32 %v578, %v995
    %997 = vdwg.mxu0
    %v1000 = vrot.slane %v988, 4
    %v1001 = vrot.slane %v994, 4
    %v1002 = vsel %vm335, %v1000, %v1001
    %v1005 = vadd.f32 %v490, %v1000
    %v1006 = vadd.f32 %v495, %v1002
    %v1007 = vxor.u32 %v1005, 2147483648
    %v1008 = vxor.u32 %v1006, 2147483648
    %v1009 = vmul.f32 %v1007, 1.442695
    %v1010 = vpow.pop %v1009
    %v1011 = vmul.f32 %v1008, 1.442695
    %v1012 = vpow.pop %v1011
    %v1013 = vadd.f32 %v1010, 1.0
    %v1014 = vadd.f32 %v1012, 1.0
    %v1015 = vrcp.pop %v1013
    %v1016 = vmul.f32 1.0, %v1015
    %v1017 = vrcp.pop %v1014
    %v1018 = vmul.f32 1.0, %v1017
    %1019 = vrot.lane.b32.xlu0 %v1000, 64
    %v1020 = vpop.permute.xlu0 %1019
    %1021 = vrot.lane.b32.xlu0 %v1002, 64
    %v1022 = vpop.permute.xlu0 %1021
    %v1025 = vmul.f32 %v1016, %v1020
    %v1026 = vmul.f32 %v1018, %v1022
    %1029 = vrot.lane.b32.xlu0 %v1025, 64
    %v1030 = vpop.permute.xlu0 %1029
    %1031 = vrot.lane.b32.xlu0 %v1026, 64
    %v1032 = vpop.permute.xlu0 %1031
    %v1035 = vadd.f32 %v490, %v1030
    %v1036 = vadd.f32 %v495, %v1032
    %v1037 = vtanh.pop %v1035
    %v1038 = vtanh.pop %v1036
    %v1039 = vsub.f32 1.0, %v1016
    %v1040 = vsub.f32 1.0, %v1018
    %1043 = vrot.lane.b32.xlu0 %v1037, 96
    %v1044 = vpop.permute.xlu0 %1043
    %1045 = vrot.lane.b32.xlu0 %v1038, 96
    %v1046 = vpop.permute.xlu0 %1045
    %v1049 = vmul.f32 %v1039, %v1044
    %v1050 = vmul.f32 %v1040, %v1046
    %v1051 = vrot.slane %v897, 4
    %v1052 = vrot.slane %v898, 4
    %v1053 = vsel %vm335, %v1051, %v1052
    %1054 = vrot.lane.b32.xlu0 %v1051, 32
    %v1055 = vpop.permute.xlu0 %1054
    %1056 = vrot.lane.b32.xlu0 %v1053, 32
    %v1057 = vpop.permute.xlu0 %1056
    %v1060 = vmul.f32 %v1016, %v1055
    %v1061 = vmul.f32 %v1018, %v1057
    %v1062 = vadd.f32 %v1049, %v1060
    %v1063 = vadd.f32 %v1050, %v1061
    %v1064 = vld [vmem:[%s7 + $0xc0] sm:$0xff]
    %v1065 = vld [vmem:[%s7 + $0xd0] sm:$0xff]
    %v1066 = vld [vmem:[%s7 + $0xe0] sm:$0xff]
    %v1067 = vld [vmem:[%s7 + $0xf0] sm:$0xff]
    %v1070 = vrot.slane %v1062, 4
    %v1071 = vrot.slane %v1063, 4
    %v1072 = vsel %vm335, %v1070, %v1071
    %1073 = vrot.lane.b32.xlu0 %v1072, 96
    %v1074 = vpop.permute.xlu0 %1073
    %1075 = vrot.lane.b32.xlu0 %v1071, 96
    %v1076 = vpop.permute.xlu0 %1075
    %v1077 = vsel %vm155, %v1074, 0
    %v1079 = vsel %vm155, %v1076, 0
    %1081 = vmatprep.subr.mxu0 0.0
    %1082 = vmatpush1.msra.mxu0 0.0
    %1083 = vmatprep.subr.mxu0 0.0
    %1084 = vmatpush1.msra.mxu0 0.0
    %1085 = vmatprep.subr.mxu0 0.0
    %1086 = vmatpush1.msra.mxu0 0.0
    %1087 = vmatprep.subr.mxu0 0.0
    %1088 = vmatpush1.msra.mxu0 0.0
    %1089 = vmatprep.subr.mxu0 0.0
    %1090 = vmatpush1.msra.mxu0 0.0
    %1091 = vmatprep.subr.mxu0 0.0
    %1092 = vmatpush1.msra.mxu0 0.0
    %1093 = vmatprep.subr.mxu0 0.0
    %1094 = vmatpush1.msra.mxu0 0.0
    %1095 = vmatprep.subr.mxu0 0.0
    %1096 = vmatpush1.msra.mxu0 0.0
    %1097 = vmatprep.subr.mxu0 0.0
    %1098 = vmatpush1.msra.mxu0 0.0
    %1099 = vmatprep.subr.mxu0 0.0
    %1100 = vmatpush1.msra.mxu0 0.0
    %1101 = vmatprep.subr.mxu0 0.0
    %1102 = vmatpush1.msra.mxu0 0.0
    %1103 = vmatprep.subr.mxu0 0.0
    %1104 = vmatpush1.msra.mxu0 0.0
    %1105 = vmatprep.subr.mxu0 0.0
    %1106 = vmatpush1.msra.mxu0 %v1067
    %1107 = vmatprep.subr.mxu0 0.0
    %1108 = vmatpush1.msra.mxu0 %v1066
    %1109 = vmatprep.subr.mxu0 0.0
    %1110 = vmatpush1.msra.mxu0 %v1065
    %1111 = vmatprep.subr.mxu0 0.0
    %1112 = vmatpush1.msra.mxu0 %v1064
    %1113 = vmatprep.subr.mxu0 0.0
    %1114 = vmatpush2.msra.mxu0 0.0
    %1115 = vmatprep.subr.mxu0 0.0
    %1116 = vmatpush2.msra.mxu0 0.0
    %1117 = vmatprep.subr.mxu0 0.0
    %1118 = vmatpush2.msra.mxu0 0.0
    %1119 = vmatprep.subr.mxu0 0.0
    %1120 = vmatpush2.msra.mxu0 0.0
    %1121 = vmatprep.subr.mxu0 0.0
    %1122 = vmatpush2.msra.mxu0 0.0
    %1123 = vmatprep.subr.mxu0 0.0
    %1124 = vmatpush2.msra.mxu0 0.0
    %1125 = vmatprep.subr.mxu0 0.0
    %1126 = vmatpush2.msra.mxu0 0.0
    %1127 = vmatprep.subr.mxu0 0.0
    %1128 = vmatpush2.msra.mxu0 0.0
    %1129 = vmatprep.subr.mxu0 0.0
    %1130 = vmatpush2.msra.mxu0 0.0
    %1131 = vmatprep.subr.mxu0 0.0
    %1132 = vmatpush2.msra.mxu0 0.0
    %1133 = vmatprep.subr.mxu0 0.0
    %1134 = vmatpush2.msra.mxu0 0.0
    %1135 = vmatprep.subr.mxu0 0.0
    %1136 = vmatpush2.msra.mxu0 0.0
    %1137 = vmatprep.subr.mxu0 0.0
    %1138 = vmatpush2.msra.mxu0 0.0
    %1139 = vmatprep.subr.mxu0 0.0
    %1140 = vmatpush2.msra.mxu0 0.0
    %1141 = vmatprep.subr.mxu0 0.0
    %1142 = vmatpush2.msra.mxu0 0.0
    %1143 = vmatprep.subr.mxu0 0.0
    %1144 = vmatpush2.msra.mxu0 0.0
    %1145 = vmatprep.mubr.f32.mxu0 0.0
    %1146 = vmatmul.mubr.f32.gmra.mxu0 %v1077
    %v1147 = vpop.f32.mrf.mxu0
    %v1148 = vadd.f32 %v545, %v1147
    %v1149 = vpop.f32.mrf.mxu0
    %1150 = vmatprep.mubr.f32.mxu0 0.0
    %1151 = vmatmul.mubr.f32.gmra.mxu0 %v1079
    %v1152 = vpop.f32.mrf.mxu0
    %v1153 = vadd.f32 %v545, %v1152
    %v1154 = vpop.f32.mrf.mxu0
    %1155 = vdwg.mxu0
    %1156 = vrot.lane.b32.xlu0 %v988, 32
    %v1157 = vpop.permute.xlu0 %1156
    %1158 = vrot.lane.b32.xlu0 %v994, 32
    %v1159 = vpop.permute.xlu0 %1158
    %v1162 = vadd.f32 %v1148, %v1157
    %v1163 = vadd.f32 %v1153, %v1159
    %v1164 = vxor.u32 %v1162, 2147483648
    %v1165 = vxor.u32 %v1163, 2147483648
    %v1166 = vmul.f32 %v1164, 1.442695
    %v1167 = vpow.pop %v1166
    %v1168 = vmul.f32 %v1165, 1.442695
    %v1169 = vpow.pop %v1168
    %v1170 = vadd.f32 %v1167, 1.0
    %v1171 = vadd.f32 %v1169, 1.0
    %v1172 = vrcp.pop %v1170
    %v1173 = vmul.f32 1.0, %v1172
    %v1174 = vrcp.pop %v1171
    %v1175 = vmul.f32 1.0, %v1174
    %1178 = vrot.lane.b32.xlu0 %v990, 32
    %v1179 = vpop.permute.xlu0 %1178
    %1180 = vrot.lane.b32.xlu0 %v996, 32
    %v1181 = vpop.permute.xlu0 %1180
    %v1184 = vadd.f32 %v1148, %v1179
    %v1185 = vadd.f32 %v1153, %v1181
    %v1186 = vxor.u32 %v1184, 2147483648
    %v1187 = vxor.u32 %v1185, 2147483648
    %v1188 = vmul.f32 %v1186, 1.442695
    %v1189 = vpow.pop %v1188
    %v1190 = vmul.f32 %v1187, 1.442695
    %v1191 = vpow.pop %v1190
    %v1192 = vadd.f32 %v1189, 1.0
    %v1193 = vadd.f32 %v1191, 1.0
    %v1194 = vrcp.pop %v1192
    %v1195 = vmul.f32 1.0, %v1194
    %v1196 = vrcp.pop %v1193
    %v1197 = vmul.f32 1.0, %v1196
    %1198 = vrot.lane.b32.xlu0 %v990, 96
    %v1199 = vpop.permute.xlu0 %1198
    %1200 = vrot.lane.b32.xlu0 %v996, 96
    %v1201 = vpop.permute.xlu0 %1200
    %v1204 = vmul.f32 %v1173, %v1199
    %v1205 = vmul.f32 %v1175, %v1201
    %1208 = vrot.lane.b32.xlu0 %v1204, 64
    %v1209 = vpop.permute.xlu0 %1208
    %1210 = vrot.lane.b32.xlu0 %v1205, 64
    %v1211 = vpop.permute.xlu0 %1210
    %v1214 = vadd.f32 %v1148, %v1209
    %v1215 = vadd.f32 %v1153, %v1211
    %v1216 = vtanh.pop %v1214
    %v1217 = vtanh.pop %v1215
    %v1218 = vsub.f32 1.0, %v1195
    %v1219 = vsub.f32 1.0, %v1197
    %1222 = vrot.lane.b32.xlu0 %v1216, 96
    %v1223 = vpop.permute.xlu0 %1222
    %1224 = vrot.lane.b32.xlu0 %v1217, 96
    %v1225 = vpop.permute.xlu0 %1224
    %v1228 = vmul.f32 %v1218, %v1223
    %v1229 = vmul.f32 %v1219, %v1225
    %v1230 = vmul.f32 %v1195, %v897
    %v1231 = vmul.f32 %v1197, %v898
    %v1232 = vadd.f32 %v1228, %v1230
    %v1233 = vadd.f32 %v1229, %v1231
    %1234 = vrot.lane.b32.xlu0 %v1062, 96
    %v1235 = vpop.permute.xlu0 %1234
    %1236 = vrot.lane.b32.xlu0 %v1063, 96
    %v1237 = vpop.permute.xlu0 %1236
    %vm1240 = vcmask 261124
    %1241 = vst.msk [vmem:[#allocation3 - $0x4] sm:$0xf0] %vm1240, %v1235
    %1242 = vst.msk [vmem:[#allocation3 + $0x4] sm:$0xff] %vm155, %v1237
    %1243 = vst.msk [vmem:[#allocation3] sm:$0xff] %vm893, %v1232
    %1244 = vst.msk [vmem:[#allocation3 + $0x8] sm:$0xf] %vm895, %v1233
    %v1245 = vld [vmem:[#allocation3] sm:$0xff]
    %v1246 = vld [vmem:[#allocation3 + $0x8] sm:$0xf]
    %v1247 = vld [vmem:[%s7 + $0x40] sm:$0xff]
    %v1248 = vld [vmem:[%s7 + $0x48] sm:$0xff]
    %v1249 = vld [vmem:[%s7 + $0x50] sm:$0xff]
    %v1250 = vld [vmem:[%s7 + $0x58] sm:$0xff]
    %v1251 = vld [vmem:[%s7 + $0x60] sm:$0xff]
    %v1252 = vld [vmem:[%s7 + $0x68] sm:$0xff]
    %v1253 = vld [vmem:[%s7 + $0x70] sm:$0xff]
    %v1254 = vld [vmem:[%s7 + $0x78] sm:$0xff]
    %v1255 = vld [vmem:[%s7 + $0x80] sm:$0xff]
    %v1256 = vld [vmem:[%s7 + $0x88] sm:$0xff]
    %v1257 = vld [vmem:[%s7 + $0x90] sm:$0xff]
    %v1258 = vld [vmem:[%s7 + $0x98] sm:$0xff]
    %v1259 = vld [vmem:[%s7 + $0xa0] sm:$0xff]
    %v1260 = vld [vmem:[%s7 + $0xa8] sm:$0xff]
    %v1261 = vld [vmem:[%s7 + $0xb0] sm:$0xff]
    %v1262 = vld [vmem:[%s7 + $0xb8] sm:$0xff]
    %v1264 = vsel %vm548, %v1245, 0
    %v1267 = vsel %vm548, %v1246, 0
    %1269 = vmatprep.subr.mxu0 0.0
    %1270 = vmatpush1.msra.mxu0 0.0
    %1271 = vmatprep.subr.mxu0 0.0
    %1272 = vmatpush1.msra.mxu0 0.0
    %1273 = vmatprep.subr.mxu0 0.0
    %1274 = vmatpush1.msra.mxu0 0.0
    %1275 = vmatprep.subr.mxu0 0.0
    %1276 = vmatpush1.msra.mxu0 0.0
    %1277 = vmatprep.subr.mxu0 0.0
    %1278 = vmatpush1.msra.mxu0 0.0
    %1279 = vmatprep.subr.mxu0 0.0
    %1280 = vmatpush1.msra.mxu0 0.0
    %1281 = vmatprep.subr.mxu0 0.0
    %1282 = vmatpush1.msra.mxu0 0.0
    %1283 = vmatprep.subr.mxu0 0.0
    %1284 = vmatpush1.msra.mxu0 0.0
    %1285 = vmatprep.subr.mxu0 %v1262
    %1286 = vmatpush1.msra.mxu0 %v1261
    %1287 = vmatprep.subr.mxu0 %v1260
    %1288 = vmatpush1.msra.mxu0 %v1259
    %1289 = vmatprep.subr.mxu0 %v1258
    %1290 = vmatpush1.msra.mxu0 %v1257
    %1291 = vmatprep.subr.mxu0 %v1256
    %1292 = vmatpush1.msra.mxu0 %v1255
    %1293 = vmatprep.subr.mxu0 %v1254
    %1294 = vmatpush1.msra.mxu0 %v1253
    %1295 = vmatprep.subr.mxu0 %v1252
    %1296 = vmatpush1.msra.mxu0 %v1251
    %1297 = vmatprep.subr.mxu0 %v1250
    %1298 = vmatpush1.msra.mxu0 %v1249
    %1299 = vmatprep.subr.mxu0 %v1248
    %1300 = vmatpush1.msra.mxu0 %v1247
    %1301 = vmatprep.subr.mxu0 0.0
    %1302 = vmatpush2.msra.mxu0 0.0
    %1303 = vmatprep.subr.mxu0 0.0
    %1304 = vmatpush2.msra.mxu0 0.0
    %1305 = vmatprep.subr.mxu0 0.0
    %1306 = vmatpush2.msra.mxu0 0.0
    %1307 = vmatprep.subr.mxu0 0.0
    %1308 = vmatpush2.msra.mxu0 0.0
    %1309 = vmatprep.subr.mxu0 0.0
    %1310 = vmatpush2.msra.mxu0 0.0
    %1311 = vmatprep.subr.mxu0 0.0
    %1312 = vmatpush2.msra.mxu0 0.0
    %1313 = vmatprep.subr.mxu0 0.0
    %1314 = vmatpush2.msra.mxu0 0.0
    %1315 = vmatprep.subr.mxu0 0.0
    %1316 = vmatpush2.msra.mxu0 0.0
    %1317 = vmatprep.subr.mxu0 0.0
    %1318 = vmatpush2.msra.mxu0 0.0
    %1319 = vmatprep.subr.mxu0 0.0
    %1320 = vmatpush2.msra.mxu0 0.0
    %1321 = vmatprep.subr.mxu0 0.0
    %1322 = vmatpush2.msra.mxu0 0.0
    %1323 = vmatprep.subr.mxu0 0.0
    %1324 = vmatpush2.msra.mxu0 0.0
    %1325 = vmatprep.subr.mxu0 0.0
    %1326 = vmatpush2.msra.mxu0 0.0
    %1327 = vmatprep.subr.mxu0 0.0
    %1328 = vmatpush2.msra.mxu0 0.0
    %1329 = vmatprep.subr.mxu0 0.0
    %1330 = vmatpush2.msra.mxu0 0.0
    %1331 = vmatprep.subr.mxu0 0.0
    %1332 = vmatpush2.msra.mxu0 0.0
    %1333 = vmatprep.mubr.f32.mxu0 0.0
    %1334 = vmatmul.mubr.f32.gmra.mxu0 %v1264
    %v1335 = vpop.f32.mrf.mxu0
    %v1336 = vadd.f32 %v574, %v1335
    %v1337 = vpop.f32.mrf.mxu0
    %v1338 = vadd.f32 %v578, %v1337
    %1339 = vmatprep.mubr.f32.mxu0 0.0
    %1340 = vmatmul.mubr.f32.gmra.mxu0 %v1267
    %v1341 = vpop.f32.mrf.mxu0
    %v1342 = vadd.f32 %v574, %v1341
    %v1343 = vpop.f32.mrf.mxu0
    %v1344 = vadd.f32 %v578, %v1343
    %1345 = vdwg.mxu0
    %v1346 = vadd.f32 %v500, %v1336
    %v1347 = vadd.f32 %v505, %v1342
    %v1348 = vxor.u32 %v1346, 2147483648
    %v1349 = vxor.u32 %v1347, 2147483648
    %v1350 = vmul.f32 %v1348, 1.442695
    %v1351 = vpow.pop %v1350
    %v1352 = vmul.f32 %v1349, 1.442695
    %v1353 = vpow.pop %v1352
    %v1354 = vadd.f32 %v1351, 1.0
    %v1355 = vadd.f32 %v1353, 1.0
    %v1356 = vrcp.pop %v1354
    %v1357 = vmul.f32 1.0, %v1356
    %v1358 = vrcp.pop %v1355
    %v1359 = vmul.f32 1.0, %v1358
    %1362 = vrot.lane.b32.xlu0 %v1336, 64
    %v1363 = vpop.permute.xlu0 %1362
    %1364 = vrot.lane.b32.xlu0 %v1342, 64
    %v1365 = vpop.permute.xlu0 %1364
    %v1368 = vmul.f32 %v1357, %v1363
    %v1369 = vmul.f32 %v1359, %v1365
    %1372 = vrot.lane.b32.xlu0 %v1368, 64
    %v1373 = vpop.permute.xlu0 %1372
    %1374 = vrot.lane.b32.xlu0 %v1369, 64
    %v1375 = vpop.permute.xlu0 %1374
    %v1378 = vadd.f32 %v500, %v1373
    %v1379 = vadd.f32 %v505, %v1375
    %v1380 = vtanh.pop %v1378
    %v1381 = vtanh.pop %v1379
    %v1382 = vsub.f32 1.0, %v1357
    %v1383 = vsub.f32 1.0, %v1359
    %1386 = vrot.lane.b32.xlu0 %v1380, 96
    %v1387 = vpop.permute.xlu0 %1386
    %1388 = vrot.lane.b32.xlu0 %v1381, 96
    %v1389 = vpop.permute.xlu0 %1388
    %v1392 = vmul.f32 %v1382, %v1387
    %v1393 = vmul.f32 %v1383, %v1389
    %1394 = vrot.lane.b32.xlu0 %v1245, 32
    %v1395 = vpop.permute.xlu0 %1394
    %1396 = vrot.lane.b32.xlu0 %v1246, 32
    %v1397 = vpop.permute.xlu0 %1396
    %v1400 = vmul.f32 %v1357, %v1395
    %v1401 = vmul.f32 %v1359, %v1397
    %v1402 = vadd.f32 %v1392, %v1400
    %v1403 = vadd.f32 %v1393, %v1401
    %v1404 = vld [vmem:[%s7 + $0xc0] sm:$0xff]
    %v1405 = vld [vmem:[%s7 + $0xd0] sm:$0xff]
    %v1406 = vld [vmem:[%s7 + $0xe0] sm:$0xff]
    %v1407 = vld [vmem:[%s7 + $0xf0] sm:$0xff]
    %1410 = vrot.lane.b32.xlu0 %v1402, 96
    %v1411 = vpop.permute.xlu0 %1410
    %1412 = vrot.lane.b32.xlu0 %v1403, 96
    %v1413 = vpop.permute.xlu0 %1412
    %v1414 = vsel %vm155, %v1411, 0
    %v1416 = vsel %vm155, %v1413, 0
    %1418 = vmatprep.subr.mxu0 0.0
    %1419 = vmatpush1.msra.mxu0 0.0
    %1420 = vmatprep.subr.mxu0 0.0
    %1421 = vmatpush1.msra.mxu0 0.0
    %1422 = vmatprep.subr.mxu0 0.0
    %1423 = vmatpush1.msra.mxu0 0.0
    %1424 = vmatprep.subr.mxu0 0.0
    %1425 = vmatpush1.msra.mxu0 0.0
    %1426 = vmatprep.subr.mxu0 0.0
    %1427 = vmatpush1.msra.mxu0 0.0
    %1428 = vmatprep.subr.mxu0 0.0
    %1429 = vmatpush1.msra.mxu0 0.0
    %1430 = vmatprep.subr.mxu0 0.0
    %1431 = vmatpush1.msra.mxu0 0.0
    %1432 = vmatprep.subr.mxu0 0.0
    %1433 = vmatpush1.msra.mxu0 0.0
    %1434 = vmatprep.subr.mxu0 0.0
    %1435 = vmatpush1.msra.mxu0 0.0
    %1436 = vmatprep.subr.mxu0 0.0
    %1437 = vmatpush1.msra.mxu0 0.0
    %1438 = vmatprep.subr.mxu0 0.0
    %1439 = vmatpush1.msra.mxu0 0.0
    %1440 = vmatprep.subr.mxu0 0.0
    %1441 = vmatpush1.msra.mxu0 0.0
    %1442 = vmatprep.subr.mxu0 0.0
    %1443 = vmatpush1.msra.mxu0 %v1407
    %1444 = vmatprep.subr.mxu0 0.0
    %1445 = vmatpush1.msra.mxu0 %v1406
    %1446 = vmatprep.subr.mxu0 0.0
    %1447 = vmatpush1.msra.mxu0 %v1405
    %1448 = vmatprep.subr.mxu0 0.0
    %1449 = vmatpush1.msra.mxu0 %v1404
    %1450 = vmatprep.subr.mxu0 0.0
    %1451 = vmatpush2.msra.mxu0 0.0
    %1452 = vmatprep.subr.mxu0 0.0
    %1453 = vmatpush2.msra.mxu0 0.0
    %1454 = vmatprep.subr.mxu0 0.0
    %1455 = vmatpush2.msra.mxu0 0.0
    %1456 = vmatprep.subr.mxu0 0.0
    %1457 = vmatpush2.msra.mxu0 0.0
    %1458 = vmatprep.subr.mxu0 0.0
    %1459 = vmatpush2.msra.mxu0 0.0
    %1460 = vmatprep.subr.mxu0 0.0
    %1461 = vmatpush2.msra.mxu0 0.0
    %1462 = vmatprep.subr.mxu0 0.0
    %1463 = vmatpush2.msra.mxu0 0.0
    %1464 = vmatprep.subr.mxu0 0.0
    %1465 = vmatpush2.msra.mxu0 0.0
    %1466 = vmatprep.subr.mxu0 0.0
    %1467 = vmatpush2.msra.mxu0 0.0
    %1468 = vmatprep.subr.mxu0 0.0
    %1469 = vmatpush2.msra.mxu0 0.0
    %1470 = vmatprep.subr.mxu0 0.0
    %1471 = vmatpush2.msra.mxu0 0.0
    %1472 = vmatprep.subr.mxu0 0.0
    %1473 = vmatpush2.msra.mxu0 0.0
    %1474 = vmatprep.subr.mxu0 0.0
    %1475 = vmatpush2.msra.mxu0 0.0
    %1476 = vmatprep.subr.mxu0 0.0
    %1477 = vmatpush2.msra.mxu0 0.0
    %1478 = vmatprep.subr.mxu0 0.0
    %1479 = vmatpush2.msra.mxu0 0.0
    %1480 = vmatprep.subr.mxu0 0.0
    %1481 = vmatpush2.msra.mxu0 0.0
    %1482 = vmatprep.mubr.f32.mxu0 0.0
    %1483 = vmatmul.mubr.f32.gmra.mxu0 %v1414
    %v1484 = vpop.f32.mrf.mxu0
    %v1485 = vadd.f32 %v545, %v1484
    %v1486 = vpop.f32.mrf.mxu0
    %1487 = vmatprep.mubr.f32.mxu0 0.0
    %1488 = vmatmul.mubr.f32.gmra.mxu0 %v1416
    %v1489 = vpop.f32.mrf.mxu0
    %v1490 = vadd.f32 %v545, %v1489
    %v1491 = vpop.f32.mrf.mxu0
    %1492 = vdwg.mxu0
    %1493 = vrot.lane.b32.xlu0 %v1336, 32
    %v1494 = vpop.permute.xlu0 %1493
    %1495 = vrot.lane.b32.xlu0 %v1342, 32
    %v1496 = vpop.permute.xlu0 %1495
    %v1499 = vadd.f32 %v1485, %v1494
    %v1500 = vadd.f32 %v1490, %v1496
    %v1501 = vxor.u32 %v1499, 2147483648
    %v1502 = vxor.u32 %v1500, 2147483648
    %v1503 = vmul.f32 %v1501, 1.442695
    %v1504 = vpow.pop %v1503
    %v1505 = vmul.f32 %v1502, 1.442695
    %v1506 = vpow.pop %v1505
    %v1507 = vadd.f32 %v1504, 1.0
    %v1508 = vadd.f32 %v1506, 1.0
    %v1509 = vrcp.pop %v1507
    %v1510 = vmul.f32 1.0, %v1509
    %v1511 = vrcp.pop %v1508
    %v1512 = vmul.f32 1.0, %v1511
    %1515 = vrot.lane.b32.xlu0 %v1338, 32
    %v1516 = vpop.permute.xlu0 %1515
    %1517 = vrot.lane.b32.xlu0 %v1344, 32
    %v1518 = vpop.permute.xlu0 %1517
    %v1521 = vadd.f32 %v1485, %v1516
    %v1522 = vadd.f32 %v1490, %v1518
    %v1523 = vxor.u32 %v1521, 2147483648
    %v1524 = vxor.u32 %v1522, 2147483648
    %v1525 = vmul.f32 %v1523, 1.442695
    %v1526 = vpow.pop %v1525
    %v1527 = vmul.f32 %v1524, 1.442695
    %v1528 = vpow.pop %v1527
    %v1529 = vadd.f32 %v1526, 1.0
    %v1530 = vadd.f32 %v1528, 1.0
    %v1531 = vrcp.pop %v1529
    %v1532 = vmul.f32 1.0, %v1531
    %v1533 = vrcp.pop %v1530
    %v1534 = vmul.f32 1.0, %v1533
    %1535 = vrot.lane.b32.xlu0 %v1338, 96
    %v1536 = vpop.permute.xlu0 %1535
    %1537 = vrot.lane.b32.xlu0 %v1344, 96
    %v1538 = vpop.permute.xlu0 %1537
    %v1541 = vmul.f32 %v1510, %v1536
    %v1542 = vmul.f32 %v1512, %v1538
    %1545 = vrot.lane.b32.xlu0 %v1541, 64
    %v1546 = vpop.permute.xlu0 %1545
    %1547 = vrot.lane.b32.xlu0 %v1542, 64
    %v1548 = vpop.permute.xlu0 %1547
    %v1551 = vadd.f32 %v1485, %v1546
    %v1552 = vadd.f32 %v1490, %v1548
    %v1553 = vtanh.pop %v1551
    %v1554 = vtanh.pop %v1552
    %v1555 = vsub.f32 1.0, %v1532
    %v1556 = vsub.f32 1.0, %v1534
    %1559 = vrot.lane.b32.xlu0 %v1553, 96
    %v1560 = vpop.permute.xlu0 %1559
    %1561 = vrot.lane.b32.xlu0 %v1554, 96
    %v1562 = vpop.permute.xlu0 %1561
    %v1565 = vmul.f32 %v1555, %v1560
    %v1566 = vmul.f32 %v1556, %v1562
    %v1567 = vmul.f32 %v1532, %v1245
    %v1568 = vmul.f32 %v1534, %v1246
    %v1569 = vadd.f32 %v1565, %v1567
    %v1570 = vadd.f32 %v1566, %v1568
    %1573 = vst.msk [vmem:[#allocation3] sm:$0xff] %vm155, %v1411
    %1574 = vst.msk [vmem:[#allocation3 + $0x8] sm:$0xf] %vm331, %v1413
    %1575 = vst.msk [vmem:[#allocation3] sm:$0xff] %vm893, %v1569
    %1576 = vst.msk [vmem:[#allocation3 + $0x8] sm:$0xf] %vm895, %v1570
    %v1577 = vld [vmem:[#allocation3] sm:$0xff]
    %v1578 = vld [vmem:[#allocation3 + $0x8] sm:$0xf]
    %v1579 = vld [vmem:[%s7 + $0x40] sm:$0xff]
    %v1580 = vld [vmem:[%s7 + $0x48] sm:$0xff]
    %v1581 = vld [vmem:[%s7 + $0x50] sm:$0xff]
    %v1582 = vld [vmem:[%s7 + $0x58] sm:$0xff]
    %v1583 = vld [vmem:[%s7 + $0x60] sm:$0xff]
    %v1584 = vld [vmem:[%s7 + $0x68] sm:$0xff]
    %v1585 = vld [vmem:[%s7 + $0x70] sm:$0xff]
    %v1586 = vld [vmem:[%s7 + $0x78] sm:$0xff]
    %v1587 = vld [vmem:[%s7 + $0x80] sm:$0xff]
    %v1588 = vld [vmem:[%s7 + $0x88] sm:$0xff]
    %v1589 = vld [vmem:[%s7 + $0x90] sm:$0xff]
    %v1590 = vld [vmem:[%s7 + $0x98] sm:$0xff]
    %v1591 = vld [vmem:[%s7 + $0xa0] sm:$0xff]
    %v1592 = vld [vmem:[%s7 + $0xa8] sm:$0xff]
    %v1593 = vld [vmem:[%s7 + $0xb0] sm:$0xff]
    %v1594 = vld [vmem:[%s7 + $0xb8] sm:$0xff]
    %v1596 = vsel %vm548, %v1577, 0
    %v1599 = vsel %vm548, %v1578, 0
    %1601 = vmatprep.subr.mxu0 0.0
    %1602 = vmatpush1.msra.mxu0 0.0
    %1603 = vmatprep.subr.mxu0 0.0
    %1604 = vmatpush1.msra.mxu0 0.0
    %1605 = vmatprep.subr.mxu0 0.0
    %1606 = vmatpush1.msra.mxu0 0.0
    %1607 = vmatprep.subr.mxu0 0.0
    %1608 = vmatpush1.msra.mxu0 0.0
    %1609 = vmatprep.subr.mxu0 0.0
    %1610 = vmatpush1.msra.mxu0 0.0
    %1611 = vmatprep.subr.mxu0 0.0
    %1612 = vmatpush1.msra.mxu0 0.0
    %1613 = vmatprep.subr.mxu0 0.0
    %1614 = vmatpush1.msra.mxu0 0.0
    %1615 = vmatprep.subr.mxu0 0.0
    %1616 = vmatpush1.msra.mxu0 0.0
    %1617 = vmatprep.subr.mxu0 %v1594
    %1618 = vmatpush1.msra.mxu0 %v1593
    %1619 = vmatprep.subr.mxu0 %v1592
    %1620 = vmatpush1.msra.mxu0 %v1591
    %1621 = vmatprep.subr.mxu0 %v1590
    %1622 = vmatpush1.msra.mxu0 %v1589
    %1623 = vmatprep.subr.mxu0 %v1588
    %1624 = vmatpush1.msra.mxu0 %v1587
    %1625 = vmatprep.subr.mxu0 %v1586
    %1626 = vmatpush1.msra.mxu0 %v1585
    %1627 = vmatprep.subr.mxu0 %v1584
    %1628 = vmatpush1.msra.mxu0 %v1583
    %1629 = vmatprep.subr.mxu0 %v1582
    %1630 = vmatpush1.msra.mxu0 %v1581
    %1631 = vmatprep.subr.mxu0 %v1580
    %1632 = vmatpush1.msra.mxu0 %v1579
    %1633 = vmatprep.subr.mxu0 0.0
    %1634 = vmatpush2.msra.mxu0 0.0
    %1635 = vmatprep.subr.mxu0 0.0
    %1636 = vmatpush2.msra.mxu0 0.0
    %1637 = vmatprep.subr.mxu0 0.0
    %1638 = vmatpush2.msra.mxu0 0.0
    %1639 = vmatprep.subr.mxu0 0.0
    %1640 = vmatpush2.msra.mxu0 0.0
    %1641 = vmatprep.subr.mxu0 0.0
    %1642 = vmatpush2.msra.mxu0 0.0
    %1643 = vmatprep.subr.mxu0 0.0
    %1644 = vmatpush2.msra.mxu0 0.0
    %1645 = vmatprep.subr.mxu0 0.0
    %1646 = vmatpush2.msra.mxu0 0.0
    %1647 = vmatprep.subr.mxu0 0.0
    %1648 = vmatpush2.msra.mxu0 0.0
    %1649 = vmatprep.subr.mxu0 0.0
    %1650 = vmatpush2.msra.mxu0 0.0
    %1651 = vmatprep.subr.mxu0 0.0
    %1652 = vmatpush2.msra.mxu0 0.0
    %1653 = vmatprep.subr.mxu0 0.0
    %1654 = vmatpush2.msra.mxu0 0.0
    %1655 = vmatprep.subr.mxu0 0.0
    %1656 = vmatpush2.msra.mxu0 0.0
    %1657 = vmatprep.subr.mxu0 0.0
    %1658 = vmatpush2.msra.mxu0 0.0
    %1659 = vmatprep.subr.mxu0 0.0
    %1660 = vmatpush2.msra.mxu0 0.0
    %1661 = vmatprep.subr.mxu0 0.0
    %1662 = vmatpush2.msra.mxu0 0.0
    %1663 = vmatprep.subr.mxu0 0.0
    %1664 = vmatpush2.msra.mxu0 0.0
    %1665 = vmatprep.mubr.f32.mxu0 0.0
    %1666 = vmatmul.mubr.f32.gmra.mxu0 %v1596
    %v1667 = vpop.f32.mrf.mxu0
    %v1668 = vadd.f32 %v574, %v1667
    %v1669 = vpop.f32.mrf.mxu0
    %v1670 = vadd.f32 %v578, %v1669
    %1671 = vmatprep.mubr.f32.mxu0 0.0
    %1672 = vmatmul.mubr.f32.gmra.mxu0 %v1599
    %v1673 = vpop.f32.mrf.mxu0
    %v1674 = vadd.f32 %v574, %v1673
    %v1675 = vpop.f32.mrf.mxu0
    %v1676 = vadd.f32 %v578, %v1675
    %1677 = vdwg.mxu0
    %v1680 = vrot.slane %v1668, 4
    %v1681 = vrot.slane %v1674, 4
    %v1682 = vsel %vm335, %v1680, %v1681
    %v1685 = vadd.f32 %v505, %v1680
    %v1686 = vadd.f32 %v510, %v1682
    %v1687 = vxor.u32 %v1685, 2147483648
    %v1688 = vxor.u32 %v1686, 2147483648
    %v1689 = vmul.f32 %v1687, 1.442695
    %v1690 = vpow.pop %v1689
    %v1691 = vmul.f32 %v1688, 1.442695
    %v1692 = vpow.pop %v1691
    %v1693 = vadd.f32 %v1690, 1.0
    %v1694 = vadd.f32 %v1692, 1.0
    %v1695 = vrcp.pop %v1693
    %v1696 = vmul.f32 1.0, %v1695
    %v1697 = vrcp.pop %v1694
    %v1698 = vmul.f32 1.0, %v1697
    %1699 = vrot.lane.b32.xlu0 %v1680, 64
    %v1700 = vpop.permute.xlu0 %1699
    %1701 = vrot.lane.b32.xlu0 %v1682, 64
    %v1702 = vpop.permute.xlu0 %1701
    %v1705 = vmul.f32 %v1696, %v1700
    %v1706 = vmul.f32 %v1698, %v1702
    %1709 = vrot.lane.b32.xlu0 %v1705, 64
    %v1710 = vpop.permute.xlu0 %1709
    %1711 = vrot.lane.b32.xlu0 %v1706, 64
    %v1712 = vpop.permute.xlu0 %1711
    %v1715 = vadd.f32 %v505, %v1710
    %v1716 = vadd.f32 %v510, %v1712
    %v1717 = vtanh.pop %v1715
    %v1718 = vtanh.pop %v1716
    %v1719 = vsub.f32 1.0, %v1696
    %v1720 = vsub.f32 1.0, %v1698
    %1723 = vrot.lane.b32.xlu0 %v1717, 96
    %v1724 = vpop.permute.xlu0 %1723
    %1725 = vrot.lane.b32.xlu0 %v1718, 96
    %v1726 = vpop.permute.xlu0 %1725
    %v1729 = vmul.f32 %v1719, %v1724
    %v1730 = vmul.f32 %v1720, %v1726
    %v1731 = vrot.slane %v1577, 4
    %v1732 = vrot.slane %v1578, 4
    %v1733 = vsel %vm335, %v1731, %v1732
    %1734 = vrot.lane.b32.xlu0 %v1731, 32
    %v1735 = vpop.permute.xlu0 %1734
    %1736 = vrot.lane.b32.xlu0 %v1733, 32
    %v1737 = vpop.permute.xlu0 %1736
    %v1740 = vmul.f32 %v1696, %v1735
    %v1741 = vmul.f32 %v1698, %v1737
    %v1742 = vadd.f32 %v1729, %v1740
    %v1743 = vadd.f32 %v1730, %v1741
    %v1744 = vld [vmem:[%s7 + $0xc0] sm:$0xff]
    %v1745 = vld [vmem:[%s7 + $0xd0] sm:$0xff]
    %v1746 = vld [vmem:[%s7 + $0xe0] sm:$0xff]
    %v1747 = vld [vmem:[%s7 + $0xf0] sm:$0xff]
    %v1750 = vrot.slane %v1742, 4
    %v1751 = vrot.slane %v1743, 4
    %v1752 = vsel %vm335, %v1750, %v1751
    %1753 = vrot.lane.b32.xlu0 %v1752, 96
    %v1754 = vpop.permute.xlu0 %1753
    %1755 = vrot.lane.b32.xlu0 %v1751, 96
    %v1756 = vpop.permute.xlu0 %1755
    %v1757 = vsel %vm155, %v1754, 0
    %v1759 = vsel %vm155, %v1756, 0
    %1761 = vmatprep.subr.mxu0 0.0
    %1762 = vmatpush1.msra.mxu0 0.0
    %1763 = vmatprep.subr.mxu0 0.0
    %1764 = vmatpush1.msra.mxu0 0.0
    %1765 = vmatprep.subr.mxu0 0.0
    %1766 = vmatpush1.msra.mxu0 0.0
    %1767 = vmatprep.subr.mxu0 0.0
    %1768 = vmatpush1.msra.mxu0 0.0
    %1769 = vmatprep.subr.mxu0 0.0
    %1770 = vmatpush1.msra.mxu0 0.0
    %1771 = vmatprep.subr.mxu0 0.0
    %1772 = vmatpush1.msra.mxu0 0.0
    %1773 = vmatprep.subr.mxu0 0.0
    %1774 = vmatpush1.msra.mxu0 0.0
    %1775 = vmatprep.subr.mxu0 0.0
    %1776 = vmatpush1.msra.mxu0 0.0
    %1777 = vmatprep.subr.mxu0 0.0
    %1778 = vmatpush1.msra.mxu0 0.0
    %1779 = vmatprep.subr.mxu0 0.0
    %1780 = vmatpush1.msra.mxu0 0.0
    %1781 = vmatprep.subr.mxu0 0.0
    %1782 = vmatpush1.msra.mxu0 0.0
    %1783 = vmatprep.subr.mxu0 0.0
    %1784 = vmatpush1.msra.mxu0 0.0
    %1785 = vmatprep.subr.mxu0 0.0
    %1786 = vmatpush1.msra.mxu0 %v1747
    %1787 = vmatprep.subr.mxu0 0.0
    %1788 = vmatpush1.msra.mxu0 %v1746
    %1789 = vmatprep.subr.mxu0 0.0
    %1790 = vmatpush1.msra.mxu0 %v1745
    %1791 = vmatprep.subr.mxu0 0.0
    %1792 = vmatpush1.msra.mxu0 %v1744
    %1793 = vmatprep.subr.mxu0 0.0
    %1794 = vmatpush2.msra.mxu0 0.0
    %1795 = vmatprep.subr.mxu0 0.0
    %1796 = vmatpush2.msra.mxu0 0.0
    %1797 = vmatprep.subr.mxu0 0.0
    %1798 = vmatpush2.msra.mxu0 0.0
    %1799 = vmatprep.subr.mxu0 0.0
    %1800 = vmatpush2.msra.mxu0 0.0
    %1801 = vmatprep.subr.mxu0 0.0
    %1802 = vmatpush2.msra.mxu0 0.0
    %1803 = vmatprep.subr.mxu0 0.0
    %1804 = vmatpush2.msra.mxu0 0.0
    %1805 = vmatprep.subr.mxu0 0.0
    %1806 = vmatpush2.msra.mxu0 0.0
    %1807 = vmatprep.subr.mxu0 0.0
    %1808 = vmatpush2.msra.mxu0 0.0
    %1809 = vmatprep.subr.mxu0 0.0
    %1810 = vmatpush2.msra.mxu0 0.0
    %1811 = vmatprep.subr.mxu0 0.0
    %1812 = vmatpush2.msra.mxu0 0.0
    %1813 = vmatprep.subr.mxu0 0.0
    %1814 = vmatpush2.msra.mxu0 0.0
    %1815 = vmatprep.subr.mxu0 0.0
    %1816 = vmatpush2.msra.mxu0 0.0
    %1817 = vmatprep.subr.mxu0 0.0
    %1818 = vmatpush2.msra.mxu0 0.0
    %1819 = vmatprep.subr.mxu0 0.0
    %1820 = vmatpush2.msra.mxu0 0.0
    %1821 = vmatprep.subr.mxu0 0.0
    %1822 = vmatpush2.msra.mxu0 0.0
    %1823 = vmatprep.subr.mxu0 0.0
    %1824 = vmatpush2.msra.mxu0 0.0
    %1825 = vmatprep.mubr.f32.mxu0 0.0
    %1826 = vmatmul.mubr.f32.gmra.mxu0 %v1757
    %v1827 = vpop.f32.mrf.mxu0
    %v1828 = vadd.f32 %v545, %v1827
    %v1829 = vpop.f32.mrf.mxu0
    %1830 = vmatprep.mubr.f32.mxu0 0.0
    %1831 = vmatmul.mubr.f32.gmra.mxu0 %v1759
    %v1832 = vpop.f32.mrf.mxu0
    %v1833 = vadd.f32 %v545, %v1832
    %v1834 = vpop.f32.mrf.mxu0
    %1835 = vdwg.mxu0
    %1836 = vrot.lane.b32.xlu0 %v1668, 32
    %v1837 = vpop.permute.xlu0 %1836
    %1838 = vrot.lane.b32.xlu0 %v1674, 32
    %v1839 = vpop.permute.xlu0 %1838
    %v1842 = vadd.f32 %v1828, %v1837
    %v1843 = vadd.f32 %v1833, %v1839
    %v1844 = vxor.u32 %v1842, 2147483648
    %v1845 = vxor.u32 %v1843, 2147483648
    %v1846 = vmul.f32 %v1844, 1.442695
    %v1847 = vpow.pop %v1846
    %v1848 = vmul.f32 %v1845, 1.442695
    %v1849 = vpow.pop %v1848
    %v1850 = vadd.f32 %v1847, 1.0
    %v1851 = vadd.f32 %v1849, 1.0
    %v1852 = vrcp.pop %v1850
    %v1853 = vmul.f32 1.0, %v1852
    %v1854 = vrcp.pop %v1851
    %v1855 = vmul.f32 1.0, %v1854
    %1858 = vrot.lane.b32.xlu0 %v1670, 32
    %v1859 = vpop.permute.xlu0 %1858
    %1860 = vrot.lane.b32.xlu0 %v1676, 32
    %v1861 = vpop.permute.xlu0 %1860
    %v1864 = vadd.f32 %v1828, %v1859
    %v1865 = vadd.f32 %v1833, %v1861
    %v1866 = vxor.u32 %v1864, 2147483648
    %v1867 = vxor.u32 %v1865, 2147483648
    %v1868 = vmul.f32 %v1866, 1.442695
    %v1869 = vpow.pop %v1868
    %v1870 = vmul.f32 %v1867, 1.442695
    %v1871 = vpow.pop %v1870
    %v1872 = vadd.f32 %v1869, 1.0
    %v1873 = vadd.f32 %v1871, 1.0
    %v1874 = vrcp.pop %v1872
    %v1875 = vmul.f32 1.0, %v1874
    %v1876 = vrcp.pop %v1873
    %v1877 = vmul.f32 1.0, %v1876
    %1878 = vrot.lane.b32.xlu0 %v1670, 96
    %v1879 = vpop.permute.xlu0 %1878
    %1880 = vrot.lane.b32.xlu0 %v1676, 96
    %v1881 = vpop.permute.xlu0 %1880
    %v1884 = vmul.f32 %v1853, %v1879
    %v1885 = vmul.f32 %v1855, %v1881
    %1888 = vrot.lane.b32.xlu0 %v1884, 64
    %v1889 = vpop.permute.xlu0 %1888
    %1890 = vrot.lane.b32.xlu0 %v1885, 64
    %v1891 = vpop.permute.xlu0 %1890
    %v1894 = vadd.f32 %v1828, %v1889
    %v1895 = vadd.f32 %v1833, %v1891
    %v1896 = vtanh.pop %v1894
    %v1897 = vtanh.pop %v1895
    %v1898 = vsub.f32 1.0, %v1875
    %v1899 = vsub.f32 1.0, %v1877
    %1902 = vrot.lane.b32.xlu0 %v1896, 96
    %v1903 = vpop.permute.xlu0 %1902
    %1904 = vrot.lane.b32.xlu0 %v1897, 96
    %v1905 = vpop.permute.xlu0 %1904
    %v1908 = vmul.f32 %v1898, %v1903
    %v1909 = vmul.f32 %v1899, %v1905
    %v1910 = vmul.f32 %v1875, %v1577
    %v1911 = vmul.f32 %v1877, %v1578
    %v1912 = vadd.f32 %v1908, %v1910
    %v1913 = vadd.f32 %v1909, %v1911
    %1914 = vrot.lane.b32.xlu0 %v1742, 96
    %v1915 = vpop.permute.xlu0 %1914
    %1916 = vrot.lane.b32.xlu0 %v1743, 96
    %v1917 = vpop.permute.xlu0 %1916
    %1920 = vst.msk [vmem:[#allocation3 - $0x4] sm:$0xf0] %vm1240, %v1915
    %1921 = vst.msk [vmem:[#allocation3 + $0x4] sm:$0xff] %vm155, %v1917
    %1922 = vst.msk [vmem:[#allocation3] sm:$0xff] %vm893, %v1912
    %1923 = vst.msk [vmem:[#allocation3 + $0x8] sm:$0xf] %vm895, %v1913
    %v1924 = vld [vmem:[#allocation3] sm:$0xff]
    %v1925 = vld [vmem:[#allocation3 + $0x8] sm:$0xf]
    %v1926 = vld [vmem:[%s7 + $0x40] sm:$0xff]
    %v1927 = vld [vmem:[%s7 + $0x48] sm:$0xff]
    %v1928 = vld [vmem:[%s7 + $0x50] sm:$0xff]
    %v1929 = vld [vmem:[%s7 + $0x58] sm:$0xff]
    %v1930 = vld [vmem:[%s7 + $0x60] sm:$0xff]
    %v1931 = vld [vmem:[%s7 + $0x68] sm:$0xff]
    %v1932 = vld [vmem:[%s7 + $0x70] sm:$0xff]
    %v1933 = vld [vmem:[%s7 + $0x78] sm:$0xff]
    %v1934 = vld [vmem:[%s7 + $0x80] sm:$0xff]
    %v1935 = vld [vmem:[%s7 + $0x88] sm:$0xff]
    %v1936 = vld [vmem:[%s7 + $0x90] sm:$0xff]
    %v1937 = vld [vmem:[%s7 + $0x98] sm:$0xff]
    %v1938 = vld [vmem:[%s7 + $0xa0] sm:$0xff]
    %v1939 = vld [vmem:[%s7 + $0xa8] sm:$0xff]
    %v1940 = vld [vmem:[%s7 + $0xb0] sm:$0xff]
    %v1941 = vld [vmem:[%s7 + $0xb8] sm:$0xff]
    %v1943 = vsel %vm548, %v1924, 0
    %v1946 = vsel %vm548, %v1925, 0
    %1948 = vmatprep.subr.mxu0 0.0
    %1949 = vmatpush1.msra.mxu0 0.0
    %1950 = vmatprep.subr.mxu0 0.0
    %1951 = vmatpush1.msra.mxu0 0.0
    %1952 = vmatprep.subr.mxu0 0.0
    %1953 = vmatpush1.msra.mxu0 0.0
    %1954 = vmatprep.subr.mxu0 0.0
    %1955 = vmatpush1.msra.mxu0 0.0
    %1956 = vmatprep.subr.mxu0 0.0
    %1957 = vmatpush1.msra.mxu0 0.0
    %1958 = vmatprep.subr.mxu0 0.0
    %1959 = vmatpush1.msra.mxu0 0.0
    %1960 = vmatprep.subr.mxu0 0.0
    %1961 = vmatpush1.msra.mxu0 0.0
    %1962 = vmatprep.subr.mxu0 0.0
    %1963 = vmatpush1.msra.mxu0 0.0
    %1964 = vmatprep.subr.mxu0 %v1941
    %1965 = vmatpush1.msra.mxu0 %v1940
    %1966 = vmatprep.subr.mxu0 %v1939
    %1967 = vmatpush1.msra.mxu0 %v1938
    %1968 = vmatprep.subr.mxu0 %v1937
    %1969 = vmatpush1.msra.mxu0 %v1936
    %1970 = vmatprep.subr.mxu0 %v1935
    %1971 = vmatpush1.msra.mxu0 %v1934
    %1972 = vmatprep.subr.mxu0 %v1933
    %1973 = vmatpush1.msra.mxu0 %v1932
    %1974 = vmatprep.subr.mxu0 %v1931
    %1975 = vmatpush1.msra.mxu0 %v1930
    %1976 = vmatprep.subr.mxu0 %v1929
    %1977 = vmatpush1.msra.mxu0 %v1928
    %1978 = vmatprep.subr.mxu0 %v1927
    %1979 = vmatpush1.msra.mxu0 %v1926
    %1980 = vmatprep.subr.mxu0 0.0
    %1981 = vmatpush2.msra.mxu0 0.0
    %1982 = vmatprep.subr.mxu0 0.0
    %1983 = vmatpush2.msra.mxu0 0.0
    %1984 = vmatprep.subr.mxu0 0.0
    %1985 = vmatpush2.msra.mxu0 0.0
    %1986 = vmatprep.subr.mxu0 0.0
    %1987 = vmatpush2.msra.mxu0 0.0
    %1988 = vmatprep.subr.mxu0 0.0
    %1989 = vmatpush2.msra.mxu0 0.0
    %1990 = vmatprep.subr.mxu0 0.0
    %1991 = vmatpush2.msra.mxu0 0.0
    %1992 = vmatprep.subr.mxu0 0.0
    %1993 = vmatpush2.msra.mxu0 0.0
    %1994 = vmatprep.subr.mxu0 0.0
    %1995 = vmatpush2.msra.mxu0 0.0
    %1996 = vmatprep.subr.mxu0 0.0
    %1997 = vmatpush2.msra.mxu0 0.0
    %1998 = vmatprep.subr.mxu0 0.0
    %1999 = vmatpush2.msra.mxu0 0.0
    %2000 = vmatprep.subr.mxu0 0.0
    %2001 = vmatpush2.msra.mxu0 0.0
    %2002 = vmatprep.subr.mxu0 0.0
    %2003 = vmatpush2.msra.mxu0 0.0
    %2004 = vmatprep.subr.mxu0 0.0
    %2005 = vmatpush2.msra.mxu0 0.0
    %2006 = vmatprep.subr.mxu0 0.0
    %2007 = vmatpush2.msra.mxu0 0.0
    %2008 = vmatprep.subr.mxu0 0.0
    %2009 = vmatpush2.msra.mxu0 0.0
    %2010 = vmatprep.subr.mxu0 0.0
    %2011 = vmatpush2.msra.mxu0 0.0
    %2012 = vmatprep.mubr.f32.mxu0 0.0
    %2013 = vmatmul.mubr.f32.gmra.mxu0 %v1943
    %v2014 = vpop.f32.mrf.mxu0
    %v2015 = vadd.f32 %v574, %v2014
    %v2016 = vpop.f32.mrf.mxu0
    %v2017 = vadd.f32 %v578, %v2016
    %2018 = vmatprep.mubr.f32.mxu0 0.0
    %2019 = vmatmul.mubr.f32.gmra.mxu0 %v1946
    %v2020 = vpop.f32.mrf.mxu0
    %v2021 = vadd.f32 %v574, %v2020
    %v2022 = vpop.f32.mrf.mxu0
    %v2023 = vadd.f32 %v578, %v2022
    %2024 = vdwg.mxu0
    %v2025 = vadd.f32 %v515, %v2015
    %v2026 = vadd.f32 %v520, %v2021
    %v2027 = vxor.u32 %v2025, 2147483648
    %v2028 = vxor.u32 %v2026, 2147483648
    %v2029 = vmul.f32 %v2027, 1.442695
    %v2030 = vpow.pop %v2029
    %v2031 = vmul.f32 %v2028, 1.442695
    %v2032 = vpow.pop %v2031
    %v2033 = vadd.f32 %v2030, 1.0
    %v2034 = vadd.f32 %v2032, 1.0
    %v2035 = vrcp.pop %v2033
    %v2036 = vmul.f32 1.0, %v2035
    %v2037 = vrcp.pop %v2034
    %v2038 = vmul.f32 1.0, %v2037
    %2041 = vrot.lane.b32.xlu0 %v2015, 64
    %v2042 = vpop.permute.xlu0 %2041
    %2043 = vrot.lane.b32.xlu0 %v2021, 64
    %v2044 = vpop.permute.xlu0 %2043
    %v2047 = vmul.f32 %v2036, %v2042
    %v2048 = vmul.f32 %v2038, %v2044
    %2051 = vrot.lane.b32.xlu0 %v2047, 64
    %v2052 = vpop.permute.xlu0 %2051
    %2053 = vrot.lane.b32.xlu0 %v2048, 64
    %v2054 = vpop.permute.xlu0 %2053
    %v2057 = vadd.f32 %v515, %v2052
    %v2058 = vadd.f32 %v520, %v2054
    %v2059 = vtanh.pop %v2057
    %v2060 = vtanh.pop %v2058
    %v2061 = vsub.f32 1.0, %v2036
    %v2062 = vsub.f32 1.0, %v2038
    %2065 = vrot.lane.b32.xlu0 %v2059, 96
    %v2066 = vpop.permute.xlu0 %2065
    %2067 = vrot.lane.b32.xlu0 %v2060, 96
    %v2068 = vpop.permute.xlu0 %2067
    %v2071 = vmul.f32 %v2061, %v2066
    %v2072 = vmul.f32 %v2062, %v2068
    %2073 = vrot.lane.b32.xlu0 %v1924, 32
    %v2074 = vpop.permute.xlu0 %2073
    %2075 = vrot.lane.b32.xlu0 %v1925, 32
    %v2076 = vpop.permute.xlu0 %2075
    %v2079 = vmul.f32 %v2036, %v2074
    %v2080 = vmul.f32 %v2038, %v2076
    %v2081 = vadd.f32 %v2071, %v2079
    %v2082 = vadd.f32 %v2072, %v2080
    %v2083 = vld [vmem:[%s7 + $0xc0] sm:$0xff]
    %v2084 = vld [vmem:[%s7 + $0xd0] sm:$0xff]
    %v2085 = vld [vmem:[%s7 + $0xe0] sm:$0xff]
    %v2086 = vld [vmem:[%s7 + $0xf0] sm:$0xff]
    %2089 = vrot.lane.b32.xlu0 %v2081, 96
    %v2090 = vpop.permute.xlu0 %2089
    %2091 = vrot.lane.b32.xlu0 %v2082, 96
    %v2092 = vpop.permute.xlu0 %2091
    %v2093 = vsel %vm155, %v2090, 0
    %v2095 = vsel %vm155, %v2092, 0
    %2097 = vmatprep.subr.mxu0 0.0
    %2098 = vmatpush1.msra.mxu0 0.0
    %2099 = vmatprep.subr.mxu0 0.0
    %2100 = vmatpush1.msra.mxu0 0.0
    %2101 = vmatprep.subr.mxu0 0.0
    %2102 = vmatpush1.msra.mxu0 0.0
    %2103 = vmatprep.subr.mxu0 0.0
    %2104 = vmatpush1.msra.mxu0 0.0
    %2105 = vmatprep.subr.mxu0 0.0
    %2106 = vmatpush1.msra.mxu0 0.0
    %2107 = vmatprep.subr.mxu0 0.0
    %2108 = vmatpush1.msra.mxu0 0.0
    %2109 = vmatprep.subr.mxu0 0.0
    %2110 = vmatpush1.msra.mxu0 0.0
    %2111 = vmatprep.subr.mxu0 0.0
    %2112 = vmatpush1.msra.mxu0 0.0
    %2113 = vmatprep.subr.mxu0 0.0
    %2114 = vmatpush1.msra.mxu0 0.0
    %2115 = vmatprep.subr.mxu0 0.0
    %2116 = vmatpush1.msra.mxu0 0.0
    %2117 = vmatprep.subr.mxu0 0.0
    %2118 = vmatpush1.msra.mxu0 0.0
    %2119 = vmatprep.subr.mxu0 0.0
    %2120 = vmatpush1.msra.mxu0 0.0
    %2121 = vmatprep.subr.mxu0 0.0
    %2122 = vmatpush1.msra.mxu0 %v2086
    %2123 = vmatprep.subr.mxu0 0.0
    %2124 = vmatpush1.msra.mxu0 %v2085
    %2125 = vmatprep.subr.mxu0 0.0
    %2126 = vmatpush1.msra.mxu0 %v2084
    %2127 = vmatprep.subr.mxu0 0.0
    %2128 = vmatpush1.msra.mxu0 %v2083
    %2129 = vmatprep.subr.mxu0 0.0
    %2130 = vmatpush2.msra.mxu0 0.0
    %2131 = vmatprep.subr.mxu0 0.0
    %2132 = vmatpush2.msra.mxu0 0.0
    %2133 = vmatprep.subr.mxu0 0.0
    %2134 = vmatpush2.msra.mxu0 0.0
    %2135 = vmatprep.subr.mxu0 0.0
    %2136 = vmatpush2.msra.mxu0 0.0
    %2137 = vmatprep.subr.mxu0 0.0
    %2138 = vmatpush2.msra.mxu0 0.0
    %2139 = vmatprep.subr.mxu0 0.0
    %2140 = vmatpush2.msra.mxu0 0.0
    %2141 = vmatprep.subr.mxu0 0.0
    %2142 = vmatpush2.msra.mxu0 0.0
    %2143 = vmatprep.subr.mxu0 0.0
    %2144 = vmatpush2.msra.mxu0 0.0
    %2145 = vmatprep.subr.mxu0 0.0
    %2146 = vmatpush2.msra.mxu0 0.0
    %2147 = vmatprep.subr.mxu0 0.0
    %2148 = vmatpush2.msra.mxu0 0.0
    %2149 = vmatprep.subr.mxu0 0.0
    %2150 = vmatpush2.msra.mxu0 0.0
    %2151 = vmatprep.subr.mxu0 0.0
    %2152 = vmatpush2.msra.mxu0 0.0
    %2153 = vmatprep.subr.mxu0 0.0
    %2154 = vmatpush2.msra.mxu0 0.0
    %2155 = vmatprep.subr.mxu0 0.0
    %2156 = vmatpush2.msra.mxu0 0.0
    %2157 = vmatprep.subr.mxu0 0.0
    %2158 = vmatpush2.msra.mxu0 0.0
    %2159 = vmatprep.subr.mxu0 0.0
    %2160 = vmatpush2.msra.mxu0 0.0
    %2161 = vmatprep.mubr.f32.mxu0 0.0
    %2162 = vmatmul.mubr.f32.gmra.mxu0 %v2093
    %v2163 = vpop.f32.mrf.mxu0
    %v2164 = vadd.f32 %v545, %v2163
    %v2165 = vpop.f32.mrf.mxu0
    %2166 = vmatprep.mubr.f32.mxu0 0.0
    %2167 = vmatmul.mubr.f32.gmra.mxu0 %v2095
    %v2168 = vpop.f32.mrf.mxu0
    %v2169 = vadd.f32 %v545, %v2168
    %v2170 = vpop.f32.mrf.mxu0
    %2171 = vdwg.mxu0
    %2172 = vrot.lane.b32.xlu0 %v2015, 32
    %v2173 = vpop.permute.xlu0 %2172
    %2174 = vrot.lane.b32.xlu0 %v2021, 32
    %v2175 = vpop.permute.xlu0 %2174
    %v2178 = vadd.f32 %v2164, %v2173
    %v2179 = vadd.f32 %v2169, %v2175
    %v2180 = vxor.u32 %v2178, 2147483648
    %v2181 = vxor.u32 %v2179, 2147483648
    %v2182 = vmul.f32 %v2180, 1.442695
    %v2183 = vpow.pop %v2182
    %v2184 = vmul.f32 %v2181, 1.442695
    %v2185 = vpow.pop %v2184
    %v2186 = vadd.f32 %v2183, 1.0
    %v2187 = vadd.f32 %v2185, 1.0
    %v2188 = vrcp.pop %v2186
    %v2189 = vmul.f32 1.0, %v2188
    %v2190 = vrcp.pop %v2187
    %v2191 = vmul.f32 1.0, %v2190
    %2194 = vrot.lane.b32.xlu0 %v2017, 32
    %v2195 = vpop.permute.xlu0 %2194
    %2196 = vrot.lane.b32.xlu0 %v2023, 32
    %v2197 = vpop.permute.xlu0 %2196
    %v2200 = vadd.f32 %v2164, %v2195
    %v2201 = vadd.f32 %v2169, %v2197
    %v2202 = vxor.u32 %v2200, 2147483648
    %v2203 = vxor.u32 %v2201, 2147483648
    %v2204 = vmul.f32 %v2202, 1.442695
    %v2205 = vpow.pop %v2204
    %v2206 = vmul.f32 %v2203, 1.442695
    %v2207 = vpow.pop %v2206
    %v2208 = vadd.f32 %v2205, 1.0
    %v2209 = vadd.f32 %v2207, 1.0
    %v2210 = vrcp.pop %v2208
    %v2211 = vmul.f32 1.0, %v2210
    %v2212 = vrcp.pop %v2209
    %v2213 = vmul.f32 1.0, %v2212
    %2214 = vrot.lane.b32.xlu0 %v2017, 96
    %v2215 = vpop.permute.xlu0 %2214
    %2216 = vrot.lane.b32.xlu0 %v2023, 96
    %v2217 = vpop.permute.xlu0 %2216
    %v2220 = vmul.f32 %v2189, %v2215
    %v2221 = vmul.f32 %v2191, %v2217
    %2224 = vrot.lane.b32.xlu0 %v2220, 64
    %v2225 = vpop.permute.xlu0 %2224
    %2226 = vrot.lane.b32.xlu0 %v2221, 64
    %v2227 = vpop.permute.xlu0 %2226
    %v2230 = vadd.f32 %v2164, %v2225
    %v2231 = vadd.f32 %v2169, %v2227
    %v2232 = vtanh.pop %v2230
    %v2233 = vtanh.pop %v2231
    %v2234 = vsub.f32 1.0, %v2211
    %v2235 = vsub.f32 1.0, %v2213
    %2238 = vrot.lane.b32.xlu0 %v2232, 96
    %v2239 = vpop.permute.xlu0 %2238
    %2240 = vrot.lane.b32.xlu0 %v2233, 96
    %v2241 = vpop.permute.xlu0 %2240
    %v2244 = vmul.f32 %v2234, %v2239
    %v2245 = vmul.f32 %v2235, %v2241
    %v2246 = vmul.f32 %v2211, %v1924
    %v2247 = vmul.f32 %v2213, %v1925
    %v2248 = vadd.f32 %v2244, %v2246
    %v2249 = vadd.f32 %v2245, %v2247
    %2252 = vst.msk [vmem:[#allocation3] sm:$0xff] %vm155, %v2090
    %2253 = vst.msk [vmem:[#allocation3 + $0x8] sm:$0xf] %vm331, %v2092
    %2254 = vst.msk [vmem:[#allocation3] sm:$0xff] %vm893, %v2248
    %2255 = vst.msk [vmem:[#allocation3 + $0x8] sm:$0xf] %vm895, %v2249
    %v2256 = vld [vmem:[#allocation3] sm:$0xff]
    %v2257 = vld [vmem:[#allocation3 + $0x8] sm:$0xf]
    %v2258 = vld [vmem:[%s7 + $0x40] sm:$0xff]
    %v2259 = vld [vmem:[%s7 + $0x48] sm:$0xff]
    %v2260 = vld [vmem:[%s7 + $0x50] sm:$0xff]
    %v2261 = vld [vmem:[%s7 + $0x58] sm:$0xff]
    %v2262 = vld [vmem:[%s7 + $0x60] sm:$0xff]
    %v2263 = vld [vmem:[%s7 + $0x68] sm:$0xff]
    %v2264 = vld [vmem:[%s7 + $0x70] sm:$0xff]
    %v2265 = vld [vmem:[%s7 + $0x78] sm:$0xff]
    %v2266 = vld [vmem:[%s7 + $0x80] sm:$0xff]
    %v2267 = vld [vmem:[%s7 + $0x88] sm:$0xff]
    %v2268 = vld [vmem:[%s7 + $0x90] sm:$0xff]
    %v2269 = vld [vmem:[%s7 + $0x98] sm:$0xff]
    %v2270 = vld [vmem:[%s7 + $0xa0] sm:$0xff]
    %v2271 = vld [vmem:[%s7 + $0xa8] sm:$0xff]
    %v2272 = vld [vmem:[%s7 + $0xb0] sm:$0xff]
    %v2273 = vld [vmem:[%s7 + $0xb8] sm:$0xff]
    %v2275 = vsel %vm548, %v2256, 0
    %v2278 = vsel %vm548, %v2257, 0
    %2280 = vmatprep.subr.mxu0 0.0
    %2281 = vmatpush1.msra.mxu0 0.0
    %2282 = vmatprep.subr.mxu0 0.0
    %2283 = vmatpush1.msra.mxu0 0.0
    %2284 = vmatprep.subr.mxu0 0.0
    %2285 = vmatpush1.msra.mxu0 0.0
    %2286 = vmatprep.subr.mxu0 0.0
    %2287 = vmatpush1.msra.mxu0 0.0
    %2288 = vmatprep.subr.mxu0 0.0
    %2289 = vmatpush1.msra.mxu0 0.0
    %2290 = vmatprep.subr.mxu0 0.0
    %2291 = vmatpush1.msra.mxu0 0.0
    %2292 = vmatprep.subr.mxu0 0.0
    %2293 = vmatpush1.msra.mxu0 0.0
    %2294 = vmatprep.subr.mxu0 0.0
    %2295 = vmatpush1.msra.mxu0 0.0
    %2296 = vmatprep.subr.mxu0 %v2273
    %2297 = vmatpush1.msra.mxu0 %v2272
    %2298 = vmatprep.subr.mxu0 %v2271
    %2299 = vmatpush1.msra.mxu0 %v2270
    %2300 = vmatprep.subr.mxu0 %v2269
    %2301 = vmatpush1.msra.mxu0 %v2268
    %2302 = vmatprep.subr.mxu0 %v2267
    %2303 = vmatpush1.msra.mxu0 %v2266
    %2304 = vmatprep.subr.mxu0 %v2265
    %2305 = vmatpush1.msra.mxu0 %v2264
    %2306 = vmatprep.subr.mxu0 %v2263
    %2307 = vmatpush1.msra.mxu0 %v2262
    %2308 = vmatprep.subr.mxu0 %v2261
    %2309 = vmatpush1.msra.mxu0 %v2260
    %2310 = vmatprep.subr.mxu0 %v2259
    %2311 = vmatpush1.msra.mxu0 %v2258
    %2312 = vmatprep.subr.mxu0 0.0
    %2313 = vmatpush2.msra.mxu0 0.0
    %2314 = vmatprep.subr.mxu0 0.0
    %2315 = vmatpush2.msra.mxu0 0.0
    %2316 = vmatprep.subr.mxu0 0.0
    %2317 = vmatpush2.msra.mxu0 0.0
    %2318 = vmatprep.subr.mxu0 0.0
    %2319 = vmatpush2.msra.mxu0 0.0
    %2320 = vmatprep.subr.mxu0 0.0
    %2321 = vmatpush2.msra.mxu0 0.0
    %2322 = vmatprep.subr.mxu0 0.0
    %2323 = vmatpush2.msra.mxu0 0.0
    %2324 = vmatprep.subr.mxu0 0.0
    %2325 = vmatpush2.msra.mxu0 0.0
    %2326 = vmatprep.subr.mxu0 0.0
    %2327 = vmatpush2.msra.mxu0 0.0
    %2328 = vmatprep.subr.mxu0 0.0
    %2329 = vmatpush2.msra.mxu0 0.0
    %2330 = vmatprep.subr.mxu0 0.0
    %2331 = vmatpush2.msra.mxu0 0.0
    %2332 = vmatprep.subr.mxu0 0.0
    %2333 = vmatpush2.msra.mxu0 0.0
    %2334 = vmatprep.subr.mxu0 0.0
    %2335 = vmatpush2.msra.mxu0 0.0
    %2336 = vmatprep.subr.mxu0 0.0
    %2337 = vmatpush2.msra.mxu0 0.0
    %2338 = vmatprep.subr.mxu0 0.0
    %2339 = vmatpush2.msra.mxu0 0.0
    %2340 = vmatprep.subr.mxu0 0.0
    %2341 = vmatpush2.msra.mxu0 0.0
    %2342 = vmatprep.subr.mxu0 0.0
    %2343 = vmatpush2.msra.mxu0 0.0
    %2344 = vmatprep.mubr.f32.mxu0 0.0
    %2345 = vmatmul.mubr.f32.gmra.mxu0 %v2275
    %v2346 = vpop.f32.mrf.mxu0
    %v2347 = vadd.f32 %v574, %v2346
    %v2348 = vpop.f32.mrf.mxu0
    %v2349 = vadd.f32 %v578, %v2348
    %2350 = vmatprep.mubr.f32.mxu0 0.0
    %2351 = vmatmul.mubr.f32.gmra.mxu0 %v2278
    %v2352 = vpop.f32.mrf.mxu0
    %v2353 = vadd.f32 %v574, %v2352
    %v2354 = vpop.f32.mrf.mxu0
    %v2355 = vadd.f32 %v578, %v2354
    %2356 = vdwg.mxu0
    %v2359 = vrot.slane %v2347, 4
    %v2360 = vrot.slane %v2353, 4
    %v2361 = vsel %vm335, %v2359, %v2360
    %v2364 = vadd.f32 %v520, %v2359
    %v2365 = vadd.f32 %v525, %v2361
    %v2366 = vxor.u32 %v2364, 2147483648
    %v2367 = vxor.u32 %v2365, 2147483648
    %v2368 = vmul.f32 %v2366, 1.442695
    %v2369 = vpow.pop %v2368
    %v2370 = vmul.f32 %v2367, 1.442695
    %v2371 = vpow.pop %v2370
    %v2372 = vadd.f32 %v2369, 1.0
    %v2373 = vadd.f32 %v2371, 1.0
    %v2374 = vrcp.pop %v2372
    %v2375 = vmul.f32 1.0, %v2374
    %v2376 = vrcp.pop %v2373
    %v2377 = vmul.f32 1.0, %v2376
    %2378 = vrot.lane.b32.xlu0 %v2359, 64
    %v2379 = vpop.permute.xlu0 %2378
    %2380 = vrot.lane.b32.xlu0 %v2361, 64
    %v2381 = vpop.permute.xlu0 %2380
    %v2384 = vmul.f32 %v2375, %v2379
    %v2385 = vmul.f32 %v2377, %v2381
    %2388 = vrot.lane.b32.xlu0 %v2384, 64
    %v2389 = vpop.permute.xlu0 %2388
    %2390 = vrot.lane.b32.xlu0 %v2385, 64
    %v2391 = vpop.permute.xlu0 %2390
    %v2394 = vadd.f32 %v520, %v2389
    %v2395 = vadd.f32 %v525, %v2391
    %v2396 = vtanh.pop %v2394
    %v2397 = vtanh.pop %v2395
    %v2398 = vsub.f32 1.0, %v2375
    %v2399 = vsub.f32 1.0, %v2377
    %2402 = vrot.lane.b32.xlu0 %v2396, 96
    %v2403 = vpop.permute.xlu0 %2402
    %2404 = vrot.lane.b32.xlu0 %v2397, 96
    %v2405 = vpop.permute.xlu0 %2404
    %v2408 = vmul.f32 %v2398, %v2403
    %v2409 = vmul.f32 %v2399, %v2405
    %v2410 = vrot.slane %v2256, 4
    %v2411 = vrot.slane %v2257, 4
    %v2412 = vsel %vm335, %v2410, %v2411
    %2413 = vrot.lane.b32.xlu0 %v2410, 32
    %v2414 = vpop.permute.xlu0 %2413
    %2415 = vrot.lane.b32.xlu0 %v2412, 32
    %v2416 = vpop.permute.xlu0 %2415
    %v2419 = vmul.f32 %v2375, %v2414
    %v2420 = vmul.f32 %v2377, %v2416
    %v2421 = vadd.f32 %v2408, %v2419
    %v2422 = vadd.f32 %v2409, %v2420
    %v2423 = vld [vmem:[%s7 + $0xc0] sm:$0xff]
    %v2424 = vld [vmem:[%s7 + $0xd0] sm:$0xff]
    %v2425 = vld [vmem:[%s7 + $0xe0] sm:$0xff]
    %v2426 = vld [vmem:[%s7 + $0xf0] sm:$0xff]
    %v2429 = vrot.slane %v2421, 4
    %v2430 = vrot.slane %v2422, 4
    %v2431 = vsel %vm335, %v2429, %v2430
    %2432 = vrot.lane.b32.xlu0 %v2431, 96
    %v2433 = vpop.permute.xlu0 %2432
    %2434 = vrot.lane.b32.xlu0 %v2430, 96
    %v2435 = vpop.permute.xlu0 %2434
    %v2436 = vsel %vm155, %v2433, 0
    %v2438 = vsel %vm155, %v2435, 0
    %2440 = vmatprep.subr.mxu0 0.0
    %2441 = vmatpush1.msra.mxu0 0.0
    %2442 = vmatprep.subr.mxu0 0.0
    %2443 = vmatpush1.msra.mxu0 0.0
    %2444 = vmatprep.subr.mxu0 0.0
    %2445 = vmatpush1.msra.mxu0 0.0
    %2446 = vmatprep.subr.mxu0 0.0
    %2447 = vmatpush1.msra.mxu0 0.0
    %2448 = vmatprep.subr.mxu0 0.0
    %2449 = vmatpush1.msra.mxu0 0.0
    %2450 = vmatprep.subr.mxu0 0.0
    %2451 = vmatpush1.msra.mxu0 0.0
    %2452 = vmatprep.subr.mxu0 0.0
    %2453 = vmatpush1.msra.mxu0 0.0
    %2454 = vmatprep.subr.mxu0 0.0
    %2455 = vmatpush1.msra.mxu0 0.0
    %2456 = vmatprep.subr.mxu0 0.0
    %2457 = vmatpush1.msra.mxu0 0.0
    %2458 = vmatprep.subr.mxu0 0.0
    %2459 = vmatpush1.msra.mxu0 0.0
    %2460 = vmatprep.subr.mxu0 0.0
    %2461 = vmatpush1.msra.mxu0 0.0
    %2462 = vmatprep.subr.mxu0 0.0
    %2463 = vmatpush1.msra.mxu0 0.0
    %2464 = vmatprep.subr.mxu0 0.0
    %2465 = vmatpush1.msra.mxu0 %v2426
    %2466 = vmatprep.subr.mxu0 0.0
    %2467 = vmatpush1.msra.mxu0 %v2425
    %2468 = vmatprep.subr.mxu0 0.0
    %2469 = vmatpush1.msra.mxu0 %v2424
    %2470 = vmatprep.subr.mxu0 0.0
    %2471 = vmatpush1.msra.mxu0 %v2423
    %2472 = vmatprep.subr.mxu0 0.0
    %2473 = vmatpush2.msra.mxu0 0.0
    %2474 = vmatprep.subr.mxu0 0.0
    %2475 = vmatpush2.msra.mxu0 0.0
    %2476 = vmatprep.subr.mxu0 0.0
    %2477 = vmatpush2.msra.mxu0 0.0
    %2478 = vmatprep.subr.mxu0 0.0
    %2479 = vmatpush2.msra.mxu0 0.0
    %2480 = vmatprep.subr.mxu0 0.0
    %2481 = vmatpush2.msra.mxu0 0.0
    %2482 = vmatprep.subr.mxu0 0.0
    %2483 = vmatpush2.msra.mxu0 0.0
    %2484 = vmatprep.subr.mxu0 0.0
    %2485 = vmatpush2.msra.mxu0 0.0
    %2486 = vmatprep.subr.mxu0 0.0
    %2487 = vmatpush2.msra.mxu0 0.0
    %2488 = vmatprep.subr.mxu0 0.0
    %2489 = vmatpush2.msra.mxu0 0.0
    %2490 = vmatprep.subr.mxu0 0.0
    %2491 = vmatpush2.msra.mxu0 0.0
    %2492 = vmatprep.subr.mxu0 0.0
    %2493 = vmatpush2.msra.mxu0 0.0
    %2494 = vmatprep.subr.mxu0 0.0
    %2495 = vmatpush2.msra.mxu0 0.0
    %2496 = vmatprep.subr.mxu0 0.0
    %2497 = vmatpush2.msra.mxu0 0.0
    %2498 = vmatprep.subr.mxu0 0.0
    %2499 = vmatpush2.msra.mxu0 0.0
    %2500 = vmatprep.subr.mxu0 0.0
    %2501 = vmatpush2.msra.mxu0 0.0
    %2502 = vmatprep.subr.mxu0 0.0
    %2503 = vmatpush2.msra.mxu0 0.0
    %2504 = vmatprep.mubr.f32.mxu0 0.0
    %2505 = vmatmul.mubr.f32.gmra.mxu0 %v2436
    %v2506 = vpop.f32.mrf.mxu0
    %v2507 = vadd.f32 %v545, %v2506
    %v2508 = vpop.f32.mrf.mxu0
    %2509 = vmatprep.mubr.f32.mxu0 0.0
    %2510 = vmatmul.mubr.f32.gmra.mxu0 %v2438
    %v2511 = vpop.f32.mrf.mxu0
    %v2512 = vadd.f32 %v545, %v2511
    %v2513 = vpop.f32.mrf.mxu0
    %2514 = vdwg.mxu0
    %2515 = vrot.lane.b32.xlu0 %v2347, 32
    %v2516 = vpop.permute.xlu0 %2515
    %2517 = vrot.lane.b32.xlu0 %v2353, 32
    %v2518 = vpop.permute.xlu0 %2517
    %v2521 = vadd.f32 %v2507, %v2516
    %v2522 = vadd.f32 %v2512, %v2518
    %v2523 = vxor.u32 %v2521, 2147483648
    %v2524 = vxor.u32 %v2522, 2147483648
    %v2525 = vmul.f32 %v2523, 1.442695
    %v2526 = vpow.pop %v2525
    %v2527 = vmul.f32 %v2524, 1.442695
    %v2528 = vpow.pop %v2527
    %v2529 = vadd.f32 %v2526, 1.0
    %v2530 = vadd.f32 %v2528, 1.0
    %v2531 = vrcp.pop %v2529
    %v2532 = vmul.f32 1.0, %v2531
    %v2533 = vrcp.pop %v2530
    %v2534 = vmul.f32 1.0, %v2533
    %2537 = vrot.lane.b32.xlu0 %v2349, 32
    %v2538 = vpop.permute.xlu0 %2537
    %2539 = vrot.lane.b32.xlu0 %v2355, 32
    %v2540 = vpop.permute.xlu0 %2539
    %v2543 = vadd.f32 %v2507, %v2538
    %v2544 = vadd.f32 %v2512, %v2540
    %v2545 = vxor.u32 %v2543, 2147483648
    %v2546 = vxor.u32 %v2544, 2147483648
    %v2547 = vmul.f32 %v2545, 1.442695
    %v2548 = vpow.pop %v2547
    %v2549 = vmul.f32 %v2546, 1.442695
    %v2550 = vpow.pop %v2549
    %v2551 = vadd.f32 %v2548, 1.0
    %v2552 = vadd.f32 %v2550, 1.0
    %v2553 = vrcp.pop %v2551
    %v2554 = vmul.f32 1.0, %v2553
    %v2555 = vrcp.pop %v2552
    %v2556 = vmul.f32 1.0, %v2555
    %2557 = vrot.lane.b32.xlu0 %v2349, 96
    %v2558 = vpop.permute.xlu0 %2557
    %2559 = vrot.lane.b32.xlu0 %v2355, 96
    %v2560 = vpop.permute.xlu0 %2559
    %v2563 = vmul.f32 %v2532, %v2558
    %v2564 = vmul.f32 %v2534, %v2560
    %2567 = vrot.lane.b32.xlu0 %v2563, 64
    %v2568 = vpop.permute.xlu0 %2567
    %2569 = vrot.lane.b32.xlu0 %v2564, 64
    %v2570 = vpop.permute.xlu0 %2569
    %v2573 = vadd.f32 %v2507, %v2568
    %v2574 = vadd.f32 %v2512, %v2570
    %v2575 = vtanh.pop %v2573
    %v2576 = vtanh.pop %v2574
    %v2577 = vsub.f32 1.0, %v2554
    %v2578 = vsub.f32 1.0, %v2556
    %2581 = vrot.lane.b32.xlu0 %v2575, 96
    %v2582 = vpop.permute.xlu0 %2581
    %2583 = vrot.lane.b32.xlu0 %v2576, 96
    %v2584 = vpop.permute.xlu0 %2583
    %v2587 = vmul.f32 %v2577, %v2582
    %v2588 = vmul.f32 %v2578, %v2584
    %v2589 = vmul.f32 %v2554, %v2256
    %v2590 = vmul.f32 %v2556, %v2257
    %v2591 = vadd.f32 %v2587, %v2589
    %v2592 = vadd.f32 %v2588, %v2590
    %2593 = vrot.lane.b32.xlu0 %v2421, 96
    %v2594 = vpop.permute.xlu0 %2593
    %2595 = vrot.lane.b32.xlu0 %v2422, 96
    %v2596 = vpop.permute.xlu0 %2595
    %2599 = vst.msk [vmem:[#allocation3 - $0x4] sm:$0xf0] %vm1240, %v2594
    %2600 = vst.msk [vmem:[#allocation3 + $0x4] sm:$0xff] %vm155, %v2596
    %2601 = vst.msk [vmem:[#allocation3] sm:$0xff] %vm893, %v2591
    %2602 = vst.msk [vmem:[#allocation3 + $0x8] sm:$0xf] %vm895, %v2592
    %v2603 = vld [vmem:[#allocation3] sm:$0xff]
    %v2604 = vld [vmem:[#allocation3 + $0x8] sm:$0xf]
    %v2605 = vld [vmem:[%s7 + $0x40] sm:$0xff]
    %v2606 = vld [vmem:[%s7 + $0x48] sm:$0xff]
    %v2607 = vld [vmem:[%s7 + $0x50] sm:$0xff]
    %v2608 = vld [vmem:[%s7 + $0x58] sm:$0xff]
    %v2609 = vld [vmem:[%s7 + $0x60] sm:$0xff]
    %v2610 = vld [vmem:[%s7 + $0x68] sm:$0xff]
    %v2611 = vld [vmem:[%s7 + $0x70] sm:$0xff]
    %v2612 = vld [vmem:[%s7 + $0x78] sm:$0xff]
    %v2613 = vld [vmem:[%s7 + $0x80] sm:$0xff]
    %v2614 = vld [vmem:[%s7 + $0x88] sm:$0xff]
    %v2615 = vld [vmem:[%s7 + $0x90] sm:$0xff]
    %v2616 = vld [vmem:[%s7 + $0x98] sm:$0xff]
    %v2617 = vld [vmem:[%s7 + $0xa0] sm:$0xff]
    %v2618 = vld [vmem:[%s7 + $0xa8] sm:$0xff]
    %v2619 = vld [vmem:[%s7 + $0xb0] sm:$0xff]
    %v2620 = vld [vmem:[%s7 + $0xb8] sm:$0xff]
    %v2622 = vsel %vm548, %v2603, 0
    %v2625 = vsel %vm548, %v2604, 0
    %2627 = vmatprep.subr.mxu0 0.0
    %2628 = vmatpush1.msra.mxu0 0.0
    %2629 = vmatprep.subr.mxu0 0.0
    %2630 = vmatpush1.msra.mxu0 0.0
    %2631 = vmatprep.subr.mxu0 0.0
    %2632 = vmatpush1.msra.mxu0 0.0
    %2633 = vmatprep.subr.mxu0 0.0
    %2634 = vmatpush1.msra.mxu0 0.0
    %2635 = vmatprep.subr.mxu0 0.0
    %2636 = vmatpush1.msra.mxu0 0.0
    %2637 = vmatprep.subr.mxu0 0.0
    %2638 = vmatpush1.msra.mxu0 0.0
    %2639 = vmatprep.subr.mxu0 0.0
    %2640 = vmatpush1.msra.mxu0 0.0
    %2641 = vmatprep.subr.mxu0 0.0
    %2642 = vmatpush1.msra.mxu0 0.0
    %2643 = vmatprep.subr.mxu0 %v2620
    %2644 = vmatpush1.msra.mxu0 %v2619
    %2645 = vmatprep.subr.mxu0 %v2618
    %2646 = vmatpush1.msra.mxu0 %v2617
    %2647 = vmatprep.subr.mxu0 %v2616
    %2648 = vmatpush1.msra.mxu0 %v2615
    %2649 = vmatprep.subr.mxu0 %v2614
    %2650 = vmatpush1.msra.mxu0 %v2613
    %2651 = vmatprep.subr.mxu0 %v2612
    %2652 = vmatpush1.msra.mxu0 %v2611
    %2653 = vmatprep.subr.mxu0 %v2610
    %2654 = vmatpush1.msra.mxu0 %v2609
    %2655 = vmatprep.subr.mxu0 %v2608
    %2656 = vmatpush1.msra.mxu0 %v2607
    %2657 = vmatprep.subr.mxu0 %v2606
    %2658 = vmatpush1.msra.mxu0 %v2605
    %2659 = vmatprep.subr.mxu0 0.0
    %2660 = vmatpush2.msra.mxu0 0.0
    %2661 = vmatprep.subr.mxu0 0.0
    %2662 = vmatpush2.msra.mxu0 0.0
    %2663 = vmatprep.subr.mxu0 0.0
    %2664 = vmatpush2.msra.mxu0 0.0
    %2665 = vmatprep.subr.mxu0 0.0
    %2666 = vmatpush2.msra.mxu0 0.0
    %2667 = vmatprep.subr.mxu0 0.0
    %2668 = vmatpush2.msra.mxu0 0.0
    %2669 = vmatprep.subr.mxu0 0.0
    %2670 = vmatpush2.msra.mxu0 0.0
    %2671 = vmatprep.subr.mxu0 0.0
    %2672 = vmatpush2.msra.mxu0 0.0
    %2673 = vmatprep.subr.mxu0 0.0
    %2674 = vmatpush2.msra.mxu0 0.0
    %2675 = vmatprep.subr.mxu0 0.0
    %2676 = vmatpush2.msra.mxu0 0.0
    %2677 = vmatprep.subr.mxu0 0.0
    %2678 = vmatpush2.msra.mxu0 0.0
    %2679 = vmatprep.subr.mxu0 0.0
    %2680 = vmatpush2.msra.mxu0 0.0
    %2681 = vmatprep.subr.mxu0 0.0
    %2682 = vmatpush2.msra.mxu0 0.0
    %2683 = vmatprep.subr.mxu0 0.0
    %2684 = vmatpush2.msra.mxu0 0.0
    %2685 = vmatprep.subr.mxu0 0.0
    %2686 = vmatpush2.msra.mxu0 0.0
    %2687 = vmatprep.subr.mxu0 0.0
    %2688 = vmatpush2.msra.mxu0 0.0
    %2689 = vmatprep.subr.mxu0 0.0
    %2690 = vmatpush2.msra.mxu0 0.0
    %2691 = vmatprep.mubr.f32.mxu0 0.0
    %2692 = vmatmul.mubr.f32.gmra.mxu0 %v2622
    %v2693 = vpop.f32.mrf.mxu0
    %v2694 = vadd.f32 %v574, %v2693
    %v2695 = vpop.f32.mrf.mxu0
    %v2696 = vadd.f32 %v578, %v2695
    %2697 = vmatprep.mubr.f32.mxu0 0.0
    %2698 = vmatmul.mubr.f32.gmra.mxu0 %v2625
    %v2699 = vpop.f32.mrf.mxu0
    %v2700 = vadd.f32 %v574, %v2699
    %v2701 = vpop.f32.mrf.mxu0
    %v2702 = vadd.f32 %v578, %v2701
    %2703 = vdwg.mxu0
    %v2704 = vadd.f32 %v530, %v2694
    %v2705 = vadd.f32 %v535, %v2700
    %v2706 = vxor.u32 %v2704, 2147483648
    %v2707 = vxor.u32 %v2705, 2147483648
    %v2708 = vmul.f32 %v2706, 1.442695
    %v2709 = vpow.pop %v2708
    %v2710 = vmul.f32 %v2707, 1.442695
    %v2711 = vpow.pop %v2710
    %v2712 = vadd.f32 %v2709, 1.0
    %v2713 = vadd.f32 %v2711, 1.0
    %v2714 = vrcp.pop %v2712
    %v2715 = vmul.f32 1.0, %v2714
    %v2716 = vrcp.pop %v2713
    %v2717 = vmul.f32 1.0, %v2716
    %2720 = vrot.lane.b32.xlu0 %v2694, 64
    %v2721 = vpop.permute.xlu0 %2720
    %2722 = vrot.lane.b32.xlu0 %v2700, 64
    %v2723 = vpop.permute.xlu0 %2722
    %v2726 = vmul.f32 %v2715, %v2721
    %v2727 = vmul.f32 %v2717, %v2723
    %2730 = vrot.lane.b32.xlu0 %v2726, 64
    %v2731 = vpop.permute.xlu0 %2730
    %2732 = vrot.lane.b32.xlu0 %v2727, 64
    %v2733 = vpop.permute.xlu0 %2732
    %v2736 = vadd.f32 %v530, %v2731
    %v2737 = vadd.f32 %v535, %v2733
    %v2738 = vtanh.pop %v2736
    %v2739 = vtanh.pop %v2737
    %v2740 = vsub.f32 1.0, %v2715
    %v2741 = vsub.f32 1.0, %v2717
    %2744 = vrot.lane.b32.xlu0 %v2738, 96
    %v2745 = vpop.permute.xlu0 %2744
    %2746 = vrot.lane.b32.xlu0 %v2739, 96
    %v2747 = vpop.permute.xlu0 %2746
    %v2750 = vmul.f32 %v2740, %v2745
    %v2751 = vmul.f32 %v2741, %v2747
    %2752 = vrot.lane.b32.xlu0 %v2603, 32
    %v2753 = vpop.permute.xlu0 %2752
    %2754 = vrot.lane.b32.xlu0 %v2604, 32
    %v2755 = vpop.permute.xlu0 %2754
    %v2758 = vmul.f32 %v2715, %v2753
    %v2759 = vmul.f32 %v2717, %v2755
    %v2760 = vadd.f32 %v2750, %v2758
    %v2761 = vadd.f32 %v2751, %v2759
    %v2762 = vld [vmem:[%s7 + $0xc0] sm:$0xff]
    %v2763 = vld [vmem:[%s7 + $0xd0] sm:$0xff]
    %v2764 = vld [vmem:[%s7 + $0xe0] sm:$0xff]
    %v2765 = vld [vmem:[%s7 + $0xf0] sm:$0xff]
    %2768 = vrot.lane.b32.xlu0 %v2760, 96
    %v2769 = vpop.permute.xlu0 %2768
    %2770 = vrot.lane.b32.xlu0 %v2761, 96
    %v2771 = vpop.permute.xlu0 %2770
    %v2772 = vsel %vm155, %v2769, 0
    %v2774 = vsel %vm155, %v2771, 0
    %2776 = vmatprep.subr.mxu0 0.0
    %2777 = vmatpush1.msra.mxu0 0.0
    %2778 = vmatprep.subr.mxu0 0.0
    %2779 = vmatpush1.msra.mxu0 0.0
    %2780 = vmatprep.subr.mxu0 0.0
    %2781 = vmatpush1.msra.mxu0 0.0
    %2782 = vmatprep.subr.mxu0 0.0
    %2783 = vmatpush1.msra.mxu0 0.0
    %2784 = vmatprep.subr.mxu0 0.0
    %2785 = vmatpush1.msra.mxu0 0.0
    %2786 = vmatprep.subr.mxu0 0.0
    %2787 = vmatpush1.msra.mxu0 0.0
    %2788 = vmatprep.subr.mxu0 0.0
    %2789 = vmatpush1.msra.mxu0 0.0
    %2790 = vmatprep.subr.mxu0 0.0
    %2791 = vmatpush1.msra.mxu0 0.0
    %2792 = vmatprep.subr.mxu0 0.0
    %2793 = vmatpush1.msra.mxu0 0.0
    %2794 = vmatprep.subr.mxu0 0.0
    %2795 = vmatpush1.msra.mxu0 0.0
    %2796 = vmatprep.subr.mxu0 0.0
    %2797 = vmatpush1.msra.mxu0 0.0
    %2798 = vmatprep.subr.mxu0 0.0
    %2799 = vmatpush1.msra.mxu0 0.0
    %2800 = vmatprep.subr.mxu0 0.0
    %2801 = vmatpush1.msra.mxu0 %v2765
    %2802 = vmatprep.subr.mxu0 0.0
    %2803 = vmatpush1.msra.mxu0 %v2764
    %2804 = vmatprep.subr.mxu0 0.0
    %2805 = vmatpush1.msra.mxu0 %v2763
    %2806 = vmatprep.subr.mxu0 0.0
    %2807 = vmatpush1.msra.mxu0 %v2762
    %2808 = vmatprep.subr.mxu0 0.0
    %2809 = vmatpush2.msra.mxu0 0.0
    %2810 = vmatprep.subr.mxu0 0.0
    %2811 = vmatpush2.msra.mxu0 0.0
    %2812 = vmatprep.subr.mxu0 0.0
    %2813 = vmatpush2.msra.mxu0 0.0
    %2814 = vmatprep.subr.mxu0 0.0
    %2815 = vmatpush2.msra.mxu0 0.0
    %2816 = vmatprep.subr.mxu0 0.0
    %2817 = vmatpush2.msra.mxu0 0.0
    %2818 = vmatprep.subr.mxu0 0.0
    %2819 = vmatpush2.msra.mxu0 0.0
    %2820 = vmatprep.subr.mxu0 0.0
    %2821 = vmatpush2.msra.mxu0 0.0
    %2822 = vmatprep.subr.mxu0 0.0
    %2823 = vmatpush2.msra.mxu0 0.0
    %2824 = vmatprep.subr.mxu0 0.0
    %2825 = vmatpush2.msra.mxu0 0.0
    %2826 = vmatprep.subr.mxu0 0.0
    %2827 = vmatpush2.msra.mxu0 0.0
    %2828 = vmatprep.subr.mxu0 0.0
    %2829 = vmatpush2.msra.mxu0 0.0
    %2830 = vmatprep.subr.mxu0 0.0
    %2831 = vmatpush2.msra.mxu0 0.0
    %2832 = vmatprep.subr.mxu0 0.0
    %2833 = vmatpush2.msra.mxu0 0.0
    %2834 = vmatprep.subr.mxu0 0.0
    %2835 = vmatpush2.msra.mxu0 0.0
    %2836 = vmatprep.subr.mxu0 0.0
    %2837 = vmatpush2.msra.mxu0 0.0
    %2838 = vmatprep.subr.mxu0 0.0
    %2839 = vmatpush2.msra.mxu0 0.0
    %2840 = vmatprep.mubr.f32.mxu0 0.0
    %2841 = vmatmul.mubr.f32.gmra.mxu0 %v2772
    %v2842 = vpop.f32.mrf.mxu0
    %v2843 = vadd.f32 %v545, %v2842
    %v2844 = vpop.f32.mrf.mxu0
    %2845 = vmatprep.mubr.f32.mxu0 0.0
    %2846 = vmatmul.mubr.f32.gmra.mxu0 %v2774
    %v2847 = vpop.f32.mrf.mxu0
    %v2848 = vadd.f32 %v545, %v2847
    %v2849 = vpop.f32.mrf.mxu0
    %2850 = vdwg.mxu0
    %2851 = vrot.lane.b32.xlu0 %v2694, 32
    %v2852 = vpop.permute.xlu0 %2851
    %2853 = vrot.lane.b32.xlu0 %v2700, 32
    %v2854 = vpop.permute.xlu0 %2853
    %v2857 = vadd.f32 %v2843, %v2852
    %v2858 = vadd.f32 %v2848, %v2854
    %v2859 = vxor.u32 %v2857, 2147483648
    %v2860 = vxor.u32 %v2858, 2147483648
    %v2861 = vmul.f32 %v2859, 1.442695
    %v2862 = vpow.pop %v2861
    %v2863 = vmul.f32 %v2860, 1.442695
    %v2864 = vpow.pop %v2863
    %v2865 = vadd.f32 %v2862, 1.0
    %v2866 = vadd.f32 %v2864, 1.0
    %v2867 = vrcp.pop %v2865
    %v2868 = vmul.f32 1.0, %v2867
    %v2869 = vrcp.pop %v2866
    %v2870 = vmul.f32 1.0, %v2869
    %2873 = vrot.lane.b32.xlu0 %v2696, 32
    %v2874 = vpop.permute.xlu0 %2873
    %2875 = vrot.lane.b32.xlu0 %v2702, 32
    %v2876 = vpop.permute.xlu0 %2875
    %v2879 = vadd.f32 %v2843, %v2874
    %v2880 = vadd.f32 %v2848, %v2876
    %v2881 = vxor.u32 %v2879, 2147483648
    %v2882 = vxor.u32 %v2880, 2147483648
    %v2883 = vmul.f32 %v2881, 1.442695
    %v2884 = vpow.pop %v2883
    %v2885 = vmul.f32 %v2882, 1.442695
    %v2886 = vpow.pop %v2885
    %v2887 = vadd.f32 %v2884, 1.0
    %v2888 = vadd.f32 %v2886, 1.0
    %v2889 = vrcp.pop %v2887
    %v2890 = vmul.f32 1.0, %v2889
    %v2891 = vrcp.pop %v2888
    %v2892 = vmul.f32 1.0, %v2891
    %2893 = vrot.lane.b32.xlu0 %v2696, 96
    %v2894 = vpop.permute.xlu0 %2893
    %2895 = vrot.lane.b32.xlu0 %v2702, 96
    %v2896 = vpop.permute.xlu0 %2895
    %v2899 = vmul.f32 %v2868, %v2894
    %v2900 = vmul.f32 %v2870, %v2896
    %2903 = vrot.lane.b32.xlu0 %v2899, 64
    %v2904 = vpop.permute.xlu0 %2903
    %2905 = vrot.lane.b32.xlu0 %v2900, 64
    %v2906 = vpop.permute.xlu0 %2905
    %v2909 = vadd.f32 %v2843, %v2904
    %v2910 = vadd.f32 %v2848, %v2906
    %v2911 = vtanh.pop %v2909
    %v2912 = vtanh.pop %v2910
    %v2913 = vsub.f32 1.0, %v2890
    %v2914 = vsub.f32 1.0, %v2892
    %2917 = vrot.lane.b32.xlu0 %v2911, 96
    %v2918 = vpop.permute.xlu0 %2917
    %2919 = vrot.lane.b32.xlu0 %v2912, 96
    %v2920 = vpop.permute.xlu0 %2919
    %v2923 = vmul.f32 %v2913, %v2918
    %v2924 = vmul.f32 %v2914, %v2920
    %v2925 = vmul.f32 %v2890, %v2603
    %v2926 = vmul.f32 %v2892, %v2604
    %v2927 = vadd.f32 %v2923, %v2925
    %v2928 = vadd.f32 %v2924, %v2926
    %2931 = vst.msk [vmem:[#allocation3] sm:$0xff] %vm155, %v2769
    %2932 = vst.msk [vmem:[#allocation3 + $0x8] sm:$0xf] %vm331, %v2771
    %2933 = vst.msk [vmem:[#allocation3] sm:$0xff] %vm893, %v2927
    %2934 = vst.msk [vmem:[#allocation3 + $0x8] sm:$0xf] %vm895, %v2928
    %v2935 = vld [vmem:[#allocation3] sm:$0xff]
    %v2936 = vld [vmem:[#allocation3 + $0x8] sm:$0xf]
    %v2937 = vld [vmem:[%s7 + $0x40] sm:$0xff]
    %v2938 = vld [vmem:[%s7 + $0x48] sm:$0xff]
    %v2939 = vld [vmem:[%s7 + $0x50] sm:$0xff]
    %v2940 = vld [vmem:[%s7 + $0x58] sm:$0xff]
    %v2941 = vld [vmem:[%s7 + $0x60] sm:$0xff]
    %v2942 = vld [vmem:[%s7 + $0x68] sm:$0xff]
    %v2943 = vld [vmem:[%s7 + $0x70] sm:$0xff]
    %v2944 = vld [vmem:[%s7 + $0x78] sm:$0xff]
    %v2945 = vld [vmem:[%s7 + $0x80] sm:$0xff]
    %v2946 = vld [vmem:[%s7 + $0x88] sm:$0xff]
    %v2947 = vld [vmem:[%s7 + $0x90] sm:$0xff]
    %v2948 = vld [vmem:[%s7 + $0x98] sm:$0xff]
    %v2949 = vld [vmem:[%s7 + $0xa0] sm:$0xff]
    %v2950 = vld [vmem:[%s7 + $0xa8] sm:$0xff]
    %v2951 = vld [vmem:[%s7 + $0xb0] sm:$0xff]
    %v2952 = vld [vmem:[%s7 + $0xb8] sm:$0xff]
    %v2954 = vsel %vm548, %v2935, 0
    %v2957 = vsel %vm548, %v2936, 0
    %2959 = vmatprep.subr.mxu0 0.0
    %2960 = vmatpush1.msra.mxu0 0.0
    %2961 = vmatprep.subr.mxu0 0.0
    %2962 = vmatpush1.msra.mxu0 0.0
    %2963 = vmatprep.subr.mxu0 0.0
    %2964 = vmatpush1.msra.mxu0 0.0
    %2965 = vmatprep.subr.mxu0 0.0
    %2966 = vmatpush1.msra.mxu0 0.0
    %2967 = vmatprep.subr.mxu0 0.0
    %2968 = vmatpush1.msra.mxu0 0.0
    %2969 = vmatprep.subr.mxu0 0.0
    %2970 = vmatpush1.msra.mxu0 0.0
    %2971 = vmatprep.subr.mxu0 0.0
    %2972 = vmatpush1.msra.mxu0 0.0
    %2973 = vmatprep.subr.mxu0 0.0
    %2974 = vmatpush1.msra.mxu0 0.0
    %2975 = vmatprep.subr.mxu0 %v2952
    %2976 = vmatpush1.msra.mxu0 %v2951
    %2977 = vmatprep.subr.mxu0 %v2950
    %2978 = vmatpush1.msra.mxu0 %v2949
    %2979 = vmatprep.subr.mxu0 %v2948
    %2980 = vmatpush1.msra.mxu0 %v2947
    %2981 = vmatprep.subr.mxu0 %v2946
    %2982 = vmatpush1.msra.mxu0 %v2945
    %2983 = vmatprep.subr.mxu0 %v2944
    %2984 = vmatpush1.msra.mxu0 %v2943
    %2985 = vmatprep.subr.mxu0 %v2942
    %2986 = vmatpush1.msra.mxu0 %v2941
    %2987 = vmatprep.subr.mxu0 %v2940
    %2988 = vmatpush1.msra.mxu0 %v2939
    %2989 = vmatprep.subr.mxu0 %v2938
    %2990 = vmatpush1.msra.mxu0 %v2937
    %2991 = vmatprep.subr.mxu0 0.0
    %2992 = vmatpush2.msra.mxu0 0.0
    %2993 = vmatprep.subr.mxu0 0.0
    %2994 = vmatpush2.msra.mxu0 0.0
    %2995 = vmatprep.subr.mxu0 0.0
    %2996 = vmatpush2.msra.mxu0 0.0
    %2997 = vmatprep.subr.mxu0 0.0
    %2998 = vmatpush2.msra.mxu0 0.0
    %2999 = vmatprep.subr.mxu0 0.0
    %3000 = vmatpush2.msra.mxu0 0.0
    %3001 = vmatprep.subr.mxu0 0.0
    %3002 = vmatpush2.msra.mxu0 0.0
    %3003 = vmatprep.subr.mxu0 0.0
    %3004 = vmatpush2.msra.mxu0 0.0
    %3005 = vmatprep.subr.mxu0 0.0
    %3006 = vmatpush2.msra.mxu0 0.0
    %3007 = vmatprep.subr.mxu0 0.0
    %3008 = vmatpush2.msra.mxu0 0.0
    %3009 = vmatprep.subr.mxu0 0.0
    %3010 = vmatpush2.msra.mxu0 0.0
    %3011 = vmatprep.subr.mxu0 0.0
    %3012 = vmatpush2.msra.mxu0 0.0
    %3013 = vmatprep.subr.mxu0 0.0
    %3014 = vmatpush2.msra.mxu0 0.0
    %3015 = vmatprep.subr.mxu0 0.0
    %3016 = vmatpush2.msra.mxu0 0.0
    %3017 = vmatprep.subr.mxu0 0.0
    %3018 = vmatpush2.msra.mxu0 0.0
    %3019 = vmatprep.subr.mxu0 0.0
    %3020 = vmatpush2.msra.mxu0 0.0
    %3021 = vmatprep.subr.mxu0 0.0
    %3022 = vmatpush2.msra.mxu0 0.0
    %3023 = vmatprep.mubr.f32.mxu0 0.0
    %3024 = vmatmul.mubr.f32.gmra.mxu0 %v2954
    %v3025 = vpop.f32.mrf.mxu0
    %v3026 = vadd.f32 %v574, %v3025
    %v3027 = vpop.f32.mrf.mxu0
    %v3028 = vadd.f32 %v578, %v3027
    %3029 = vmatprep.mubr.f32.mxu0 0.0
    %3030 = vmatmul.mubr.f32.gmra.mxu0 %v2957
    %v3031 = vpop.f32.mrf.mxu0
    %v3032 = vadd.f32 %v574, %v3031
    %v3033 = vpop.f32.mrf.mxu0
    %v3034 = vadd.f32 %v578, %v3033
    %3035 = vdwg.mxu0
    %v3038 = vrot.slane %v3026, 4
    %v3039 = vrot.slane %v3032, 4
    %v3040 = vsel %vm335, %v3038, %v3039
    %v3043 = vadd.f32 %v535, %v3038
    %v3044 = vadd.f32 %v540, %v3040
    %v3045 = vxor.u32 %v3043, 2147483648
    %v3046 = vxor.u32 %v3044, 2147483648
    %v3047 = vmul.f32 %v3045, 1.442695
    %v3048 = vpow.pop %v3047
    %v3049 = vmul.f32 %v3046, 1.442695
    %v3050 = vpow.pop %v3049
    %v3051 = vadd.f32 %v3048, 1.0
    %v3052 = vadd.f32 %v3050, 1.0
    %v3053 = vrcp.pop %v3051
    %v3054 = vmul.f32 1.0, %v3053
    %v3055 = vrcp.pop %v3052
    %v3056 = vmul.f32 1.0, %v3055
    %3057 = vrot.lane.b32.xlu0 %v3038, 64
    %v3058 = vpop.permute.xlu0 %3057
    %3059 = vrot.lane.b32.xlu0 %v3040, 64
    %v3060 = vpop.permute.xlu0 %3059
    %v3063 = vmul.f32 %v3054, %v3058
    %v3064 = vmul.f32 %v3056, %v3060
    %3067 = vrot.lane.b32.xlu0 %v3063, 64
    %v3068 = vpop.permute.xlu0 %3067
    %3069 = vrot.lane.b32.xlu0 %v3064, 64
    %v3070 = vpop.permute.xlu0 %3069
    %v3073 = vadd.f32 %v535, %v3068
    %v3074 = vadd.f32 %v540, %v3070
    %v3075 = vtanh.pop %v3073
    %v3076 = vtanh.pop %v3074
    %v3077 = vsub.f32 1.0, %v3054
    %v3078 = vsub.f32 1.0, %v3056
    %3081 = vrot.lane.b32.xlu0 %v3075, 96
    %v3082 = vpop.permute.xlu0 %3081
    %3083 = vrot.lane.b32.xlu0 %v3076, 96
    %v3084 = vpop.permute.xlu0 %3083
    %v3087 = vmul.f32 %v3077, %v3082
    %v3088 = vmul.f32 %v3078, %v3084
    %v3089 = vrot.slane %v2935, 4
    %v3090 = vrot.slane %v2936, 4
    %v3091 = vsel %vm335, %v3089, %v3090
    %3092 = vrot.lane.b32.xlu0 %v3089, 32
    %v3093 = vpop.permute.xlu0 %3092
    %3094 = vrot.lane.b32.xlu0 %v3091, 32
    %v3095 = vpop.permute.xlu0 %3094
    %v3098 = vmul.f32 %v3054, %v3093
    %v3099 = vmul.f32 %v3056, %v3095
    %v3100 = vadd.f32 %v3087, %v3098
    %v3101 = vadd.f32 %v3088, %v3099
    %v3102 = vld [vmem:[%s7 + $0xc0] sm:$0xff]
    %v3103 = vld [vmem:[%s7 + $0xd0] sm:$0xff]
    %v3104 = vld [vmem:[%s7 + $0xe0] sm:$0xff]
    %v3105 = vld [vmem:[%s7 + $0xf0] sm:$0xff]
    %v3108 = vrot.slane %v3100, 4
    %v3109 = vrot.slane %v3101, 4
    %v3110 = vsel %vm335, %v3108, %v3109
    %3111 = vrot.lane.b32.xlu0 %v3110, 96
    %v3112 = vpop.permute.xlu0 %3111
    %3113 = vrot.lane.b32.xlu0 %v3109, 96
    %v3114 = vpop.permute.xlu0 %3113
    %v3115 = vsel %vm155, %v3112, 0
    %v3117 = vsel %vm155, %v3114, 0
    %3119 = vmatprep.subr.mxu0 0.0
    %3120 = vmatpush1.msra.mxu0 0.0
    %3121 = vmatprep.subr.mxu0 0.0
    %3122 = vmatpush1.msra.mxu0 0.0
    %3123 = vmatprep.subr.mxu0 0.0
    %3124 = vmatpush1.msra.mxu0 0.0
    %3125 = vmatprep.subr.mxu0 0.0
    %3126 = vmatpush1.msra.mxu0 0.0
    %3127 = vmatprep.subr.mxu0 0.0
    %3128 = vmatpush1.msra.mxu0 0.0
    %3129 = vmatprep.subr.mxu0 0.0
    %3130 = vmatpush1.msra.mxu0 0.0
    %3131 = vmatprep.subr.mxu0 0.0
    %3132 = vmatpush1.msra.mxu0 0.0
    %3133 = vmatprep.subr.mxu0 0.0
    %3134 = vmatpush1.msra.mxu0 0.0
    %3135 = vmatprep.subr.mxu0 0.0
    %3136 = vmatpush1.msra.mxu0 0.0
    %3137 = vmatprep.subr.mxu0 0.0
    %3138 = vmatpush1.msra.mxu0 0.0
    %3139 = vmatprep.subr.mxu0 0.0
    %3140 = vmatpush1.msra.mxu0 0.0
    %3141 = vmatprep.subr.mxu0 0.0
    %3142 = vmatpush1.msra.mxu0 0.0
    %3143 = vmatprep.subr.mxu0 0.0
    %3144 = vmatpush1.msra.mxu0 %v3105
    %3145 = vmatprep.subr.mxu0 0.0
    %3146 = vmatpush1.msra.mxu0 %v3104
    %3147 = vmatprep.subr.mxu0 0.0
    %3148 = vmatpush1.msra.mxu0 %v3103
    %3149 = vmatprep.subr.mxu0 0.0
    %3150 = vmatpush1.msra.mxu0 %v3102
    %3151 = vmatprep.subr.mxu0 0.0
    %3152 = vmatpush2.msra.mxu0 0.0
    %3153 = vmatprep.subr.mxu0 0.0
    %3154 = vmatpush2.msra.mxu0 0.0
    %3155 = vmatprep.subr.mxu0 0.0
    %3156 = vmatpush2.msra.mxu0 0.0
    %3157 = vmatprep.subr.mxu0 0.0
    %3158 = vmatpush2.msra.mxu0 0.0
    %3159 = vmatprep.subr.mxu0 0.0
    %3160 = vmatpush2.msra.mxu0 0.0
    %3161 = vmatprep.subr.mxu0 0.0
    %3162 = vmatpush2.msra.mxu0 0.0
    %3163 = vmatprep.subr.mxu0 0.0
    %3164 = vmatpush2.msra.mxu0 0.0
    %3165 = vmatprep.subr.mxu0 0.0
    %3166 = vmatpush2.msra.mxu0 0.0
    %3167 = vmatprep.subr.mxu0 0.0
    %3168 = vmatpush2.msra.mxu0 0.0
    %3169 = vmatprep.subr.mxu0 0.0
    %3170 = vmatpush2.msra.mxu0 0.0
    %3171 = vmatprep.subr.mxu0 0.0
    %3172 = vmatpush2.msra.mxu0 0.0
    %3173 = vmatprep.subr.mxu0 0.0
    %3174 = vmatpush2.msra.mxu0 0.0
    %3175 = vmatprep.subr.mxu0 0.0
    %3176 = vmatpush2.msra.mxu0 0.0
    %3177 = vmatprep.subr.mxu0 0.0
    %3178 = vmatpush2.msra.mxu0 0.0
    %3179 = vmatprep.subr.mxu0 0.0
    %3180 = vmatpush2.msra.mxu0 0.0
    %3181 = vmatprep.subr.mxu0 0.0
    %3182 = vmatpush2.msra.mxu0 0.0
    %3183 = vmatprep.mubr.f32.mxu0 0.0
    %3184 = vmatmul.mubr.f32.gmra.mxu0 %v3115
    %v3185 = vpop.f32.mrf.mxu0
    %v3186 = vadd.f32 %v545, %v3185
    %v3187 = vpop.f32.mrf.mxu0
    %3188 = vmatprep.mubr.f32.mxu0 0.0
    %3189 = vmatmul.mubr.f32.gmra.mxu0 %v3117
    %v3190 = vpop.f32.mrf.mxu0
    %v3191 = vadd.f32 %v545, %v3190
    %v3192 = vpop.f32.mrf.mxu0
    %3193 = vdwg.mxu0
    %3194 = vrot.lane.b32.xlu0 %v3026, 32
    %v3195 = vpop.permute.xlu0 %3194
    %3196 = vrot.lane.b32.xlu0 %v3032, 32
    %v3197 = vpop.permute.xlu0 %3196
    %v3200 = vadd.f32 %v3186, %v3195
    %v3201 = vadd.f32 %v3191, %v3197
    %v3202 = vxor.u32 %v3200, 2147483648
    %v3203 = vxor.u32 %v3201, 2147483648
    %v3204 = vmul.f32 %v3202, 1.442695
    %v3205 = vpow.pop %v3204
    %v3206 = vmul.f32 %v3203, 1.442695
    %v3207 = vpow.pop %v3206
    %v3208 = vadd.f32 %v3205, 1.0
    %v3209 = vadd.f32 %v3207, 1.0
    %v3210 = vrcp.pop %v3208
    %v3211 = vmul.f32 1.0, %v3210
    %v3212 = vrcp.pop %v3209
    %v3213 = vmul.f32 1.0, %v3212
    %3216 = vrot.lane.b32.xlu0 %v3028, 32
    %v3217 = vpop.permute.xlu0 %3216
    %3218 = vrot.lane.b32.xlu0 %v3034, 32
    %v3219 = vpop.permute.xlu0 %3218
    %v3222 = vadd.f32 %v3186, %v3217
    %v3223 = vadd.f32 %v3191, %v3219
    %v3224 = vxor.u32 %v3222, 2147483648
    %v3225 = vxor.u32 %v3223, 2147483648
    %v3226 = vmul.f32 %v3224, 1.442695
    %v3227 = vpow.pop %v3226
    %v3228 = vmul.f32 %v3225, 1.442695
    %v3229 = vpow.pop %v3228
    %v3230 = vadd.f32 %v3227, 1.0
    %v3231 = vadd.f32 %v3229, 1.0
    %v3232 = vrcp.pop %v3230
    %v3233 = vmul.f32 1.0, %v3232
    %v3234 = vrcp.pop %v3231
    %v3235 = vmul.f32 1.0, %v3234
    %3236 = vrot.lane.b32.xlu0 %v3028, 96
    %v3237 = vpop.permute.xlu0 %3236
    %3238 = vrot.lane.b32.xlu0 %v3034, 96
    %v3239 = vpop.permute.xlu0 %3238
    %v3242 = vmul.f32 %v3211, %v3237
    %v3243 = vmul.f32 %v3213, %v3239
    %3246 = vrot.lane.b32.xlu0 %v3242, 64
    %v3247 = vpop.permute.xlu0 %3246
    %3248 = vrot.lane.b32.xlu0 %v3243, 64
    %v3249 = vpop.permute.xlu0 %3248
    %v3252 = vadd.f32 %v3186, %v3247
    %v3253 = vadd.f32 %v3191, %v3249
    %v3254 = vtanh.pop %v3252
    %v3255 = vtanh.pop %v3253
    %v3256 = vsub.f32 1.0, %v3233
    %v3257 = vsub.f32 1.0, %v3235
    %3260 = vrot.lane.b32.xlu0 %v3254, 96
    %v3261 = vpop.permute.xlu0 %3260
    %3262 = vrot.lane.b32.xlu0 %v3255, 96
    %v3263 = vpop.permute.xlu0 %3262
    %v3266 = vmul.f32 %v3256, %v3261
    %v3267 = vmul.f32 %v3257, %v3263
    %v3268 = vmul.f32 %v3233, %v2935
    %v3269 = vmul.f32 %v3235, %v2936
    %v3270 = vadd.f32 %v3266, %v3268
    %v3271 = vadd.f32 %v3267, %v3269
    %3272 = vrot.lane.b32.xlu0 %v3100, 96
    %v3273 = vpop.permute.xlu0 %3272
    %3274 = vrot.lane.b32.xlu0 %v3101, 96
    %v3275 = vpop.permute.xlu0 %3274
    %3278 = vst.msk [vmem:[#allocation3 - $0x4] sm:$0xf0] %vm1240, %v3273
    %3279 = vst.msk [vmem:[#allocation3 + $0x4] sm:$0xff] %vm155, %v3275
    %3280 = vst.msk [vmem:[#allocation3] sm:$0xff] %vm893, %v3270
    %3281 = vst.msk [vmem:[#allocation3 + $0x8] sm:$0xf] %vm895, %v3271
    %v3282 = vld [vmem:[#allocation3] sm:$0xff]
    %v3283 = vld [vmem:[#allocation3 + $0x8] sm:$0xf]
    %3285 = vrot.lane.b32.xlu0 %v3282, 96
    %v3286 = vpop.permute.xlu0 %3285
    %3288 = vst.msk [vmem:[#allocation2] sm:$0xf] %vm331, %v3286
    %3289 = vst.msk [vmem:[#allocation2 + $0x4] sm:$0xf] %vm331, %v238
    %3291 = vrot.lane.b32.xlu0 %v3283, 96
    %v3292 = vpop.permute.xlu0 %3291
    %3294 = vst.msk [vmem:[#allocation2 + $0x4] sm:$0xf0] %vm1240, %v3286
    %3295 = vst.msk [vmem:[#allocation2 + $0xc] sm:$0xf] %vm331, %v3292
    %v3296 = vld [vmem:[#allocation2] sm:$0xff]
    %v3297 = vld [vmem:[#allocation2 + $0x8] sm:$0xff]
    %v3298 = vld [vmem:[#allocation5] sm:$0xff]
    %v3299 = vld [vmem:[#allocation5 + $0x8] sm:$0xff]
    %v3300 = vld [vmem:[#allocation5 + $0x10] sm:$0xff]
    %v3301 = vld [vmem:[#allocation5 + $0x18] sm:$0xff]
    %v3302 = vld [vmem:[#allocation5 + $0x20] sm:$0xff]
    %v3303 = vld [vmem:[#allocation5 + $0x28] sm:$0xff]
    %v3304 = vld [vmem:[#allocation5 + $0x30] sm:$0xff]
    %v3305 = vld [vmem:[#allocation5 + $0x38] sm:$0xff]
    %v3306 = vld [vmem:[#allocation5 + $0x40] sm:$0xff]
    %v3307 = vld [vmem:[#allocation5 + $0x48] sm:$0xff]
    %v3308 = vld [vmem:[#allocation5 + $0x50] sm:$0xff]
    %v3309 = vld [vmem:[#allocation5 + $0x58] sm:$0xff]
    %v3310 = vld [vmem:[#allocation5 + $0x60] sm:$0xff]
    %v3311 = vld [vmem:[#allocation5 + $0x68] sm:$0xff]
    %v3312 = vld [vmem:[#allocation5 + $0x70] sm:$0xff]
    %v3313 = vld [vmem:[#allocation5 + $0x78] sm:$0xff]
    %v3315 = vsel %vm155, %v3296, 0
    %v3318 = vsel %vm155, %v3297, 0
    %3320 = vmatprep.subr.mxu0 0.0
    %3321 = vmatpush1.msra.mxu0 0.0
    %3322 = vmatprep.subr.mxu0 0.0
    %3323 = vmatpush1.msra.mxu0 0.0
    %3324 = vmatprep.subr.mxu0 0.0
    %3325 = vmatpush1.msra.mxu0 0.0
    %3326 = vmatprep.subr.mxu0 0.0
    %3327 = vmatpush1.msra.mxu0 0.0
    %3328 = vmatprep.subr.mxu0 0.0
    %3329 = vmatpush1.msra.mxu0 0.0
    %3330 = vmatprep.subr.mxu0 0.0
    %3331 = vmatpush1.msra.mxu0 0.0
    %3332 = vmatprep.subr.mxu0 0.0
    %3333 = vmatpush1.msra.mxu0 0.0
    %3334 = vmatprep.subr.mxu0 0.0
    %3335 = vmatpush1.msra.mxu0 0.0
    %3336 = vmatprep.subr.mxu0 0.0
    %3337 = vmatpush1.msra.mxu0 0.0
    %3338 = vmatprep.subr.mxu0 0.0
    %3339 = vmatpush1.msra.mxu0 0.0
    %3340 = vmatprep.subr.mxu0 0.0
    %3341 = vmatpush1.msra.mxu0 0.0
    %3342 = vmatprep.subr.mxu0 0.0
    %3343 = vmatpush1.msra.mxu0 0.0
    %3344 = vmatprep.subr.mxu0 %v3311
    %3345 = vmatpush1.msra.mxu0 %v3310
    %3346 = vmatprep.subr.mxu0 %v3307
    %3347 = vmatpush1.msra.mxu0 %v3306
    %3348 = vmatprep.subr.mxu0 %v3303
    %3349 = vmatpush1.msra.mxu0 %v3302
    %3350 = vmatprep.subr.mxu0 %v3299
    %3351 = vmatpush1.msra.mxu0 %v3298
    %3352 = vmatprep.subr.mxu0 0.0
    %3353 = vmatpush2.msra.mxu0 0.0
    %3354 = vmatprep.subr.mxu0 0.0
    %3355 = vmatpush2.msra.mxu0 0.0
    %3356 = vmatprep.subr.mxu0 0.0
    %3357 = vmatpush2.msra.mxu0 0.0
    %3358 = vmatprep.subr.mxu0 0.0
    %3359 = vmatpush2.msra.mxu0 0.0
    %3360 = vmatprep.subr.mxu0 0.0
    %3361 = vmatpush2.msra.mxu0 0.0
    %3362 = vmatprep.subr.mxu0 0.0
    %3363 = vmatpush2.msra.mxu0 0.0
    %3364 = vmatprep.subr.mxu0 0.0
    %3365 = vmatpush2.msra.mxu0 0.0
    %3366 = vmatprep.subr.mxu0 0.0
    %3367 = vmatpush2.msra.mxu0 0.0
    %3368 = vmatprep.subr.mxu0 0.0
    %3369 = vmatpush2.msra.mxu0 0.0
    %3370 = vmatprep.subr.mxu0 0.0
    %3371 = vmatpush2.msra.mxu0 0.0
    %3372 = vmatprep.subr.mxu0 0.0
    %3373 = vmatpush2.msra.mxu0 0.0
    %3374 = vmatprep.subr.mxu0 0.0
    %3375 = vmatpush2.msra.mxu0 0.0
    %3376 = vmatprep.subr.mxu0 0.0
    %3377 = vmatpush2.msra.mxu0 0.0
    %3378 = vmatprep.subr.mxu0 0.0
    %3379 = vmatpush2.msra.mxu0 0.0
    %3380 = vmatprep.subr.mxu0 0.0
    %3381 = vmatpush2.msra.mxu0 0.0
    %3382 = vmatprep.subr.mxu0 0.0
    %3383 = vmatpush2.msra.mxu0 0.0
    %3384 = vmatprep.mubr.f32.mxu0 0.0
    %3385 = vmatmul.mubr.f32.gmra.mxu0 %v3315
    %v3386 = vpop.f32.mrf.mxu0
    %v3387 = vadd.f32 0.0, %v3386
    %v3388 = vpop.f32.mrf.mxu0
    %v3389 = vadd.f32 0.0, %v3388
    %3390 = vmatprep.mubr.f32.mxu0 0.0
    %3391 = vmatmul.mubr.f32.gmra.mxu0 %v3318
    %v3392 = vpop.f32.mrf.mxu0
    %v3393 = vadd.f32 0.0, %v3392
    %v3394 = vpop.f32.mrf.mxu0
    %v3395 = vadd.f32 0.0, %v3394
    %3396 = vdwg.mxu0
    %3397 = vmatprep.subr.mxu0 0.0
    %3398 = vmatpush1.msra.mxu0 0.0
    %3399 = vmatprep.subr.mxu0 0.0
    %3400 = vmatpush1.msra.mxu0 0.0
    %3401 = vmatprep.subr.mxu0 0.0
    %3402 = vmatpush1.msra.mxu0 0.0
    %3403 = vmatprep.subr.mxu0 0.0
    %3404 = vmatpush1.msra.mxu0 0.0
    %3405 = vmatprep.subr.mxu0 0.0
    %3406 = vmatpush1.msra.mxu0 0.0
    %3407 = vmatprep.subr.mxu0 0.0
    %3408 = vmatpush1.msra.mxu0 0.0
    %3409 = vmatprep.subr.mxu0 0.0
    %3410 = vmatpush1.msra.mxu0 0.0
    %3411 = vmatprep.subr.mxu0 0.0
    %3412 = vmatpush1.msra.mxu0 0.0
    %3413 = vmatprep.subr.mxu0 0.0
    %3414 = vmatpush1.msra.mxu0 0.0
    %3415 = vmatprep.subr.mxu0 0.0
    %3416 = vmatpush1.msra.mxu0 0.0
    %3417 = vmatprep.subr.mxu0 0.0
    %3418 = vmatpush1.msra.mxu0 0.0
    %3419 = vmatprep.subr.mxu0 0.0
    %3420 = vmatpush1.msra.mxu0 0.0
    %3421 = vmatprep.subr.mxu0 %v3313
    %3422 = vmatpush1.msra.mxu0 %v3312
    %3423 = vmatprep.subr.mxu0 %v3309
    %3424 = vmatpush1.msra.mxu0 %v3308
    %3425 = vmatprep.subr.mxu0 %v3305
    %3426 = vmatpush1.msra.mxu0 %v3304
    %3427 = vmatprep.subr.mxu0 %v3301
    %3428 = vmatpush1.msra.mxu0 %v3300
    %3429 = vmatprep.subr.mxu0 0.0
    %3430 = vmatpush2.msra.mxu0 0.0
    %3431 = vmatprep.subr.mxu0 0.0
    %3432 = vmatpush2.msra.mxu0 0.0
    %3433 = vmatprep.subr.mxu0 0.0
    %3434 = vmatpush2.msra.mxu0 0.0
    %3435 = vmatprep.subr.mxu0 0.0
    %3436 = vmatpush2.msra.mxu0 0.0
    %3437 = vmatprep.subr.mxu0 0.0
    %3438 = vmatpush2.msra.mxu0 0.0
    %3439 = vmatprep.subr.mxu0 0.0
    %3440 = vmatpush2.msra.mxu0 0.0
    %3441 = vmatprep.subr.mxu0 0.0
    %3442 = vmatpush2.msra.mxu0 0.0
    %3443 = vmatprep.subr.mxu0 0.0
    %3444 = vmatpush2.msra.mxu0 0.0
    %3445 = vmatprep.subr.mxu0 0.0
    %3446 = vmatpush2.msra.mxu0 0.0
    %3447 = vmatprep.subr.mxu0 0.0
    %3448 = vmatpush2.msra.mxu0 0.0
    %3449 = vmatprep.subr.mxu0 0.0
    %3450 = vmatpush2.msra.mxu0 0.0
    %3451 = vmatprep.subr.mxu0 0.0
    %3452 = vmatpush2.msra.mxu0 0.0
    %3453 = vmatprep.subr.mxu0 0.0
    %3454 = vmatpush2.msra.mxu0 0.0
    %3455 = vmatprep.subr.mxu0 0.0
    %3456 = vmatpush2.msra.mxu0 0.0
    %3457 = vmatprep.subr.mxu0 0.0
    %3458 = vmatpush2.msra.mxu0 0.0
    %3459 = vmatprep.subr.mxu0 0.0
    %3460 = vmatpush2.msra.mxu0 0.0
    %3461 = vmatprep.mubr.f32.mxu0 0.0
    %3462 = vmatmul.mubr.f32.gmra.mxu0 %v3315
    %v3463 = vpop.f32.mrf.mxu0
    %v3464 = vadd.f32 0.0, %v3463
    %v3465 = vpop.f32.mrf.mxu0
    %v3466 = vadd.f32 0.0, %v3465
    %3467 = vmatprep.mubr.f32.mxu0 0.0
    %3468 = vmatmul.mubr.f32.gmra.mxu0 %v3318
    %v3469 = vpop.f32.mrf.mxu0
    %v3470 = vadd.f32 0.0, %v3469
    %v3471 = vpop.f32.mrf.mxu0
    %v3472 = vadd.f32 0.0, %v3471
    %3473 = vdwg.mxu0
    %3474 = vst.msk [vmem:[#allocation4] sm:$0xff] %vm548, %v3387
    %3475 = vst.msk [vmem:[#allocation4 + $0x8] sm:$0xff] %vm548, %v3393
    %3478 = vrot.lane.b32.xlu0 %v3387, 64
    %v3479 = vpop.permute.xlu0 %3478
    %3480 = vrot.lane.b32.xlu0 %v3393, 64
    %v3481 = vpop.permute.xlu0 %3480
    %3484 = vst.msk [vmem:[#allocation4 + $0x10] sm:$0xff] %vm548, %v3479
    %3485 = vst.msk [vmem:[#allocation4 + $0x18] sm:$0xff] %vm548, %v3481
    %3486 = vst.msk [vmem:[#allocation4 + $0x20] sm:$0xff] %vm548, %v3389
    %3487 = vst.msk [vmem:[#allocation4 + $0x28] sm:$0xff] %vm548, %v3395
    %3490 = vrot.lane.b32.xlu0 %v3389, 64
    %v3491 = vpop.permute.xlu0 %3490
    %3492 = vrot.lane.b32.xlu0 %v3395, 64
    %v3493 = vpop.permute.xlu0 %3492
    %3496 = vst.msk [vmem:[#allocation4 + $0x30] sm:$0xff] %vm548, %v3491
    %3497 = vst.msk [vmem:[#allocation4 + $0x38] sm:$0xff] %vm548, %v3493
    %3498 = vst.msk [vmem:[#allocation4 + $0x40] sm:$0xff] %vm548, %v3464
    %3499 = vst.msk [vmem:[#allocation4 + $0x48] sm:$0xff] %vm548, %v3470
    %3502 = vrot.lane.b32.xlu0 %v3464, 64
    %v3503 = vpop.permute.xlu0 %3502
    %3504 = vrot.lane.b32.xlu0 %v3470, 64
    %v3505 = vpop.permute.xlu0 %3504
    %3508 = vst.msk [vmem:[#allocation4 + $0x50] sm:$0xff] %vm548, %v3503
    %3509 = vst.msk [vmem:[#allocation4 + $0x58] sm:$0xff] %vm548, %v3505
    %3510 = vst.msk [vmem:[#allocation4 + $0x60] sm:$0xff] %vm548, %v3466
    %3511 = vst.msk [vmem:[#allocation4 + $0x68] sm:$0xff] %vm548, %v3472
    %3514 = vrot.lane.b32.xlu0 %v3466, 64
    %v3515 = vpop.permute.xlu0 %3514
    %3516 = vrot.lane.b32.xlu0 %v3472, 64
    %v3517 = vpop.permute.xlu0 %3516
    %3520 = vst.msk [vmem:[#allocation4 + $0x70] sm:$0xff] %vm548, %v3515
    %3521 = vst.msk [vmem:[#allocation4 + $0x78] sm:$0xff] %vm548, %v3517
    %v3522 = vld [vmem:[#allocation4] sm:$0xff]
    %v3523 = vld [vmem:[#allocation4 + $0x8] sm:$0xff]
    %v3524 = vld [vmem:[#allocation4 + $0x10] sm:$0xff]
    %v3525 = vld [vmem:[#allocation4 + $0x18] sm:$0xff]
    %v3526 = vld [vmem:[#allocation4 + $0x20] sm:$0xff]
    %v3527 = vld [vmem:[#allocation4 + $0x28] sm:$0xff]
    %v3528 = vld [vmem:[#allocation4 + $0x30] sm:$0xff]
    %v3529 = vld [vmem:[#allocation4 + $0x38] sm:$0xff]
    %v3530 = vld [vmem:[#allocation4 + $0x40] sm:$0xff]
    %v3531 = vld [vmem:[#allocation4 + $0x48] sm:$0xff]
    %v3532 = vld [vmem:[#allocation4 + $0x50] sm:$0xff]
    %v3533 = vld [vmem:[#allocation4 + $0x58] sm:$0xff]
    %v3534 = vld [vmem:[#allocation4 + $0x60] sm:$0xff]
    %v3535 = vld [vmem:[#allocation4 + $0x68] sm:$0xff]
    %v3536 = vld [vmem:[#allocation4 + $0x70] sm:$0xff]
    %v3537 = vld [vmem:[#allocation4 + $0x78] sm:$0xff]
    %v3538 = vld [vmem:[#allocation8] sm:$0xff]
    %v3539 = vld [vmem:[#allocation8 + $0x8] sm:$0xff]
    %v3540 = vld [vmem:[#allocation8 + $0x10] sm:$0xff]
    %v3541 = vld [vmem:[#allocation8 + $0x18] sm:$0xff]
    %v3542 = vld [vmem:[#allocation8 + $0x20] sm:$0xff]
    %v3543 = vld [vmem:[#allocation8 + $0x28] sm:$0xff]
    %v3544 = vld [vmem:[#allocation8 + $0x30] sm:$0xff]
    %v3545 = vld [vmem:[#allocation8 + $0x38] sm:$0xff]
    %v3546 = vld [vmem:[#allocation8 + $0x40] sm:$0xff]
    %v3547 = vld [vmem:[#allocation8 + $0x48] sm:$0xff]
    %v3548 = vld [vmem:[#allocation8 + $0x50] sm:$0xff]
    %v3549 = vld [vmem:[#allocation8 + $0x58] sm:$0xff]
    %v3550 = vld [vmem:[#allocation8 + $0x60] sm:$0xff]
    %v3551 = vld [vmem:[#allocation8 + $0x68] sm:$0xff]
    %v3552 = vld [vmem:[#allocation8 + $0x70] sm:$0xff]
    %v3553 = vld [vmem:[#allocation8 + $0x78] sm:$0xff]
    %v3554 = vmul.f32 %v3522, %v3538
    %v3555 = vmul.f32 %v3523, %v3539
    %v3556 = vmul.f32 %v3524, %v3540
    %v3557 = vmul.f32 %v3525, %v3541
    %v3558 = vmul.f32 %v3526, %v3542
    %v3559 = vmul.f32 %v3527, %v3543
    %v3560 = vmul.f32 %v3528, %v3544
    %v3561 = vmul.f32 %v3529, %v3545
    %v3562 = vmul.f32 %v3530, %v3546
    %v3563 = vmul.f32 %v3531, %v3547
    %v3564 = vmul.f32 %v3532, %v3548
    %v3565 = vmul.f32 %v3533, %v3549
    %v3566 = vmul.f32 %v3534, %v3550
    %v3567 = vmul.f32 %v3535, %v3551
    %v3568 = vmul.f32 %v3536, %v3552
    %v3569 = vmul.f32 %v3537, %v3553
    %v3571 = vsel %vm548, %v3554, 0
    %v3574 = vsel %vm548, %v3555, 0
    %v3577 = vsel %vm548, %v3556, 0
    %v3580 = vsel %vm548, %v3557, 0
    %v3583 = vsel %vm548, %v3558, 0
    %v3586 = vsel %vm548, %v3559, 0
    %v3589 = vsel %vm548, %v3560, 0
    %v3592 = vsel %vm548, %v3561, 0
    %v3595 = vsel %vm548, %v3562, 0
    %v3598 = vsel %vm548, %v3563, 0
    %v3601 = vsel %vm548, %v3564, 0
    %v3604 = vsel %vm548, %v3565, 0
    %v3607 = vsel %vm548, %v3566, 0
    %v3610 = vsel %vm548, %v3567, 0
    %v3613 = vsel %vm548, %v3568, 0
    %v3616 = vsel %vm548, %v3569, 0
    %3618 = vmatprep.subr.mxu0 0.0
    %3619 = vmatpush1.msra.mxu0 0.0
    %3620 = vmatprep.subr.mxu0 0.0
    %3621 = vmatpush1.msra.mxu0 0.0
    %3622 = vmatprep.subr.mxu0 0.0
    %3623 = vmatpush1.msra.mxu0 0.0
    %3624 = vmatprep.subr.mxu0 0.0
    %3625 = vmatpush1.msra.mxu0 0.0
    %3626 = vmatprep.subr.mxu0 0.0
    %3627 = vmatpush1.msra.mxu0 0.0
    %3628 = vmatprep.subr.mxu0 0.0
    %3629 = vmatpush1.msra.mxu0 0.0
    %3630 = vmatprep.subr.mxu0 0.0
    %3631 = vmatpush1.msra.mxu0 0.0
    %3632 = vmatprep.subr.mxu0 0.0
    %3633 = vmatpush1.msra.mxu0 0.0
    %3634 = vmatprep.subr.mxu0 0.0
    %3635 = vmatpush1.msra.mxu0 1.0
    %3636 = vmatprep.subr.mxu0 0.0
    %3637 = vmatpush1.msra.mxu0 1.0
    %3638 = vmatprep.subr.mxu0 0.0
    %3639 = vmatpush1.msra.mxu0 1.0
    %3640 = vmatprep.subr.mxu0 0.0
    %3641 = vmatpush1.msra.mxu0 1.0
    %3642 = vmatprep.subr.mxu0 0.0
    %3643 = vmatpush1.msra.mxu0 1.0
    %3644 = vmatprep.subr.mxu0 0.0
    %3645 = vmatpush1.msra.mxu0 1.0
    %3646 = vmatprep.subr.mxu0 0.0
    %3647 = vmatpush1.msra.mxu0 1.0
    %3648 = vmatprep.subr.mxu0 0.0
    %3649 = vmatpush1.msra.mxu0 1.0
    %3650 = vmatprep.subr.mxu0 0.0
    %3651 = vmatpush2.msra.mxu0 0.0
    %3652 = vmatprep.subr.mxu0 0.0
    %3653 = vmatpush2.msra.mxu0 0.0
    %3654 = vmatprep.subr.mxu0 0.0
    %3655 = vmatpush2.msra.mxu0 0.0
    %3656 = vmatprep.subr.mxu0 0.0
    %3657 = vmatpush2.msra.mxu0 0.0
    %3658 = vmatprep.subr.mxu0 0.0
    %3659 = vmatpush2.msra.mxu0 0.0
    %3660 = vmatprep.subr.mxu0 0.0
    %3661 = vmatpush2.msra.mxu0 0.0
    %3662 = vmatprep.subr.mxu0 0.0
    %3663 = vmatpush2.msra.mxu0 0.0
    %3664 = vmatprep.subr.mxu0 0.0
    %3665 = vmatpush2.msra.mxu0 0.0
    %3666 = vmatprep.subr.mxu0 0.0
    %3667 = vmatpush2.msra.mxu0 0.0
    %3668 = vmatprep.subr.mxu0 0.0
    %3669 = vmatpush2.msra.mxu0 0.0
    %3670 = vmatprep.subr.mxu0 0.0
    %3671 = vmatpush2.msra.mxu0 0.0
    %3672 = vmatprep.subr.mxu0 0.0
    %3673 = vmatpush2.msra.mxu0 0.0
    %3674 = vmatprep.subr.mxu0 0.0
    %3675 = vmatpush2.msra.mxu0 0.0
    %3676 = vmatprep.subr.mxu0 0.0
    %3677 = vmatpush2.msra.mxu0 0.0
    %3678 = vmatprep.subr.mxu0 0.0
    %3679 = vmatpush2.msra.mxu0 0.0
    %3680 = vmatprep.subr.mxu0 0.0
    %3681 = vmatpush2.msra.mxu0 0.0
    %3682 = vmatprep.mubr.f32.mxu0 0.0
    %3683 = vmatmul.mubr.f32.gmra.mxu0 %v3571
    %v3684 = vpop.f32.mrf.mxu0
    %v3685 = vadd.f32 0.0, %v3684
    %v3686 = vpop.f32.mrf.mxu0
    %3687 = vmatprep.mubr.f32.mxu0 0.0
    %3688 = vmatmul.mubr.f32.gmra.mxu0 %v3574
    %v3689 = vpop.f32.mrf.mxu0
    %v3690 = vadd.f32 0.0, %v3689
    %v3691 = vpop.f32.mrf.mxu0
    %3692 = vmatprep.mubr.f32.mxu0 0.0
    %3693 = vmatmul.mubr.f32.gmra.mxu0 %v3577
    %v3694 = vpop.f32.mrf.mxu0
    %v3695 = vadd.f32 0.0, %v3694
    %v3696 = vpop.f32.mrf.mxu0
    %3697 = vmatprep.mubr.f32.mxu0 0.0
    %3698 = vmatmul.mubr.f32.gmra.mxu0 %v3580
    %v3699 = vpop.f32.mrf.mxu0
    %v3700 = vadd.f32 0.0, %v3699
    %v3701 = vpop.f32.mrf.mxu0
    %3702 = vmatprep.mubr.f32.mxu0 0.0
    %3703 = vmatmul.mubr.f32.gmra.mxu0 %v3583
    %v3704 = vpop.f32.mrf.mxu0
    %v3705 = vadd.f32 0.0, %v3704
    %v3706 = vpop.f32.mrf.mxu0
    %3707 = vmatprep.mubr.f32.mxu0 0.0
    %3708 = vmatmul.mubr.f32.gmra.mxu0 %v3586
    %v3709 = vpop.f32.mrf.mxu0
    %v3710 = vadd.f32 0.0, %v3709
    %v3711 = vpop.f32.mrf.mxu0
    %3712 = vmatprep.mubr.f32.mxu0 0.0
    %3713 = vmatmul.mubr.f32.gmra.mxu0 %v3589
    %v3714 = vpop.f32.mrf.mxu0
    %v3715 = vadd.f32 0.0, %v3714
    %v3716 = vpop.f32.mrf.mxu0
    %3717 = vmatprep.mubr.f32.mxu0 0.0
    %3718 = vmatmul.mubr.f32.gmra.mxu0 %v3592
    %v3719 = vpop.f32.mrf.mxu0
    %v3720 = vadd.f32 0.0, %v3719
    %v3721 = vpop.f32.mrf.mxu0
    %3722 = vmatprep.mubr.f32.mxu0 0.0
    %3723 = vmatmul.mubr.f32.gmra.mxu0 %v3595
    %v3724 = vpop.f32.mrf.mxu0
    %v3725 = vadd.f32 0.0, %v3724
    %v3726 = vpop.f32.mrf.mxu0
    %3727 = vmatprep.mubr.f32.mxu0 0.0
    %3728 = vmatmul.mubr.f32.gmra.mxu0 %v3598
    %v3729 = vpop.f32.mrf.mxu0
    %v3730 = vadd.f32 0.0, %v3729
    %v3731 = vpop.f32.mrf.mxu0
    %3732 = vmatprep.mubr.f32.mxu0 0.0
    %3733 = vmatmul.mubr.f32.gmra.mxu0 %v3601
    %v3734 = vpop.f32.mrf.mxu0
    %v3735 = vadd.f32 0.0, %v3734
    %v3736 = vpop.f32.mrf.mxu0
    %3737 = vmatprep.mubr.f32.mxu0 0.0
    %3738 = vmatmul.mubr.f32.gmra.mxu0 %v3604
    %v3739 = vpop.f32.mrf.mxu0
    %v3740 = vadd.f32 0.0, %v3739
    %v3741 = vpop.f32.mrf.mxu0
    %3742 = vmatprep.mubr.f32.mxu0 0.0
    %3743 = vmatmul.mubr.f32.gmra.mxu0 %v3607
    %v3744 = vpop.f32.mrf.mxu0
    %v3745 = vadd.f32 0.0, %v3744
    %v3746 = vpop.f32.mrf.mxu0
    %3747 = vmatprep.mubr.f32.mxu0 0.0
    %3748 = vmatmul.mubr.f32.gmra.mxu0 %v3610
    %v3749 = vpop.f32.mrf.mxu0
    %v3750 = vadd.f32 0.0, %v3749
    %v3751 = vpop.f32.mrf.mxu0
    %3752 = vmatprep.mubr.f32.mxu0 0.0
    %3753 = vmatmul.mubr.f32.gmra.mxu0 %v3613
    %v3754 = vpop.f32.mrf.mxu0
    %v3755 = vadd.f32 0.0, %v3754
    %v3756 = vpop.f32.mrf.mxu0
    %3757 = vmatprep.mubr.f32.mxu0 0.0
    %3758 = vmatmul.mubr.f32.gmra.mxu0 %v3616
    %v3759 = vpop.f32.mrf.mxu0
    %v3760 = vadd.f32 0.0, %v3759
    %v3761 = vpop.f32.mrf.mxu0
    %3762 = vdwg.mxu0
    %3779 = vrot.lane.b32.xlu0 %v3538, 64
    %v3780 = vpop.permute.xlu0 %3779
    %3781 = vrot.lane.b32.xlu0 %v3539, 64
    %v3782 = vpop.permute.xlu0 %3781
    %3783 = vrot.lane.b32.xlu0 %v3540, 64
    %v3784 = vpop.permute.xlu0 %3783
    %3785 = vrot.lane.b32.xlu0 %v3541, 64
    %v3786 = vpop.permute.xlu0 %3785
    %3787 = vrot.lane.b32.xlu0 %v3542, 64
    %v3788 = vpop.permute.xlu0 %3787
    %3789 = vrot.lane.b32.xlu0 %v3543, 64
    %v3790 = vpop.permute.xlu0 %3789
    %3791 = vrot.lane.b32.xlu0 %v3544, 64
    %v3792 = vpop.permute.xlu0 %3791
    %3793 = vrot.lane.b32.xlu0 %v3545, 64
    %v3794 = vpop.permute.xlu0 %3793
    %3795 = vrot.lane.b32.xlu0 %v3546, 64
    %v3796 = vpop.permute.xlu0 %3795
    %3797 = vrot.lane.b32.xlu0 %v3547, 64
    %v3798 = vpop.permute.xlu0 %3797
    %3799 = vrot.lane.b32.xlu0 %v3548, 64
    %v3800 = vpop.permute.xlu0 %3799
    %3801 = vrot.lane.b32.xlu0 %v3549, 64
    %v3802 = vpop.permute.xlu0 %3801
    %3803 = vrot.lane.b32.xlu0 %v3550, 64
    %v3804 = vpop.permute.xlu0 %3803
    %3805 = vrot.lane.b32.xlu0 %v3551, 64
    %v3806 = vpop.permute.xlu0 %3805
    %3807 = vrot.lane.b32.xlu0 %v3552, 64
    %v3808 = vpop.permute.xlu0 %3807
    %3809 = vrot.lane.b32.xlu0 %v3553, 64
    %v3810 = vpop.permute.xlu0 %3809
    %v3827 = vmul.f32 %v3522, %v3780
    %v3828 = vmul.f32 %v3523, %v3782
    %v3829 = vmul.f32 %v3524, %v3784
    %v3830 = vmul.f32 %v3525, %v3786
    %v3831 = vmul.f32 %v3526, %v3788
    %v3832 = vmul.f32 %v3527, %v3790
    %v3833 = vmul.f32 %v3528, %v3792
    %v3834 = vmul.f32 %v3529, %v3794
    %v3835 = vmul.f32 %v3530, %v3796
    %v3836 = vmul.f32 %v3531, %v3798
    %v3837 = vmul.f32 %v3532, %v3800
    %v3838 = vmul.f32 %v3533, %v3802
    %v3839 = vmul.f32 %v3534, %v3804
    %v3840 = vmul.f32 %v3535, %v3806
    %v3841 = vmul.f32 %v3536, %v3808
    %v3842 = vmul.f32 %v3537, %v3810
    %v3844 = vsel %vm548, 1.0, 0
    %v3847 = vsel %vm548, %v3827, 0
    %v3850 = vsel %vm548, %v3828, 0
    %v3853 = vsel %vm548, %v3829, 0
    %v3856 = vsel %vm548, %v3830, 0
    %v3859 = vsel %vm548, %v3831, 0
    %v3862 = vsel %vm548, %v3832, 0
    %v3865 = vsel %vm548, %v3833, 0
    %v3868 = vsel %vm548, %v3834, 0
    %v3871 = vsel %vm548, %v3835, 0
    %v3874 = vsel %vm548, %v3836, 0
    %v3877 = vsel %vm548, %v3837, 0
    %v3880 = vsel %vm548, %v3838, 0
    %v3883 = vsel %vm548, %v3839, 0
    %v3886 = vsel %vm548, %v3840, 0
    %v3889 = vsel %vm548, %v3841, 0
    %v3892 = vsel %vm548, %v3842, 0
    %3894 = vmatprep.subr.mxu0 0.0
    %3895 = vmatpush1.xpose.msra.mxu0 %v3892
    %3896 = vmatprep.subr.mxu0 0.0
    %3897 = vmatpush1.xpose.msra.mxu0 %v3889
    %3898 = vmatprep.subr.mxu0 0.0
    %3899 = vmatpush1.xpose.msra.mxu0 %v3886
    %3900 = vmatprep.subr.mxu0 0.0
    %3901 = vmatpush1.xpose.msra.mxu0 %v3883
    %3902 = vmatprep.subr.mxu0 0.0
    %3903 = vmatpush1.xpose.msra.mxu0 %v3880
    %3904 = vmatprep.subr.mxu0 0.0
    %3905 = vmatpush1.xpose.msra.mxu0 %v3877
    %3906 = vmatprep.subr.mxu0 0.0
    %3907 = vmatpush1.xpose.msra.mxu0 %v3874
    %3908 = vmatprep.subr.mxu0 0.0
    %3909 = vmatpush1.xpose.msra.mxu0 %v3871
    %3910 = vmatprep.subr.mxu0 0.0
    %3911 = vmatpush1.xpose.msra.mxu0 %v3868
    %3912 = vmatprep.subr.mxu0 0.0
    %3913 = vmatpush1.xpose.msra.mxu0 %v3865
    %3914 = vmatprep.subr.mxu0 0.0
    %3915 = vmatpush1.xpose.msra.mxu0 %v3862
    %3916 = vmatprep.subr.mxu0 0.0
    %3917 = vmatpush1.xpose.msra.mxu0 %v3859
    %3918 = vmatprep.subr.mxu0 0.0
    %3919 = vmatpush1.xpose.msra.mxu0 %v3856
    %3920 = vmatprep.subr.mxu0 0.0
    %3921 = vmatpush1.xpose.msra.mxu0 %v3853
    %3922 = vmatprep.subr.mxu0 0.0
    %3923 = vmatpush1.xpose.msra.mxu0 %v3850
    %3924 = vmatprep.subr.mxu0 0.0
    %3925 = vmatpush1.xpose.msra.mxu0 %v3847
    %3926 = vmatprep.subr.mxu0 0.0
    %3927 = vmatpush2.xpose.msra.mxu0 0.0
    %3928 = vmatprep.subr.mxu0 0.0
    %3929 = vmatpush2.xpose.msra.mxu0 0.0
    %3930 = vmatprep.subr.mxu0 0.0
    %3931 = vmatpush2.xpose.msra.mxu0 0.0
    %3932 = vmatprep.subr.mxu0 0.0
    %3933 = vmatpush2.xpose.msra.mxu0 0.0
    %3934 = vmatprep.subr.mxu0 0.0
    %3935 = vmatpush2.xpose.msra.mxu0 0.0
    %3936 = vmatprep.subr.mxu0 0.0
    %3937 = vmatpush2.xpose.msra.mxu0 0.0
    %3938 = vmatprep.subr.mxu0 0.0
    %3939 = vmatpush2.xpose.msra.mxu0 0.0
    %3940 = vmatprep.subr.mxu0 0.0
    %3941 = vmatpush2.xpose.msra.mxu0 0.0
    %3942 = vmatprep.subr.mxu0 0.0
    %3943 = vmatpush2.xpose.msra.mxu0 0.0
    %3944 = vmatprep.subr.mxu0 0.0
    %3945 = vmatpush2.xpose.msra.mxu0 0.0
    %3946 = vmatprep.subr.mxu0 0.0
    %3947 = vmatpush2.xpose.msra.mxu0 0.0
    %3948 = vmatprep.subr.mxu0 0.0
    %3949 = vmatpush2.xpose.msra.mxu0 0.0
    %3950 = vmatprep.subr.mxu0 0.0
    %3951 = vmatpush2.xpose.msra.mxu0 0.0
    %3952 = vmatprep.subr.mxu0 0.0
    %3953 = vmatpush2.xpose.msra.mxu0 0.0
    %3954 = vmatprep.subr.mxu0 0.0
    %3955 = vmatpush2.xpose.msra.mxu0 0.0
    %3956 = vmatprep.subr.mxu0 0.0
    %3957 = vmatpush2.xpose.msra.mxu0 0.0
    %3958 = vmatprep.mubr.f32.mxu0 0.0
    %3959 = vmatmul.mubr.f32.gmra.mxu0 %v3844
    %v3960 = vpop.f32.mrf.mxu0
    %v3961 = vadd.f32 0.0, %v3960
    %v3962 = vpop.f32.mrf.mxu0
    %3963 = vdwg.mxu0
    %3965 = vset.pattern.permute.xlu0 0
    %3966 = vperm.xlu0 %3965, %v3685
    %v3967 = vpop.permute.xlu0 %3966
    %3970 = vset.pattern.permute.xlu0 0
    %3971 = vperm.xlu0 %3970, %v3690
    %v3972 = vpop.permute.xlu0 %3971
    %3975 = vset.pattern.permute.xlu0 0
    %3976 = vperm.xlu0 %3975, %v3695
    %v3977 = vpop.permute.xlu0 %3976
    %3980 = vset.pattern.permute.xlu0 0
    %3981 = vperm.xlu0 %3980, %v3700
    %v3982 = vpop.permute.xlu0 %3981
    %3985 = vset.pattern.permute.xlu0 0
    %3986 = vperm.xlu0 %3985, %v3705
    %v3987 = vpop.permute.xlu0 %3986
    %3990 = vset.pattern.permute.xlu0 0
    %3991 = vperm.xlu0 %3990, %v3710
    %v3992 = vpop.permute.xlu0 %3991
    %3995 = vset.pattern.permute.xlu0 0
    %3996 = vperm.xlu0 %3995, %v3715
    %v3997 = vpop.permute.xlu0 %3996
    %4000 = vset.pattern.permute.xlu0 0
    %4001 = vperm.xlu0 %4000, %v3720
    %v4002 = vpop.permute.xlu0 %4001
    %4005 = vset.pattern.permute.xlu0 0
    %4006 = vperm.xlu0 %4005, %v3725
    %v4007 = vpop.permute.xlu0 %4006
    %4010 = vset.pattern.permute.xlu0 0
    %4011 = vperm.xlu0 %4010, %v3730
    %v4012 = vpop.permute.xlu0 %4011
    %4015 = vset.pattern.permute.xlu0 0
    %4016 = vperm.xlu0 %4015, %v3735
    %v4017 = vpop.permute.xlu0 %4016
    %4020 = vset.pattern.permute.xlu0 0
    %4021 = vperm.xlu0 %4020, %v3740
    %v4022 = vpop.permute.xlu0 %4021
    %4025 = vset.pattern.permute.xlu0 0
    %4026 = vperm.xlu0 %4025, %v3745
    %v4027 = vpop.permute.xlu0 %4026
    %4030 = vset.pattern.permute.xlu0 0
    %4031 = vperm.xlu0 %4030, %v3750
    %v4032 = vpop.permute.xlu0 %4031
    %4035 = vset.pattern.permute.xlu0 0
    %4036 = vperm.xlu0 %4035, %v3755
    %v4037 = vpop.permute.xlu0 %4036
    %4040 = vset.pattern.permute.xlu0 0
    %4041 = vperm.xlu0 %4040, %v3760
    %v4042 = vpop.permute.xlu0 %4041
    %v4044 = vlaneseq
    %v4045 = vshrl.u32 %v4044, 7
    %v4046 = vsub.s32 0, %v4045
    %v4047 = vrot.slane %v3961, %v4046
    %v4048 = vadd.f32 %v3967, %v4047
    %v4049 = vadd.f32 %v3972, %v4047
    %v4050 = vadd.f32 %v3977, %v4047
    %v4051 = vadd.f32 %v3982, %v4047
    %v4052 = vadd.f32 %v3987, %v4047
    %v4053 = vadd.f32 %v3992, %v4047
    %v4054 = vadd.f32 %v3997, %v4047
    %v4055 = vadd.f32 %v4002, %v4047
    %v4056 = vadd.f32 %v4007, %v4047
    %v4057 = vadd.f32 %v4012, %v4047
    %v4058 = vadd.f32 %v4017, %v4047
    %v4059 = vadd.f32 %v4022, %v4047
    %v4060 = vadd.f32 %v4027, %v4047
    %v4061 = vadd.f32 %v4032, %v4047
    %v4062 = vadd.f32 %v4037, %v4047
    %v4063 = vadd.f32 %v4042, %v4047
    %v4064 = vld [vmem:[%s4] sm:$0xff]
    %v4065 = vld [vmem:[%s4 + $0x8] sm:$0xff]
    %v4066 = vld [vmem:[%s4 + $0x10] sm:$0xff]
    %v4067 = vld [vmem:[%s4 + $0x18] sm:$0xff]
    %v4068 = vld [vmem:[%s4 + $0x20] sm:$0xff]
    %v4069 = vld [vmem:[%s4 + $0x28] sm:$0xff]
    %v4070 = vld [vmem:[%s4 + $0x30] sm:$0xff]
    %v4071 = vld [vmem:[%s4 + $0x38] sm:$0xff]
    %v4072 = vld [vmem:[%s4 + $0x40] sm:$0xff]
    %v4073 = vld [vmem:[%s4 + $0x48] sm:$0xff]
    %v4074 = vld [vmem:[%s4 + $0x50] sm:$0xff]
    %v4075 = vld [vmem:[%s4 + $0x58] sm:$0xff]
    %v4076 = vld [vmem:[%s4 + $0x60] sm:$0xff]
    %v4077 = vld [vmem:[%s4 + $0x68] sm:$0xff]
    %v4078 = vld [vmem:[%s4 + $0x70] sm:$0xff]
    %v4079 = vld [vmem:[%s4 + $0x78] sm:$0xff]
    %vm4080 = vcmp.gt.f32.partialorder %v4048, 0.0
    %vm4081 = vcmp.gt.f32.partialorder %v4049, 0.0
    %vm4082 = vcmp.gt.f32.partialorder %v4050, 0.0
    %vm4083 = vcmp.gt.f32.partialorder %v4051, 0.0
    %vm4084 = vcmp.gt.f32.partialorder %v4052, 0.0
    %vm4085 = vcmp.gt.f32.partialorder %v4053, 0.0
    %vm4086 = vcmp.gt.f32.partialorder %v4054, 0.0
    %vm4087 = vcmp.gt.f32.partialorder %v4055, 0.0
    %vm4088 = vcmp.gt.f32.partialorder %v4056, 0.0
    %vm4089 = vcmp.gt.f32.partialorder %v4057, 0.0
    %vm4090 = vcmp.gt.f32.partialorder %v4058, 0.0
    %vm4091 = vcmp.gt.f32.partialorder %v4059, 0.0
    %vm4092 = vcmp.gt.f32.partialorder %v4060, 0.0
    %vm4093 = vcmp.gt.f32.partialorder %v4061, 0.0
    %vm4094 = vcmp.gt.f32.partialorder %v4062, 0.0
    %vm4095 = vcmp.gt.f32.partialorder %v4063, 0.0
    %v4096 = vmul.f32 %v4048, 0.2
    %v4097 = vmul.f32 %v4049, 0.2
    %v4098 = vmul.f32 %v4050, 0.2
    %v4099 = vmul.f32 %v4051, 0.2
    %v4100 = vmul.f32 %v4052, 0.2
    %v4101 = vmul.f32 %v4053, 0.2
    %v4102 = vmul.f32 %v4054, 0.2
    %v4103 = vmul.f32 %v4055, 0.2
    %v4104 = vmul.f32 %v4056, 0.2
    %v4105 = vmul.f32 %v4057, 0.2
    %v4106 = vmul.f32 %v4058, 0.2
    %v4107 = vmul.f32 %v4059, 0.2
    %v4108 = vmul.f32 %v4060, 0.2
    %v4109 = vmul.f32 %v4061, 0.2
    %v4110 = vmul.f32 %v4062, 0.2
    %v4111 = vmul.f32 %v4063, 0.2
    %v4112 = vsel %vm4080, %v4048, %v4096
    %v4113 = vsel %vm4081, %v4049, %v4097
    %v4114 = vsel %vm4082, %v4050, %v4098
    %v4115 = vsel %vm4083, %v4051, %v4099
    %v4116 = vsel %vm4084, %v4052, %v4100
    %v4117 = vsel %vm4085, %v4053, %v4101
    %v4118 = vsel %vm4086, %v4054, %v4102
    %v4119 = vsel %vm4087, %v4055, %v4103
    %v4120 = vsel %vm4088, %v4056, %v4104
    %v4121 = vsel %vm4089, %v4057, %v4105
    %v4122 = vsel %vm4090, %v4058, %v4106
    %v4123 = vsel %vm4091, %v4059, %v4107
    %v4124 = vsel %vm4092, %v4060, %v4108
    %v4125 = vsel %vm4093, %v4061, %v4109
    %v4126 = vsel %vm4094, %v4062, %v4110
    %v4127 = vsel %vm4095, %v4063, %v4111
    %v4128 = vadd.f32 %v4112, %v4064
    %v4129 = vadd.f32 %v4113, %v4065
    %v4130 = vadd.f32 %v4114, %v4066
    %v4131 = vadd.f32 %v4115, %v4067
    %v4132 = vadd.f32 %v4116, %v4068
    %v4133 = vadd.f32 %v4117, %v4069
    %v4134 = vadd.f32 %v4118, %v4070
    %v4135 = vadd.f32 %v4119, %v4071
    %v4136 = vadd.f32 %v4120, %v4072
    %v4137 = vadd.f32 %v4121, %v4073
    %v4138 = vadd.f32 %v4122, %v4074
    %v4139 = vadd.f32 %v4123, %v4075
    %v4140 = vadd.f32 %v4124, %v4076
    %v4141 = vadd.f32 %v4125, %v4077
    %v4142 = vadd.f32 %v4126, %v4078
    %v4143 = vadd.f32 %v4127, %v4079
    %4144 = vmax.xlane.f32.xlu0 %v4128
    %v4145 = vpop.xlane.xlu0 %4144
    %4146 = vmax.xlane.f32.xlu0 %v4129
    %v4147 = vpop.xlane.xlu0 %4146
    %4148 = vmax.xlane.f32.xlu0 %v4130
    %v4149 = vpop.xlane.xlu0 %4148
    %4150 = vmax.xlane.f32.xlu0 %v4131
    %v4151 = vpop.xlane.xlu0 %4150
    %4152 = vmax.xlane.f32.xlu0 %v4132
    %v4153 = vpop.xlane.xlu0 %4152
    %4154 = vmax.xlane.f32.xlu0 %v4133
    %v4155 = vpop.xlane.xlu0 %4154
    %4156 = vmax.xlane.f32.xlu0 %v4134
    %v4157 = vpop.xlane.xlu0 %4156
    %4158 = vmax.xlane.f32.xlu0 %v4135
    %v4159 = vpop.xlane.xlu0 %4158
    %4160 = vmax.xlane.f32.xlu0 %v4136
    %v4161 = vpop.xlane.xlu0 %4160
    %4162 = vmax.xlane.f32.xlu0 %v4137
    %v4163 = vpop.xlane.xlu0 %4162
    %4164 = vmax.xlane.f32.xlu0 %v4138
    %v4165 = vpop.xlane.xlu0 %4164
    %4166 = vmax.xlane.f32.xlu0 %v4139
    %v4167 = vpop.xlane.xlu0 %4166
    %4168 = vmax.xlane.f32.xlu0 %v4140
    %v4169 = vpop.xlane.xlu0 %4168
    %4170 = vmax.xlane.f32.xlu0 %v4141
    %v4171 = vpop.xlane.xlu0 %4170
    %4172 = vmax.xlane.f32.xlu0 %v4142
    %v4173 = vpop.xlane.xlu0 %4172
    %4174 = vmax.xlane.f32.xlu0 %v4143
    %v4175 = vpop.xlane.xlu0 %4174
    %v4176 = vsub.f32 %v4128, %v4145
    %v4177 = vsub.f32 %v4129, %v4147
    %v4178 = vsub.f32 %v4130, %v4149
    %v4179 = vsub.f32 %v4131, %v4151
    %v4180 = vsub.f32 %v4132, %v4153
    %v4181 = vsub.f32 %v4133, %v4155
    %v4182 = vsub.f32 %v4134, %v4157
    %v4183 = vsub.f32 %v4135, %v4159
    %v4184 = vsub.f32 %v4136, %v4161
    %v4185 = vsub.f32 %v4137, %v4163
    %v4186 = vsub.f32 %v4138, %v4165
    %v4187 = vsub.f32 %v4139, %v4167
    %v4188 = vsub.f32 %v4140, %v4169
    %v4189 = vsub.f32 %v4141, %v4171
    %v4190 = vsub.f32 %v4142, %v4173
    %v4191 = vsub.f32 %v4143, %v4175
    %v4192 = vmul.f32 %v4176, 1.442695
    %v4193 = vpow.pop %v4192
    %v4194 = vmul.f32 %v4177, 1.442695
    %v4195 = vpow.pop %v4194
    %v4196 = vmul.f32 %v4178, 1.442695
    %v4197 = vpow.pop %v4196
    %v4198 = vmul.f32 %v4179, 1.442695
    %v4199 = vpow.pop %v4198
    %v4200 = vmul.f32 %v4180, 1.442695
    %v4201 = vpow.pop %v4200
    %v4202 = vmul.f32 %v4181, 1.442695
    %v4203 = vpow.pop %v4202
    %v4204 = vmul.f32 %v4182, 1.442695
    %v4205 = vpow.pop %v4204
    %v4206 = vmul.f32 %v4183, 1.442695
    %v4207 = vpow.pop %v4206
    %v4208 = vmul.f32 %v4184, 1.442695
    %v4209 = vpow.pop %v4208
    %v4210 = vmul.f32 %v4185, 1.442695
    %v4211 = vpow.pop %v4210
    %v4212 = vmul.f32 %v4186, 1.442695
    %v4213 = vpow.pop %v4212
    %v4214 = vmul.f32 %v4187, 1.442695
    %v4215 = vpow.pop %v4214
    %v4216 = vmul.f32 %v4188, 1.442695
    %v4217 = vpow.pop %v4216
    %v4218 = vmul.f32 %v4189, 1.442695
    %v4219 = vpow.pop %v4218
    %v4220 = vmul.f32 %v4190, 1.442695
    %v4221 = vpow.pop %v4220
    %v4222 = vmul.f32 %v4191, 1.442695
    %v4223 = vpow.pop %v4222
    %4224 = vadd.xlane.f32.xlu0 %v4193
    %v4225 = vpop.xlane.xlu0 %4224
    %4226 = vadd.xlane.f32.xlu0 %v4195
    %v4227 = vpop.xlane.xlu0 %4226
    %4228 = vadd.xlane.f32.xlu0 %v4197
    %v4229 = vpop.xlane.xlu0 %4228
    %4230 = vadd.xlane.f32.xlu0 %v4199
    %v4231 = vpop.xlane.xlu0 %4230
    %4232 = vadd.xlane.f32.xlu0 %v4201
    %v4233 = vpop.xlane.xlu0 %4232
    %4234 = vadd.xlane.f32.xlu0 %v4203
    %v4235 = vpop.xlane.xlu0 %4234
    %4236 = vadd.xlane.f32.xlu0 %v4205
    %v4237 = vpop.xlane.xlu0 %4236
    %4238 = vadd.xlane.f32.xlu0 %v4207
    %v4239 = vpop.xlane.xlu0 %4238
    %4240 = vadd.xlane.f32.xlu0 %v4209
    %v4241 = vpop.xlane.xlu0 %4240
    %4242 = vadd.xlane.f32.xlu0 %v4211
    %v4243 = vpop.xlane.xlu0 %4242
    %4244 = vadd.xlane.f32.xlu0 %v4213
    %v4245 = vpop.xlane.xlu0 %4244
    %4246 = vadd.xlane.f32.xlu0 %v4215
    %v4247 = vpop.xlane.xlu0 %4246
    %4248 = vadd.xlane.f32.xlu0 %v4217
    %v4249 = vpop.xlane.xlu0 %4248
    %4250 = vadd.xlane.f32.xlu0 %v4219
    %v4251 = vpop.xlane.xlu0 %4250
    %4252 = vadd.xlane.f32.xlu0 %v4221
    %v4253 = vpop.xlane.xlu0 %4252
    %4254 = vadd.xlane.f32.xlu0 %v4223
    %v4255 = vpop.xlane.xlu0 %4254
    %v4256 = vrcp.pop %v4225
    %v4257 = vrcp.pop %v4227
    %v4258 = vrcp.pop %v4229
    %v4259 = vrcp.pop %v4231
    %v4260 = vrcp.pop %v4233
    %v4261 = vrcp.pop %v4235
    %v4262 = vrcp.pop %v4237
    %v4263 = vrcp.pop %v4239
    %v4264 = vrcp.pop %v4241
    %v4265 = vrcp.pop %v4243
    %v4266 = vrcp.pop %v4245
    %v4267 = vrcp.pop %v4247
    %v4268 = vrcp.pop %v4249
    %v4269 = vrcp.pop %v4251
    %v4270 = vrcp.pop %v4253
    %v4271 = vrcp.pop %v4255
    %v4272 = vmul.f32 %v4193, %v4256
    %v4273 = vmul.f32 %v4195, %v4257
    %v4274 = vmul.f32 %v4197, %v4258
    %v4275 = vmul.f32 %v4199, %v4259
    %v4276 = vmul.f32 %v4201, %v4260
    %v4277 = vmul.f32 %v4203, %v4261
    %v4278 = vmul.f32 %v4205, %v4262
    %v4279 = vmul.f32 %v4207, %v4263
    %v4280 = vmul.f32 %v4209, %v4264
    %v4281 = vmul.f32 %v4211, %v4265
    %v4282 = vmul.f32 %v4213, %v4266
    %v4283 = vmul.f32 %v4215, %v4267
    %v4284 = vmul.f32 %v4217, %v4268
    %v4285 = vmul.f32 %v4219, %v4269
    %v4286 = vmul.f32 %v4221, %v4270
    %v4287 = vmul.f32 %v4223, %v4271
    %4288 = vmatprep.subr.mxu0 0.0
    %4289 = vmatpush1.msra.mxu0 %v3537
    %4290 = vmatprep.subr.mxu0 0.0
    %4291 = vmatpush1.msra.mxu0 %v3536
    %4292 = vmatprep.subr.mxu0 0.0
    %4293 = vmatpush1.msra.mxu0 %v3535
    %4294 = vmatprep.subr.mxu0 0.0
    %4295 = vmatpush1.msra.mxu0 %v3534
    %4296 = vmatprep.subr.mxu0 0.0
    %4297 = vmatpush1.msra.mxu0 %v3533
    %4298 = vmatprep.subr.mxu0 0.0
    %4299 = vmatpush1.msra.mxu0 %v3532
    %4300 = vmatprep.subr.mxu0 0.0
    %4301 = vmatpush1.msra.mxu0 %v3531
    %4302 = vmatprep.subr.mxu0 0.0
    %4303 = vmatpush1.msra.mxu0 %v3530
    %4304 = vmatprep.subr.mxu0 0.0
    %4305 = vmatpush1.msra.mxu0 %v3529
    %4306 = vmatprep.subr.mxu0 0.0
    %4307 = vmatpush1.msra.mxu0 %v3528
    %4308 = vmatprep.subr.mxu0 0.0
    %4309 = vmatpush1.msra.mxu0 %v3527
    %4310 = vmatprep.subr.mxu0 0.0
    %4311 = vmatpush1.msra.mxu0 %v3526
    %4312 = vmatprep.subr.mxu0 0.0
    %4313 = vmatpush1.msra.mxu0 %v3525
    %4314 = vmatprep.subr.mxu0 0.0
    %4315 = vmatpush1.msra.mxu0 %v3524
    %4316 = vmatprep.subr.mxu0 0.0
    %4317 = vmatpush1.msra.mxu0 %v3523
    %4318 = vmatprep.subr.mxu0 0.0
    %4319 = vmatpush1.msra.mxu0 %v3522
    %4320 = vmatprep.subr.mxu0 0.0
    %4321 = vmatpush2.msra.mxu0 0.0
    %4322 = vmatprep.subr.mxu0 0.0
    %4323 = vmatpush2.msra.mxu0 0.0
    %4324 = vmatprep.subr.mxu0 0.0
    %4325 = vmatpush2.msra.mxu0 0.0
    %4326 = vmatprep.subr.mxu0 0.0
    %4327 = vmatpush2.msra.mxu0 0.0
    %4328 = vmatprep.subr.mxu0 0.0
    %4329 = vmatpush2.msra.mxu0 0.0
    %4330 = vmatprep.subr.mxu0 0.0
    %4331 = vmatpush2.msra.mxu0 0.0
    %4332 = vmatprep.subr.mxu0 0.0
    %4333 = vmatpush2.msra.mxu0 0.0
    %4334 = vmatprep.subr.mxu0 0.0
    %4335 = vmatpush2.msra.mxu0 0.0
    %4336 = vmatprep.subr.mxu0 0.0
    %4337 = vmatpush2.msra.mxu0 0.0
    %4338 = vmatprep.subr.mxu0 0.0
    %4339 = vmatpush2.msra.mxu0 0.0
    %4340 = vmatprep.subr.mxu0 0.0
    %4341 = vmatpush2.msra.mxu0 0.0
    %4342 = vmatprep.subr.mxu0 0.0
    %4343 = vmatpush2.msra.mxu0 0.0
    %4344 = vmatprep.subr.mxu0 0.0
    %4345 = vmatpush2.msra.mxu0 0.0
    %4346 = vmatprep.subr.mxu0 0.0
    %4347 = vmatpush2.msra.mxu0 0.0
    %4348 = vmatprep.subr.mxu0 0.0
    %4349 = vmatpush2.msra.mxu0 0.0
    %4350 = vmatprep.subr.mxu0 0.0
    %4351 = vmatpush2.msra.mxu0 0.0
    %4352 = vmatprep.mubr.f32.mxu0 0.0
    %4353 = vmatmul.mubr.f32.gmra.mxu0 %v4272
    %v4354 = vpop.f32.mrf.mxu0
    %v4355 = vadd.f32 0.0, %v4354
    %v4356 = vpop.f32.mrf.mxu0
    %4357 = vmatprep.mubr.f32.mxu0 0.0
    %4358 = vmatmul.mubr.f32.gmra.mxu0 %v4273
    %v4359 = vpop.f32.mrf.mxu0
    %v4360 = vadd.f32 0.0, %v4359
    %v4361 = vpop.f32.mrf.mxu0
    %4362 = vmatprep.mubr.f32.mxu0 0.0
    %4363 = vmatmul.mubr.f32.gmra.mxu0 %v4274
    %v4364 = vpop.f32.mrf.mxu0
    %v4365 = vadd.f32 0.0, %v4364
    %v4366 = vpop.f32.mrf.mxu0
    %4367 = vmatprep.mubr.f32.mxu0 0.0
    %4368 = vmatmul.mubr.f32.gmra.mxu0 %v4275
    %v4369 = vpop.f32.mrf.mxu0
    %v4370 = vadd.f32 0.0, %v4369
    %v4371 = vpop.f32.mrf.mxu0
    %4372 = vmatprep.mubr.f32.mxu0 0.0
    %4373 = vmatmul.mubr.f32.gmra.mxu0 %v4276
    %v4374 = vpop.f32.mrf.mxu0
    %v4375 = vadd.f32 0.0, %v4374
    %v4376 = vpop.f32.mrf.mxu0
    %4377 = vmatprep.mubr.f32.mxu0 0.0
    %4378 = vmatmul.mubr.f32.gmra.mxu0 %v4277
    %v4379 = vpop.f32.mrf.mxu0
    %v4380 = vadd.f32 0.0, %v4379
    %v4381 = vpop.f32.mrf.mxu0
    %4382 = vmatprep.mubr.f32.mxu0 0.0
    %4383 = vmatmul.mubr.f32.gmra.mxu0 %v4278
    %v4384 = vpop.f32.mrf.mxu0
    %v4385 = vadd.f32 0.0, %v4384
    %v4386 = vpop.f32.mrf.mxu0
    %4387 = vmatprep.mubr.f32.mxu0 0.0
    %4388 = vmatmul.mubr.f32.gmra.mxu0 %v4279
    %v4389 = vpop.f32.mrf.mxu0
    %v4390 = vadd.f32 0.0, %v4389
    %v4391 = vpop.f32.mrf.mxu0
    %4392 = vmatprep.mubr.f32.mxu0 0.0
    %4393 = vmatmul.mubr.f32.gmra.mxu0 %v4280
    %v4394 = vpop.f32.mrf.mxu0
    %v4395 = vadd.f32 0.0, %v4394
    %v4396 = vpop.f32.mrf.mxu0
    %4397 = vmatprep.mubr.f32.mxu0 0.0
    %4398 = vmatmul.mubr.f32.gmra.mxu0 %v4281
    %v4399 = vpop.f32.mrf.mxu0
    %v4400 = vadd.f32 0.0, %v4399
    %v4401 = vpop.f32.mrf.mxu0
    %4402 = vmatprep.mubr.f32.mxu0 0.0
    %4403 = vmatmul.mubr.f32.gmra.mxu0 %v4282
    %v4404 = vpop.f32.mrf.mxu0
    %v4405 = vadd.f32 0.0, %v4404
    %v4406 = vpop.f32.mrf.mxu0
    %4407 = vmatprep.mubr.f32.mxu0 0.0
    %4408 = vmatmul.mubr.f32.gmra.mxu0 %v4283
    %v4409 = vpop.f32.mrf.mxu0
    %v4410 = vadd.f32 0.0, %v4409
    %v4411 = vpop.f32.mrf.mxu0
    %4412 = vmatprep.mubr.f32.mxu0 0.0
    %4413 = vmatmul.mubr.f32.gmra.mxu0 %v4284
    %v4414 = vpop.f32.mrf.mxu0
    %v4415 = vadd.f32 0.0, %v4414
    %v4416 = vpop.f32.mrf.mxu0
    %4417 = vmatprep.mubr.f32.mxu0 0.0
    %4418 = vmatmul.mubr.f32.gmra.mxu0 %v4285
    %v4419 = vpop.f32.mrf.mxu0
    %v4420 = vadd.f32 0.0, %v4419
    %v4421 = vpop.f32.mrf.mxu0
    %4422 = vmatprep.mubr.f32.mxu0 0.0
    %4423 = vmatmul.mubr.f32.gmra.mxu0 %v4286
    %v4424 = vpop.f32.mrf.mxu0
    %v4425 = vadd.f32 0.0, %v4424
    %v4426 = vpop.f32.mrf.mxu0
    %4427 = vmatprep.mubr.f32.mxu0 0.0
    %4428 = vmatmul.mubr.f32.gmra.mxu0 %v4287
    %v4429 = vpop.f32.mrf.mxu0
    %v4430 = vadd.f32 0.0, %v4429
    %v4431 = vpop.f32.mrf.mxu0
    %4432 = vdwg.mxu0
    %v4433 = vld [vmem:[%s10] sm:$0xff]
    %v4434 = vld [vmem:[%s10 + $0x8] sm:$0xff]
    %v4435 = vld [vmem:[%s10 + $0x10] sm:$0xff]
    %v4436 = vld [vmem:[%s10 + $0x18] sm:$0xff]
    %v4437 = vld [vmem:[%s10 + $0x20] sm:$0xff]
    %v4438 = vld [vmem:[%s10 + $0x28] sm:$0xff]
    %v4439 = vld [vmem:[%s10 + $0x30] sm:$0xff]
    %v4440 = vld [vmem:[%s10 + $0x38] sm:$0xff]
    %v4441 = vld [vmem:[%s10 + $0x40] sm:$0xff]
    %v4442 = vld [vmem:[%s10 + $0x48] sm:$0xff]
    %v4443 = vld [vmem:[%s10 + $0x50] sm:$0xff]
    %v4444 = vld [vmem:[%s10 + $0x58] sm:$0xff]
    %v4445 = vld [vmem:[%s10 + $0x60] sm:$0xff]
    %v4446 = vld [vmem:[%s10 + $0x68] sm:$0xff]
    %v4447 = vld [vmem:[%s10 + $0x70] sm:$0xff]
    %v4448 = vld [vmem:[%s10 + $0x78] sm:$0xff]
    %v4450 = vsel %vm548, %v4365, 0
    %v4453 = vsel %vm548, %v4370, 0
    %4455 = vmatprep.subr.mxu0 0.0
    %4456 = vmatpush1.msra.mxu0 0.0
    %4457 = vmatprep.subr.mxu0 0.0
    %4458 = vmatpush1.msra.mxu0 0.0
    %4459 = vmatprep.subr.mxu0 0.0
    %4460 = vmatpush1.msra.mxu0 0.0
    %4461 = vmatprep.subr.mxu0 0.0
    %4462 = vmatpush1.msra.mxu0 0.0
    %4463 = vmatprep.subr.mxu0 0.0
    %4464 = vmatpush1.msra.mxu0 0.0
    %4465 = vmatprep.subr.mxu0 0.0
    %4466 = vmatpush1.msra.mxu0 0.0
    %4467 = vmatprep.subr.mxu0 0.0
    %4468 = vmatpush1.msra.mxu0 0.0
    %4469 = vmatprep.subr.mxu0 0.0
    %4470 = vmatpush1.msra.mxu0 0.0
    %4471 = vmatprep.subr.mxu0 0.0
    %4472 = vmatpush1.msra.mxu0 %v4448
    %4473 = vmatprep.subr.mxu0 0.0
    %4474 = vmatpush1.msra.mxu0 %v4447
    %4475 = vmatprep.subr.mxu0 0.0
    %4476 = vmatpush1.msra.mxu0 %v4446
    %4477 = vmatprep.subr.mxu0 0.0
    %4478 = vmatpush1.msra.mxu0 %v4445
    %4479 = vmatprep.subr.mxu0 0.0
    %4480 = vmatpush1.msra.mxu0 %v4444
    %4481 = vmatprep.subr.mxu0 0.0
    %4482 = vmatpush1.msra.mxu0 %v4443
    %4483 = vmatprep.subr.mxu0 0.0
    %4484 = vmatpush1.msra.mxu0 %v4442
    %4485 = vmatprep.subr.mxu0 0.0
    %4486 = vmatpush1.msra.mxu0 %v4441
    %4487 = vmatprep.subr.mxu0 0.0
    %4488 = vmatpush2.msra.mxu0 0.0
    %4489 = vmatprep.subr.mxu0 0.0
    %4490 = vmatpush2.msra.mxu0 0.0
    %4491 = vmatprep.subr.mxu0 0.0
    %4492 = vmatpush2.msra.mxu0 0.0
    %4493 = vmatprep.subr.mxu0 0.0
    %4494 = vmatpush2.msra.mxu0 0.0
    %4495 = vmatprep.subr.mxu0 0.0
    %4496 = vmatpush2.msra.mxu0 0.0
    %4497 = vmatprep.subr.mxu0 0.0
    %4498 = vmatpush2.msra.mxu0 0.0
    %4499 = vmatprep.subr.mxu0 0.0
    %4500 = vmatpush2.msra.mxu0 0.0
    %4501 = vmatprep.subr.mxu0 0.0
    %4502 = vmatpush2.msra.mxu0 0.0
    %4503 = vmatprep.subr.mxu0 0.0
    %4504 = vmatpush2.msra.mxu0 0.0
    %4505 = vmatprep.subr.mxu0 0.0
    %4506 = vmatpush2.msra.mxu0 0.0
    %4507 = vmatprep.subr.mxu0 0.0
    %4508 = vmatpush2.msra.mxu0 0.0
    %4509 = vmatprep.subr.mxu0 0.0
    %4510 = vmatpush2.msra.mxu0 0.0
    %4511 = vmatprep.subr.mxu0 0.0
    %4512 = vmatpush2.msra.mxu0 0.0
    %4513 = vmatprep.subr.mxu0 0.0
    %4514 = vmatpush2.msra.mxu0 0.0
    %4515 = vmatprep.subr.mxu0 0.0
    %4516 = vmatpush2.msra.mxu0 0.0
    %4517 = vmatprep.subr.mxu0 0.0
    %4518 = vmatpush2.msra.mxu0 0.0
    %4519 = vmatprep.mubr.f32.mxu0 0.0
    %4520 = vmatmul.mubr.f32.gmra.mxu0 %v4450
    %v4521 = vpop.f32.mrf.mxu0
    %v4522 = vadd.f32 0.0, %v4521
    %v4523 = vpop.f32.mrf.mxu0
    %4524 = vmatprep.mubr.f32.mxu0 0.0
    %4525 = vmatmul.mubr.f32.gmra.mxu0 %v4453
    %v4526 = vpop.f32.mrf.mxu0
    %v4527 = vadd.f32 0.0, %v4526
    %v4528 = vpop.f32.mrf.mxu0
    %4529 = vdwg.mxu0
    %v4531 = vsel %vm548, %v4355, 0
    %v4534 = vsel %vm548, %v4360, 0
    %4536 = vmatprep.subr.mxu0 0.0
    %4537 = vmatpush1.msra.mxu0 0.0
    %4538 = vmatprep.subr.mxu0 0.0
    %4539 = vmatpush1.msra.mxu0 0.0
    %4540 = vmatprep.subr.mxu0 0.0
    %4541 = vmatpush1.msra.mxu0 0.0
    %4542 = vmatprep.subr.mxu0 0.0
    %4543 = vmatpush1.msra.mxu0 0.0
    %4544 = vmatprep.subr.mxu0 0.0
    %4545 = vmatpush1.msra.mxu0 0.0
    %4546 = vmatprep.subr.mxu0 0.0
    %4547 = vmatpush1.msra.mxu0 0.0
    %4548 = vmatprep.subr.mxu0 0.0
    %4549 = vmatpush1.msra.mxu0 0.0
    %4550 = vmatprep.subr.mxu0 0.0
    %4551 = vmatpush1.msra.mxu0 0.0
    %4552 = vmatprep.subr.mxu0 0.0
    %4553 = vmatpush1.msra.mxu0 %v4440
    %4554 = vmatprep.subr.mxu0 0.0
    %4555 = vmatpush1.msra.mxu0 %v4439
    %4556 = vmatprep.subr.mxu0 0.0
    %4557 = vmatpush1.msra.mxu0 %v4438
    %4558 = vmatprep.subr.mxu0 0.0
    %4559 = vmatpush1.msra.mxu0 %v4437
    %4560 = vmatprep.subr.mxu0 0.0
    %4561 = vmatpush1.msra.mxu0 %v4436
    %4562 = vmatprep.subr.mxu0 0.0
    %4563 = vmatpush1.msra.mxu0 %v4435
    %4564 = vmatprep.subr.mxu0 0.0
    %4565 = vmatpush1.msra.mxu0 %v4434
    %4566 = vmatprep.subr.mxu0 0.0
    %4567 = vmatpush1.msra.mxu0 %v4433
    %4568 = vmatprep.subr.mxu0 0.0
    %4569 = vmatpush2.msra.mxu0 0.0
    %4570 = vmatprep.subr.mxu0 0.0
    %4571 = vmatpush2.msra.mxu0 0.0
    %4572 = vmatprep.subr.mxu0 0.0
    %4573 = vmatpush2.msra.mxu0 0.0
    %4574 = vmatprep.subr.mxu0 0.0
    %4575 = vmatpush2.msra.mxu0 0.0
    %4576 = vmatprep.subr.mxu0 0.0
    %4577 = vmatpush2.msra.mxu0 0.0
    %4578 = vmatprep.subr.mxu0 0.0
    %4579 = vmatpush2.msra.mxu0 0.0
    %4580 = vmatprep.subr.mxu0 0.0
    %4581 = vmatpush2.msra.mxu0 0.0
    %4582 = vmatprep.subr.mxu0 0.0
    %4583 = vmatpush2.msra.mxu0 0.0
    %4584 = vmatprep.subr.mxu0 0.0
    %4585 = vmatpush2.msra.mxu0 0.0
    %4586 = vmatprep.subr.mxu0 0.0
    %4587 = vmatpush2.msra.mxu0 0.0
    %4588 = vmatprep.subr.mxu0 0.0
    %4589 = vmatpush2.msra.mxu0 0.0
    %4590 = vmatprep.subr.mxu0 0.0
    %4591 = vmatpush2.msra.mxu0 0.0
    %4592 = vmatprep.subr.mxu0 0.0
    %4593 = vmatpush2.msra.mxu0 0.0
    %4594 = vmatprep.subr.mxu0 0.0
    %4595 = vmatpush2.msra.mxu0 0.0
    %4596 = vmatprep.subr.mxu0 0.0
    %4597 = vmatpush2.msra.mxu0 0.0
    %4598 = vmatprep.subr.mxu0 0.0
    %4599 = vmatpush2.msra.mxu0 0.0
    %4600 = vmatprep.mubr.f32.mxu0 0.0
    %4601 = vmatmul.mubr.f32.gmra.mxu0 %v4531
    %v4602 = vpop.f32.mrf.mxu0
    %v4603 = vadd.f32 %v4522, %v4602
    %v4604 = vpop.f32.mrf.mxu0
    %4605 = vmatprep.mubr.f32.mxu0 0.0
    %4606 = vmatmul.mubr.f32.gmra.mxu0 %v4534
    %v4607 = vpop.f32.mrf.mxu0
    %v4608 = vadd.f32 %v4527, %v4607
    %v4609 = vpop.f32.mrf.mxu0
    %4610 = vdwg.mxu0
    %v4611 = vld [vmem:[%s10 + $0x80] sm:$0xff]
    %v4612 = vld [vmem:[%s10 + $0x88] sm:$0xff]
    %v4613 = vld [vmem:[%s10 + $0x90] sm:$0xff]
    %v4614 = vld [vmem:[%s10 + $0x98] sm:$0xff]
    %v4615 = vld [vmem:[%s10 + $0xa0] sm:$0xff]
    %v4616 = vld [vmem:[%s10 + $0xa8] sm:$0xff]
    %v4617 = vld [vmem:[%s10 + $0xb0] sm:$0xff]
    %v4618 = vld [vmem:[%s10 + $0xb8] sm:$0xff]
    %v4620 = vsel %vm548, %v4375, 0
    %v4623 = vsel %vm548, %v4380, 0
    %4625 = vmatprep.subr.mxu0 0.0
    %4626 = vmatpush1.msra.mxu0 0.0
    %4627 = vmatprep.subr.mxu0 0.0
    %4628 = vmatpush1.msra.mxu0 0.0
    %4629 = vmatprep.subr.mxu0 0.0
    %4630 = vmatpush1.msra.mxu0 0.0
    %4631 = vmatprep.subr.mxu0 0.0
    %4632 = vmatpush1.msra.mxu0 0.0
    %4633 = vmatprep.subr.mxu0 0.0
    %4634 = vmatpush1.msra.mxu0 0.0
    %4635 = vmatprep.subr.mxu0 0.0
    %4636 = vmatpush1.msra.mxu0 0.0
    %4637 = vmatprep.subr.mxu0 0.0
    %4638 = vmatpush1.msra.mxu0 0.0
    %4639 = vmatprep.subr.mxu0 0.0
    %4640 = vmatpush1.msra.mxu0 0.0
    %4641 = vmatprep.subr.mxu0 0.0
    %4642 = vmatpush1.msra.mxu0 %v4618
    %4643 = vmatprep.subr.mxu0 0.0
    %4644 = vmatpush1.msra.mxu0 %v4617
    %4645 = vmatprep.subr.mxu0 0.0
    %4646 = vmatpush1.msra.mxu0 %v4616
    %4647 = vmatprep.subr.mxu0 0.0
    %4648 = vmatpush1.msra.mxu0 %v4615
    %4649 = vmatprep.subr.mxu0 0.0
    %4650 = vmatpush1.msra.mxu0 %v4614
    %4651 = vmatprep.subr.mxu0 0.0
    %4652 = vmatpush1.msra.mxu0 %v4613
    %4653 = vmatprep.subr.mxu0 0.0
    %4654 = vmatpush1.msra.mxu0 %v4612
    %4655 = vmatprep.subr.mxu0 0.0
    %4656 = vmatpush1.msra.mxu0 %v4611
    %4657 = vmatprep.subr.mxu0 0.0
    %4658 = vmatpush2.msra.mxu0 0.0
    %4659 = vmatprep.subr.mxu0 0.0
    %4660 = vmatpush2.msra.mxu0 0.0
    %4661 = vmatprep.subr.mxu0 0.0
    %4662 = vmatpush2.msra.mxu0 0.0
    %4663 = vmatprep.subr.mxu0 0.0
    %4664 = vmatpush2.msra.mxu0 0.0
    %4665 = vmatprep.subr.mxu0 0.0
    %4666 = vmatpush2.msra.mxu0 0.0
    %4667 = vmatprep.subr.mxu0 0.0
    %4668 = vmatpush2.msra.mxu0 0.0
    %4669 = vmatprep.subr.mxu0 0.0
    %4670 = vmatpush2.msra.mxu0 0.0
    %4671 = vmatprep.subr.mxu0 0.0
    %4672 = vmatpush2.msra.mxu0 0.0
    %4673 = vmatprep.subr.mxu0 0.0
    %4674 = vmatpush2.msra.mxu0 0.0
    %4675 = vmatprep.subr.mxu0 0.0
    %4676 = vmatpush2.msra.mxu0 0.0
    %4677 = vmatprep.subr.mxu0 0.0
    %4678 = vmatpush2.msra.mxu0 0.0
    %4679 = vmatprep.subr.mxu0 0.0
    %4680 = vmatpush2.msra.mxu0 0.0
    %4681 = vmatprep.subr.mxu0 0.0
    %4682 = vmatpush2.msra.mxu0 0.0
    %4683 = vmatprep.subr.mxu0 0.0
    %4684 = vmatpush2.msra.mxu0 0.0
    %4685 = vmatprep.subr.mxu0 0.0
    %4686 = vmatpush2.msra.mxu0 0.0
    %4687 = vmatprep.subr.mxu0 0.0
    %4688 = vmatpush2.msra.mxu0 0.0
    %4689 = vmatprep.mubr.f32.mxu0 0.0
    %4690 = vmatmul.mubr.f32.gmra.mxu0 %v4620
    %v4691 = vpop.f32.mrf.mxu0
    %v4692 = vadd.f32 0.0, %v4691
    %v4693 = vpop.f32.mrf.mxu0
    %4694 = vmatprep.mubr.f32.mxu0 0.0
    %4695 = vmatmul.mubr.f32.gmra.mxu0 %v4623
    %v4696 = vpop.f32.mrf.mxu0
    %v4697 = vadd.f32 0.0, %v4696
    %v4698 = vpop.f32.mrf.mxu0
    %4699 = vdwg.mxu0
    %v4700 = vadd.f32 %v4603, %v4692
    %v4701 = vadd.f32 %v4608, %v4697
    %v4702 = vld [vmem:[%s10 + $0xc0] sm:$0xff]
    %v4703 = vld [vmem:[%s10 + $0xc8] sm:$0xff]
    %v4704 = vld [vmem:[%s10 + $0xd0] sm:$0xff]
    %v4705 = vld [vmem:[%s10 + $0xd8] sm:$0xff]
    %v4706 = vld [vmem:[%s10 + $0xe0] sm:$0xff]
    %v4707 = vld [vmem:[%s10 + $0xe8] sm:$0xff]
    %v4708 = vld [vmem:[%s10 + $0xf0] sm:$0xff]
    %v4709 = vld [vmem:[%s10 + $0xf8] sm:$0xff]
    %v4711 = vsel %vm548, %v4385, 0
    %v4714 = vsel %vm548, %v4390, 0
    %4716 = vmatprep.subr.mxu0 0.0
    %4717 = vmatpush1.msra.mxu0 0.0
    %4718 = vmatprep.subr.mxu0 0.0
    %4719 = vmatpush1.msra.mxu0 0.0
    %4720 = vmatprep.subr.mxu0 0.0
    %4721 = vmatpush1.msra.mxu0 0.0
    %4722 = vmatprep.subr.mxu0 0.0
    %4723 = vmatpush1.msra.mxu0 0.0
    %4724 = vmatprep.subr.mxu0 0.0
    %4725 = vmatpush1.msra.mxu0 0.0
    %4726 = vmatprep.subr.mxu0 0.0
    %4727 = vmatpush1.msra.mxu0 0.0
    %4728 = vmatprep.subr.mxu0 0.0
    %4729 = vmatpush1.msra.mxu0 0.0
    %4730 = vmatprep.subr.mxu0 0.0
    %4731 = vmatpush1.msra.mxu0 0.0
    %4732 = vmatprep.subr.mxu0 0.0
    %4733 = vmatpush1.msra.mxu0 %v4709
    %4734 = vmatprep.subr.mxu0 0.0
    %4735 = vmatpush1.msra.mxu0 %v4708
    %4736 = vmatprep.subr.mxu0 0.0
    %4737 = vmatpush1.msra.mxu0 %v4707
    %4738 = vmatprep.subr.mxu0 0.0
    %4739 = vmatpush1.msra.mxu0 %v4706
    %4740 = vmatprep.subr.mxu0 0.0
    %4741 = vmatpush1.msra.mxu0 %v4705
    %4742 = vmatprep.subr.mxu0 0.0
    %4743 = vmatpush1.msra.mxu0 %v4704
    %4744 = vmatprep.subr.mxu0 0.0
    %4745 = vmatpush1.msra.mxu0 %v4703
    %4746 = vmatprep.subr.mxu0 0.0
    %4747 = vmatpush1.msra.mxu0 %v4702
    %4748 = vmatprep.subr.mxu0 0.0
    %4749 = vmatpush2.msra.mxu0 0.0
    %4750 = vmatprep.subr.mxu0 0.0
    %4751 = vmatpush2.msra.mxu0 0.0
    %4752 = vmatprep.subr.mxu0 0.0
    %4753 = vmatpush2.msra.mxu0 0.0
    %4754 = vmatprep.subr.mxu0 0.0
    %4755 = vmatpush2.msra.mxu0 0.0
    %4756 = vmatprep.subr.mxu0 0.0
    %4757 = vmatpush2.msra.mxu0 0.0
    %4758 = vmatprep.subr.mxu0 0.0
    %4759 = vmatpush2.msra.mxu0 0.0
    %4760 = vmatprep.subr.mxu0 0.0
    %4761 = vmatpush2.msra.mxu0 0.0
    %4762 = vmatprep.subr.mxu0 0.0
    %4763 = vmatpush2.msra.mxu0 0.0
    %4764 = vmatprep.subr.mxu0 0.0
    %4765 = vmatpush2.msra.mxu0 0.0
    %4766 = vmatprep.subr.mxu0 0.0
    %4767 = vmatpush2.msra.mxu0 0.0
    %4768 = vmatprep.subr.mxu0 0.0
    %4769 = vmatpush2.msra.mxu0 0.0
    %4770 = vmatprep.subr.mxu0 0.0
    %4771 = vmatpush2.msra.mxu0 0.0
    %4772 = vmatprep.subr.mxu0 0.0
    %4773 = vmatpush2.msra.mxu0 0.0
    %4774 = vmatprep.subr.mxu0 0.0
    %4775 = vmatpush2.msra.mxu0 0.0
    %4776 = vmatprep.subr.mxu0 0.0
    %4777 = vmatpush2.msra.mxu0 0.0
    %4778 = vmatprep.subr.mxu0 0.0
    %4779 = vmatpush2.msra.mxu0 0.0
    %4780 = vmatprep.mubr.f32.mxu0 0.0
    %4781 = vmatmul.mubr.f32.gmra.mxu0 %v4711
    %v4782 = vpop.f32.mrf.mxu0
    %v4783 = vadd.f32 0.0, %v4782
    %v4784 = vpop.f32.mrf.mxu0
    %4785 = vmatprep.mubr.f32.mxu0 0.0
    %4786 = vmatmul.mubr.f32.gmra.mxu0 %v4714
    %v4787 = vpop.f32.mrf.mxu0
    %v4788 = vadd.f32 0.0, %v4787
    %v4789 = vpop.f32.mrf.mxu0
    %4790 = vdwg.mxu0
    %v4791 = vadd.f32 %v4700, %v4783
    %v4792 = vadd.f32 %v4701, %v4788
    %v4793 = vld [vmem:[%s10 + $0x100] sm:$0xff]
    %v4794 = vld [vmem:[%s10 + $0x108] sm:$0xff]
    %v4795 = vld [vmem:[%s10 + $0x110] sm:$0xff]
    %v4796 = vld [vmem:[%s10 + $0x118] sm:$0xff]
    %v4797 = vld [vmem:[%s10 + $0x120] sm:$0xff]
    %v4798 = vld [vmem:[%s10 + $0x128] sm:$0xff]
    %v4799 = vld [vmem:[%s10 + $0x130] sm:$0xff]
    %v4800 = vld [vmem:[%s10 + $0x138] sm:$0xff]
    %v4802 = vsel %vm548, %v4395, 0
    %v4805 = vsel %vm548, %v4400, 0
    %4807 = vmatprep.subr.mxu0 0.0
    %4808 = vmatpush1.msra.mxu0 0.0
    %4809 = vmatprep.subr.mxu0 0.0
    %4810 = vmatpush1.msra.mxu0 0.0
    %4811 = vmatprep.subr.mxu0 0.0
    %4812 = vmatpush1.msra.mxu0 0.0
    %4813 = vmatprep.subr.mxu0 0.0
    %4814 = vmatpush1.msra.mxu0 0.0
    %4815 = vmatprep.subr.mxu0 0.0
    %4816 = vmatpush1.msra.mxu0 0.0
    %4817 = vmatprep.subr.mxu0 0.0
    %4818 = vmatpush1.msra.mxu0 0.0
    %4819 = vmatprep.subr.mxu0 0.0
    %4820 = vmatpush1.msra.mxu0 0.0
    %4821 = vmatprep.subr.mxu0 0.0
    %4822 = vmatpush1.msra.mxu0 0.0
    %4823 = vmatprep.subr.mxu0 0.0
    %4824 = vmatpush1.msra.mxu0 %v4800
    %4825 = vmatprep.subr.mxu0 0.0
    %4826 = vmatpush1.msra.mxu0 %v4799
    %4827 = vmatprep.subr.mxu0 0.0
    %4828 = vmatpush1.msra.mxu0 %v4798
    %4829 = vmatprep.subr.mxu0 0.0
    %4830 = vmatpush1.msra.mxu0 %v4797
    %4831 = vmatprep.subr.mxu0 0.0
    %4832 = vmatpush1.msra.mxu0 %v4796
    %4833 = vmatprep.subr.mxu0 0.0
    %4834 = vmatpush1.msra.mxu0 %v4795
    %4835 = vmatprep.subr.mxu0 0.0
    %4836 = vmatpush1.msra.mxu0 %v4794
    %4837 = vmatprep.subr.mxu0 0.0
    %4838 = vmatpush1.msra.mxu0 %v4793
    %4839 = vmatprep.subr.mxu0 0.0
    %4840 = vmatpush2.msra.mxu0 0.0
    %4841 = vmatprep.subr.mxu0 0.0
    %4842 = vmatpush2.msra.mxu0 0.0
    %4843 = vmatprep.subr.mxu0 0.0
    %4844 = vmatpush2.msra.mxu0 0.0
    %4845 = vmatprep.subr.mxu0 0.0
    %4846 = vmatpush2.msra.mxu0 0.0
    %4847 = vmatprep.subr.mxu0 0.0
    %4848 = vmatpush2.msra.mxu0 0.0
    %4849 = vmatprep.subr.mxu0 0.0
    %4850 = vmatpush2.msra.mxu0 0.0
    %4851 = vmatprep.subr.mxu0 0.0
    %4852 = vmatpush2.msra.mxu0 0.0
    %4853 = vmatprep.subr.mxu0 0.0
    %4854 = vmatpush2.msra.mxu0 0.0
    %4855 = vmatprep.subr.mxu0 0.0
    %4856 = vmatpush2.msra.mxu0 0.0
    %4857 = vmatprep.subr.mxu0 0.0
    %4858 = vmatpush2.msra.mxu0 0.0
    %4859 = vmatprep.subr.mxu0 0.0
    %4860 = vmatpush2.msra.mxu0 0.0
    %4861 = vmatprep.subr.mxu0 0.0
    %4862 = vmatpush2.msra.mxu0 0.0
    %4863 = vmatprep.subr.mxu0 0.0
    %4864 = vmatpush2.msra.mxu0 0.0
    %4865 = vmatprep.subr.mxu0 0.0
    %4866 = vmatpush2.msra.mxu0 0.0
    %4867 = vmatprep.subr.mxu0 0.0
    %4868 = vmatpush2.msra.mxu0 0.0
    %4869 = vmatprep.subr.mxu0 0.0
    %4870 = vmatpush2.msra.mxu0 0.0
    %4871 = vmatprep.mubr.f32.mxu0 0.0
    %4872 = vmatmul.mubr.f32.gmra.mxu0 %v4802
    %v4873 = vpop.f32.mrf.mxu0
    %v4874 = vadd.f32 0.0, %v4873
    %v4875 = vpop.f32.mrf.mxu0
    %4876 = vmatprep.mubr.f32.mxu0 0.0
    %4877 = vmatmul.mubr.f32.gmra.mxu0 %v4805
    %v4878 = vpop.f32.mrf.mxu0
    %v4879 = vadd.f32 0.0, %v4878
    %v4880 = vpop.f32.mrf.mxu0
    %4881 = vdwg.mxu0
    %v4882 = vadd.f32 %v4791, %v4874
    %v4883 = vadd.f32 %v4792, %v4879
    %v4884 = vld [vmem:[%s10 + $0x140] sm:$0xff]
    %v4885 = vld [vmem:[%s10 + $0x148] sm:$0xff]
    %v4886 = vld [vmem:[%s10 + $0x150] sm:$0xff]
    %v4887 = vld [vmem:[%s10 + $0x158] sm:$0xff]
    %v4888 = vld [vmem:[%s10 + $0x160] sm:$0xff]
    %v4889 = vld [vmem:[%s10 + $0x168] sm:$0xff]
    %v4890 = vld [vmem:[%s10 + $0x170] sm:$0xff]
    %v4891 = vld [vmem:[%s10 + $0x178] sm:$0xff]
    %v4893 = vsel %vm548, %v4405, 0
    %v4896 = vsel %vm548, %v4410, 0
    %4898 = vmatprep.subr.mxu0 0.0
    %4899 = vmatpush1.msra.mxu0 0.0
    %4900 = vmatprep.subr.mxu0 0.0
    %4901 = vmatpush1.msra.mxu0 0.0
    %4902 = vmatprep.subr.mxu0 0.0
    %4903 = vmatpush1.msra.mxu0 0.0
    %4904 = vmatprep.subr.mxu0 0.0
    %4905 = vmatpush1.msra.mxu0 0.0
    %4906 = vmatprep.subr.mxu0 0.0
    %4907 = vmatpush1.msra.mxu0 0.0
    %4908 = vmatprep.subr.mxu0 0.0
    %4909 = vmatpush1.msra.mxu0 0.0
    %4910 = vmatprep.subr.mxu0 0.0
    %4911 = vmatpush1.msra.mxu0 0.0
    %4912 = vmatprep.subr.mxu0 0.0
    %4913 = vmatpush1.msra.mxu0 0.0
    %4914 = vmatprep.subr.mxu0 0.0
    %4915 = vmatpush1.msra.mxu0 %v4891
    %4916 = vmatprep.subr.mxu0 0.0
    %4917 = vmatpush1.msra.mxu0 %v4890
    %4918 = vmatprep.subr.mxu0 0.0
    %4919 = vmatpush1.msra.mxu0 %v4889
    %4920 = vmatprep.subr.mxu0 0.0
    %4921 = vmatpush1.msra.mxu0 %v4888
    %4922 = vmatprep.subr.mxu0 0.0
    %4923 = vmatpush1.msra.mxu0 %v4887
    %4924 = vmatprep.subr.mxu0 0.0
    %4925 = vmatpush1.msra.mxu0 %v4886
    %4926 = vmatprep.subr.mxu0 0.0
    %4927 = vmatpush1.msra.mxu0 %v4885
    %4928 = vmatprep.subr.mxu0 0.0
    %4929 = vmatpush1.msra.mxu0 %v4884
    %4930 = vmatprep.subr.mxu0 0.0
    %4931 = vmatpush2.msra.mxu0 0.0
    %4932 = vmatprep.subr.mxu0 0.0
    %4933 = vmatpush2.msra.mxu0 0.0
    %4934 = vmatprep.subr.mxu0 0.0
    %4935 = vmatpush2.msra.mxu0 0.0
    %4936 = vmatprep.subr.mxu0 0.0
    %4937 = vmatpush2.msra.mxu0 0.0
    %4938 = vmatprep.subr.mxu0 0.0
    %4939 = vmatpush2.msra.mxu0 0.0
    %4940 = vmatprep.subr.mxu0 0.0
    %4941 = vmatpush2.msra.mxu0 0.0
    %4942 = vmatprep.subr.mxu0 0.0
    %4943 = vmatpush2.msra.mxu0 0.0
    %4944 = vmatprep.subr.mxu0 0.0
    %4945 = vmatpush2.msra.mxu0 0.0
    %4946 = vmatprep.subr.mxu0 0.0
    %4947 = vmatpush2.msra.mxu0 0.0
    %4948 = vmatprep.subr.mxu0 0.0
    %4949 = vmatpush2.msra.mxu0 0.0
    %4950 = vmatprep.subr.mxu0 0.0
    %4951 = vmatpush2.msra.mxu0 0.0
    %4952 = vmatprep.subr.mxu0 0.0
    %4953 = vmatpush2.msra.mxu0 0.0
    %4954 = vmatprep.subr.mxu0 0.0
    %4955 = vmatpush2.msra.mxu0 0.0
    %4956 = vmatprep.subr.mxu0 0.0
    %4957 = vmatpush2.msra.mxu0 0.0
    %4958 = vmatprep.subr.mxu0 0.0
    %4959 = vmatpush2.msra.mxu0 0.0
    %4960 = vmatprep.subr.mxu0 0.0
    %4961 = vmatpush2.msra.mxu0 0.0
    %4962 = vmatprep.mubr.f32.mxu0 0.0
    %4963 = vmatmul.mubr.f32.gmra.mxu0 %v4893
    %v4964 = vpop.f32.mrf.mxu0
    %v4965 = vadd.f32 0.0, %v4964
    %v4966 = vpop.f32.mrf.mxu0
    %4967 = vmatprep.mubr.f32.mxu0 0.0
    %4968 = vmatmul.mubr.f32.gmra.mxu0 %v4896
    %v4969 = vpop.f32.mrf.mxu0
    %v4970 = vadd.f32 0.0, %v4969
    %v4971 = vpop.f32.mrf.mxu0
    %4972 = vdwg.mxu0
    %v4973 = vadd.f32 %v4882, %v4965
    %v4974 = vadd.f32 %v4883, %v4970
    %v4975 = vld [vmem:[%s10 + $0x180] sm:$0xff]
    %v4976 = vld [vmem:[%s10 + $0x188] sm:$0xff]
    %v4977 = vld [vmem:[%s10 + $0x190] sm:$0xff]
    %v4978 = vld [vmem:[%s10 + $0x198] sm:$0xff]
    %v4979 = vld [vmem:[%s10 + $0x1a0] sm:$0xff]
    %v4980 = vld [vmem:[%s10 + $0x1a8] sm:$0xff]
    %v4981 = vld [vmem:[%s10 + $0x1b0] sm:$0xff]
    %v4982 = vld [vmem:[%s10 + $0x1b8] sm:$0xff]
    %v4984 = vsel %vm548, %v4415, 0
    %v4987 = vsel %vm548, %v4420, 0
    %4989 = vmatprep.subr.mxu0 0.0
    %4990 = vmatpush1.msra.mxu0 0.0
    %4991 = vmatprep.subr.mxu0 0.0
    %4992 = vmatpush1.msra.mxu0 0.0
    %4993 = vmatprep.subr.mxu0 0.0
    %4994 = vmatpush1.msra.mxu0 0.0
    %4995 = vmatprep.subr.mxu0 0.0
    %4996 = vmatpush1.msra.mxu0 0.0
    %4997 = vmatprep.subr.mxu0 0.0
    %4998 = vmatpush1.msra.mxu0 0.0
    %4999 = vmatprep.subr.mxu0 0.0
    %5000 = vmatpush1.msra.mxu0 0.0
    %5001 = vmatprep.subr.mxu0 0.0
    %5002 = vmatpush1.msra.mxu0 0.0
    %5003 = vmatprep.subr.mxu0 0.0
    %5004 = vmatpush1.msra.mxu0 0.0
    %5005 = vmatprep.subr.mxu0 0.0
    %5006 = vmatpush1.msra.mxu0 %v4982
    %5007 = vmatprep.subr.mxu0 0.0
    %5008 = vmatpush1.msra.mxu0 %v4981
    %5009 = vmatprep.subr.mxu0 0.0
    %5010 = vmatpush1.msra.mxu0 %v4980
    %5011 = vmatprep.subr.mxu0 0.0
    %5012 = vmatpush1.msra.mxu0 %v4979
    %5013 = vmatprep.subr.mxu0 0.0
    %5014 = vmatpush1.msra.mxu0 %v4978
    %5015 = vmatprep.subr.mxu0 0.0
    %5016 = vmatpush1.msra.mxu0 %v4977
    %5017 = vmatprep.subr.mxu0 0.0
    %5018 = vmatpush1.msra.mxu0 %v4976
    %5019 = vmatprep.subr.mxu0 0.0
    %5020 = vmatpush1.msra.mxu0 %v4975
    %5021 = vmatprep.subr.mxu0 0.0
    %5022 = vmatpush2.msra.mxu0 0.0
    %5023 = vmatprep.subr.mxu0 0.0
    %5024 = vmatpush2.msra.mxu0 0.0
    %5025 = vmatprep.subr.mxu0 0.0
    %5026 = vmatpush2.msra.mxu0 0.0
    %5027 = vmatprep.subr.mxu0 0.0
    %5028 = vmatpush2.msra.mxu0 0.0
    %5029 = vmatprep.subr.mxu0 0.0
    %5030 = vmatpush2.msra.mxu0 0.0
    %5031 = vmatprep.subr.mxu0 0.0
    %5032 = vmatpush2.msra.mxu0 0.0
    %5033 = vmatprep.subr.mxu0 0.0
    %5034 = vmatpush2.msra.mxu0 0.0
    %5035 = vmatprep.subr.mxu0 0.0
    %5036 = vmatpush2.msra.mxu0 0.0
    %5037 = vmatprep.subr.mxu0 0.0
    %5038 = vmatpush2.msra.mxu0 0.0
    %5039 = vmatprep.subr.mxu0 0.0
    %5040 = vmatpush2.msra.mxu0 0.0
    %5041 = vmatprep.subr.mxu0 0.0
    %5042 = vmatpush2.msra.mxu0 0.0
    %5043 = vmatprep.subr.mxu0 0.0
    %5044 = vmatpush2.msra.mxu0 0.0
    %5045 = vmatprep.subr.mxu0 0.0
    %5046 = vmatpush2.msra.mxu0 0.0
    %5047 = vmatprep.subr.mxu0 0.0
    %5048 = vmatpush2.msra.mxu0 0.0
    %5049 = vmatprep.subr.mxu0 0.0
    %5050 = vmatpush2.msra.mxu0 0.0
    %5051 = vmatprep.subr.mxu0 0.0
    %5052 = vmatpush2.msra.mxu0 0.0
    %5053 = vmatprep.mubr.f32.mxu0 0.0
    %5054 = vmatmul.mubr.f32.gmra.mxu0 %v4984
    %v5055 = vpop.f32.mrf.mxu0
    %v5056 = vadd.f32 0.0, %v5055
    %v5057 = vpop.f32.mrf.mxu0
    %5058 = vmatprep.mubr.f32.mxu0 0.0
    %5059 = vmatmul.mubr.f32.gmra.mxu0 %v4987
    %v5060 = vpop.f32.mrf.mxu0
    %v5061 = vadd.f32 0.0, %v5060
    %v5062 = vpop.f32.mrf.mxu0
    %5063 = vdwg.mxu0
    %v5064 = vadd.f32 %v4973, %v5056
    %v5065 = vadd.f32 %v4974, %v5061
    %v5066 = vld [vmem:[%s10 + $0x1c0] sm:$0xff]
    %v5067 = vld [vmem:[%s10 + $0x1c8] sm:$0xff]
    %v5068 = vld [vmem:[%s10 + $0x1d0] sm:$0xff]
    %v5069 = vld [vmem:[%s10 + $0x1d8] sm:$0xff]
    %v5070 = vld [vmem:[%s10 + $0x1e0] sm:$0xff]
    %v5071 = vld [vmem:[%s10 + $0x1e8] sm:$0xff]
    %v5072 = vld [vmem:[%s10 + $0x1f0] sm:$0xff]
    %v5073 = vld [vmem:[%s10 + $0x1f8] sm:$0xff]
    %v5075 = vsel %vm548, %v4425, 0
    %v5078 = vsel %vm548, %v4430, 0
    %5080 = vmatprep.subr.mxu0 0.0
    %5081 = vmatpush1.msra.mxu0 0.0
    %5082 = vmatprep.subr.mxu0 0.0
    %5083 = vmatpush1.msra.mxu0 0.0
    %5084 = vmatprep.subr.mxu0 0.0
    %5085 = vmatpush1.msra.mxu0 0.0
    %5086 = vmatprep.subr.mxu0 0.0
    %5087 = vmatpush1.msra.mxu0 0.0
    %5088 = vmatprep.subr.mxu0 0.0
    %5089 = vmatpush1.msra.mxu0 0.0
    %5090 = vmatprep.subr.mxu0 0.0
    %5091 = vmatpush1.msra.mxu0 0.0
    %5092 = vmatprep.subr.mxu0 0.0
    %5093 = vmatpush1.msra.mxu0 0.0
    %5094 = vmatprep.subr.mxu0 0.0
    %5095 = vmatpush1.msra.mxu0 0.0
    %5096 = vmatprep.subr.mxu0 0.0
    %5097 = vmatpush1.msra.mxu0 %v5073
    %5098 = vmatprep.subr.mxu0 0.0
    %5099 = vmatpush1.msra.mxu0 %v5072
    %5100 = vmatprep.subr.mxu0 0.0
    %5101 = vmatpush1.msra.mxu0 %v5071
    %5102 = vmatprep.subr.mxu0 0.0
    %5103 = vmatpush1.msra.mxu0 %v5070
    %5104 = vmatprep.subr.mxu0 0.0
    %5105 = vmatpush1.msra.mxu0 %v5069
    %5106 = vmatprep.subr.mxu0 0.0
    %5107 = vmatpush1.msra.mxu0 %v5068
    %5108 = vmatprep.subr.mxu0 0.0
    %5109 = vmatpush1.msra.mxu0 %v5067
    %5110 = vmatprep.subr.mxu0 0.0
    %5111 = vmatpush1.msra.mxu0 %v5066
    %5112 = vmatprep.subr.mxu0 0.0
    %5113 = vmatpush2.msra.mxu0 0.0
    %5114 = vmatprep.subr.mxu0 0.0
    %5115 = vmatpush2.msra.mxu0 0.0
    %5116 = vmatprep.subr.mxu0 0.0
    %5117 = vmatpush2.msra.mxu0 0.0
    %5118 = vmatprep.subr.mxu0 0.0
    %5119 = vmatpush2.msra.mxu0 0.0
    %5120 = vmatprep.subr.mxu0 0.0
    %5121 = vmatpush2.msra.mxu0 0.0
    %5122 = vmatprep.subr.mxu0 0.0
    %5123 = vmatpush2.msra.mxu0 0.0
    %5124 = vmatprep.subr.mxu0 0.0
    %5125 = vmatpush2.msra.mxu0 0.0
    %5126 = vmatprep.subr.mxu0 0.0
    %5127 = vmatpush2.msra.mxu0 0.0
    %5128 = vmatprep.subr.mxu0 0.0
    %5129 = vmatpush2.msra.mxu0 0.0
    %5130 = vmatprep.subr.mxu0 0.0
    %5131 = vmatpush2.msra.mxu0 0.0
    %5132 = vmatprep.subr.mxu0 0.0
    %5133 = vmatpush2.msra.mxu0 0.0
    %5134 = vmatprep.subr.mxu0 0.0
    %5135 = vmatpush2.msra.mxu0 0.0
    %5136 = vmatprep.subr.mxu0 0.0
    %5137 = vmatpush2.msra.mxu0 0.0
    %5138 = vmatprep.subr.mxu0 0.0
    %5139 = vmatpush2.msra.mxu0 0.0
    %5140 = vmatprep.subr.mxu0 0.0
    %5141 = vmatpush2.msra.mxu0 0.0
    %5142 = vmatprep.subr.mxu0 0.0
    %5143 = vmatpush2.msra.mxu0 0.0
    %5144 = vmatprep.mubr.f32.mxu0 0.0
    %5145 = vmatmul.mubr.f32.gmra.mxu0 %v5075
    %v5146 = vpop.f32.mrf.mxu0
    %v5147 = vadd.f32 0.0, %v5146
    %v5148 = vpop.f32.mrf.mxu0
    %5149 = vmatprep.mubr.f32.mxu0 0.0
    %5150 = vmatmul.mubr.f32.gmra.mxu0 %v5078
    %v5151 = vpop.f32.mrf.mxu0
    %v5152 = vadd.f32 0.0, %v5151
    %v5153 = vpop.f32.mrf.mxu0
    %5154 = vdwg.mxu0
    %v5155 = vadd.f32 %v5064, %v5147
    %v5156 = vadd.f32 %v5065, %v5152
    %v5157 = vld [vmem:[%s5 + $0x6] ss:$0 sm:$0xff]
    %v5158 = vadd.f32 %v5155, %v5157
    %v5159 = vadd.f32 %v5156, %v5157
    %v5160 = vld [vmem:[%s5 + $0x10] ss:$0 sm:$0xff]
    %v5161 = vld [vmem:[%s5 + $0x11] ss:$0 sm:$0xff]
    %v5162 = vmul.f32 %v5158, %v5160
    %v5163 = vmul.f32 %v5159, %v5160
    %5164 = vmatprep.subr.mxu0 0.0
    %5165 = vmatpush1.msra.mxu0 1.0
    %5166 = vmatprep.subr.mxu0 0.0
    %5167 = vmatpush1.msra.mxu0 1.0
    %5168 = vmatprep.subr.mxu0 0.0
    %5169 = vmatpush1.msra.mxu0 1.0
    %5170 = vmatprep.subr.mxu0 0.0
    %5171 = vmatpush1.msra.mxu0 1.0
    %5172 = vmatprep.subr.mxu0 0.0
    %5173 = vmatpush1.msra.mxu0 1.0
    %5174 = vmatprep.subr.mxu0 0.0
    %5175 = vmatpush1.msra.mxu0 1.0
    %5176 = vmatprep.subr.mxu0 0.0
    %5177 = vmatpush1.msra.mxu0 1.0
    %5178 = vmatprep.subr.mxu0 0.0
    %5179 = vmatpush1.msra.mxu0 1.0
    %5180 = vmatprep.subr.mxu0 0.0
    %5181 = vmatpush1.msra.mxu0 1.0
    %5182 = vmatprep.subr.mxu0 0.0
    %5183 = vmatpush1.msra.mxu0 1.0
    %5184 = vmatprep.subr.mxu0 0.0
    %5185 = vmatpush1.msra.mxu0 1.0
    %5186 = vmatprep.subr.mxu0 0.0
    %5187 = vmatpush1.msra.mxu0 1.0
    %5188 = vmatprep.subr.mxu0 0.0
    %5189 = vmatpush1.msra.mxu0 1.0
    %5190 = vmatprep.subr.mxu0 0.0
    %5191 = vmatpush1.msra.mxu0 1.0
    %5192 = vmatprep.subr.mxu0 0.0
    %5193 = vmatpush1.msra.mxu0 1.0
    %5194 = vmatprep.subr.mxu0 0.0
    %5195 = vmatpush1.msra.mxu0 1.0
    %5196 = vmatprep.subr.mxu0 0.0
    %5197 = vmatpush2.msra.mxu0 0.0
    %5198 = vmatprep.subr.mxu0 0.0
    %5199 = vmatpush2.msra.mxu0 0.0
    %5200 = vmatprep.subr.mxu0 0.0
    %5201 = vmatpush2.msra.mxu0 0.0
    %5202 = vmatprep.subr.mxu0 0.0
    %5203 = vmatpush2.msra.mxu0 0.0
    %5204 = vmatprep.subr.mxu0 0.0
    %5205 = vmatpush2.msra.mxu0 0.0
    %5206 = vmatprep.subr.mxu0 0.0
    %5207 = vmatpush2.msra.mxu0 0.0
    %5208 = vmatprep.subr.mxu0 0.0
    %5209 = vmatpush2.msra.mxu0 0.0
    %5210 = vmatprep.subr.mxu0 0.0
    %5211 = vmatpush2.msra.mxu0 0.0
    %5212 = vmatprep.subr.mxu0 0.0
    %5213 = vmatpush2.msra.mxu0 0.0
    %5214 = vmatprep.subr.mxu0 0.0
    %5215 = vmatpush2.msra.mxu0 0.0
    %5216 = vmatprep.subr.mxu0 0.0
    %5217 = vmatpush2.msra.mxu0 0.0
    %5218 = vmatprep.subr.mxu0 0.0
    %5219 = vmatpush2.msra.mxu0 0.0
    %5220 = vmatprep.subr.mxu0 0.0
    %5221 = vmatpush2.msra.mxu0 0.0
    %5222 = vmatprep.subr.mxu0 0.0
    %5223 = vmatpush2.msra.mxu0 0.0
    %5224 = vmatprep.subr.mxu0 0.0
    %5225 = vmatpush2.msra.mxu0 0.0
    %5226 = vmatprep.subr.mxu0 0.0
    %5227 = vmatpush2.msra.mxu0 0.0
    %5228 = vmatprep.mubr.f32.mxu0 0.0
    %5229 = vmatmul.mubr.f32.gmra.mxu0 %v5162
    %v5230 = vpop.f32.mrf.mxu0
    %v5231 = vadd.f32 0.0, %v5230
    %v5232 = vpop.f32.mrf.mxu0
    %5233 = vmatprep.mubr.f32.mxu0 0.0
    %5234 = vmatmul.mubr.f32.gmra.mxu0 %v5163
    %v5235 = vpop.f32.mrf.mxu0
    %v5236 = vadd.f32 0.0, %v5235
    %v5237 = vpop.f32.mrf.mxu0
    %5238 = vdwg.mxu0
    %v5239 = vmul.f32 %v5158, %v5161
    %v5240 = vmul.f32 %v5159, %v5161
    %5241 = vmatprep.subr.mxu0 0.0
    %5242 = vmatpush1.xpose.msra.mxu0 0.0
    %5243 = vmatprep.subr.mxu0 0.0
    %5244 = vmatpush1.xpose.msra.mxu0 0.0
    %5245 = vmatprep.subr.mxu0 0.0
    %5246 = vmatpush1.xpose.msra.mxu0 0.0
    %5247 = vmatprep.subr.mxu0 0.0
    %5248 = vmatpush1.xpose.msra.mxu0 0.0
    %5249 = vmatprep.subr.mxu0 0.0
    %5250 = vmatpush1.xpose.msra.mxu0 0.0
    %5251 = vmatprep.subr.mxu0 0.0
    %5252 = vmatpush1.xpose.msra.mxu0 0.0
    %5253 = vmatprep.subr.mxu0 0.0
    %5254 = vmatpush1.xpose.msra.mxu0 0.0
    %5255 = vmatprep.subr.mxu0 0.0
    %5256 = vmatpush1.xpose.msra.mxu0 0.0
    %5257 = vmatprep.subr.mxu0 0.0
    %5258 = vmatpush1.xpose.msra.mxu0 0.0
    %5259 = vmatprep.subr.mxu0 0.0
    %5260 = vmatpush1.xpose.msra.mxu0 0.0
    %5261 = vmatprep.subr.mxu0 0.0
    %5262 = vmatpush1.xpose.msra.mxu0 0.0
    %5263 = vmatprep.subr.mxu0 0.0
    %5264 = vmatpush1.xpose.msra.mxu0 0.0
    %5265 = vmatprep.subr.mxu0 0.0
    %5266 = vmatpush1.xpose.msra.mxu0 0.0
    %5267 = vmatprep.subr.mxu0 0.0
    %5268 = vmatpush1.xpose.msra.mxu0 0.0
    %5269 = vmatprep.subr.mxu0 0.0
    %5270 = vmatpush1.xpose.msra.mxu0 %v5240
    %5271 = vmatprep.subr.mxu0 0.0
    %5272 = vmatpush1.xpose.msra.mxu0 %v5239
    %5273 = vmatprep.subr.mxu0 0.0
    %5274 = vmatpush2.xpose.msra.mxu0 0.0
    %5275 = vmatprep.subr.mxu0 0.0
    %5276 = vmatpush2.xpose.msra.mxu0 0.0
    %5277 = vmatprep.subr.mxu0 0.0
    %5278 = vmatpush2.xpose.msra.mxu0 0.0
    %5279 = vmatprep.subr.mxu0 0.0
    %5280 = vmatpush2.xpose.msra.mxu0 0.0
    %5281 = vmatprep.subr.mxu0 0.0
    %5282 = vmatpush2.xpose.msra.mxu0 0.0
    %5283 = vmatprep.subr.mxu0 0.0
    %5284 = vmatpush2.xpose.msra.mxu0 0.0
    %5285 = vmatprep.subr.mxu0 0.0
    %5286 = vmatpush2.xpose.msra.mxu0 0.0
    %5287 = vmatprep.subr.mxu0 0.0
    %5288 = vmatpush2.xpose.msra.mxu0 0.0
    %5289 = vmatprep.subr.mxu0 0.0
    %5290 = vmatpush2.xpose.msra.mxu0 0.0
    %5291 = vmatprep.subr.mxu0 0.0
    %5292 = vmatpush2.xpose.msra.mxu0 0.0
    %5293 = vmatprep.subr.mxu0 0.0
    %5294 = vmatpush2.xpose.msra.mxu0 0.0
    %5295 = vmatprep.subr.mxu0 0.0
    %5296 = vmatpush2.xpose.msra.mxu0 0.0
    %5297 = vmatprep.subr.mxu0 0.0
    %5298 = vmatpush2.xpose.msra.mxu0 0.0
    %5299 = vmatprep.subr.mxu0 0.0
    %5300 = vmatpush2.xpose.msra.mxu0 0.0
    %5301 = vmatprep.subr.mxu0 0.0
    %5302 = vmatpush2.xpose.msra.mxu0 0.0
    %5303 = vmatprep.subr.mxu0 0.0
    %5304 = vmatpush2.xpose.msra.mxu0 0.0
    %5305 = vmatprep.mubr.f32.mxu0 0.0
    %5306 = vmatmul.mubr.f32.gmra.mxu0 1.0
    %v5307 = vpop.f32.mrf.mxu0
    %v5308 = vadd.f32 0.0, %v5307
    %v5309 = vpop.f32.mrf.mxu0
    %5310 = vdwg.mxu0
    %5312 = vset.pattern.permute.xlu0 0
    %5313 = vperm.xlu0 %5312, %v5231
    %v5314 = vpop.permute.xlu0 %5313
    %5317 = vset.pattern.permute.xlu0 0
    %5318 = vperm.xlu0 %5317, %v5236
    %v5319 = vpop.permute.xlu0 %5318
    %v5321 = vlaneseq
    %v5322 = vshrl.u32 %v5321, 7
    %v5323 = vsub.s32 0, %v5322
    %v5324 = vrot.slane %v5308, %v5323
    %v5325 = vadd.f32 %v5314, %v5324
    %v5326 = vadd.f32 %v5319, %v5324
    %v5327 = vld [vmem:[%s4] sm:$0xff]
    %v5328 = vld [vmem:[%s4 + $0x8] sm:$0xff]
    %vm5329 = vcmp.gt.f32.partialorder %v5325, 0.0
    %vm5330 = vcmp.gt.f32.partialorder %v5326, 0.0
    %v5331 = vmul.f32 %v5325, 0.2
    %v5332 = vmul.f32 %v5326, 0.2
    %v5333 = vsel %vm5329, %v5325, %v5331
    %v5334 = vsel %vm5330, %v5326, %v5332
    %v5335 = vadd.f32 %v5333, %v5327
    %v5336 = vadd.f32 %v5334, %v5328
    %v5337 = vsel %vm75, %v5335, -inf
    %5338 = vmax.xlane.f32.xlu0 %v5337
    %v5339 = vpop.xlane.xlu0 %5338
    %v5340 = vsel %vm75, %v5336, -inf
    %5341 = vmax.xlane.f32.xlu0 %v5340
    %v5342 = vpop.xlane.xlu0 %5341
    %v5343 = vsub.f32 %v5335, %v5339
    %v5344 = vsub.f32 %v5336, %v5342
    %v5345 = vmul.f32 %v5343, 1.442695
    %v5346 = vpow.pop %v5345
    %v5347 = vmul.f32 %v5344, 1.442695
    %v5348 = vpow.pop %v5347
    %v5349 = vsel %vm75, %v5346, 0.0
    %5350 = vadd.xlane.f32.xlu0 %v5349
    %v5351 = vpop.xlane.xlu0 %5350
    %v5352 = vsel %vm75, %v5348, 0.0
    %5353 = vadd.xlane.f32.xlu0 %v5352
    %v5354 = vpop.xlane.xlu0 %5353
    %v5355 = vrcp.pop %v5351
    %v5356 = vrcp.pop %v5354
    %v5357 = vmul.f32 %v5346, %v5355
    %v5358 = vmul.f32 %v5348, %v5356
    %v5359 = vld [vmem:[%s5 + $0x7] ss:$0 sm:$0xff]
    %v5361 = vsel %vm75, %v5357, 0
    %v5364 = vsel %vm75, %v5358, 0
    %5366 = vmatprep.subr.mxu0 0.0
    %5367 = vmatpush1.msra.mxu0 0.0
    %5368 = vmatprep.subr.mxu0 0.0
    %5369 = vmatpush1.msra.mxu0 0.0
    %5370 = vmatprep.subr.mxu0 0.0
    %5371 = vmatpush1.msra.mxu0 0.0
    %5372 = vmatprep.subr.mxu0 0.0
    %5373 = vmatpush1.msra.mxu0 0.0
    %5374 = vmatprep.subr.mxu0 0.0
    %5375 = vmatpush1.msra.mxu0 0.0
    %5376 = vmatprep.subr.mxu0 0.0
    %5377 = vmatpush1.msra.mxu0 0.0
    %5378 = vmatprep.subr.mxu0 0.0
    %5379 = vmatpush1.msra.mxu0 0.0
    %5380 = vmatprep.subr.mxu0 0.0
    %5381 = vmatpush1.msra.mxu0 0.0
    %5382 = vmatprep.subr.mxu0 0.0
    %5383 = vmatpush1.msra.mxu0 0.0
    %5384 = vmatprep.subr.mxu0 0.0
    %5385 = vmatpush1.msra.mxu0 0.0
    %5386 = vmatprep.subr.mxu0 0.0
    %5387 = vmatpush1.msra.mxu0 0.0
    %5388 = vmatprep.subr.mxu0 0.0
    %5389 = vmatpush1.msra.mxu0 0.0
    %5390 = vmatprep.subr.mxu0 0.0
    %5391 = vmatpush1.msra.mxu0 0.0
    %5392 = vmatprep.subr.mxu0 0.0
    %5393 = vmatpush1.msra.mxu0 0.0
    %5394 = vmatprep.subr.mxu0 0.0
    %5395 = vmatpush1.msra.mxu0 %v5159
    %5396 = vmatprep.subr.mxu0 0.0
    %5397 = vmatpush1.msra.mxu0 %v5158
    %5398 = vmatprep.subr.mxu0 0.0
    %5399 = vmatpush2.msra.mxu0 0.0
    %5400 = vmatprep.subr.mxu0 0.0
    %5401 = vmatpush2.msra.mxu0 0.0
    %5402 = vmatprep.subr.mxu0 0.0
    %5403 = vmatpush2.msra.mxu0 0.0
    %5404 = vmatprep.subr.mxu0 0.0
    %5405 = vmatpush2.msra.mxu0 0.0
    %5406 = vmatprep.subr.mxu0 0.0
    %5407 = vmatpush2.msra.mxu0 0.0
    %5408 = vmatprep.subr.mxu0 0.0
    %5409 = vmatpush2.msra.mxu0 0.0
    %5410 = vmatprep.subr.mxu0 0.0
    %5411 = vmatpush2.msra.mxu0 0.0
    %5412 = vmatprep.subr.mxu0 0.0
    %5413 = vmatpush2.msra.mxu0 0.0
    %5414 = vmatprep.subr.mxu0 0.0
    %5415 = vmatpush2.msra.mxu0 0.0
    %5416 = vmatprep.subr.mxu0 0.0
    %5417 = vmatpush2.msra.mxu0 0.0
    %5418 = vmatprep.subr.mxu0 0.0
    %5419 = vmatpush2.msra.mxu0 0.0
    %5420 = vmatprep.subr.mxu0 0.0
    %5421 = vmatpush2.msra.mxu0 0.0
    %5422 = vmatprep.subr.mxu0 0.0
    %5423 = vmatpush2.msra.mxu0 0.0
    %5424 = vmatprep.subr.mxu0 0.0
    %5425 = vmatpush2.msra.mxu0 0.0
    %5426 = vmatprep.subr.mxu0 0.0
    %5427 = vmatpush2.msra.mxu0 0.0
    %5428 = vmatprep.subr.mxu0 0.0
    %5429 = vmatpush2.msra.mxu0 0.0
    %5430 = vmatprep.mubr.f32.mxu0 0.0
    %5431 = vmatmul.mubr.f32.gmra.mxu0 %v5361
    %v5432 = vpop.f32.mrf.mxu0
    %v5433 = vadd.f32 %v5359, %v5432
    %v5434 = vpop.f32.mrf.mxu0
    %5435 = vmatprep.mubr.f32.mxu0 0.0
    %5436 = vmatmul.mubr.f32.gmra.mxu0 %v5364
    %v5437 = vpop.f32.mrf.mxu0
    %v5438 = vadd.f32 %v5359, %v5437
    %v5439 = vpop.f32.mrf.mxu0
    %5440 = vdwg.mxu0
    %5441 = vst [vmem:[#allocation10] sm:$0xff] %v5433
    %5442 = vst [vmem:[#allocation10 + $0x8] sm:$0xff] %v5438
    // Predicated region
    $region54: #{tpu_custom_call.1} parent=1 // pred_check
      _
    $region55: #{tpu_custom_call.1} parent=1 // pred_check_branch
      %5444 = sbr.rel (0) target = $region57
    $region56: #{tpu_custom_call.1} parent=1 // pred_region
      %s5446 = ssub.s32 256, 256
      %5447 = vsyncadd [#allocation7], %s5446
      %s5448 = sshll.u32 [#allocation10], 4
      %s5449 = int_to_ptr.vmem [resolvable:$true] %s5448
      %5454 = dma.vmem_to_hbm [thread:$0]  %s5449, 256, %s11, [#allocation7], 128, 128, 8
    $region57: #{tpu_custom_call.1} parent=1 // pred_fallthru
      _
    // Predicated region
    $region58: #{tpu_custom_call.1} parent=1 // pred_check
      _
    $region59: #{tpu_custom_call.1} parent=1 // pred_check_branch
      %5456 = sbr.rel (0) target = $region61
    $region60: #{tpu_custom_call.1} parent=1 // pred_region
      %s5458 = ssub.s32 16, 16
      %5459 = vsyncadd [#allocation12], %s5458
      %s5461 = sshll.u32 [#allocation11], 4
      %s5462 = int_to_ptr.vmem [resolvable:$true] %s5461
      %5464 = dma.vmem_to_hbm [thread:$0]  %s5462, 16, %s12, [#allocation12]
    $region61: #{tpu_custom_call.1} parent=1 // pred_fallthru
      _
    // Predicated region
    $region62: #{tpu_custom_call.1} parent=1 // pred_check
      _
    $region63: #{tpu_custom_call.1} parent=1 // pred_check_branch
      %5466 = sbr.rel (0) target = $region65
    $region64: #{tpu_custom_call.1} parent=1 // pred_region
      %s5468 = ssub.s32 16, 16
      %5469 = vsyncadd [#allocation12], %s5468
      %s5471 = sshll.u32 [#allocation13], 4
      %s5472 = int_to_ptr.vmem [resolvable:$true] %s5471
      %5474 = dma.vmem_to_hbm [thread:$0]  %s5472, 16, %s13, [#allocation12]
    $region65: #{tpu_custom_call.1} parent=1 // pred_fallthru
      _
    // Predicated region
    $region66: #{tpu_custom_call.1} parent=1 // pred_check
      _
    $region67: #{tpu_custom_call.1} parent=1 // pred_check_branch
      %5476 = sbr.rel (0) target = $region69
    $region68: #{tpu_custom_call.1} parent=1 // pred_region
      %5477 = dma.done [#allocation7], 256
    $region69: #{tpu_custom_call.1} parent=1 // pred_fallthru
      _
    // Predicated region
    $region70: #{tpu_custom_call.1} parent=1 // pred_check
      _
    $region71: #{tpu_custom_call.1} parent=1 // pred_check_branch
      %5479 = sbr.rel (0) target = $region73
    $region72: #{tpu_custom_call.1} parent=1 // pred_region
      %5480 = dma.done [#allocation12], 16
    $region73: #{tpu_custom_call.1} parent=1 // pred_fallthru
      _
    // Predicated region
    $region74: #{tpu_custom_call.1} parent=1 // pred_check
      _
    $region75: #{tpu_custom_call.1} parent=1 // pred_check_branch
      %5482 = sbr.rel (0) target = $region77
    $region76: #{tpu_custom_call.1} parent=1 // pred_region
      %5483 = dma.done [#allocation12], 16
    $region77: #{tpu_custom_call.1} parent=1 // pred_fallthru
      _
    %5484 = vsyncpa [#allocation6], 1
    %5485 = vsyncpa [#allocation9], 1
    %5486 = vsyncpa [#allocation7], 1
    %5487 = vsyncpa [#allocation12], 1

</llo_original>
